<compile_context>
chip_gen: v6e
topology: v6e:2x2x1
jax: 0.10.0
libtpu: 0.0.40
codegen_flags: <defaults>
</compile_context>

<pallas_src>
import functools
import math

import jax
import jax.numpy as jnp
from jax.experimental import pallas as pl
from jax.experimental.pallas import tpu as pltpu


_N_STACK = 30  # number of per-layer stacked parameter tensors


# ----------------------------- fused forward kernel -----------------------------

def _fused_forward_kernel(*refs, B, T, D, H, K, L, scale):
    x_ref, mask_ref = refs[0], refs[1]
    stack = refs[2:2 + _N_STACK]
    attn_w_ref, attn_b_ref, pred_w_ref, pred_b_ref = refs[2 + _N_STACK:6 + _N_STACK]
    o_ref = refs[6 + _N_STACK]
    buf_ref = refs[7 + _N_STACK]      # (B*T, D) per-batch assembly scratch (VMEM)
    dw_ref = refs[8 + _N_STACK]       # (T+K-1, D) depthwise-conv halo scratch (VMEM)

    (ffn1_ln_g, ffn1_ln_b, ffn1_w1, ffn1_b1, ffn1_w2, ffn1_b2,
     mha_ln_g, mha_ln_b, mha_wqkv, mha_bqkv, mha_wo, mha_bo,
     conv_ln_g, conv_ln_b, conv_wa, conv_ba, conv_wb, conv_bb,
     conv_dw_w, conv_dw_b, conv_pw2_w, conv_pw2_b,
     ffn2_ln_g, ffn2_ln_b, ffn2_w1, ffn2_b1, ffn2_w2, ffn2_b2,
     fin_ln_g, fin_ln_b) = stack

    hd = D // H
    pad = (K - 1) // 2

    x2 = x_ref[...]                       # (B*T, D) f32, VMEM-resident for the whole model
    mask = mask_ref[...]                  # (B, T) additive key-padding mask

    # halo rows of the depthwise-conv scratch stay zero for the entire kernel
    dw_ref[...] = jnp.zeros_like(dw_ref)

    lane = jax.lax.broadcasted_iota(jnp.int32, (1, D), 1)

    def layer_norm(v, g, b):
        mean = jnp.mean(v, axis=-1, keepdims=True)
        c = v - mean
        var = jnp.mean(c * c, axis=-1, keepdims=True)
        return c * jax.lax.rsqrt(var + 1e-5) * g + b

    def ffn(v, g_r, b_r, w1_r, b1_r, w2_r, b2_r, l):
        h = layer_norm(v, g_r[l], b_r[l])
        h = jnp.dot(h, w1_r[l], preferred_element_type=jnp.float32) + b1_r[l]
        h = h * jax.nn.sigmoid(h)                                      # SiLU
        return jnp.dot(h, w2_r[l], preferred_element_type=jnp.float32) + b2_r[l]

    for l in range(L):                                                 # static unroll (L=2)
        # ---- FFN1 (half-step residual) ----
        x2 = x2 + 0.5 * ffn(x2, ffn1_ln_g, ffn1_ln_b, ffn1_w1, ffn1_b1, ffn1_w2, ffn1_b2, l)

        # ---- multi-head self-attention module (fused QKV, in-kernel heads) ----
        h = layer_norm(x2, mha_ln_g[l], mha_ln_b[l])
        qkv = jnp.dot(h, mha_wqkv[l], preferred_element_type=jnp.float32) + mha_bqkv[l]
        q, k, v = qkv[:, 0:D], qkv[:, D:2 * D], qkv[:, 2 * D:3 * D]
        wo, bo = mha_wo[l], mha_bo[l]
        for b in range(B):
            qb = q[b * T:(b + 1) * T, :]
            kb = k[b * T:(b + 1) * T, :]
            vb = v[b * T:(b + 1) * T, :]
            mb = mask[b:b + 1, :]                                      # (1, T)
            ctx = jnp.zeros((T, D), jnp.float32)
            for hh in range(H):
                # lane mask selects this head's hd lanes -> per-head contraction
                hm = jnp.logical_and(lane >= hh * hd, lane < (hh + 1) * hd)
                qh = jnp.where(hm, qb, 0.0)
                vh = jnp.where(hm, vb, 0.0)
                s = jax.lax.dot_general(qh, kb, (((1,), (1,)), ((), ())),
                                        preferred_element_type=jnp.float32) * scale
                s = s + mb
                s = s - jnp.max(s, axis=-1, keepdims=True)
                p = jnp.exp(s)
                p = p * pl.reciprocal(jnp.sum(p, axis=-1, keepdims=True), approx=True)
                ctx = ctx + jnp.dot(p, vh, preferred_element_type=jnp.float32)
            buf_ref[b * T:(b + 1) * T, :] = (
                jnp.dot(ctx, wo, preferred_element_type=jnp.float32) + bo)
        x2 = x2 + buf_ref[...]

        # ---- convolution module: pointwise -> GLU -> depthwise(+folded BN) -> SiLU -> pointwise ----
        h = layer_norm(x2, conv_ln_g[l], conv_ln_b[l])
        ga = jnp.dot(h, conv_wa[l], preferred_element_type=jnp.float32) + conv_ba[l]
        gb = jnp.dot(h, conv_wb[l], preferred_element_type=jnp.float32) + conv_bb[l]
        hg = ga * jax.nn.sigmoid(gb)                                   # GLU (two aligned dots)
        wd, bd = conv_dw_w[l], conv_dw_b[l]                            # BatchNorm already folded
        for b in range(B):
            dw_ref[pad:pad + T, :] = hg[b * T:(b + 1) * T, :]
            xp = dw_ref[...]                                           # (T+K-1, D), halo rows zero
            acc = jnp.zeros((T, D), jnp.float32)
            for kk in range(K):                                        # static taps
                acc = acc + xp[kk:kk + T, :] * wd[kk:kk + 1, :]
            acc = acc + bd
            buf_ref[b * T:(b + 1) * T, :] = acc * jax.nn.sigmoid(acc)  # SiLU
        hc = jnp.dot(buf_ref[...], conv_pw2_w[l],
                     preferred_element_type=jnp.float32) + conv_pw2_b[l]
        x2 = x2 + hc

        # ---- FFN2 (half-step residual) + final layer norm ----
        x2 = x2 + 0.5 * ffn(x2, ffn2_ln_g, ffn2_ln_b, ffn2_w1, ffn2_b1, ffn2_w2, ffn2_b2, l)
        x2 = layer_norm(x2, fin_ln_g[l], fin_ln_b[l])

    # ---- attention pooling (softmax over time, unmasked — matches reference) + classifier ----
    logits = jnp.dot(x2, attn_w_ref[...], preferred_element_type=jnp.float32) + attn_b_ref[...]
    pw, pb = pred_w_ref[...], pred_b_ref[...]
    for b in range(B):
        lb = logits[b * T:(b + 1) * T, :]                              # (T, 1)
        lb = lb - jnp.max(lb, axis=0, keepdims=True)
        w = jnp.exp(lb)
        w = w * pl.reciprocal(jnp.sum(w, axis=0, keepdims=True), approx=True)
        xb = x2[b * T:(b + 1) * T, :]
        pooled = jax.lax.dot_general(w, xb, (((0,), (0,)), ((), ())),
                                     preferred_element_type=jnp.float32)   # (1, D), MXU
        o_ref[b:b + 1, :] = jnp.dot(pooled, pw, preferred_element_type=jnp.float32) + pb


# ----------------------------- wrapper -----------------------------

def _full_spec(x):
    nd = x.ndim
    return pl.BlockSpec(x.shape, lambda i: (0,) * nd)


def conformer_attn_pool_no_prenet(mels, lens, packed, *, H, K, n_spks):
    B, T, D = mels.shape
    stack = tuple(packed["stack"])
    L = stack[0].shape[0]
    n_pad = packed["pred_w"].shape[1]                                  # lane-dense classifier width

    # additive key-padding mask: -1e9 where t >= lens[b]
    t_idx = jnp.arange(T)
    mask_add = jnp.where(t_idx[None, :] >= lens[:, None], -1e9, 0.0).astype(jnp.float32)

    x2d = mels.reshape(B * T, D).astype(jnp.float32)
    inputs = (x2d, mask_add) + stack + (packed["attn_w"], packed["attn_b"],
                                        packed["pred_w"], packed["pred_b"])

    out = pl.pallas_call(
        functools.partial(_fused_forward_kernel, B=B, T=T, D=D, H=H, K=K, L=L,
                          scale=1.0 / math.sqrt(D // H)),
        out_shape=jax.ShapeDtypeStruct((B, n_pad), jnp.float32),
        grid=(1,),   # whole model in one latency-bound step; tiny workload -> no core split
        in_specs=[_full_spec(a) for a in inputs],
        out_specs=pl.BlockSpec((B, n_pad), lambda i: (0, 0)),
        scratch_shapes=[pltpu.VMEM((B * T, D), jnp.float32),
                        pltpu.VMEM((T + K - 1, D), jnp.float32)],
        compiler_params=pltpu.CompilerParams(dimension_semantics=("arbitrary",)),
    )(*inputs)
    return out[:, :n_spks]


# ----------------------------- one-time parameter packing -----------------------------

def pack_params(raw, n_spks):
    """Fold BN, fuse QKV, split GLU, pad classifier to 640 lanes, stack over layers."""
    layers = raw["layers"]
    D = layers[0]["mha"]["wq"].shape[0]

    def stack(fn):
        return jnp.stack([jnp.asarray(fn(lp), jnp.float32) for lp in layers], axis=0)

    def vec(fn):
        return stack(lambda lp: fn(lp).reshape(1, -1))

    def _bn_scale(c):
        return c["bn_g"] * jax.lax.rsqrt(c["bn_rv"] + 1e-5)

    def fold_dw_w(lp):
        c = lp["conv"]
        return c["dw_w"] * _bn_scale(c)[None, :]

    def fold_dw_b(lp):
        c = lp["conv"]
        s = _bn_scale(c)
        return (c["dw_b"] * s + c["bn_b"] - c["bn_rm"] * s).reshape(1, -1)

    stacked = (
        vec(lambda lp: lp["ffn1"]["ln_g"]), vec(lambda lp: lp["ffn1"]["ln_b"]),
        stack(lambda lp: lp["ffn1"]["w1"]), vec(lambda lp: lp["ffn1"]["b1"]),
        stack(lambda lp: lp["ffn1"]["w2"]), vec(lambda lp: lp["ffn1"]["b2"]),
        vec(lambda lp: lp["mha"]["ln_g"]), vec(lambda lp: lp["mha"]["ln_b"]),
        stack(lambda lp: jnp.concatenate(
            [lp["mha"]["wq"], lp["mha"]["wk"], lp["mha"]["wv"]], axis=1)),
        stack(lambda lp: jnp.concatenate(
            [lp["mha"]["bq"], lp["mha"]["bk"], lp["mha"]["bv"]]).reshape(1, -1)),
        stack(lambda lp: lp["mha"]["wo"]), vec(lambda lp: lp["mha"]["bo"]),
        vec(lambda lp: lp["conv"]["ln_g"]), vec(lambda lp: lp["conv"]["ln_b"]),
        stack(lambda lp: lp["conv"]["pw1_w"][:, :D]),
        stack(lambda lp: lp["conv"]["pw1_b"][:D].reshape(1, -1)),
        stack(lambda lp: lp["conv"]["pw1_w"][:, D:]),
        stack(lambda lp: lp["conv"]["pw1_b"][D:].reshape(1, -1)),
        stack(fold_dw_w), stack(fold_dw_b),
        stack(lambda lp: lp["conv"]["pw2_w"]), vec(lambda lp: lp["conv"]["pw2_b"]),
        vec(lambda lp: lp["ffn2"]["ln_g"]), vec(lambda lp: lp["ffn2"]["ln_b"]),
        stack(lambda lp: lp["ffn2"]["w1"]), vec(lambda lp: lp["ffn2"]["b1"]),
        stack(lambda lp: lp["ffn2"]["w2"]), vec(lambda lp: lp["ffn2"]["b2"]),
        vec(lambda lp: lp["final_ln_g"]), vec(lambda lp: lp["final_ln_b"]),
    )
    assert len(stacked) == _N_STACK

    n_pad = pl.cdiv(n_spks, 128) * 128
    pred_w = jnp.pad(jnp.asarray(raw["pred_w"], jnp.float32),
                     ((0, 0), (0, n_pad - n_spks)))
    pred_b = jnp.pad(jnp.asarray(raw["pred_b"], jnp.float32).reshape(1, -1),
                     ((0, 0), (0, n_pad - n_spks)))
    return {
        "stack": stacked,
        "attn_w": jnp.asarray(raw["attn_w"], jnp.float32).reshape(1, -1).T,  # (D, 1)
        "attn_b": jnp.asarray(raw["attn_b"], jnp.float32).reshape(1, 1),
        "pred_w": pred_w,
        "pred_b": pred_b,
    }


# ----------------------------- deterministic raw parameter init -----------------------------

def init_raw_params(key, D, F, H, K, L, n_spks):
    keys = iter(jax.random.split(key, 512))

    def w(shape, scale=0.05):
        return jax.random.normal(next(keys), shape, jnp.float32) * scale

    def ffn():
        return {"ln_g": jnp.ones((D,), jnp.float32), "ln_b": jnp.zeros((D,), jnp.float32),
                "w1": w((D, F)), "b1": w((F,)),
                "w2": w((F, D)), "b2": w((D,))}

    layers = []
    for _ in range(L):
        layers.append({
            "ffn1": ffn(),
            "mha": {"ln_g": jnp.ones((D,), jnp.float32), "ln_b": jnp.zeros((D,), jnp.float32),
                    "wq": w((D, D)), "bq": w((D,)),
                    "wk": w((D, D)), "bk": w((D,)),
                    "wv": w((D, D)), "bv": w((D,)),
                    "wo": w((D, D)), "bo": w((D,))},
            "conv": {"ln_g": jnp.ones((D,), jnp.float32), "ln_b": jnp.zeros((D,), jnp.float32),
                     "pw1_w": w((D, 2 * D)), "pw1_b": w((2 * D,)),
                     "dw_w": w((K, D)), "dw_b": w((D,)),
                     "bn_g": jnp.ones((D,), jnp.float32), "bn_b": jnp.zeros((D,), jnp.float32),
                     "bn_rm": jnp.zeros((D,), jnp.float32), "bn_rv": jnp.ones((D,), jnp.float32),
                     "pw2_w": w((D, D)), "pw2_b": w((D,))},
            "ffn2": ffn(),
            "final_ln_g": jnp.ones((D,), jnp.float32),
            "final_ln_b": jnp.zeros((D,), jnp.float32),
        })
    return {
        "layers": layers,
        "attn_w": w((1, D)),          # nn.Linear(D, 1).weight
        "attn_b": w((1, 1)),
        "pred_w": w((D, n_spks)),     # nn.Linear(D, n_spks).weight^T
        "pred_b": w((1, n_spks)),
    }


# ----------------------------- main -----------------------------

if __name__ == "__main__":
    # args: din=32, nhead=4, dfc=64, nlayers=2, kernelsize=3, dropout=0 (eval); n_spks=600
    B, T, D = 2, 8, 32
    H, F, K, L = 4, 64, 3, 2
    n_spks = 600

    key = jax.random.PRNGKey(0)
    k_mels, k_params = jax.random.split(key)
    mels = jax.random.normal(k_mels, (B, T, D), jnp.float32)
    lens = jnp.array([T, T - 2], dtype=jnp.int32)

    raw = init_raw_params(k_params, D, F, H, K, L, n_spks)
    packed = pack_params(raw, n_spks)          # one-time preprocessing (BN fold, QKV fuse, ...)

    fwd = jax.jit(functools.partial(conformer_attn_pool_no_prenet, H=H, K=K, n_spks=n_spks))
    scores = jax.block_until_ready(fwd(mels, lens, packed))

    assert scores.shape == (B, n_spks)
    assert bool(jnp.all(jnp.isfinite(scores)))
    print("KERNEL_OK")
</pallas_src>

<mosaic_0001>
module attributes {stable_mosaic.version = 11 : i64} {
  func.func @_fused_forward_kernel(%arg0: i32, %arg1: memref<16x32xf32, #tpu.memory_space<vmem>>, %arg2: memref<2x8xf32, #tpu.memory_space<vmem>>, %arg3: memref<2x1x32xf32, #tpu.memory_space<vmem>>, %arg4: memref<2x1x32xf32, #tpu.memory_space<vmem>>, %arg5: memref<2x32x64xf32, #tpu.memory_space<vmem>>, %arg6: memref<2x1x64xf32, #tpu.memory_space<vmem>>, %arg7: memref<2x64x32xf32, #tpu.memory_space<vmem>>, %arg8: memref<2x1x32xf32, #tpu.memory_space<vmem>>, %arg9: memref<2x1x32xf32, #tpu.memory_space<vmem>>, %arg10: memref<2x1x32xf32, #tpu.memory_space<vmem>>, %arg11: memref<2x32x96xf32, #tpu.memory_space<vmem>>, %arg12: memref<2x1x96xf32, #tpu.memory_space<vmem>>, %arg13: memref<2x32x32xf32, #tpu.memory_space<vmem>>, %arg14: memref<2x1x32xf32, #tpu.memory_space<vmem>>, %arg15: memref<2x1x32xf32, #tpu.memory_space<vmem>>, %arg16: memref<2x1x32xf32, #tpu.memory_space<vmem>>, %arg17: memref<2x32x32xf32, #tpu.memory_space<vmem>>, %arg18: memref<2x1x32xf32, #tpu.memory_space<vmem>>, %arg19: memref<2x32x32xf32, #tpu.memory_space<vmem>>, %arg20: memref<2x1x32xf32, #tpu.memory_space<vmem>>, %arg21: memref<2x3x32xf32, #tpu.memory_space<vmem>>, %arg22: memref<2x1x32xf32, #tpu.memory_space<vmem>>, %arg23: memref<2x32x32xf32, #tpu.memory_space<vmem>>, %arg24: memref<2x1x32xf32, #tpu.memory_space<vmem>>, %arg25: memref<2x1x32xf32, #tpu.memory_space<vmem>>, %arg26: memref<2x1x32xf32, #tpu.memory_space<vmem>>, %arg27: memref<2x32x64xf32, #tpu.memory_space<vmem>>, %arg28: memref<2x1x64xf32, #tpu.memory_space<vmem>>, %arg29: memref<2x64x32xf32, #tpu.memory_space<vmem>>, %arg30: memref<2x1x32xf32, #tpu.memory_space<vmem>>, %arg31: memref<2x1x32xf32, #tpu.memory_space<vmem>>, %arg32: memref<2x1x32xf32, #tpu.memory_space<vmem>>, %arg33: memref<32x1xf32, #tpu.memory_space<vmem>>, %arg34: memref<1x1xf32, #tpu.memory_space<vmem>>, %arg35: memref<32x640xf32, #tpu.memory_space<vmem>>, %arg36: memref<1x640xf32, #tpu.memory_space<vmem>>, %arg37: memref<2x640xf32, #tpu.memory_space<vmem>>, %arg38: memref<16x32xf32, #tpu.memory_space<vmem>>, %arg39: memref<10x32xf32, #tpu.memory_space<vmem>>) attributes {dimension_semantics = [#tpu.dimension_semantics<arbitrary>], iteration_bounds = array<i64: 1>, scalar_prefetch = 0 : i64, scratch_operands = 2 : i64, tpu.core_type = #tpu.core_type<tc>, window_params = [{pipeline_mode = #tpu.pipeline_mode<synchronous>, transform_indices = @transform_0, window_bounds = array<i64: 16, 32>}, {pipeline_mode = #tpu.pipeline_mode<synchronous>, transform_indices = @transform_1, window_bounds = array<i64: 2, 8>}, {pipeline_mode = #tpu.pipeline_mode<synchronous>, transform_indices = @transform_2, window_bounds = array<i64: 2, 1, 32>}, {pipeline_mode = #tpu.pipeline_mode<synchronous>, transform_indices = @transform_3, window_bounds = array<i64: 2, 1, 32>}, {pipeline_mode = #tpu.pipeline_mode<synchronous>, transform_indices = @transform_4, window_bounds = array<i64: 2, 32, 64>}, {pipeline_mode = #tpu.pipeline_mode<synchronous>, transform_indices = @transform_5, window_bounds = array<i64: 2, 1, 64>}, {pipeline_mode = #tpu.pipeline_mode<synchronous>, transform_indices = @transform_6, window_bounds = array<i64: 2, 64, 32>}, {pipeline_mode = #tpu.pipeline_mode<synchronous>, transform_indices = @transform_7, window_bounds = array<i64: 2, 1, 32>}, {pipeline_mode = #tpu.pipeline_mode<synchronous>, transform_indices = @transform_8, window_bounds = array<i64: 2, 1, 32>}, {pipeline_mode = #tpu.pipeline_mode<synchronous>, transform_indices = @transform_9, window_bounds = array<i64: 2, 1, 32>}, {pipeline_mode = #tpu.pipeline_mode<synchronous>, transform_indices = @transform_10, window_bounds = array<i64: 2, 32, 96>}, {pipeline_mode = #tpu.pipeline_mode<synchronous>, transform_indices = @transform_11, window_bounds = array<i64: 2, 1, 96>}, {pipeline_mode = #tpu.pipeline_mode<synchronous>, transform_indices = @transform_12, window_bounds = array<i64: 2, 32, 32>}, {pipeline_mode = #tpu.pipeline_mode<synchronous>, transform_indices = @transform_13, window_bounds = array<i64: 2, 1, 32>}, {pipeline_mode = #tpu.pipeline_mode<synchronous>, transform_indices = @transform_14, window_bounds = array<i64: 2, 1, 32>}, {pipeline_mode = #tpu.pipeline_mode<synchronous>, transform_indices = @transform_15, window_bounds = array<i64: 2, 1, 32>}, {pipeline_mode = #tpu.pipeline_mode<synchronous>, transform_indices = @transform_16, window_bounds = array<i64: 2, 32, 32>}, {pipeline_mode = #tpu.pipeline_mode<synchronous>, transform_indices = @transform_17, window_bounds = array<i64: 2, 1, 32>}, {pipeline_mode = #tpu.pipeline_mode<synchronous>, transform_indices = @transform_18, window_bounds = array<i64: 2, 32, 32>}, {pipeline_mode = #tpu.pipeline_mode<synchronous>, transform_indices = @transform_19, window_bounds = array<i64: 2, 1, 32>}, {pipeline_mode = #tpu.pipeline_mode<synchronous>, transform_indices = @transform_20, window_bounds = array<i64: 2, 3, 32>}, {pipeline_mode = #tpu.pipeline_mode<synchronous>, transform_indices = @transform_21, window_bounds = array<i64: 2, 1, 32>}, {pipeline_mode = #tpu.pipeline_mode<synchronous>, transform_indices = @transform_22, window_bounds = array<i64: 2, 32, 32>}, {pipeline_mode = #tpu.pipeline_mode<synchronous>, transform_indices = @transform_23, window_bounds = array<i64: 2, 1, 32>}, {pipeline_mode = #tpu.pipeline_mode<synchronous>, transform_indices = @transform_24, window_bounds = array<i64: 2, 1, 32>}, {pipeline_mode = #tpu.pipeline_mode<synchronous>, transform_indices = @transform_25, window_bounds = array<i64: 2, 1, 32>}, {pipeline_mode = #tpu.pipeline_mode<synchronous>, transform_indices = @transform_26, window_bounds = array<i64: 2, 32, 64>}, {pipeline_mode = #tpu.pipeline_mode<synchronous>, transform_indices = @transform_27, window_bounds = array<i64: 2, 1, 64>}, {pipeline_mode = #tpu.pipeline_mode<synchronous>, transform_indices = @transform_28, window_bounds = array<i64: 2, 64, 32>}, {pipeline_mode = #tpu.pipeline_mode<synchronous>, transform_indices = @transform_29, window_bounds = array<i64: 2, 1, 32>}, {pipeline_mode = #tpu.pipeline_mode<synchronous>, transform_indices = @transform_30, window_bounds = array<i64: 2, 1, 32>}, {pipeline_mode = #tpu.pipeline_mode<synchronous>, transform_indices = @transform_31, window_bounds = array<i64: 2, 1, 32>}, {pipeline_mode = #tpu.pipeline_mode<synchronous>, transform_indices = @transform_32, window_bounds = array<i64: 32, 1>}, {pipeline_mode = #tpu.pipeline_mode<synchronous>, transform_indices = @transform_33, window_bounds = array<i64: 1, 1>}, {pipeline_mode = #tpu.pipeline_mode<synchronous>, transform_indices = @transform_34, window_bounds = array<i64: 32, 640>}, {pipeline_mode = #tpu.pipeline_mode<synchronous>, transform_indices = @transform_35, window_bounds = array<i64: 1, 640>}, {pipeline_mode = #tpu.pipeline_mode<synchronous>, transform_indices = @transform_36, window_bounds = array<i64: 2, 640>}]} {
    %c0 = arith.constant 0 : index
    %c0_0 = arith.constant 0 : index
    %0 = vector.load %arg1[%c0, %c0_0] : memref<16x32xf32, #tpu.memory_space<vmem>>, vector<16x32xf32>
    %c0_1 = arith.constant 0 : index
    %c0_2 = arith.constant 0 : index
    %1 = vector.load %arg2[%c0_1, %c0_2] : memref<2x8xf32, #tpu.memory_space<vmem>>, vector<2x8xf32>
    %cst = arith.constant 0.000000e+00 : f32
    %2 = vector.broadcast %cst : f32 to vector<10x32xf32>
    %c0_3 = arith.constant 0 : index
    %c0_4 = arith.constant 0 : index
    %3 = vector.load %arg39[%c0_3, %c0_4] : memref<10x32xf32, #tpu.memory_space<vmem>>, vector<10x32xf32>
    tpu.vector_store %arg39[%c0_3, %c0_4], %2 {strides = array<i32>} : memref<10x32xf32, #tpu.memory_space<vmem>>, vector<10x32xf32>,
    %4 = tpu.iota {dimensions = array<i32: 1>} : vector<1x32xi32>
    %c0_5 = arith.constant 0 : index
    %c0_6 = arith.constant 0 : index
    %c0_7 = arith.constant 0 : index
    %5 = vector.load %arg3[%c0_5, %c0_6, %c0_7] : memref<2x1x32xf32, #tpu.memory_space<vmem>>, vector<1x1x32xf32>
    %6 = vector.shape_cast %5 : vector<1x1x32xf32> to vector<1x32xf32>
    %c0_8 = arith.constant 0 : index
    %c0_9 = arith.constant 0 : index
    %c0_10 = arith.constant 0 : index
    %7 = vector.load %arg4[%c0_8, %c0_9, %c0_10] : memref<2x1x32xf32, #tpu.memory_space<vmem>>, vector<1x1x32xf32>
    %8 = vector.shape_cast %7 : vector<1x1x32xf32> to vector<1x32xf32>
    %cst_11 = arith.constant dense<0.000000e+00> : vector<16xf32>
    %9 = vector.multi_reduction <add>, %0, %cst_11 [1] : vector<16x32xf32> to vector<16xf32>
    %10 = vector.shape_cast %9 : vector<16xf32> to vector<16x1xf32>
    %cst_12 = arith.constant 3.200000e+01 : f32
    %11 = vector.broadcast %cst_12 : f32 to vector<16x1xf32>
    %12 = arith.divf %10, %11 : vector<16x1xf32>
    %13 = vector.broadcast %12 : vector<16x1xf32> to vector<16x32xf32>
    %14 = arith.subf %0, %13 : vector<16x32xf32>
    %15 = arith.mulf %14, %14 : vector<16x32xf32>
    %cst_13 = arith.constant dense<0.000000e+00> : vector<16xf32>
    %16 = vector.multi_reduction <add>, %15, %cst_13 [1] : vector<16x32xf32> to vector<16xf32>
    %17 = vector.shape_cast %16 : vector<16xf32> to vector<16x1xf32>
    %cst_14 = arith.constant 3.200000e+01 : f32
    %18 = vector.broadcast %cst_14 : f32 to vector<16x1xf32>
    %19 = arith.divf %17, %18 : vector<16x1xf32>
    %cst_15 = arith.constant 9.99999974E-6 : f32
    %20 = vector.broadcast %cst_15 : f32 to vector<16x1xf32>
    %21 = arith.addf %19, %20 : vector<16x1xf32>
    %22 = math.rsqrt %21 : vector<16x1xf32>
    %23 = vector.broadcast %22 : vector<16x1xf32> to vector<16x32xf32>
    %24 = arith.mulf %14, %23 : vector<16x32xf32>
    %25 = vector.broadcast %6 : vector<1x32xf32> to vector<16x32xf32>
    %26 = arith.mulf %24, %25 : vector<16x32xf32>
    %27 = vector.broadcast %8 : vector<1x32xf32> to vector<16x32xf32>
    %28 = arith.addf %26, %27 : vector<16x32xf32>
    %c0_16 = arith.constant 0 : index
    %c0_17 = arith.constant 0 : index
    %c0_18 = arith.constant 0 : index
    %29 = vector.load %arg5[%c0_16, %c0_17, %c0_18] : memref<2x32x64xf32, #tpu.memory_space<vmem>>, vector<1x32x64xf32>
    %30 = vector.shape_cast %29 : vector<1x32x64xf32> to vector<32x64xf32>
    %cst_19 = arith.constant dense<0.000000e+00> : vector<16x64xf32>
    %31 = tpu.matmul %28, %30, %cst_19 {dimension_numbers = #tpu.dot_dimension_numbers<[1], [0], [0], [1], [0, 0, 1, 1], [], []>} : vector<16x32xf32>, vector<32x64xf32>, vector<16x64xf32> -> vector<16x64xf32>
    %c0_20 = arith.constant 0 : index
    %c0_21 = arith.constant 0 : index
    %c0_22 = arith.constant 0 : index
    %32 = vector.load %arg6[%c0_20, %c0_21, %c0_22] : memref<2x1x64xf32, #tpu.memory_space<vmem>>, vector<1x1x64xf32>
    %33 = vector.shape_cast %32 : vector<1x1x64xf32> to vector<1x64xf32>
    %34 = vector.broadcast %33 : vector<1x64xf32> to vector<16x64xf32>
    %35 = arith.addf %31, %34 : vector<16x64xf32>
    %36 = arith.negf %35 : vector<16x64xf32>
    %37 = math.exp %36 : vector<16x64xf32>
    %cst_23 = arith.constant 1.000000e+00 : f32
    %38 = vector.broadcast %cst_23 : f32 to vector<16x64xf32>
    %39 = arith.addf %38, %37 : vector<16x64xf32>
    %40 = arith.divf %38, %39 : vector<16x64xf32>
    %41 = arith.mulf %35, %40 : vector<16x64xf32>
    %c0_24 = arith.constant 0 : index
    %c0_25 = arith.constant 0 : index
    %c0_26 = arith.constant 0 : index
    %42 = vector.load %arg7[%c0_24, %c0_25, %c0_26] : memref<2x64x32xf32, #tpu.memory_space<vmem>>, vector<1x64x32xf32>
    %43 = vector.shape_cast %42 : vector<1x64x32xf32> to vector<64x32xf32>
    %cst_27 = arith.constant dense<0.000000e+00> : vector<16x32xf32>
    %44 = tpu.matmul %41, %43, %cst_27 {dimension_numbers = #tpu.dot_dimension_numbers<[1], [0], [0], [1], [0, 0, 1, 1], [], []>} : vector<16x64xf32>, vector<64x32xf32>, vector<16x32xf32> -> vector<16x32xf32>
    %c0_28 = arith.constant 0 : index
    %c0_29 = arith.constant 0 : index
    %c0_30 = arith.constant 0 : index
    %45 = vector.load %arg8[%c0_28, %c0_29, %c0_30] : memref<2x1x32xf32, #tpu.memory_space<vmem>>, vector<1x1x32xf32>
    %46 = vector.shape_cast %45 : vector<1x1x32xf32> to vector<1x32xf32>
    %47 = vector.broadcast %46 : vector<1x32xf32> to vector<16x32xf32>
    %48 = arith.addf %44, %47 : vector<16x32xf32>
    %cst_31 = arith.constant 5.000000e-01 : f32
    %49 = vector.broadcast %cst_31 : f32 to vector<16x32xf32>
    %50 = arith.mulf %49, %48 : vector<16x32xf32>
    %51 = arith.addf %0, %50 : vector<16x32xf32>
    %c0_32 = arith.constant 0 : index
    %c0_33 = arith.constant 0 : index
    %c0_34 = arith.constant 0 : index
    %52 = vector.load %arg9[%c0_32, %c0_33, %c0_34] : memref<2x1x32xf32, #tpu.memory_space<vmem>>, vector<1x1x32xf32>
    %53 = vector.shape_cast %52 : vector<1x1x32xf32> to vector<1x32xf32>
    %c0_35 = arith.constant 0 : index
    %c0_36 = arith.constant 0 : index
    %c0_37 = arith.constant 0 : index
    %54 = vector.load %arg10[%c0_35, %c0_36, %c0_37] : memref<2x1x32xf32, #tpu.memory_space<vmem>>, vector<1x1x32xf32>
    %55 = vector.shape_cast %54 : vector<1x1x32xf32> to vector<1x32xf32>
    %cst_38 = arith.constant dense<0.000000e+00> : vector<16xf32>
    %56 = vector.multi_reduction <add>, %51, %cst_38 [1] : vector<16x32xf32> to vector<16xf32>
    %57 = vector.shape_cast %56 : vector<16xf32> to vector<16x1xf32>
    %cst_39 = arith.constant 3.200000e+01 : f32
    %58 = vector.broadcast %cst_39 : f32 to vector<16x1xf32>
    %59 = arith.divf %57, %58 : vector<16x1xf32>
    %60 = vector.broadcast %59 : vector<16x1xf32> to vector<16x32xf32>
    %61 = arith.subf %51, %60 : vector<16x32xf32>
    %62 = arith.mulf %61, %61 : vector<16x32xf32>
    %cst_40 = arith.constant dense<0.000000e+00> : vector<16xf32>
    %63 = vector.multi_reduction <add>, %62, %cst_40 [1] : vector<16x32xf32> to vector<16xf32>
    %64 = vector.shape_cast %63 : vector<16xf32> to vector<16x1xf32>
    %cst_41 = arith.constant 3.200000e+01 : f32
    %65 = vector.broadcast %cst_41 : f32 to vector<16x1xf32>
    %66 = arith.divf %64, %65 : vector<16x1xf32>
    %cst_42 = arith.constant 9.99999974E-6 : f32
    %67 = vector.broadcast %cst_42 : f32 to vector<16x1xf32>
    %68 = arith.addf %66, %67 : vector<16x1xf32>
    %69 = math.rsqrt %68 : vector<16x1xf32>
    %70 = vector.broadcast %69 : vector<16x1xf32> to vector<16x32xf32>
    %71 = arith.mulf %61, %70 : vector<16x32xf32>
    %72 = vector.broadcast %53 : vector<1x32xf32> to vector<16x32xf32>
    %73 = arith.mulf %71, %72 : vector<16x32xf32>
    %74 = vector.broadcast %55 : vector<1x32xf32> to vector<16x32xf32>
    %75 = arith.addf %73, %74 : vector<16x32xf32>
    %c0_43 = arith.constant 0 : index
    %c0_44 = arith.constant 0 : index
    %c0_45 = arith.constant 0 : index
    %76 = vector.load %arg11[%c0_43, %c0_44, %c0_45] : memref<2x32x96xf32, #tpu.memory_space<vmem>>, vector<1x32x96xf32>
    %77 = vector.shape_cast %76 : vector<1x32x96xf32> to vector<32x96xf32>
    %cst_46 = arith.constant dense<0.000000e+00> : vector<16x96xf32>
    %78 = tpu.matmul %75, %77, %cst_46 {dimension_numbers = #tpu.dot_dimension_numbers<[1], [0], [0], [1], [0, 0, 1, 1], [], []>} : vector<16x32xf32>, vector<32x96xf32>, vector<16x96xf32> -> vector<16x96xf32>
    %c0_47 = arith.constant 0 : index
    %c0_48 = arith.constant 0 : index
    %c0_49 = arith.constant 0 : index
    %79 = vector.load %arg12[%c0_47, %c0_48, %c0_49] : memref<2x1x96xf32, #tpu.memory_space<vmem>>, vector<1x1x96xf32>
    %80 = vector.shape_cast %79 : vector<1x1x96xf32> to vector<1x96xf32>
    %81 = vector.broadcast %80 : vector<1x96xf32> to vector<16x96xf32>
    %82 = arith.addf %78, %81 : vector<16x96xf32>
    %83 = vector.extract_strided_slice %82 {offsets = [0, 0], sizes = [16, 32], strides = [1, 1]} : vector<16x96xf32> to vector<16x32xf32>
    %84 = vector.extract_strided_slice %82 {offsets = [0, 32], sizes = [16, 32], strides = [1, 1]} : vector<16x96xf32> to vector<16x32xf32>
    %85 = vector.extract_strided_slice %82 {offsets = [0, 64], sizes = [16, 32], strides = [1, 1]} : vector<16x96xf32> to vector<16x32xf32>
    %c0_50 = arith.constant 0 : index
    %c0_51 = arith.constant 0 : index
    %c0_52 = arith.constant 0 : index
    %86 = vector.load %arg13[%c0_50, %c0_51, %c0_52] : memref<2x32x32xf32, #tpu.memory_space<vmem>>, vector<1x32x32xf32>
    %87 = vector.shape_cast %86 : vector<1x32x32xf32> to vector<32x32xf32>
    %c0_53 = arith.constant 0 : index
    %c0_54 = arith.constant 0 : index
    %c0_55 = arith.constant 0 : index
    %88 = vector.load %arg14[%c0_53, %c0_54, %c0_55] : memref<2x1x32xf32, #tpu.memory_space<vmem>>, vector<1x1x32xf32>
    %89 = vector.shape_cast %88 : vector<1x1x32xf32> to vector<1x32xf32>
    %90 = vector.extract_strided_slice %83 {offsets = [0, 0], sizes = [8, 32], strides = [1, 1]} : vector<16x32xf32> to vector<8x32xf32>
    %91 = vector.extract_strided_slice %84 {offsets = [0, 0], sizes = [8, 32], strides = [1, 1]} : vector<16x32xf32> to vector<8x32xf32>
    %92 = vector.extract_strided_slice %85 {offsets = [0, 0], sizes = [8, 32], strides = [1, 1]} : vector<16x32xf32> to vector<8x32xf32>
    %93 = vector.extract_strided_slice %1 {offsets = [0, 0], sizes = [1, 8], strides = [1, 1]} : vector<2x8xf32> to vector<1x8xf32>
    %cst_56 = arith.constant 0.000000e+00 : f32
    %94 = vector.broadcast %cst_56 : f32 to vector<8x32xf32>
    %c0_i32 = arith.constant 0 : i32
    %95 = vector.broadcast %c0_i32 : i32 to vector<1x32xi32>
    %96 = arith.cmpi sge, %4, %95 : vector<1x32xi32>
    %c8_i32 = arith.constant 8 : i32
    %97 = vector.broadcast %c8_i32 : i32 to vector<1x32xi32>
    %98 = arith.cmpi slt, %4, %97 : vector<1x32xi32>
    %99 = arith.andi %96, %98 : vector<1x32xi1>
    %cst_57 = arith.constant 0.000000e+00 : f32
    %100 = vector.shape_cast %99 : vector<1x32xi1> to vector<1x32xi1>
    %101 = vector.broadcast %100 : vector<1x32xi1> to vector<8x32xi1>
    %102 = vector.broadcast %cst_57 : f32 to vector<8x32xf32>
    %103 = arith.select %101, %90, %102 : vector<8x32xi1>, vector<8x32xf32>
    %cst_58 = arith.constant 0.000000e+00 : f32
    %104 = vector.shape_cast %99 : vector<1x32xi1> to vector<1x32xi1>
    %105 = vector.broadcast %104 : vector<1x32xi1> to vector<8x32xi1>
    %106 = vector.broadcast %cst_58 : f32 to vector<8x32xf32>
    %107 = arith.select %105, %92, %106 : vector<8x32xi1>, vector<8x32xf32>
    %cst_59 = arith.constant dense<0.000000e+00> : vector<8x8xf32>
    %108 = tpu.matmul %103, %91, %cst_59 {dimension_numbers = #tpu.dot_dimension_numbers<[1], [1], [0], [0], [0, 0, 1, 0], [], []>} : vector<8x32xf32>, vector<8x32xf32>, vector<8x8xf32> -> vector<8x8xf32>
    %cst_60 = arith.constant 0.353553385 : f32
    %109 = vector.broadcast %cst_60 : f32 to vector<8x8xf32>
    %110 = arith.mulf %108, %109 : vector<8x8xf32>
    %111 = vector.broadcast %93 : vector<1x8xf32> to vector<8x8xf32>
    %112 = arith.addf %110, %111 : vector<8x8xf32>
    %cst_61 = arith.constant dense<0xFF800000> : vector<8xf32>
    %113 = vector.multi_reduction <maximumf>, %112, %cst_61 [1] : vector<8x8xf32> to vector<8xf32>
    %114 = vector.shape_cast %113 : vector<8xf32> to vector<8x1xf32>
    %115 = vector.broadcast %114 : vector<8x1xf32> to vector<8x8xf32>
    %116 = arith.subf %112, %115 : vector<8x8xf32>
    %117 = math.exp %116 : vector<8x8xf32>
    %cst_62 = arith.constant dense<0.000000e+00> : vector<8xf32>
    %118 = vector.multi_reduction <add>, %117, %cst_62 [1] : vector<8x8xf32> to vector<8xf32>
    %119 = vector.shape_cast %118 : vector<8xf32> to vector<8x1xf32>
    %120 = tpu.reciprocal %119 {approx = true} : vector<8x1xf32> -> vector<8x1xf32>
    %121 = vector.broadcast %120 : vector<8x1xf32> to vector<8x8xf32>
    %122 = arith.mulf %117, %121 : vector<8x8xf32>
    %cst_63 = arith.constant dense<0.000000e+00> : vector<8x32xf32>
    %123 = tpu.matmul %122, %107, %cst_63 {dimension_numbers = #tpu.dot_dimension_numbers<[1], [0], [0], [1], [0, 0, 1, 1], [], []>} : vector<8x8xf32>, vector<8x32xf32>, vector<8x32xf32> -> vector<8x32xf32>
    %124 = arith.addf %94, %123 : vector<8x32xf32>
    %c8_i32_64 = arith.constant 8 : i32
    %125 = vector.broadcast %c8_i32_64 : i32 to vector<1x32xi32>
    %126 = arith.cmpi sge, %4, %125 : vector<1x32xi32>
    %c16_i32 = arith.constant 16 : i32
    %127 = vector.broadcast %c16_i32 : i32 to vector<1x32xi32>
    %128 = arith.cmpi slt, %4, %127 : vector<1x32xi32>
    %129 = arith.andi %126, %128 : vector<1x32xi1>
    %cst_65 = arith.constant 0.000000e+00 : f32
    %130 = vector.shape_cast %129 : vector<1x32xi1> to vector<1x32xi1>
    %131 = vector.broadcast %130 : vector<1x32xi1> to vector<8x32xi1>
    %132 = vector.broadcast %cst_65 : f32 to vector<8x32xf32>
    %133 = arith.select %131, %90, %132 : vector<8x32xi1>, vector<8x32xf32>
    %cst_66 = arith.constant 0.000000e+00 : f32
    %134 = vector.shape_cast %129 : vector<1x32xi1> to vector<1x32xi1>
    %135 = vector.broadcast %134 : vector<1x32xi1> to vector<8x32xi1>
    %136 = vector.broadcast %cst_66 : f32 to vector<8x32xf32>
    %137 = arith.select %135, %92, %136 : vector<8x32xi1>, vector<8x32xf32>
    %cst_67 = arith.constant dense<0.000000e+00> : vector<8x8xf32>
    %138 = tpu.matmul %133, %91, %cst_67 {dimension_numbers = #tpu.dot_dimension_numbers<[1], [1], [0], [0], [0, 0, 1, 0], [], []>} : vector<8x32xf32>, vector<8x32xf32>, vector<8x8xf32> -> vector<8x8xf32>
    %cst_68 = arith.constant 0.353553385 : f32
    %139 = vector.broadcast %cst_68 : f32 to vector<8x8xf32>
    %140 = arith.mulf %138, %139 : vector<8x8xf32>
    %141 = vector.broadcast %93 : vector<1x8xf32> to vector<8x8xf32>
    %142 = arith.addf %140, %141 : vector<8x8xf32>
    %cst_69 = arith.constant dense<0xFF800000> : vector<8xf32>
    %143 = vector.multi_reduction <maximumf>, %142, %cst_69 [1] : vector<8x8xf32> to vector<8xf32>
    %144 = vector.shape_cast %143 : vector<8xf32> to vector<8x1xf32>
    %145 = vector.broadcast %144 : vector<8x1xf32> to vector<8x8xf32>
    %146 = arith.subf %142, %145 : vector<8x8xf32>
    %147 = math.exp %146 : vector<8x8xf32>
    %cst_70 = arith.constant dense<0.000000e+00> : vector<8xf32>
    %148 = vector.multi_reduction <add>, %147, %cst_70 [1] : vector<8x8xf32> to vector<8xf32>
    %149 = vector.shape_cast %148 : vector<8xf32> to vector<8x1xf32>
    %150 = tpu.reciprocal %149 {approx = true} : vector<8x1xf32> -> vector<8x1xf32>
    %151 = vector.broadcast %150 : vector<8x1xf32> to vector<8x8xf32>
    %152 = arith.mulf %147, %151 : vector<8x8xf32>
    %cst_71 = arith.constant dense<0.000000e+00> : vector<8x32xf32>
    %153 = tpu.matmul %152, %137, %cst_71 {dimension_numbers = #tpu.dot_dimension_numbers<[1], [0], [0], [1], [0, 0, 1, 1], [], []>} : vector<8x8xf32>, vector<8x32xf32>, vector<8x32xf32> -> vector<8x32xf32>
    %154 = arith.addf %124, %153 : vector<8x32xf32>
    %c16_i32_72 = arith.constant 16 : i32
    %155 = vector.broadcast %c16_i32_72 : i32 to vector<1x32xi32>
    %156 = arith.cmpi sge, %4, %155 : vector<1x32xi32>
    %c24_i32 = arith.constant 24 : i32
    %157 = vector.broadcast %c24_i32 : i32 to vector<1x32xi32>
    %158 = arith.cmpi slt, %4, %157 : vector<1x32xi32>
    %159 = arith.andi %156, %158 : vector<1x32xi1>
    %cst_73 = arith.constant 0.000000e+00 : f32
    %160 = vector.shape_cast %159 : vector<1x32xi1> to vector<1x32xi1>
    %161 = vector.broadcast %160 : vector<1x32xi1> to vector<8x32xi1>
    %162 = vector.broadcast %cst_73 : f32 to vector<8x32xf32>
    %163 = arith.select %161, %90, %162 : vector<8x32xi1>, vector<8x32xf32>
    %cst_74 = arith.constant 0.000000e+00 : f32
    %164 = vector.shape_cast %159 : vector<1x32xi1> to vector<1x32xi1>
    %165 = vector.broadcast %164 : vector<1x32xi1> to vector<8x32xi1>
    %166 = vector.broadcast %cst_74 : f32 to vector<8x32xf32>
    %167 = arith.select %165, %92, %166 : vector<8x32xi1>, vector<8x32xf32>
    %cst_75 = arith.constant dense<0.000000e+00> : vector<8x8xf32>
    %168 = tpu.matmul %163, %91, %cst_75 {dimension_numbers = #tpu.dot_dimension_numbers<[1], [1], [0], [0], [0, 0, 1, 0], [], []>} : vector<8x32xf32>, vector<8x32xf32>, vector<8x8xf32> -> vector<8x8xf32>
    %cst_76 = arith.constant 0.353553385 : f32
    %169 = vector.broadcast %cst_76 : f32 to vector<8x8xf32>
    %170 = arith.mulf %168, %169 : vector<8x8xf32>
    %171 = vector.broadcast %93 : vector<1x8xf32> to vector<8x8xf32>
    %172 = arith.addf %170, %171 : vector<8x8xf32>
    %cst_77 = arith.constant dense<0xFF800000> : vector<8xf32>
    %173 = vector.multi_reduction <maximumf>, %172, %cst_77 [1] : vector<8x8xf32> to vector<8xf32>
    %174 = vector.shape_cast %173 : vector<8xf32> to vector<8x1xf32>
    %175 = vector.broadcast %174 : vector<8x1xf32> to vector<8x8xf32>
    %176 = arith.subf %172, %175 : vector<8x8xf32>
    %177 = math.exp %176 : vector<8x8xf32>
    %cst_78 = arith.constant dense<0.000000e+00> : vector<8xf32>
    %178 = vector.multi_reduction <add>, %177, %cst_78 [1] : vector<8x8xf32> to vector<8xf32>
    %179 = vector.shape_cast %178 : vector<8xf32> to vector<8x1xf32>
    %180 = tpu.reciprocal %179 {approx = true} : vector<8x1xf32> -> vector<8x1xf32>
    %181 = vector.broadcast %180 : vector<8x1xf32> to vector<8x8xf32>
    %182 = arith.mulf %177, %181 : vector<8x8xf32>
    %cst_79 = arith.constant dense<0.000000e+00> : vector<8x32xf32>
    %183 = tpu.matmul %182, %167, %cst_79 {dimension_numbers = #tpu.dot_dimension_numbers<[1], [0], [0], [1], [0, 0, 1, 1], [], []>} : vector<8x8xf32>, vector<8x32xf32>, vector<8x32xf32> -> vector<8x32xf32>
    %184 = arith.addf %154, %183 : vector<8x32xf32>
    %c24_i32_80 = arith.constant 24 : i32
    %185 = vector.broadcast %c24_i32_80 : i32 to vector<1x32xi32>
    %186 = arith.cmpi sge, %4, %185 : vector<1x32xi32>
    %c32_i32 = arith.constant 32 : i32
    %187 = vector.broadcast %c32_i32 : i32 to vector<1x32xi32>
    %188 = arith.cmpi slt, %4, %187 : vector<1x32xi32>
    %189 = arith.andi %186, %188 : vector<1x32xi1>
    %cst_81 = arith.constant 0.000000e+00 : f32
    %190 = vector.shape_cast %189 : vector<1x32xi1> to vector<1x32xi1>
    %191 = vector.broadcast %190 : vector<1x32xi1> to vector<8x32xi1>
    %192 = vector.broadcast %cst_81 : f32 to vector<8x32xf32>
    %193 = arith.select %191, %90, %192 : vector<8x32xi1>, vector<8x32xf32>
    %cst_82 = arith.constant 0.000000e+00 : f32
    %194 = vector.shape_cast %189 : vector<1x32xi1> to vector<1x32xi1>
    %195 = vector.broadcast %194 : vector<1x32xi1> to vector<8x32xi1>
    %196 = vector.broadcast %cst_82 : f32 to vector<8x32xf32>
    %197 = arith.select %195, %92, %196 : vector<8x32xi1>, vector<8x32xf32>
    %cst_83 = arith.constant dense<0.000000e+00> : vector<8x8xf32>
    %198 = tpu.matmul %193, %91, %cst_83 {dimension_numbers = #tpu.dot_dimension_numbers<[1], [1], [0], [0], [0, 0, 1, 0], [], []>} : vector<8x32xf32>, vector<8x32xf32>, vector<8x8xf32> -> vector<8x8xf32>
    %cst_84 = arith.constant 0.353553385 : f32
    %199 = vector.broadcast %cst_84 : f32 to vector<8x8xf32>
    %200 = arith.mulf %198, %199 : vector<8x8xf32>
    %201 = vector.broadcast %93 : vector<1x8xf32> to vector<8x8xf32>
    %202 = arith.addf %200, %201 : vector<8x8xf32>
    %cst_85 = arith.constant dense<0xFF800000> : vector<8xf32>
    %203 = vector.multi_reduction <maximumf>, %202, %cst_85 [1] : vector<8x8xf32> to vector<8xf32>
    %204 = vector.shape_cast %203 : vector<8xf32> to vector<8x1xf32>
    %205 = vector.broadcast %204 : vector<8x1xf32> to vector<8x8xf32>
    %206 = arith.subf %202, %205 : vector<8x8xf32>
    %207 = math.exp %206 : vector<8x8xf32>
    %cst_86 = arith.constant dense<0.000000e+00> : vector<8xf32>
    %208 = vector.multi_reduction <add>, %207, %cst_86 [1] : vector<8x8xf32> to vector<8xf32>
    %209 = vector.shape_cast %208 : vector<8xf32> to vector<8x1xf32>
    %210 = tpu.reciprocal %209 {approx = true} : vector<8x1xf32> -> vector<8x1xf32>
    %211 = vector.broadcast %210 : vector<8x1xf32> to vector<8x8xf32>
    %212 = arith.mulf %207, %211 : vector<8x8xf32>
    %cst_87 = arith.constant dense<0.000000e+00> : vector<8x32xf32>
    %213 = tpu.matmul %212, %197, %cst_87 {dimension_numbers = #tpu.dot_dimension_numbers<[1], [0], [0], [1], [0, 0, 1, 1], [], []>} : vector<8x8xf32>, vector<8x32xf32>, vector<8x32xf32> -> vector<8x32xf32>
    %214 = arith.addf %184, %213 : vector<8x32xf32>
    %cst_88 = arith.constant dense<0.000000e+00> : vector<8x32xf32>
    %215 = tpu.matmul %214, %87, %cst_88 {dimension_numbers = #tpu.dot_dimension_numbers<[1], [0], [0], [1], [0, 0, 1, 1], [], []>} : vector<8x32xf32>, vector<32x32xf32>, vector<8x32xf32> -> vector<8x32xf32>
    %216 = vector.broadcast %89 : vector<1x32xf32> to vector<8x32xf32>
    %217 = arith.addf %215, %216 : vector<8x32xf32>
    %c0_89 = arith.constant 0 : index
    %c0_90 = arith.constant 0 : index
    %218 = vector.load %arg38[%c0_89, %c0_90] : memref<16x32xf32, #tpu.memory_space<vmem>>, vector<8x32xf32>
    tpu.vector_store %arg38[%c0_89, %c0_90], %217 {strides = array<i32>} : memref<16x32xf32, #tpu.memory_space<vmem>>, vector<8x32xf32>,
    %219 = vector.extract_strided_slice %83 {offsets = [8, 0], sizes = [8, 32], strides = [1, 1]} : vector<16x32xf32> to vector<8x32xf32>
    %220 = vector.extract_strided_slice %84 {offsets = [8, 0], sizes = [8, 32], strides = [1, 1]} : vector<16x32xf32> to vector<8x32xf32>
    %221 = vector.extract_strided_slice %85 {offsets = [8, 0], sizes = [8, 32], strides = [1, 1]} : vector<16x32xf32> to vector<8x32xf32>
    %222 = vector.extract_strided_slice %1 {offsets = [1, 0], sizes = [1, 8], strides = [1, 1]} : vector<2x8xf32> to vector<1x8xf32>
    %cst_91 = arith.constant 0.000000e+00 : f32
    %223 = vector.broadcast %cst_91 : f32 to vector<8x32xf32>
    %c0_i32_92 = arith.constant 0 : i32
    %224 = vector.broadcast %c0_i32_92 : i32 to vector<1x32xi32>
    %225 = arith.cmpi sge, %4, %224 : vector<1x32xi32>
    %c8_i32_93 = arith.constant 8 : i32
    %226 = vector.broadcast %c8_i32_93 : i32 to vector<1x32xi32>
    %227 = arith.cmpi slt, %4, %226 : vector<1x32xi32>
    %228 = arith.andi %225, %227 : vector<1x32xi1>
    %cst_94 = arith.constant 0.000000e+00 : f32
    %229 = vector.shape_cast %228 : vector<1x32xi1> to vector<1x32xi1>
    %230 = vector.broadcast %229 : vector<1x32xi1> to vector<8x32xi1>
    %231 = vector.broadcast %cst_94 : f32 to vector<8x32xf32>
    %232 = arith.select %230, %219, %231 : vector<8x32xi1>, vector<8x32xf32>
    %cst_95 = arith.constant 0.000000e+00 : f32
    %233 = vector.shape_cast %228 : vector<1x32xi1> to vector<1x32xi1>
    %234 = vector.broadcast %233 : vector<1x32xi1> to vector<8x32xi1>
    %235 = vector.broadcast %cst_95 : f32 to vector<8x32xf32>
    %236 = arith.select %234, %221, %235 : vector<8x32xi1>, vector<8x32xf32>
    %cst_96 = arith.constant dense<0.000000e+00> : vector<8x8xf32>
    %237 = tpu.matmul %232, %220, %cst_96 {dimension_numbers = #tpu.dot_dimension_numbers<[1], [1], [0], [0], [0, 0, 1, 0], [], []>} : vector<8x32xf32>, vector<8x32xf32>, vector<8x8xf32> -> vector<8x8xf32>
    %cst_97 = arith.constant 0.353553385 : f32
    %238 = vector.broadcast %cst_97 : f32 to vector<8x8xf32>
    %239 = arith.mulf %237, %238 : vector<8x8xf32>
    %240 = vector.broadcast %222 : vector<1x8xf32> to vector<8x8xf32>
    %241 = arith.addf %239, %240 : vector<8x8xf32>
    %cst_98 = arith.constant dense<0xFF800000> : vector<8xf32>
    %242 = vector.multi_reduction <maximumf>, %241, %cst_98 [1] : vector<8x8xf32> to vector<8xf32>
    %243 = vector.shape_cast %242 : vector<8xf32> to vector<8x1xf32>
    %244 = vector.broadcast %243 : vector<8x1xf32> to vector<8x8xf32>
    %245 = arith.subf %241, %244 : vector<8x8xf32>
    %246 = math.exp %245 : vector<8x8xf32>
    %cst_99 = arith.constant dense<0.000000e+00> : vector<8xf32>
    %247 = vector.multi_reduction <add>, %246, %cst_99 [1] : vector<8x8xf32> to vector<8xf32>
    %248 = vector.shape_cast %247 : vector<8xf32> to vector<8x1xf32>
    %249 = tpu.reciprocal %248 {approx = true} : vector<8x1xf32> -> vector<8x1xf32>
    %250 = vector.broadcast %249 : vector<8x1xf32> to vector<8x8xf32>
    %251 = arith.mulf %246, %250 : vector<8x8xf32>
    %cst_100 = arith.constant dense<0.000000e+00> : vector<8x32xf32>
    %252 = tpu.matmul %251, %236, %cst_100 {dimension_numbers = #tpu.dot_dimension_numbers<[1], [0], [0], [1], [0, 0, 1, 1], [], []>} : vector<8x8xf32>, vector<8x32xf32>, vector<8x32xf32> -> vector<8x32xf32>
    %253 = arith.addf %223, %252 : vector<8x32xf32>
    %c8_i32_101 = arith.constant 8 : i32
    %254 = vector.broadcast %c8_i32_101 : i32 to vector<1x32xi32>
    %255 = arith.cmpi sge, %4, %254 : vector<1x32xi32>
    %c16_i32_102 = arith.constant 16 : i32
    %256 = vector.broadcast %c16_i32_102 : i32 to vector<1x32xi32>
    %257 = arith.cmpi slt, %4, %256 : vector<1x32xi32>
    %258 = arith.andi %255, %257 : vector<1x32xi1>
    %cst_103 = arith.constant 0.000000e+00 : f32
    %259 = vector.shape_cast %258 : vector<1x32xi1> to vector<1x32xi1>
    %260 = vector.broadcast %259 : vector<1x32xi1> to vector<8x32xi1>
    %261 = vector.broadcast %cst_103 : f32 to vector<8x32xf32>
    %262 = arith.select %260, %219, %261 : vector<8x32xi1>, vector<8x32xf32>
    %cst_104 = arith.constant 0.000000e+00 : f32
    %263 = vector.shape_cast %258 : vector<1x32xi1> to vector<1x32xi1>
    %264 = vector.broadcast %263 : vector<1x32xi1> to vector<8x32xi1>
    %265 = vector.broadcast %cst_104 : f32 to vector<8x32xf32>
    %266 = arith.select %264, %221, %265 : vector<8x32xi1>, vector<8x32xf32>
    %cst_105 = arith.constant dense<0.000000e+00> : vector<8x8xf32>
    %267 = tpu.matmul %262, %220, %cst_105 {dimension_numbers = #tpu.dot_dimension_numbers<[1], [1], [0], [0], [0, 0, 1, 0], [], []>} : vector<8x32xf32>, vector<8x32xf32>, vector<8x8xf32> -> vector<8x8xf32>
    %cst_106 = arith.constant 0.353553385 : f32
    %268 = vector.broadcast %cst_106 : f32 to vector<8x8xf32>
    %269 = arith.mulf %267, %268 : vector<8x8xf32>
    %270 = vector.broadcast %222 : vector<1x8xf32> to vector<8x8xf32>
    %271 = arith.addf %269, %270 : vector<8x8xf32>
    %cst_107 = arith.constant dense<0xFF800000> : vector<8xf32>
    %272 = vector.multi_reduction <maximumf>, %271, %cst_107 [1] : vector<8x8xf32> to vector<8xf32>
    %273 = vector.shape_cast %272 : vector<8xf32> to vector<8x1xf32>
    %274 = vector.broadcast %273 : vector<8x1xf32> to vector<8x8xf32>
    %275 = arith.subf %271, %274 : vector<8x8xf32>
    %276 = math.exp %275 : vector<8x8xf32>
    %cst_108 = arith.constant dense<0.000000e+00> : vector<8xf32>
    %277 = vector.multi_reduction <add>, %276, %cst_108 [1] : vector<8x8xf32> to vector<8xf32>
    %278 = vector.shape_cast %277 : vector<8xf32> to vector<8x1xf32>
    %279 = tpu.reciprocal %278 {approx = true} : vector<8x1xf32> -> vector<8x1xf32>
    %280 = vector.broadcast %279 : vector<8x1xf32> to vector<8x8xf32>
    %281 = arith.mulf %276, %280 : vector<8x8xf32>
    %cst_109 = arith.constant dense<0.000000e+00> : vector<8x32xf32>
    %282 = tpu.matmul %281, %266, %cst_109 {dimension_numbers = #tpu.dot_dimension_numbers<[1], [0], [0], [1], [0, 0, 1, 1], [], []>} : vector<8x8xf32>, vector<8x32xf32>, vector<8x32xf32> -> vector<8x32xf32>
    %283 = arith.addf %253, %282 : vector<8x32xf32>
    %c16_i32_110 = arith.constant 16 : i32
    %284 = vector.broadcast %c16_i32_110 : i32 to vector<1x32xi32>
    %285 = arith.cmpi sge, %4, %284 : vector<1x32xi32>
    %c24_i32_111 = arith.constant 24 : i32
    %286 = vector.broadcast %c24_i32_111 : i32 to vector<1x32xi32>
    %287 = arith.cmpi slt, %4, %286 : vector<1x32xi32>
    %288 = arith.andi %285, %287 : vector<1x32xi1>
    %cst_112 = arith.constant 0.000000e+00 : f32
    %289 = vector.shape_cast %288 : vector<1x32xi1> to vector<1x32xi1>
    %290 = vector.broadcast %289 : vector<1x32xi1> to vector<8x32xi1>
    %291 = vector.broadcast %cst_112 : f32 to vector<8x32xf32>
    %292 = arith.select %290, %219, %291 : vector<8x32xi1>, vector<8x32xf32>
    %cst_113 = arith.constant 0.000000e+00 : f32
    %293 = vector.shape_cast %288 : vector<1x32xi1> to vector<1x32xi1>
    %294 = vector.broadcast %293 : vector<1x32xi1> to vector<8x32xi1>
    %295 = vector.broadcast %cst_113 : f32 to vector<8x32xf32>
    %296 = arith.select %294, %221, %295 : vector<8x32xi1>, vector<8x32xf32>
    %cst_114 = arith.constant dense<0.000000e+00> : vector<8x8xf32>
    %297 = tpu.matmul %292, %220, %cst_114 {dimension_numbers = #tpu.dot_dimension_numbers<[1], [1], [0], [0], [0, 0, 1, 0], [], []>} : vector<8x32xf32>, vector<8x32xf32>, vector<8x8xf32> -> vector<8x8xf32>
    %cst_115 = arith.constant 0.353553385 : f32
    %298 = vector.broadcast %cst_115 : f32 to vector<8x8xf32>
    %299 = arith.mulf %297, %298 : vector<8x8xf32>
    %300 = vector.broadcast %222 : vector<1x8xf32> to vector<8x8xf32>
    %301 = arith.addf %299, %300 : vector<8x8xf32>
    %cst_116 = arith.constant dense<0xFF800000> : vector<8xf32>
    %302 = vector.multi_reduction <maximumf>, %301, %cst_116 [1] : vector<8x8xf32> to vector<8xf32>
    %303 = vector.shape_cast %302 : vector<8xf32> to vector<8x1xf32>
    %304 = vector.broadcast %303 : vector<8x1xf32> to vector<8x8xf32>
    %305 = arith.subf %301, %304 : vector<8x8xf32>
    %306 = math.exp %305 : vector<8x8xf32>
    %cst_117 = arith.constant dense<0.000000e+00> : vector<8xf32>
    %307 = vector.multi_reduction <add>, %306, %cst_117 [1] : vector<8x8xf32> to vector<8xf32>
    %308 = vector.shape_cast %307 : vector<8xf32> to vector<8x1xf32>
    %309 = tpu.reciprocal %308 {approx = true} : vector<8x1xf32> -> vector<8x1xf32>
    %310 = vector.broadcast %309 : vector<8x1xf32> to vector<8x8xf32>
    %311 = arith.mulf %306, %310 : vector<8x8xf32>
    %cst_118 = arith.constant dense<0.000000e+00> : vector<8x32xf32>
    %312 = tpu.matmul %311, %296, %cst_118 {dimension_numbers = #tpu.dot_dimension_numbers<[1], [0], [0], [1], [0, 0, 1, 1], [], []>} : vector<8x8xf32>, vector<8x32xf32>, vector<8x32xf32> -> vector<8x32xf32>
    %313 = arith.addf %283, %312 : vector<8x32xf32>
    %c24_i32_119 = arith.constant 24 : i32
    %314 = vector.broadcast %c24_i32_119 : i32 to vector<1x32xi32>
    %315 = arith.cmpi sge, %4, %314 : vector<1x32xi32>
    %c32_i32_120 = arith.constant 32 : i32
    %316 = vector.broadcast %c32_i32_120 : i32 to vector<1x32xi32>
    %317 = arith.cmpi slt, %4, %316 : vector<1x32xi32>
    %318 = arith.andi %315, %317 : vector<1x32xi1>
    %cst_121 = arith.constant 0.000000e+00 : f32
    %319 = vector.shape_cast %318 : vector<1x32xi1> to vector<1x32xi1>
    %320 = vector.broadcast %319 : vector<1x32xi1> to vector<8x32xi1>
    %321 = vector.broadcast %cst_121 : f32 to vector<8x32xf32>
    %322 = arith.select %320, %219, %321 : vector<8x32xi1>, vector<8x32xf32>
    %cst_122 = arith.constant 0.000000e+00 : f32
    %323 = vector.shape_cast %318 : vector<1x32xi1> to vector<1x32xi1>
    %324 = vector.broadcast %323 : vector<1x32xi1> to vector<8x32xi1>
    %325 = vector.broadcast %cst_122 : f32 to vector<8x32xf32>
    %326 = arith.select %324, %221, %325 : vector<8x32xi1>, vector<8x32xf32>
    %cst_123 = arith.constant dense<0.000000e+00> : vector<8x8xf32>
    %327 = tpu.matmul %322, %220, %cst_123 {dimension_numbers = #tpu.dot_dimension_numbers<[1], [1], [0], [0], [0, 0, 1, 0], [], []>} : vector<8x32xf32>, vector<8x32xf32>, vector<8x8xf32> -> vector<8x8xf32>
    %cst_124 = arith.constant 0.353553385 : f32
    %328 = vector.broadcast %cst_124 : f32 to vector<8x8xf32>
    %329 = arith.mulf %327, %328 : vector<8x8xf32>
    %330 = vector.broadcast %222 : vector<1x8xf32> to vector<8x8xf32>
    %331 = arith.addf %329, %330 : vector<8x8xf32>
    %cst_125 = arith.constant dense<0xFF800000> : vector<8xf32>
    %332 = vector.multi_reduction <maximumf>, %331, %cst_125 [1] : vector<8x8xf32> to vector<8xf32>
    %333 = vector.shape_cast %332 : vector<8xf32> to vector<8x1xf32>
    %334 = vector.broadcast %333 : vector<8x1xf32> to vector<8x8xf32>
    %335 = arith.subf %331, %334 : vector<8x8xf32>
    %336 = math.exp %335 : vector<8x8xf32>
    %cst_126 = arith.constant dense<0.000000e+00> : vector<8xf32>
    %337 = vector.multi_reduction <add>, %336, %cst_126 [1] : vector<8x8xf32> to vector<8xf32>
    %338 = vector.shape_cast %337 : vector<8xf32> to vector<8x1xf32>
    %339 = tpu.reciprocal %338 {approx = true} : vector<8x1xf32> -> vector<8x1xf32>
    %340 = vector.broadcast %339 : vector<8x1xf32> to vector<8x8xf32>
    %341 = arith.mulf %336, %340 : vector<8x8xf32>
    %cst_127 = arith.constant dense<0.000000e+00> : vector<8x32xf32>
    %342 = tpu.matmul %341, %326, %cst_127 {dimension_numbers = #tpu.dot_dimension_numbers<[1], [0], [0], [1], [0, 0, 1, 1], [], []>} : vector<8x8xf32>, vector<8x32xf32>, vector<8x32xf32> -> vector<8x32xf32>
    %343 = arith.addf %313, %342 : vector<8x32xf32>
    %cst_128 = arith.constant dense<0.000000e+00> : vector<8x32xf32>
    %344 = tpu.matmul %343, %87, %cst_128 {dimension_numbers = #tpu.dot_dimension_numbers<[1], [0], [0], [1], [0, 0, 1, 1], [], []>} : vector<8x32xf32>, vector<32x32xf32>, vector<8x32xf32> -> vector<8x32xf32>
    %345 = vector.broadcast %89 : vector<1x32xf32> to vector<8x32xf32>
    %346 = arith.addf %344, %345 : vector<8x32xf32>
    %c8 = arith.constant 8 : index
    %c0_129 = arith.constant 0 : index
    %347 = vector.load %arg38[%c8, %c0_129] : memref<16x32xf32, #tpu.memory_space<vmem>>, vector<8x32xf32>
    tpu.vector_store %arg38[%c8, %c0_129], %346 {strides = array<i32>} : memref<16x32xf32, #tpu.memory_space<vmem>>, vector<8x32xf32>,
    %c0_130 = arith.constant 0 : index
    %c0_131 = arith.constant 0 : index
    %348 = vector.load %arg38[%c0_130, %c0_131] : memref<16x32xf32, #tpu.memory_space<vmem>>, vector<16x32xf32>
    %349 = arith.addf %51, %348 : vector<16x32xf32>
    %c0_132 = arith.constant 0 : index
    %c0_133 = arith.constant 0 : index
    %c0_134 = arith.constant 0 : index
    %350 = vector.load %arg15[%c0_132, %c0_133, %c0_134] : memref<2x1x32xf32, #tpu.memory_space<vmem>>, vector<1x1x32xf32>
    %351 = vector.shape_cast %350 : vector<1x1x32xf32> to vector<1x32xf32>
    %c0_135 = arith.constant 0 : index
    %c0_136 = arith.constant 0 : index
    %c0_137 = arith.constant 0 : index
    %352 = vector.load %arg16[%c0_135, %c0_136, %c0_137] : memref<2x1x32xf32, #tpu.memory_space<vmem>>, vector<1x1x32xf32>
    %353 = vector.shape_cast %352 : vector<1x1x32xf32> to vector<1x32xf32>
    %cst_138 = arith.constant dense<0.000000e+00> : vector<16xf32>
    %354 = vector.multi_reduction <add>, %349, %cst_138 [1] : vector<16x32xf32> to vector<16xf32>
    %355 = vector.shape_cast %354 : vector<16xf32> to vector<16x1xf32>
    %cst_139 = arith.constant 3.200000e+01 : f32
    %356 = vector.broadcast %cst_139 : f32 to vector<16x1xf32>
    %357 = arith.divf %355, %356 : vector<16x1xf32>
    %358 = vector.broadcast %357 : vector<16x1xf32> to vector<16x32xf32>
    %359 = arith.subf %349, %358 : vector<16x32xf32>
    %360 = arith.mulf %359, %359 : vector<16x32xf32>
    %cst_140 = arith.constant dense<0.000000e+00> : vector<16xf32>
    %361 = vector.multi_reduction <add>, %360, %cst_140 [1] : vector<16x32xf32> to vector<16xf32>
    %362 = vector.shape_cast %361 : vector<16xf32> to vector<16x1xf32>
    %cst_141 = arith.constant 3.200000e+01 : f32
    %363 = vector.broadcast %cst_141 : f32 to vector<16x1xf32>
    %364 = arith.divf %362, %363 : vector<16x1xf32>
    %cst_142 = arith.constant 9.99999974E-6 : f32
    %365 = vector.broadcast %cst_142 : f32 to vector<16x1xf32>
    %366 = arith.addf %364, %365 : vector<16x1xf32>
    %367 = math.rsqrt %366 : vector<16x1xf32>
    %368 = vector.broadcast %367 : vector<16x1xf32> to vector<16x32xf32>
    %369 = arith.mulf %359, %368 : vector<16x32xf32>
    %370 = vector.broadcast %351 : vector<1x32xf32> to vector<16x32xf32>
    %371 = arith.mulf %369, %370 : vector<16x32xf32>
    %372 = vector.broadcast %353 : vector<1x32xf32> to vector<16x32xf32>
    %373 = arith.addf %371, %372 : vector<16x32xf32>
    %c0_143 = arith.constant 0 : index
    %c0_144 = arith.constant 0 : index
    %c0_145 = arith.constant 0 : index
    %374 = vector.load %arg17[%c0_143, %c0_144, %c0_145] : memref<2x32x32xf32, #tpu.memory_space<vmem>>, vector<1x32x32xf32>
    %375 = vector.shape_cast %374 : vector<1x32x32xf32> to vector<32x32xf32>
    %cst_146 = arith.constant dense<0.000000e+00> : vector<16x32xf32>
    %376 = tpu.matmul %373, %375, %cst_146 {dimension_numbers = #tpu.dot_dimension_numbers<[1], [0], [0], [1], [0, 0, 1, 1], [], []>} : vector<16x32xf32>, vector<32x32xf32>, vector<16x32xf32> -> vector<16x32xf32>
    %c0_147 = arith.constant 0 : index
    %c0_148 = arith.constant 0 : index
    %c0_149 = arith.constant 0 : index
    %377 = vector.load %arg18[%c0_147, %c0_148, %c0_149] : memref<2x1x32xf32, #tpu.memory_space<vmem>>, vector<1x1x32xf32>
    %378 = vector.shape_cast %377 : vector<1x1x32xf32> to vector<1x32xf32>
    %379 = vector.broadcast %378 : vector<1x32xf32> to vector<16x32xf32>
    %380 = arith.addf %376, %379 : vector<16x32xf32>
    %c0_150 = arith.constant 0 : index
    %c0_151 = arith.constant 0 : index
    %c0_152 = arith.constant 0 : index
    %381 = vector.load %arg19[%c0_150, %c0_151, %c0_152] : memref<2x32x32xf32, #tpu.memory_space<vmem>>, vector<1x32x32xf32>
    %382 = vector.shape_cast %381 : vector<1x32x32xf32> to vector<32x32xf32>
    %cst_153 = arith.constant dense<0.000000e+00> : vector<16x32xf32>
    %383 = tpu.matmul %373, %382, %cst_153 {dimension_numbers = #tpu.dot_dimension_numbers<[1], [0], [0], [1], [0, 0, 1, 1], [], []>} : vector<16x32xf32>, vector<32x32xf32>, vector<16x32xf32> -> vector<16x32xf32>
    %c0_154 = arith.constant 0 : index
    %c0_155 = arith.constant 0 : index
    %c0_156 = arith.constant 0 : index
    %384 = vector.load %arg20[%c0_154, %c0_155, %c0_156] : memref<2x1x32xf32, #tpu.memory_space<vmem>>, vector<1x1x32xf32>
    %385 = vector.shape_cast %384 : vector<1x1x32xf32> to vector<1x32xf32>
    %386 = vector.broadcast %385 : vector<1x32xf32> to vector<16x32xf32>
    %387 = arith.addf %383, %386 : vector<16x32xf32>
    %388 = arith.negf %387 : vector<16x32xf32>
    %389 = math.exp %388 : vector<16x32xf32>
    %cst_157 = arith.constant 1.000000e+00 : f32
    %390 = vector.broadcast %cst_157 : f32 to vector<16x32xf32>
    %391 = arith.addf %390, %389 : vector<16x32xf32>
    %392 = arith.divf %390, %391 : vector<16x32xf32>
    %393 = arith.mulf %380, %392 : vector<16x32xf32>
    %c0_158 = arith.constant 0 : index
    %c0_159 = arith.constant 0 : index
    %c0_160 = arith.constant 0 : index
    %394 = vector.load %arg21[%c0_158, %c0_159, %c0_160] : memref<2x3x32xf32, #tpu.memory_space<vmem>>, vector<1x3x32xf32>
    %395 = vector.shape_cast %394 : vector<1x3x32xf32> to vector<3x32xf32>
    %c0_161 = arith.constant 0 : index
    %c0_162 = arith.constant 0 : index
    %c0_163 = arith.constant 0 : index
    %396 = vector.load %arg22[%c0_161, %c0_162, %c0_163] : memref<2x1x32xf32, #tpu.memory_space<vmem>>, vector<1x1x32xf32>
    %397 = vector.shape_cast %396 : vector<1x1x32xf32> to vector<1x32xf32>
    %398 = vector.extract_strided_slice %393 {offsets = [0, 0], sizes = [8, 32], strides = [1, 1]} : vector<16x32xf32> to vector<8x32xf32>
    %c1 = arith.constant 1 : index
    %c0_164 = arith.constant 0 : index
    %399 = vector.load %arg39[%c1, %c0_164] : memref<10x32xf32, #tpu.memory_space<vmem>>, vector<8x32xf32>
    tpu.vector_store %arg39[%c1, %c0_164], %398 {strides = array<i32>} : memref<10x32xf32, #tpu.memory_space<vmem>>, vector<8x32xf32>,
    %c0_165 = arith.constant 0 : index
    %c0_166 = arith.constant 0 : index
    %400 = vector.load %arg39[%c0_165, %c0_166] : memref<10x32xf32, #tpu.memory_space<vmem>>, vector<10x32xf32>
    %cst_167 = arith.constant 0.000000e+00 : f32
    %401 = vector.broadcast %cst_167 : f32 to vector<8x32xf32>
    %402 = vector.extract_strided_slice %400 {offsets = [0, 0], sizes = [8, 32], strides = [1, 1]} : vector<10x32xf32> to vector<8x32xf32>
    %403 = vector.extract_strided_slice %395 {offsets = [0, 0], sizes = [1, 32], strides = [1, 1]} : vector<3x32xf32> to vector<1x32xf32>
    %404 = vector.broadcast %403 : vector<1x32xf32> to vector<8x32xf32>
    %405 = arith.mulf %402, %404 : vector<8x32xf32>
    %406 = arith.addf %401, %405 : vector<8x32xf32>
    %407 = vector.extract_strided_slice %400 {offsets = [1, 0], sizes = [8, 32], strides = [1, 1]} : vector<10x32xf32> to vector<8x32xf32>
    %408 = vector.extract_strided_slice %395 {offsets = [1, 0], sizes = [1, 32], strides = [1, 1]} : vector<3x32xf32> to vector<1x32xf32>
    %409 = vector.broadcast %408 : vector<1x32xf32> to vector<8x32xf32>
    %410 = arith.mulf %407, %409 : vector<8x32xf32>
    %411 = arith.addf %406, %410 : vector<8x32xf32>
    %412 = vector.extract_strided_slice %400 {offsets = [2, 0], sizes = [8, 32], strides = [1, 1]} : vector<10x32xf32> to vector<8x32xf32>
    %413 = vector.extract_strided_slice %395 {offsets = [2, 0], sizes = [1, 32], strides = [1, 1]} : vector<3x32xf32> to vector<1x32xf32>
    %414 = vector.broadcast %413 : vector<1x32xf32> to vector<8x32xf32>
    %415 = arith.mulf %412, %414 : vector<8x32xf32>
    %416 = arith.addf %411, %415 : vector<8x32xf32>
    %417 = vector.broadcast %397 : vector<1x32xf32> to vector<8x32xf32>
    %418 = arith.addf %416, %417 : vector<8x32xf32>
    %419 = arith.negf %418 : vector<8x32xf32>
    %420 = math.exp %419 : vector<8x32xf32>
    %cst_168 = arith.constant 1.000000e+00 : f32
    %421 = vector.broadcast %cst_168 : f32 to vector<8x32xf32>
    %422 = arith.addf %421, %420 : vector<8x32xf32>
    %423 = arith.divf %421, %422 : vector<8x32xf32>
    %424 = arith.mulf %418, %423 : vector<8x32xf32>
    %c0_169 = arith.constant 0 : index
    %c0_170 = arith.constant 0 : index
    %425 = vector.load %arg38[%c0_169, %c0_170] : memref<16x32xf32, #tpu.memory_space<vmem>>, vector<8x32xf32>
    tpu.vector_store %arg38[%c0_169, %c0_170], %424 {strides = array<i32>} : memref<16x32xf32, #tpu.memory_space<vmem>>, vector<8x32xf32>,
    %426 = vector.extract_strided_slice %393 {offsets = [8, 0], sizes = [8, 32], strides = [1, 1]} : vector<16x32xf32> to vector<8x32xf32>
    %c1_171 = arith.constant 1 : index
    %c0_172 = arith.constant 0 : index
    %427 = vector.load %arg39[%c1_171, %c0_172] : memref<10x32xf32, #tpu.memory_space<vmem>>, vector<8x32xf32>
    tpu.vector_store %arg39[%c1_171, %c0_172], %426 {strides = array<i32>} : memref<10x32xf32, #tpu.memory_space<vmem>>, vector<8x32xf32>,
    %c0_173 = arith.constant 0 : index
    %c0_174 = arith.constant 0 : index
    %428 = vector.load %arg39[%c0_173, %c0_174] : memref<10x32xf32, #tpu.memory_space<vmem>>, vector<10x32xf32>
    %cst_175 = arith.constant 0.000000e+00 : f32
    %429 = vector.broadcast %cst_175 : f32 to vector<8x32xf32>
    %430 = vector.extract_strided_slice %428 {offsets = [0, 0], sizes = [8, 32], strides = [1, 1]} : vector<10x32xf32> to vector<8x32xf32>
    %431 = vector.extract_strided_slice %395 {offsets = [0, 0], sizes = [1, 32], strides = [1, 1]} : vector<3x32xf32> to vector<1x32xf32>
    %432 = vector.broadcast %431 : vector<1x32xf32> to vector<8x32xf32>
    %433 = arith.mulf %430, %432 : vector<8x32xf32>
    %434 = arith.addf %429, %433 : vector<8x32xf32>
    %435 = vector.extract_strided_slice %428 {offsets = [1, 0], sizes = [8, 32], strides = [1, 1]} : vector<10x32xf32> to vector<8x32xf32>
    %436 = vector.extract_strided_slice %395 {offsets = [1, 0], sizes = [1, 32], strides = [1, 1]} : vector<3x32xf32> to vector<1x32xf32>
    %437 = vector.broadcast %436 : vector<1x32xf32> to vector<8x32xf32>
    %438 = arith.mulf %435, %437 : vector<8x32xf32>
    %439 = arith.addf %434, %438 : vector<8x32xf32>
    %440 = vector.extract_strided_slice %428 {offsets = [2, 0], sizes = [8, 32], strides = [1, 1]} : vector<10x32xf32> to vector<8x32xf32>
    %441 = vector.extract_strided_slice %395 {offsets = [2, 0], sizes = [1, 32], strides = [1, 1]} : vector<3x32xf32> to vector<1x32xf32>
    %442 = vector.broadcast %441 : vector<1x32xf32> to vector<8x32xf32>
    %443 = arith.mulf %440, %442 : vector<8x32xf32>
    %444 = arith.addf %439, %443 : vector<8x32xf32>
    %445 = vector.broadcast %397 : vector<1x32xf32> to vector<8x32xf32>
    %446 = arith.addf %444, %445 : vector<8x32xf32>
    %447 = arith.negf %446 : vector<8x32xf32>
    %448 = math.exp %447 : vector<8x32xf32>
    %cst_176 = arith.constant 1.000000e+00 : f32
    %449 = vector.broadcast %cst_176 : f32 to vector<8x32xf32>
    %450 = arith.addf %449, %448 : vector<8x32xf32>
    %451 = arith.divf %449, %450 : vector<8x32xf32>
    %452 = arith.mulf %446, %451 : vector<8x32xf32>
    %c8_177 = arith.constant 8 : index
    %c0_178 = arith.constant 0 : index
    %453 = vector.load %arg38[%c8_177, %c0_178] : memref<16x32xf32, #tpu.memory_space<vmem>>, vector<8x32xf32>
    tpu.vector_store %arg38[%c8_177, %c0_178], %452 {strides = array<i32>} : memref<16x32xf32, #tpu.memory_space<vmem>>, vector<8x32xf32>,
    %c0_179 = arith.constant 0 : index
    %c0_180 = arith.constant 0 : index
    %454 = vector.load %arg38[%c0_179, %c0_180] : memref<16x32xf32, #tpu.memory_space<vmem>>, vector<16x32xf32>
    %c0_181 = arith.constant 0 : index
    %c0_182 = arith.constant 0 : index
    %c0_183 = arith.constant 0 : index
    %455 = vector.load %arg23[%c0_181, %c0_182, %c0_183] : memref<2x32x32xf32, #tpu.memory_space<vmem>>, vector<1x32x32xf32>
    %456 = vector.shape_cast %455 : vector<1x32x32xf32> to vector<32x32xf32>
    %cst_184 = arith.constant dense<0.000000e+00> : vector<16x32xf32>
    %457 = tpu.matmul %454, %456, %cst_184 {dimension_numbers = #tpu.dot_dimension_numbers<[1], [0], [0], [1], [0, 0, 1, 1], [], []>} : vector<16x32xf32>, vector<32x32xf32>, vector<16x32xf32> -> vector<16x32xf32>
    %c0_185 = arith.constant 0 : index
    %c0_186 = arith.constant 0 : index
    %c0_187 = arith.constant 0 : index
    %458 = vector.load %arg24[%c0_185, %c0_186, %c0_187] : memref<2x1x32xf32, #tpu.memory_space<vmem>>, vector<1x1x32xf32>
    %459 = vector.shape_cast %458 : vector<1x1x32xf32> to vector<1x32xf32>
    %460 = vector.broadcast %459 : vector<1x32xf32> to vector<16x32xf32>
    %461 = arith.addf %457, %460 : vector<16x32xf32>
    %462 = arith.addf %349, %461 : vector<16x32xf32>
    %c0_188 = arith.constant 0 : index
    %c0_189 = arith.constant 0 : index
    %c0_190 = arith.constant 0 : index
    %463 = vector.load %arg25[%c0_188, %c0_189, %c0_190] : memref<2x1x32xf32, #tpu.memory_space<vmem>>, vector<1x1x32xf32>
    %464 = vector.shape_cast %463 : vector<1x1x32xf32> to vector<1x32xf32>
    %c0_191 = arith.constant 0 : index
    %c0_192 = arith.constant 0 : index
    %c0_193 = arith.constant 0 : index
    %465 = vector.load %arg26[%c0_191, %c0_192, %c0_193] : memref<2x1x32xf32, #tpu.memory_space<vmem>>, vector<1x1x32xf32>
    %466 = vector.shape_cast %465 : vector<1x1x32xf32> to vector<1x32xf32>
    %cst_194 = arith.constant dense<0.000000e+00> : vector<16xf32>
    %467 = vector.multi_reduction <add>, %462, %cst_194 [1] : vector<16x32xf32> to vector<16xf32>
    %468 = vector.shape_cast %467 : vector<16xf32> to vector<16x1xf32>
    %cst_195 = arith.constant 3.200000e+01 : f32
    %469 = vector.broadcast %cst_195 : f32 to vector<16x1xf32>
    %470 = arith.divf %468, %469 : vector<16x1xf32>
    %471 = vector.broadcast %470 : vector<16x1xf32> to vector<16x32xf32>
    %472 = arith.subf %462, %471 : vector<16x32xf32>
    %473 = arith.mulf %472, %472 : vector<16x32xf32>
    %cst_196 = arith.constant dense<0.000000e+00> : vector<16xf32>
    %474 = vector.multi_reduction <add>, %473, %cst_196 [1] : vector<16x32xf32> to vector<16xf32>
    %475 = vector.shape_cast %474 : vector<16xf32> to vector<16x1xf32>
    %cst_197 = arith.constant 3.200000e+01 : f32
    %476 = vector.broadcast %cst_197 : f32 to vector<16x1xf32>
    %477 = arith.divf %475, %476 : vector<16x1xf32>
    %cst_198 = arith.constant 9.99999974E-6 : f32
    %478 = vector.broadcast %cst_198 : f32 to vector<16x1xf32>
    %479 = arith.addf %477, %478 : vector<16x1xf32>
    %480 = math.rsqrt %479 : vector<16x1xf32>
    %481 = vector.broadcast %480 : vector<16x1xf32> to vector<16x32xf32>
    %482 = arith.mulf %472, %481 : vector<16x32xf32>
    %483 = vector.broadcast %464 : vector<1x32xf32> to vector<16x32xf32>
    %484 = arith.mulf %482, %483 : vector<16x32xf32>
    %485 = vector.broadcast %466 : vector<1x32xf32> to vector<16x32xf32>
    %486 = arith.addf %484, %485 : vector<16x32xf32>
    %c0_199 = arith.constant 0 : index
    %c0_200 = arith.constant 0 : index
    %c0_201 = arith.constant 0 : index
    %487 = vector.load %arg27[%c0_199, %c0_200, %c0_201] : memref<2x32x64xf32, #tpu.memory_space<vmem>>, vector<1x32x64xf32>
    %488 = vector.shape_cast %487 : vector<1x32x64xf32> to vector<32x64xf32>
    %cst_202 = arith.constant dense<0.000000e+00> : vector<16x64xf32>
    %489 = tpu.matmul %486, %488, %cst_202 {dimension_numbers = #tpu.dot_dimension_numbers<[1], [0], [0], [1], [0, 0, 1, 1], [], []>} : vector<16x32xf32>, vector<32x64xf32>, vector<16x64xf32> -> vector<16x64xf32>
    %c0_203 = arith.constant 0 : index
    %c0_204 = arith.constant 0 : index
    %c0_205 = arith.constant 0 : index
    %490 = vector.load %arg28[%c0_203, %c0_204, %c0_205] : memref<2x1x64xf32, #tpu.memory_space<vmem>>, vector<1x1x64xf32>
    %491 = vector.shape_cast %490 : vector<1x1x64xf32> to vector<1x64xf32>
    %492 = vector.broadcast %491 : vector<1x64xf32> to vector<16x64xf32>
    %493 = arith.addf %489, %492 : vector<16x64xf32>
    %494 = arith.negf %493 : vector<16x64xf32>
    %495 = math.exp %494 : vector<16x64xf32>
    %cst_206 = arith.constant 1.000000e+00 : f32
    %496 = vector.broadcast %cst_206 : f32 to vector<16x64xf32>
    %497 = arith.addf %496, %495 : vector<16x64xf32>
    %498 = arith.divf %496, %497 : vector<16x64xf32>
    %499 = arith.mulf %493, %498 : vector<16x64xf32>
    %c0_207 = arith.constant 0 : index
    %c0_208 = arith.constant 0 : index
    %c0_209 = arith.constant 0 : index
    %500 = vector.load %arg29[%c0_207, %c0_208, %c0_209] : memref<2x64x32xf32, #tpu.memory_space<vmem>>, vector<1x64x32xf32>
    %501 = vector.shape_cast %500 : vector<1x64x32xf32> to vector<64x32xf32>
    %cst_210 = arith.constant dense<0.000000e+00> : vector<16x32xf32>
    %502 = tpu.matmul %499, %501, %cst_210 {dimension_numbers = #tpu.dot_dimension_numbers<[1], [0], [0], [1], [0, 0, 1, 1], [], []>} : vector<16x64xf32>, vector<64x32xf32>, vector<16x32xf32> -> vector<16x32xf32>
    %c0_211 = arith.constant 0 : index
    %c0_212 = arith.constant 0 : index
    %c0_213 = arith.constant 0 : index
    %503 = vector.load %arg30[%c0_211, %c0_212, %c0_213] : memref<2x1x32xf32, #tpu.memory_space<vmem>>, vector<1x1x32xf32>
    %504 = vector.shape_cast %503 : vector<1x1x32xf32> to vector<1x32xf32>
    %505 = vector.broadcast %504 : vector<1x32xf32> to vector<16x32xf32>
    %506 = arith.addf %502, %505 : vector<16x32xf32>
    %cst_214 = arith.constant 5.000000e-01 : f32
    %507 = vector.broadcast %cst_214 : f32 to vector<16x32xf32>
    %508 = arith.mulf %507, %506 : vector<16x32xf32>
    %509 = arith.addf %462, %508 : vector<16x32xf32>
    %c0_215 = arith.constant 0 : index
    %c0_216 = arith.constant 0 : index
    %c0_217 = arith.constant 0 : index
    %510 = vector.load %arg31[%c0_215, %c0_216, %c0_217] : memref<2x1x32xf32, #tpu.memory_space<vmem>>, vector<1x1x32xf32>
    %511 = vector.shape_cast %510 : vector<1x1x32xf32> to vector<1x32xf32>
    %c0_218 = arith.constant 0 : index
    %c0_219 = arith.constant 0 : index
    %c0_220 = arith.constant 0 : index
    %512 = vector.load %arg32[%c0_218, %c0_219, %c0_220] : memref<2x1x32xf32, #tpu.memory_space<vmem>>, vector<1x1x32xf32>
    %513 = vector.shape_cast %512 : vector<1x1x32xf32> to vector<1x32xf32>
    %cst_221 = arith.constant dense<0.000000e+00> : vector<16xf32>
    %514 = vector.multi_reduction <add>, %509, %cst_221 [1] : vector<16x32xf32> to vector<16xf32>
    %515 = vector.shape_cast %514 : vector<16xf32> to vector<16x1xf32>
    %cst_222 = arith.constant 3.200000e+01 : f32
    %516 = vector.broadcast %cst_222 : f32 to vector<16x1xf32>
    %517 = arith.divf %515, %516 : vector<16x1xf32>
    %518 = vector.broadcast %517 : vector<16x1xf32> to vector<16x32xf32>
    %519 = arith.subf %509, %518 : vector<16x32xf32>
    %520 = arith.mulf %519, %519 : vector<16x32xf32>
    %cst_223 = arith.constant dense<0.000000e+00> : vector<16xf32>
    %521 = vector.multi_reduction <add>, %520, %cst_223 [1] : vector<16x32xf32> to vector<16xf32>
    %522 = vector.shape_cast %521 : vector<16xf32> to vector<16x1xf32>
    %cst_224 = arith.constant 3.200000e+01 : f32
    %523 = vector.broadcast %cst_224 : f32 to vector<16x1xf32>
    %524 = arith.divf %522, %523 : vector<16x1xf32>
    %cst_225 = arith.constant 9.99999974E-6 : f32
    %525 = vector.broadcast %cst_225 : f32 to vector<16x1xf32>
    %526 = arith.addf %524, %525 : vector<16x1xf32>
    %527 = math.rsqrt %526 : vector<16x1xf32>
    %528 = vector.broadcast %527 : vector<16x1xf32> to vector<16x32xf32>
    %529 = arith.mulf %519, %528 : vector<16x32xf32>
    %530 = vector.broadcast %511 : vector<1x32xf32> to vector<16x32xf32>
    %531 = arith.mulf %529, %530 : vector<16x32xf32>
    %532 = vector.broadcast %513 : vector<1x32xf32> to vector<16x32xf32>
    %533 = arith.addf %531, %532 : vector<16x32xf32>
    %c1_226 = arith.constant 1 : index
    %c0_227 = arith.constant 0 : index
    %c0_228 = arith.constant 0 : index
    %534 = vector.load %arg3[%c1_226, %c0_227, %c0_228] : memref<2x1x32xf32, #tpu.memory_space<vmem>>, vector<1x1x32xf32>
    %535 = vector.shape_cast %534 : vector<1x1x32xf32> to vector<1x32xf32>
    %c1_229 = arith.constant 1 : index
    %c0_230 = arith.constant 0 : index
    %c0_231 = arith.constant 0 : index
    %536 = vector.load %arg4[%c1_229, %c0_230, %c0_231] : memref<2x1x32xf32, #tpu.memory_space<vmem>>, vector<1x1x32xf32>
    %537 = vector.shape_cast %536 : vector<1x1x32xf32> to vector<1x32xf32>
    %cst_232 = arith.constant dense<0.000000e+00> : vector<16xf32>
    %538 = vector.multi_reduction <add>, %533, %cst_232 [1] : vector<16x32xf32> to vector<16xf32>
    %539 = vector.shape_cast %538 : vector<16xf32> to vector<16x1xf32>
    %cst_233 = arith.constant 3.200000e+01 : f32
    %540 = vector.broadcast %cst_233 : f32 to vector<16x1xf32>
    %541 = arith.divf %539, %540 : vector<16x1xf32>
    %542 = vector.broadcast %541 : vector<16x1xf32> to vector<16x32xf32>
    %543 = arith.subf %533, %542 : vector<16x32xf32>
    %544 = arith.mulf %543, %543 : vector<16x32xf32>
    %cst_234 = arith.constant dense<0.000000e+00> : vector<16xf32>
    %545 = vector.multi_reduction <add>, %544, %cst_234 [1] : vector<16x32xf32> to vector<16xf32>
    %546 = vector.shape_cast %545 : vector<16xf32> to vector<16x1xf32>
    %cst_235 = arith.constant 3.200000e+01 : f32
    %547 = vector.broadcast %cst_235 : f32 to vector<16x1xf32>
    %548 = arith.divf %546, %547 : vector<16x1xf32>
    %cst_236 = arith.constant 9.99999974E-6 : f32
    %549 = vector.broadcast %cst_236 : f32 to vector<16x1xf32>
    %550 = arith.addf %548, %549 : vector<16x1xf32>
    %551 = math.rsqrt %550 : vector<16x1xf32>
    %552 = vector.broadcast %551 : vector<16x1xf32> to vector<16x32xf32>
    %553 = arith.mulf %543, %552 : vector<16x32xf32>
    %554 = vector.broadcast %535 : vector<1x32xf32> to vector<16x32xf32>
    %555 = arith.mulf %553, %554 : vector<16x32xf32>
    %556 = vector.broadcast %537 : vector<1x32xf32> to vector<16x32xf32>
    %557 = arith.addf %555, %556 : vector<16x32xf32>
    %c1_237 = arith.constant 1 : index
    %c0_238 = arith.constant 0 : index
    %c0_239 = arith.constant 0 : index
    %558 = vector.load %arg5[%c1_237, %c0_238, %c0_239] : memref<2x32x64xf32, #tpu.memory_space<vmem>>, vector<1x32x64xf32>
    %559 = vector.shape_cast %558 : vector<1x32x64xf32> to vector<32x64xf32>
    %cst_240 = arith.constant dense<0.000000e+00> : vector<16x64xf32>
    %560 = tpu.matmul %557, %559, %cst_240 {dimension_numbers = #tpu.dot_dimension_numbers<[1], [0], [0], [1], [0, 0, 1, 1], [], []>} : vector<16x32xf32>, vector<32x64xf32>, vector<16x64xf32> -> vector<16x64xf32>
    %c1_241 = arith.constant 1 : index
    %c0_242 = arith.constant 0 : index
    %c0_243 = arith.constant 0 : index
    %561 = vector.load %arg6[%c1_241, %c0_242, %c0_243] : memref<2x1x64xf32, #tpu.memory_space<vmem>>, vector<1x1x64xf32>
    %562 = vector.shape_cast %561 : vector<1x1x64xf32> to vector<1x64xf32>
    %563 = vector.broadcast %562 : vector<1x64xf32> to vector<16x64xf32>
    %564 = arith.addf %560, %563 : vector<16x64xf32>
    %565 = arith.negf %564 : vector<16x64xf32>
    %566 = math.exp %565 : vector<16x64xf32>
    %cst_244 = arith.constant 1.000000e+00 : f32
    %567 = vector.broadcast %cst_244 : f32 to vector<16x64xf32>
    %568 = arith.addf %567, %566 : vector<16x64xf32>
    %569 = arith.divf %567, %568 : vector<16x64xf32>
    %570 = arith.mulf %564, %569 : vector<16x64xf32>
    %c1_245 = arith.constant 1 : index
    %c0_246 = arith.constant 0 : index
    %c0_247 = arith.constant 0 : index
    %571 = vector.load %arg7[%c1_245, %c0_246, %c0_247] : memref<2x64x32xf32, #tpu.memory_space<vmem>>, vector<1x64x32xf32>
    %572 = vector.shape_cast %571 : vector<1x64x32xf32> to vector<64x32xf32>
    %cst_248 = arith.constant dense<0.000000e+00> : vector<16x32xf32>
    %573 = tpu.matmul %570, %572, %cst_248 {dimension_numbers = #tpu.dot_dimension_numbers<[1], [0], [0], [1], [0, 0, 1, 1], [], []>} : vector<16x64xf32>, vector<64x32xf32>, vector<16x32xf32> -> vector<16x32xf32>
    %c1_249 = arith.constant 1 : index
    %c0_250 = arith.constant 0 : index
    %c0_251 = arith.constant 0 : index
    %574 = vector.load %arg8[%c1_249, %c0_250, %c0_251] : memref<2x1x32xf32, #tpu.memory_space<vmem>>, vector<1x1x32xf32>
    %575 = vector.shape_cast %574 : vector<1x1x32xf32> to vector<1x32xf32>
    %576 = vector.broadcast %575 : vector<1x32xf32> to vector<16x32xf32>
    %577 = arith.addf %573, %576 : vector<16x32xf32>
    %cst_252 = arith.constant 5.000000e-01 : f32
    %578 = vector.broadcast %cst_252 : f32 to vector<16x32xf32>
    %579 = arith.mulf %578, %577 : vector<16x32xf32>
    %580 = arith.addf %533, %579 : vector<16x32xf32>
    %c1_253 = arith.constant 1 : index
    %c0_254 = arith.constant 0 : index
    %c0_255 = arith.constant 0 : index
    %581 = vector.load %arg9[%c1_253, %c0_254, %c0_255] : memref<2x1x32xf32, #tpu.memory_space<vmem>>, vector<1x1x32xf32>
    %582 = vector.shape_cast %581 : vector<1x1x32xf32> to vector<1x32xf32>
    %c1_256 = arith.constant 1 : index
    %c0_257 = arith.constant 0 : index
    %c0_258 = arith.constant 0 : index
    %583 = vector.load %arg10[%c1_256, %c0_257, %c0_258] : memref<2x1x32xf32, #tpu.memory_space<vmem>>, vector<1x1x32xf32>
    %584 = vector.shape_cast %583 : vector<1x1x32xf32> to vector<1x32xf32>
    %cst_259 = arith.constant dense<0.000000e+00> : vector<16xf32>
    %585 = vector.multi_reduction <add>, %580, %cst_259 [1] : vector<16x32xf32> to vector<16xf32>
    %586 = vector.shape_cast %585 : vector<16xf32> to vector<16x1xf32>
    %cst_260 = arith.constant 3.200000e+01 : f32
    %587 = vector.broadcast %cst_260 : f32 to vector<16x1xf32>
    %588 = arith.divf %586, %587 : vector<16x1xf32>
    %589 = vector.broadcast %588 : vector<16x1xf32> to vector<16x32xf32>
    %590 = arith.subf %580, %589 : vector<16x32xf32>
    %591 = arith.mulf %590, %590 : vector<16x32xf32>
    %cst_261 = arith.constant dense<0.000000e+00> : vector<16xf32>
    %592 = vector.multi_reduction <add>, %591, %cst_261 [1] : vector<16x32xf32> to vector<16xf32>
    %593 = vector.shape_cast %592 : vector<16xf32> to vector<16x1xf32>
    %cst_262 = arith.constant 3.200000e+01 : f32
    %594 = vector.broadcast %cst_262 : f32 to vector<16x1xf32>
    %595 = arith.divf %593, %594 : vector<16x1xf32>
    %cst_263 = arith.constant 9.99999974E-6 : f32
    %596 = vector.broadcast %cst_263 : f32 to vector<16x1xf32>
    %597 = arith.addf %595, %596 : vector<16x1xf32>
    %598 = math.rsqrt %597 : vector<16x1xf32>
    %599 = vector.broadcast %598 : vector<16x1xf32> to vector<16x32xf32>
    %600 = arith.mulf %590, %599 : vector<16x32xf32>
    %601 = vector.broadcast %582 : vector<1x32xf32> to vector<16x32xf32>
    %602 = arith.mulf %600, %601 : vector<16x32xf32>
    %603 = vector.broadcast %584 : vector<1x32xf32> to vector<16x32xf32>
    %604 = arith.addf %602, %603 : vector<16x32xf32>
    %c1_264 = arith.constant 1 : index
    %c0_265 = arith.constant 0 : index
    %c0_266 = arith.constant 0 : index
    %605 = vector.load %arg11[%c1_264, %c0_265, %c0_266] : memref<2x32x96xf32, #tpu.memory_space<vmem>>, vector<1x32x96xf32>
    %606 = vector.shape_cast %605 : vector<1x32x96xf32> to vector<32x96xf32>
    %cst_267 = arith.constant dense<0.000000e+00> : vector<16x96xf32>
    %607 = tpu.matmul %604, %606, %cst_267 {dimension_numbers = #tpu.dot_dimension_numbers<[1], [0], [0], [1], [0, 0, 1, 1], [], []>} : vector<16x32xf32>, vector<32x96xf32>, vector<16x96xf32> -> vector<16x96xf32>
    %c1_268 = arith.constant 1 : index
    %c0_269 = arith.constant 0 : index
    %c0_270 = arith.constant 0 : index
    %608 = vector.load %arg12[%c1_268, %c0_269, %c0_270] : memref<2x1x96xf32, #tpu.memory_space<vmem>>, vector<1x1x96xf32>
    %609 = vector.shape_cast %608 : vector<1x1x96xf32> to vector<1x96xf32>
    %610 = vector.broadcast %609 : vector<1x96xf32> to vector<16x96xf32>
    %611 = arith.addf %607, %610 : vector<16x96xf32>
    %612 = vector.extract_strided_slice %611 {offsets = [0, 0], sizes = [16, 32], strides = [1, 1]} : vector<16x96xf32> to vector<16x32xf32>
    %613 = vector.extract_strided_slice %611 {offsets = [0, 32], sizes = [16, 32], strides = [1, 1]} : vector<16x96xf32> to vector<16x32xf32>
    %614 = vector.extract_strided_slice %611 {offsets = [0, 64], sizes = [16, 32], strides = [1, 1]} : vector<16x96xf32> to vector<16x32xf32>
    %c1_271 = arith.constant 1 : index
    %c0_272 = arith.constant 0 : index
    %c0_273 = arith.constant 0 : index
    %615 = vector.load %arg13[%c1_271, %c0_272, %c0_273] : memref<2x32x32xf32, #tpu.memory_space<vmem>>, vector<1x32x32xf32>
    %616 = vector.shape_cast %615 : vector<1x32x32xf32> to vector<32x32xf32>
    %c1_274 = arith.constant 1 : index
    %c0_275 = arith.constant 0 : index
    %c0_276 = arith.constant 0 : index
    %617 = vector.load %arg14[%c1_274, %c0_275, %c0_276] : memref<2x1x32xf32, #tpu.memory_space<vmem>>, vector<1x1x32xf32>
    %618 = vector.shape_cast %617 : vector<1x1x32xf32> to vector<1x32xf32>
    %619 = vector.extract_strided_slice %612 {offsets = [0, 0], sizes = [8, 32], strides = [1, 1]} : vector<16x32xf32> to vector<8x32xf32>
    %620 = vector.extract_strided_slice %613 {offsets = [0, 0], sizes = [8, 32], strides = [1, 1]} : vector<16x32xf32> to vector<8x32xf32>
    %621 = vector.extract_strided_slice %614 {offsets = [0, 0], sizes = [8, 32], strides = [1, 1]} : vector<16x32xf32> to vector<8x32xf32>
    %622 = vector.extract_strided_slice %1 {offsets = [0, 0], sizes = [1, 8], strides = [1, 1]} : vector<2x8xf32> to vector<1x8xf32>
    %cst_277 = arith.constant 0.000000e+00 : f32
    %623 = vector.broadcast %cst_277 : f32 to vector<8x32xf32>
    %c0_i32_278 = arith.constant 0 : i32
    %624 = vector.broadcast %c0_i32_278 : i32 to vector<1x32xi32>
    %625 = arith.cmpi sge, %4, %624 : vector<1x32xi32>
    %c8_i32_279 = arith.constant 8 : i32
    %626 = vector.broadcast %c8_i32_279 : i32 to vector<1x32xi32>
    %627 = arith.cmpi slt, %4, %626 : vector<1x32xi32>
    %628 = arith.andi %625, %627 : vector<1x32xi1>
    %cst_280 = arith.constant 0.000000e+00 : f32
    %629 = vector.shape_cast %628 : vector<1x32xi1> to vector<1x32xi1>
    %630 = vector.broadcast %629 : vector<1x32xi1> to vector<8x32xi1>
    %631 = vector.broadcast %cst_280 : f32 to vector<8x32xf32>
    %632 = arith.select %630, %619, %631 : vector<8x32xi1>, vector<8x32xf32>
    %cst_281 = arith.constant 0.000000e+00 : f32
    %633 = vector.shape_cast %628 : vector<1x32xi1> to vector<1x32xi1>
    %634 = vector.broadcast %633 : vector<1x32xi1> to vector<8x32xi1>
    %635 = vector.broadcast %cst_281 : f32 to vector<8x32xf32>
    %636 = arith.select %634, %621, %635 : vector<8x32xi1>, vector<8x32xf32>
    %cst_282 = arith.constant dense<0.000000e+00> : vector<8x8xf32>
    %637 = tpu.matmul %632, %620, %cst_282 {dimension_numbers = #tpu.dot_dimension_numbers<[1], [1], [0], [0], [0, 0, 1, 0], [], []>} : vector<8x32xf32>, vector<8x32xf32>, vector<8x8xf32> -> vector<8x8xf32>
    %cst_283 = arith.constant 0.353553385 : f32
    %638 = vector.broadcast %cst_283 : f32 to vector<8x8xf32>
    %639 = arith.mulf %637, %638 : vector<8x8xf32>
    %640 = vector.broadcast %622 : vector<1x8xf32> to vector<8x8xf32>
    %641 = arith.addf %639, %640 : vector<8x8xf32>
    %cst_284 = arith.constant dense<0xFF800000> : vector<8xf32>
    %642 = vector.multi_reduction <maximumf>, %641, %cst_284 [1] : vector<8x8xf32> to vector<8xf32>
    %643 = vector.shape_cast %642 : vector<8xf32> to vector<8x1xf32>
    %644 = vector.broadcast %643 : vector<8x1xf32> to vector<8x8xf32>
    %645 = arith.subf %641, %644 : vector<8x8xf32>
    %646 = math.exp %645 : vector<8x8xf32>
    %cst_285 = arith.constant dense<0.000000e+00> : vector<8xf32>
    %647 = vector.multi_reduction <add>, %646, %cst_285 [1] : vector<8x8xf32> to vector<8xf32>
    %648 = vector.shape_cast %647 : vector<8xf32> to vector<8x1xf32>
    %649 = tpu.reciprocal %648 {approx = true} : vector<8x1xf32> -> vector<8x1xf32>
    %650 = vector.broadcast %649 : vector<8x1xf32> to vector<8x8xf32>
    %651 = arith.mulf %646, %650 : vector<8x8xf32>
    %cst_286 = arith.constant dense<0.000000e+00> : vector<8x32xf32>
    %652 = tpu.matmul %651, %636, %cst_286 {dimension_numbers = #tpu.dot_dimension_numbers<[1], [0], [0], [1], [0, 0, 1, 1], [], []>} : vector<8x8xf32>, vector<8x32xf32>, vector<8x32xf32> -> vector<8x32xf32>
    %653 = arith.addf %623, %652 : vector<8x32xf32>
    %c8_i32_287 = arith.constant 8 : i32
    %654 = vector.broadcast %c8_i32_287 : i32 to vector<1x32xi32>
    %655 = arith.cmpi sge, %4, %654 : vector<1x32xi32>
    %c16_i32_288 = arith.constant 16 : i32
    %656 = vector.broadcast %c16_i32_288 : i32 to vector<1x32xi32>
    %657 = arith.cmpi slt, %4, %656 : vector<1x32xi32>
    %658 = arith.andi %655, %657 : vector<1x32xi1>
    %cst_289 = arith.constant 0.000000e+00 : f32
    %659 = vector.shape_cast %658 : vector<1x32xi1> to vector<1x32xi1>
    %660 = vector.broadcast %659 : vector<1x32xi1> to vector<8x32xi1>
    %661 = vector.broadcast %cst_289 : f32 to vector<8x32xf32>
    %662 = arith.select %660, %619, %661 : vector<8x32xi1>, vector<8x32xf32>
    %cst_290 = arith.constant 0.000000e+00 : f32
    %663 = vector.shape_cast %658 : vector<1x32xi1> to vector<1x32xi1>
    %664 = vector.broadcast %663 : vector<1x32xi1> to vector<8x32xi1>
    %665 = vector.broadcast %cst_290 : f32 to vector<8x32xf32>
    %666 = arith.select %664, %621, %665 : vector<8x32xi1>, vector<8x32xf32>
    %cst_291 = arith.constant dense<0.000000e+00> : vector<8x8xf32>
    %667 = tpu.matmul %662, %620, %cst_291 {dimension_numbers = #tpu.dot_dimension_numbers<[1], [1], [0], [0], [0, 0, 1, 0], [], []>} : vector<8x32xf32>, vector<8x32xf32>, vector<8x8xf32> -> vector<8x8xf32>
    %cst_292 = arith.constant 0.353553385 : f32
    %668 = vector.broadcast %cst_292 : f32 to vector<8x8xf32>
    %669 = arith.mulf %667, %668 : vector<8x8xf32>
    %670 = vector.broadcast %622 : vector<1x8xf32> to vector<8x8xf32>
    %671 = arith.addf %669, %670 : vector<8x8xf32>
    %cst_293 = arith.constant dense<0xFF800000> : vector<8xf32>
    %672 = vector.multi_reduction <maximumf>, %671, %cst_293 [1] : vector<8x8xf32> to vector<8xf32>
    %673 = vector.shape_cast %672 : vector<8xf32> to vector<8x1xf32>
    %674 = vector.broadcast %673 : vector<8x1xf32> to vector<8x8xf32>
    %675 = arith.subf %671, %674 : vector<8x8xf32>
    %676 = math.exp %675 : vector<8x8xf32>
    %cst_294 = arith.constant dense<0.000000e+00> : vector<8xf32>
    %677 = vector.multi_reduction <add>, %676, %cst_294 [1] : vector<8x8xf32> to vector<8xf32>
    %678 = vector.shape_cast %677 : vector<8xf32> to vector<8x1xf32>
    %679 = tpu.reciprocal %678 {approx = true} : vector<8x1xf32> -> vector<8x1xf32>
    %680 = vector.broadcast %679 : vector<8x1xf32> to vector<8x8xf32>
    %681 = arith.mulf %676, %680 : vector<8x8xf32>
    %cst_295 = arith.constant dense<0.000000e+00> : vector<8x32xf32>
    %682 = tpu.matmul %681, %666, %cst_295 {dimension_numbers = #tpu.dot_dimension_numbers<[1], [0], [0], [1], [0, 0, 1, 1], [], []>} : vector<8x8xf32>, vector<8x32xf32>, vector<8x32xf32> -> vector<8x32xf32>
    %683 = arith.addf %653, %682 : vector<8x32xf32>
    %c16_i32_296 = arith.constant 16 : i32
    %684 = vector.broadcast %c16_i32_296 : i32 to vector<1x32xi32>
    %685 = arith.cmpi sge, %4, %684 : vector<1x32xi32>
    %c24_i32_297 = arith.constant 24 : i32
    %686 = vector.broadcast %c24_i32_297 : i32 to vector<1x32xi32>
    %687 = arith.cmpi slt, %4, %686 : vector<1x32xi32>
    %688 = arith.andi %685, %687 : vector<1x32xi1>
    %cst_298 = arith.constant 0.000000e+00 : f32
    %689 = vector.shape_cast %688 : vector<1x32xi1> to vector<1x32xi1>
    %690 = vector.broadcast %689 : vector<1x32xi1> to vector<8x32xi1>
    %691 = vector.broadcast %cst_298 : f32 to vector<8x32xf32>
    %692 = arith.select %690, %619, %691 : vector<8x32xi1>, vector<8x32xf32>
    %cst_299 = arith.constant 0.000000e+00 : f32
    %693 = vector.shape_cast %688 : vector<1x32xi1> to vector<1x32xi1>
    %694 = vector.broadcast %693 : vector<1x32xi1> to vector<8x32xi1>
    %695 = vector.broadcast %cst_299 : f32 to vector<8x32xf32>
    %696 = arith.select %694, %621, %695 : vector<8x32xi1>, vector<8x32xf32>
    %cst_300 = arith.constant dense<0.000000e+00> : vector<8x8xf32>
    %697 = tpu.matmul %692, %620, %cst_300 {dimension_numbers = #tpu.dot_dimension_numbers<[1], [1], [0], [0], [0, 0, 1, 0], [], []>} : vector<8x32xf32>, vector<8x32xf32>, vector<8x8xf32> -> vector<8x8xf32>
    %cst_301 = arith.constant 0.353553385 : f32
    %698 = vector.broadcast %cst_301 : f32 to vector<8x8xf32>
    %699 = arith.mulf %697, %698 : vector<8x8xf32>
    %700 = vector.broadcast %622 : vector<1x8xf32> to vector<8x8xf32>
    %701 = arith.addf %699, %700 : vector<8x8xf32>
    %cst_302 = arith.constant dense<0xFF800000> : vector<8xf32>
    %702 = vector.multi_reduction <maximumf>, %701, %cst_302 [1] : vector<8x8xf32> to vector<8xf32>
    %703 = vector.shape_cast %702 : vector<8xf32> to vector<8x1xf32>
    %704 = vector.broadcast %703 : vector<8x1xf32> to vector<8x8xf32>
    %705 = arith.subf %701, %704 : vector<8x8xf32>
    %706 = math.exp %705 : vector<8x8xf32>
    %cst_303 = arith.constant dense<0.000000e+00> : vector<8xf32>
    %707 = vector.multi_reduction <add>, %706, %cst_303 [1] : vector<8x8xf32> to vector<8xf32>
    %708 = vector.shape_cast %707 : vector<8xf32> to vector<8x1xf32>
    %709 = tpu.reciprocal %708 {approx = true} : vector<8x1xf32> -> vector<8x1xf32>
    %710 = vector.broadcast %709 : vector<8x1xf32> to vector<8x8xf32>
    %711 = arith.mulf %706, %710 : vector<8x8xf32>
    %cst_304 = arith.constant dense<0.000000e+00> : vector<8x32xf32>
    %712 = tpu.matmul %711, %696, %cst_304 {dimension_numbers = #tpu.dot_dimension_numbers<[1], [0], [0], [1], [0, 0, 1, 1], [], []>} : vector<8x8xf32>, vector<8x32xf32>, vector<8x32xf32> -> vector<8x32xf32>
    %713 = arith.addf %683, %712 : vector<8x32xf32>
    %c24_i32_305 = arith.constant 24 : i32
    %714 = vector.broadcast %c24_i32_305 : i32 to vector<1x32xi32>
    %715 = arith.cmpi sge, %4, %714 : vector<1x32xi32>
    %c32_i32_306 = arith.constant 32 : i32
    %716 = vector.broadcast %c32_i32_306 : i32 to vector<1x32xi32>
    %717 = arith.cmpi slt, %4, %716 : vector<1x32xi32>
    %718 = arith.andi %715, %717 : vector<1x32xi1>
    %cst_307 = arith.constant 0.000000e+00 : f32
    %719 = vector.shape_cast %718 : vector<1x32xi1> to vector<1x32xi1>
    %720 = vector.broadcast %719 : vector<1x32xi1> to vector<8x32xi1>
    %721 = vector.broadcast %cst_307 : f32 to vector<8x32xf32>
    %722 = arith.select %720, %619, %721 : vector<8x32xi1>, vector<8x32xf32>
    %cst_308 = arith.constant 0.000000e+00 : f32
    %723 = vector.shape_cast %718 : vector<1x32xi1> to vector<1x32xi1>
    %724 = vector.broadcast %723 : vector<1x32xi1> to vector<8x32xi1>
    %725 = vector.broadcast %cst_308 : f32 to vector<8x32xf32>
    %726 = arith.select %724, %621, %725 : vector<8x32xi1>, vector<8x32xf32>
    %cst_309 = arith.constant dense<0.000000e+00> : vector<8x8xf32>
    %727 = tpu.matmul %722, %620, %cst_309 {dimension_numbers = #tpu.dot_dimension_numbers<[1], [1], [0], [0], [0, 0, 1, 0], [], []>} : vector<8x32xf32>, vector<8x32xf32>, vector<8x8xf32> -> vector<8x8xf32>
    %cst_310 = arith.constant 0.353553385 : f32
    %728 = vector.broadcast %cst_310 : f32 to vector<8x8xf32>
    %729 = arith.mulf %727, %728 : vector<8x8xf32>
    %730 = vector.broadcast %622 : vector<1x8xf32> to vector<8x8xf32>
    %731 = arith.addf %729, %730 : vector<8x8xf32>
    %cst_311 = arith.constant dense<0xFF800000> : vector<8xf32>
    %732 = vector.multi_reduction <maximumf>, %731, %cst_311 [1] : vector<8x8xf32> to vector<8xf32>
    %733 = vector.shape_cast %732 : vector<8xf32> to vector<8x1xf32>
    %734 = vector.broadcast %733 : vector<8x1xf32> to vector<8x8xf32>
    %735 = arith.subf %731, %734 : vector<8x8xf32>
    %736 = math.exp %735 : vector<8x8xf32>
    %cst_312 = arith.constant dense<0.000000e+00> : vector<8xf32>
    %737 = vector.multi_reduction <add>, %736, %cst_312 [1] : vector<8x8xf32> to vector<8xf32>
    %738 = vector.shape_cast %737 : vector<8xf32> to vector<8x1xf32>
    %739 = tpu.reciprocal %738 {approx = true} : vector<8x1xf32> -> vector<8x1xf32>
    %740 = vector.broadcast %739 : vector<8x1xf32> to vector<8x8xf32>
    %741 = arith.mulf %736, %740 : vector<8x8xf32>
    %cst_313 = arith.constant dense<0.000000e+00> : vector<8x32xf32>
    %742 = tpu.matmul %741, %726, %cst_313 {dimension_numbers = #tpu.dot_dimension_numbers<[1], [0], [0], [1], [0, 0, 1, 1], [], []>} : vector<8x8xf32>, vector<8x32xf32>, vector<8x32xf32> -> vector<8x32xf32>
    %743 = arith.addf %713, %742 : vector<8x32xf32>
    %cst_314 = arith.constant dense<0.000000e+00> : vector<8x32xf32>
    %744 = tpu.matmul %743, %616, %cst_314 {dimension_numbers = #tpu.dot_dimension_numbers<[1], [0], [0], [1], [0, 0, 1, 1], [], []>} : vector<8x32xf32>, vector<32x32xf32>, vector<8x32xf32> -> vector<8x32xf32>
    %745 = vector.broadcast %618 : vector<1x32xf32> to vector<8x32xf32>
    %746 = arith.addf %744, %745 : vector<8x32xf32>
    %c0_315 = arith.constant 0 : index
    %c0_316 = arith.constant 0 : index
    %747 = vector.load %arg38[%c0_315, %c0_316] : memref<16x32xf32, #tpu.memory_space<vmem>>, vector<8x32xf32>
    tpu.vector_store %arg38[%c0_315, %c0_316], %746 {strides = array<i32>} : memref<16x32xf32, #tpu.memory_space<vmem>>, vector<8x32xf32>,
    %748 = vector.extract_strided_slice %612 {offsets = [8, 0], sizes = [8, 32], strides = [1, 1]} : vector<16x32xf32> to vector<8x32xf32>
    %749 = vector.extract_strided_slice %613 {offsets = [8, 0], sizes = [8, 32], strides = [1, 1]} : vector<16x32xf32> to vector<8x32xf32>
    %750 = vector.extract_strided_slice %614 {offsets = [8, 0], sizes = [8, 32], strides = [1, 1]} : vector<16x32xf32> to vector<8x32xf32>
    %751 = vector.extract_strided_slice %1 {offsets = [1, 0], sizes = [1, 8], strides = [1, 1]} : vector<2x8xf32> to vector<1x8xf32>
    %cst_317 = arith.constant 0.000000e+00 : f32
    %752 = vector.broadcast %cst_317 : f32 to vector<8x32xf32>
    %c0_i32_318 = arith.constant 0 : i32
    %753 = vector.broadcast %c0_i32_318 : i32 to vector<1x32xi32>
    %754 = arith.cmpi sge, %4, %753 : vector<1x32xi32>
    %c8_i32_319 = arith.constant 8 : i32
    %755 = vector.broadcast %c8_i32_319 : i32 to vector<1x32xi32>
    %756 = arith.cmpi slt, %4, %755 : vector<1x32xi32>
    %757 = arith.andi %754, %756 : vector<1x32xi1>
    %cst_320 = arith.constant 0.000000e+00 : f32
    %758 = vector.shape_cast %757 : vector<1x32xi1> to vector<1x32xi1>
    %759 = vector.broadcast %758 : vector<1x32xi1> to vector<8x32xi1>
    %760 = vector.broadcast %cst_320 : f32 to vector<8x32xf32>
    %761 = arith.select %759, %748, %760 : vector<8x32xi1>, vector<8x32xf32>
    %cst_321 = arith.constant 0.000000e+00 : f32
    %762 = vector.shape_cast %757 : vector<1x32xi1> to vector<1x32xi1>
    %763 = vector.broadcast %762 : vector<1x32xi1> to vector<8x32xi1>
    %764 = vector.broadcast %cst_321 : f32 to vector<8x32xf32>
    %765 = arith.select %763, %750, %764 : vector<8x32xi1>, vector<8x32xf32>
    %cst_322 = arith.constant dense<0.000000e+00> : vector<8x8xf32>
    %766 = tpu.matmul %761, %749, %cst_322 {dimension_numbers = #tpu.dot_dimension_numbers<[1], [1], [0], [0], [0, 0, 1, 0], [], []>} : vector<8x32xf32>, vector<8x32xf32>, vector<8x8xf32> -> vector<8x8xf32>
    %cst_323 = arith.constant 0.353553385 : f32
    %767 = vector.broadcast %cst_323 : f32 to vector<8x8xf32>
    %768 = arith.mulf %766, %767 : vector<8x8xf32>
    %769 = vector.broadcast %751 : vector<1x8xf32> to vector<8x8xf32>
    %770 = arith.addf %768, %769 : vector<8x8xf32>
    %cst_324 = arith.constant dense<0xFF800000> : vector<8xf32>
    %771 = vector.multi_reduction <maximumf>, %770, %cst_324 [1] : vector<8x8xf32> to vector<8xf32>
    %772 = vector.shape_cast %771 : vector<8xf32> to vector<8x1xf32>
    %773 = vector.broadcast %772 : vector<8x1xf32> to vector<8x8xf32>
    %774 = arith.subf %770, %773 : vector<8x8xf32>
    %775 = math.exp %774 : vector<8x8xf32>
    %cst_325 = arith.constant dense<0.000000e+00> : vector<8xf32>
    %776 = vector.multi_reduction <add>, %775, %cst_325 [1] : vector<8x8xf32> to vector<8xf32>
    %777 = vector.shape_cast %776 : vector<8xf32> to vector<8x1xf32>
    %778 = tpu.reciprocal %777 {approx = true} : vector<8x1xf32> -> vector<8x1xf32>
    %779 = vector.broadcast %778 : vector<8x1xf32> to vector<8x8xf32>
    %780 = arith.mulf %775, %779 : vector<8x8xf32>
    %cst_326 = arith.constant dense<0.000000e+00> : vector<8x32xf32>
    %781 = tpu.matmul %780, %765, %cst_326 {dimension_numbers = #tpu.dot_dimension_numbers<[1], [0], [0], [1], [0, 0, 1, 1], [], []>} : vector<8x8xf32>, vector<8x32xf32>, vector<8x32xf32> -> vector<8x32xf32>
    %782 = arith.addf %752, %781 : vector<8x32xf32>
    %c8_i32_327 = arith.constant 8 : i32
    %783 = vector.broadcast %c8_i32_327 : i32 to vector<1x32xi32>
    %784 = arith.cmpi sge, %4, %783 : vector<1x32xi32>
    %c16_i32_328 = arith.constant 16 : i32
    %785 = vector.broadcast %c16_i32_328 : i32 to vector<1x32xi32>
    %786 = arith.cmpi slt, %4, %785 : vector<1x32xi32>
    %787 = arith.andi %784, %786 : vector<1x32xi1>
    %cst_329 = arith.constant 0.000000e+00 : f32
    %788 = vector.shape_cast %787 : vector<1x32xi1> to vector<1x32xi1>
    %789 = vector.broadcast %788 : vector<1x32xi1> to vector<8x32xi1>
    %790 = vector.broadcast %cst_329 : f32 to vector<8x32xf32>
    %791 = arith.select %789, %748, %790 : vector<8x32xi1>, vector<8x32xf32>
    %cst_330 = arith.constant 0.000000e+00 : f32
    %792 = vector.shape_cast %787 : vector<1x32xi1> to vector<1x32xi1>
    %793 = vector.broadcast %792 : vector<1x32xi1> to vector<8x32xi1>
    %794 = vector.broadcast %cst_330 : f32 to vector<8x32xf32>
    %795 = arith.select %793, %750, %794 : vector<8x32xi1>, vector<8x32xf32>
    %cst_331 = arith.constant dense<0.000000e+00> : vector<8x8xf32>
    %796 = tpu.matmul %791, %749, %cst_331 {dimension_numbers = #tpu.dot_dimension_numbers<[1], [1], [0], [0], [0, 0, 1, 0], [], []>} : vector<8x32xf32>, vector<8x32xf32>, vector<8x8xf32> -> vector<8x8xf32>
    %cst_332 = arith.constant 0.353553385 : f32
    %797 = vector.broadcast %cst_332 : f32 to vector<8x8xf32>
    %798 = arith.mulf %796, %797 : vector<8x8xf32>
    %799 = vector.broadcast %751 : vector<1x8xf32> to vector<8x8xf32>
    %800 = arith.addf %798, %799 : vector<8x8xf32>
    %cst_333 = arith.constant dense<0xFF800000> : vector<8xf32>
    %801 = vector.multi_reduction <maximumf>, %800, %cst_333 [1] : vector<8x8xf32> to vector<8xf32>
    %802 = vector.shape_cast %801 : vector<8xf32> to vector<8x1xf32>
    %803 = vector.broadcast %802 : vector<8x1xf32> to vector<8x8xf32>
    %804 = arith.subf %800, %803 : vector<8x8xf32>
    %805 = math.exp %804 : vector<8x8xf32>
    %cst_334 = arith.constant dense<0.000000e+00> : vector<8xf32>
    %806 = vector.multi_reduction <add>, %805, %cst_334 [1] : vector<8x8xf32> to vector<8xf32>
    %807 = vector.shape_cast %806 : vector<8xf32> to vector<8x1xf32>
    %808 = tpu.reciprocal %807 {approx = true} : vector<8x1xf32> -> vector<8x1xf32>
    %809 = vector.broadcast %808 : vector<8x1xf32> to vector<8x8xf32>
    %810 = arith.mulf %805, %809 : vector<8x8xf32>
    %cst_335 = arith.constant dense<0.000000e+00> : vector<8x32xf32>
    %811 = tpu.matmul %810, %795, %cst_335 {dimension_numbers = #tpu.dot_dimension_numbers<[1], [0], [0], [1], [0, 0, 1, 1], [], []>} : vector<8x8xf32>, vector<8x32xf32>, vector<8x32xf32> -> vector<8x32xf32>
    %812 = arith.addf %782, %811 : vector<8x32xf32>
    %c16_i32_336 = arith.constant 16 : i32
    %813 = vector.broadcast %c16_i32_336 : i32 to vector<1x32xi32>
    %814 = arith.cmpi sge, %4, %813 : vector<1x32xi32>
    %c24_i32_337 = arith.constant 24 : i32
    %815 = vector.broadcast %c24_i32_337 : i32 to vector<1x32xi32>
    %816 = arith.cmpi slt, %4, %815 : vector<1x32xi32>
    %817 = arith.andi %814, %816 : vector<1x32xi1>
    %cst_338 = arith.constant 0.000000e+00 : f32
    %818 = vector.shape_cast %817 : vector<1x32xi1> to vector<1x32xi1>
    %819 = vector.broadcast %818 : vector<1x32xi1> to vector<8x32xi1>
    %820 = vector.broadcast %cst_338 : f32 to vector<8x32xf32>
    %821 = arith.select %819, %748, %820 : vector<8x32xi1>, vector<8x32xf32>
    %cst_339 = arith.constant 0.000000e+00 : f32
    %822 = vector.shape_cast %817 : vector<1x32xi1> to vector<1x32xi1>
    %823 = vector.broadcast %822 : vector<1x32xi1> to vector<8x32xi1>
    %824 = vector.broadcast %cst_339 : f32 to vector<8x32xf32>
    %825 = arith.select %823, %750, %824 : vector<8x32xi1>, vector<8x32xf32>
    %cst_340 = arith.constant dense<0.000000e+00> : vector<8x8xf32>
    %826 = tpu.matmul %821, %749, %cst_340 {dimension_numbers = #tpu.dot_dimension_numbers<[1], [1], [0], [0], [0, 0, 1, 0], [], []>} : vector<8x32xf32>, vector<8x32xf32>, vector<8x8xf32> -> vector<8x8xf32>
    %cst_341 = arith.constant 0.353553385 : f32
    %827 = vector.broadcast %cst_341 : f32 to vector<8x8xf32>
    %828 = arith.mulf %826, %827 : vector<8x8xf32>
    %829 = vector.broadcast %751 : vector<1x8xf32> to vector<8x8xf32>
    %830 = arith.addf %828, %829 : vector<8x8xf32>
    %cst_342 = arith.constant dense<0xFF800000> : vector<8xf32>
    %831 = vector.multi_reduction <maximumf>, %830, %cst_342 [1] : vector<8x8xf32> to vector<8xf32>
    %832 = vector.shape_cast %831 : vector<8xf32> to vector<8x1xf32>
    %833 = vector.broadcast %832 : vector<8x1xf32> to vector<8x8xf32>
    %834 = arith.subf %830, %833 : vector<8x8xf32>
    %835 = math.exp %834 : vector<8x8xf32>
    %cst_343 = arith.constant dense<0.000000e+00> : vector<8xf32>
    %836 = vector.multi_reduction <add>, %835, %cst_343 [1] : vector<8x8xf32> to vector<8xf32>
    %837 = vector.shape_cast %836 : vector<8xf32> to vector<8x1xf32>
    %838 = tpu.reciprocal %837 {approx = true} : vector<8x1xf32> -> vector<8x1xf32>
    %839 = vector.broadcast %838 : vector<8x1xf32> to vector<8x8xf32>
    %840 = arith.mulf %835, %839 : vector<8x8xf32>
    %cst_344 = arith.constant dense<0.000000e+00> : vector<8x32xf32>
    %841 = tpu.matmul %840, %825, %cst_344 {dimension_numbers = #tpu.dot_dimension_numbers<[1], [0], [0], [1], [0, 0, 1, 1], [], []>} : vector<8x8xf32>, vector<8x32xf32>, vector<8x32xf32> -> vector<8x32xf32>
    %842 = arith.addf %812, %841 : vector<8x32xf32>
    %c24_i32_345 = arith.constant 24 : i32
    %843 = vector.broadcast %c24_i32_345 : i32 to vector<1x32xi32>
    %844 = arith.cmpi sge, %4, %843 : vector<1x32xi32>
    %c32_i32_346 = arith.constant 32 : i32
    %845 = vector.broadcast %c32_i32_346 : i32 to vector<1x32xi32>
    %846 = arith.cmpi slt, %4, %845 : vector<1x32xi32>
    %847 = arith.andi %844, %846 : vector<1x32xi1>
    %cst_347 = arith.constant 0.000000e+00 : f32
    %848 = vector.shape_cast %847 : vector<1x32xi1> to vector<1x32xi1>
    %849 = vector.broadcast %848 : vector<1x32xi1> to vector<8x32xi1>
    %850 = vector.broadcast %cst_347 : f32 to vector<8x32xf32>
    %851 = arith.select %849, %748, %850 : vector<8x32xi1>, vector<8x32xf32>
    %cst_348 = arith.constant 0.000000e+00 : f32
    %852 = vector.shape_cast %847 : vector<1x32xi1> to vector<1x32xi1>
    %853 = vector.broadcast %852 : vector<1x32xi1> to vector<8x32xi1>
    %854 = vector.broadcast %cst_348 : f32 to vector<8x32xf32>
    %855 = arith.select %853, %750, %854 : vector<8x32xi1>, vector<8x32xf32>
    %cst_349 = arith.constant dense<0.000000e+00> : vector<8x8xf32>
    %856 = tpu.matmul %851, %749, %cst_349 {dimension_numbers = #tpu.dot_dimension_numbers<[1], [1], [0], [0], [0, 0, 1, 0], [], []>} : vector<8x32xf32>, vector<8x32xf32>, vector<8x8xf32> -> vector<8x8xf32>
    %cst_350 = arith.constant 0.353553385 : f32
    %857 = vector.broadcast %cst_350 : f32 to vector<8x8xf32>
    %858 = arith.mulf %856, %857 : vector<8x8xf32>
    %859 = vector.broadcast %751 : vector<1x8xf32> to vector<8x8xf32>
    %860 = arith.addf %858, %859 : vector<8x8xf32>
    %cst_351 = arith.constant dense<0xFF800000> : vector<8xf32>
    %861 = vector.multi_reduction <maximumf>, %860, %cst_351 [1] : vector<8x8xf32> to vector<8xf32>
    %862 = vector.shape_cast %861 : vector<8xf32> to vector<8x1xf32>
    %863 = vector.broadcast %862 : vector<8x1xf32> to vector<8x8xf32>
    %864 = arith.subf %860, %863 : vector<8x8xf32>
    %865 = math.exp %864 : vector<8x8xf32>
    %cst_352 = arith.constant dense<0.000000e+00> : vector<8xf32>
    %866 = vector.multi_reduction <add>, %865, %cst_352 [1] : vector<8x8xf32> to vector<8xf32>
    %867 = vector.shape_cast %866 : vector<8xf32> to vector<8x1xf32>
    %868 = tpu.reciprocal %867 {approx = true} : vector<8x1xf32> -> vector<8x1xf32>
    %869 = vector.broadcast %868 : vector<8x1xf32> to vector<8x8xf32>
    %870 = arith.mulf %865, %869 : vector<8x8xf32>
    %cst_353 = arith.constant dense<0.000000e+00> : vector<8x32xf32>
    %871 = tpu.matmul %870, %855, %cst_353 {dimension_numbers = #tpu.dot_dimension_numbers<[1], [0], [0], [1], [0, 0, 1, 1], [], []>} : vector<8x8xf32>, vector<8x32xf32>, vector<8x32xf32> -> vector<8x32xf32>
    %872 = arith.addf %842, %871 : vector<8x32xf32>
    %cst_354 = arith.constant dense<0.000000e+00> : vector<8x32xf32>
    %873 = tpu.matmul %872, %616, %cst_354 {dimension_numbers = #tpu.dot_dimension_numbers<[1], [0], [0], [1], [0, 0, 1, 1], [], []>} : vector<8x32xf32>, vector<32x32xf32>, vector<8x32xf32> -> vector<8x32xf32>
    %874 = vector.broadcast %618 : vector<1x32xf32> to vector<8x32xf32>
    %875 = arith.addf %873, %874 : vector<8x32xf32>
    %c8_355 = arith.constant 8 : index
    %c0_356 = arith.constant 0 : index
    %876 = vector.load %arg38[%c8_355, %c0_356] : memref<16x32xf32, #tpu.memory_space<vmem>>, vector<8x32xf32>
    tpu.vector_store %arg38[%c8_355, %c0_356], %875 {strides = array<i32>} : memref<16x32xf32, #tpu.memory_space<vmem>>, vector<8x32xf32>,
    %c0_357 = arith.constant 0 : index
    %c0_358 = arith.constant 0 : index
    %877 = vector.load %arg38[%c0_357, %c0_358] : memref<16x32xf32, #tpu.memory_space<vmem>>, vector<16x32xf32>
    %878 = arith.addf %580, %877 : vector<16x32xf32>
    %c1_359 = arith.constant 1 : index
    %c0_360 = arith.constant 0 : index
    %c0_361 = arith.constant 0 : index
    %879 = vector.load %arg15[%c1_359, %c0_360, %c0_361] : memref<2x1x32xf32, #tpu.memory_space<vmem>>, vector<1x1x32xf32>
    %880 = vector.shape_cast %879 : vector<1x1x32xf32> to vector<1x32xf32>
    %c1_362 = arith.constant 1 : index
    %c0_363 = arith.constant 0 : index
    %c0_364 = arith.constant 0 : index
    %881 = vector.load %arg16[%c1_362, %c0_363, %c0_364] : memref<2x1x32xf32, #tpu.memory_space<vmem>>, vector<1x1x32xf32>
    %882 = vector.shape_cast %881 : vector<1x1x32xf32> to vector<1x32xf32>
    %cst_365 = arith.constant dense<0.000000e+00> : vector<16xf32>
    %883 = vector.multi_reduction <add>, %878, %cst_365 [1] : vector<16x32xf32> to vector<16xf32>
    %884 = vector.shape_cast %883 : vector<16xf32> to vector<16x1xf32>
    %cst_366 = arith.constant 3.200000e+01 : f32
    %885 = vector.broadcast %cst_366 : f32 to vector<16x1xf32>
    %886 = arith.divf %884, %885 : vector<16x1xf32>
    %887 = vector.broadcast %886 : vector<16x1xf32> to vector<16x32xf32>
    %888 = arith.subf %878, %887 : vector<16x32xf32>
    %889 = arith.mulf %888, %888 : vector<16x32xf32>
    %cst_367 = arith.constant dense<0.000000e+00> : vector<16xf32>
    %890 = vector.multi_reduction <add>, %889, %cst_367 [1] : vector<16x32xf32> to vector<16xf32>
    %891 = vector.shape_cast %890 : vector<16xf32> to vector<16x1xf32>
    %cst_368 = arith.constant 3.200000e+01 : f32
    %892 = vector.broadcast %cst_368 : f32 to vector<16x1xf32>
    %893 = arith.divf %891, %892 : vector<16x1xf32>
    %cst_369 = arith.constant 9.99999974E-6 : f32
    %894 = vector.broadcast %cst_369 : f32 to vector<16x1xf32>
    %895 = arith.addf %893, %894 : vector<16x1xf32>
    %896 = math.rsqrt %895 : vector<16x1xf32>
    %897 = vector.broadcast %896 : vector<16x1xf32> to vector<16x32xf32>
    %898 = arith.mulf %888, %897 : vector<16x32xf32>
    %899 = vector.broadcast %880 : vector<1x32xf32> to vector<16x32xf32>
    %900 = arith.mulf %898, %899 : vector<16x32xf32>
    %901 = vector.broadcast %882 : vector<1x32xf32> to vector<16x32xf32>
    %902 = arith.addf %900, %901 : vector<16x32xf32>
    %c1_370 = arith.constant 1 : index
    %c0_371 = arith.constant 0 : index
    %c0_372 = arith.constant 0 : index
    %903 = vector.load %arg17[%c1_370, %c0_371, %c0_372] : memref<2x32x32xf32, #tpu.memory_space<vmem>>, vector<1x32x32xf32>
    %904 = vector.shape_cast %903 : vector<1x32x32xf32> to vector<32x32xf32>
    %cst_373 = arith.constant dense<0.000000e+00> : vector<16x32xf32>
    %905 = tpu.matmul %902, %904, %cst_373 {dimension_numbers = #tpu.dot_dimension_numbers<[1], [0], [0], [1], [0, 0, 1, 1], [], []>} : vector<16x32xf32>, vector<32x32xf32>, vector<16x32xf32> -> vector<16x32xf32>
    %c1_374 = arith.constant 1 : index
    %c0_375 = arith.constant 0 : index
    %c0_376 = arith.constant 0 : index
    %906 = vector.load %arg18[%c1_374, %c0_375, %c0_376] : memref<2x1x32xf32, #tpu.memory_space<vmem>>, vector<1x1x32xf32>
    %907 = vector.shape_cast %906 : vector<1x1x32xf32> to vector<1x32xf32>
    %908 = vector.broadcast %907 : vector<1x32xf32> to vector<16x32xf32>
    %909 = arith.addf %905, %908 : vector<16x32xf32>
    %c1_377 = arith.constant 1 : index
    %c0_378 = arith.constant 0 : index
    %c0_379 = arith.constant 0 : index
    %910 = vector.load %arg19[%c1_377, %c0_378, %c0_379] : memref<2x32x32xf32, #tpu.memory_space<vmem>>, vector<1x32x32xf32>
    %911 = vector.shape_cast %910 : vector<1x32x32xf32> to vector<32x32xf32>
    %cst_380 = arith.constant dense<0.000000e+00> : vector<16x32xf32>
    %912 = tpu.matmul %902, %911, %cst_380 {dimension_numbers = #tpu.dot_dimension_numbers<[1], [0], [0], [1], [0, 0, 1, 1], [], []>} : vector<16x32xf32>, vector<32x32xf32>, vector<16x32xf32> -> vector<16x32xf32>
    %c1_381 = arith.constant 1 : index
    %c0_382 = arith.constant 0 : index
    %c0_383 = arith.constant 0 : index
    %913 = vector.load %arg20[%c1_381, %c0_382, %c0_383] : memref<2x1x32xf32, #tpu.memory_space<vmem>>, vector<1x1x32xf32>
    %914 = vector.shape_cast %913 : vector<1x1x32xf32> to vector<1x32xf32>
    %915 = vector.broadcast %914 : vector<1x32xf32> to vector<16x32xf32>
    %916 = arith.addf %912, %915 : vector<16x32xf32>
    %917 = arith.negf %916 : vector<16x32xf32>
    %918 = math.exp %917 : vector<16x32xf32>
    %cst_384 = arith.constant 1.000000e+00 : f32
    %919 = vector.broadcast %cst_384 : f32 to vector<16x32xf32>
    %920 = arith.addf %919, %918 : vector<16x32xf32>
    %921 = arith.divf %919, %920 : vector<16x32xf32>
    %922 = arith.mulf %909, %921 : vector<16x32xf32>
    %c1_385 = arith.constant 1 : index
    %c0_386 = arith.constant 0 : index
    %c0_387 = arith.constant 0 : index
    %923 = vector.load %arg21[%c1_385, %c0_386, %c0_387] : memref<2x3x32xf32, #tpu.memory_space<vmem>>, vector<1x3x32xf32>
    %924 = vector.shape_cast %923 : vector<1x3x32xf32> to vector<3x32xf32>
    %c1_388 = arith.constant 1 : index
    %c0_389 = arith.constant 0 : index
    %c0_390 = arith.constant 0 : index
    %925 = vector.load %arg22[%c1_388, %c0_389, %c0_390] : memref<2x1x32xf32, #tpu.memory_space<vmem>>, vector<1x1x32xf32>
    %926 = vector.shape_cast %925 : vector<1x1x32xf32> to vector<1x32xf32>
    %927 = vector.extract_strided_slice %922 {offsets = [0, 0], sizes = [8, 32], strides = [1, 1]} : vector<16x32xf32> to vector<8x32xf32>
    %c1_391 = arith.constant 1 : index
    %c0_392 = arith.constant 0 : index
    %928 = vector.load %arg39[%c1_391, %c0_392] : memref<10x32xf32, #tpu.memory_space<vmem>>, vector<8x32xf32>
    tpu.vector_store %arg39[%c1_391, %c0_392], %927 {strides = array<i32>} : memref<10x32xf32, #tpu.memory_space<vmem>>, vector<8x32xf32>,
    %c0_393 = arith.constant 0 : index
    %c0_394 = arith.constant 0 : index
    %929 = vector.load %arg39[%c0_393, %c0_394] : memref<10x32xf32, #tpu.memory_space<vmem>>, vector<10x32xf32>
    %cst_395 = arith.constant 0.000000e+00 : f32
    %930 = vector.broadcast %cst_395 : f32 to vector<8x32xf32>
    %931 = vector.extract_strided_slice %929 {offsets = [0, 0], sizes = [8, 32], strides = [1, 1]} : vector<10x32xf32> to vector<8x32xf32>
    %932 = vector.extract_strided_slice %924 {offsets = [0, 0], sizes = [1, 32], strides = [1, 1]} : vector<3x32xf32> to vector<1x32xf32>
    %933 = vector.broadcast %932 : vector<1x32xf32> to vector<8x32xf32>
    %934 = arith.mulf %931, %933 : vector<8x32xf32>
    %935 = arith.addf %930, %934 : vector<8x32xf32>
    %936 = vector.extract_strided_slice %929 {offsets = [1, 0], sizes = [8, 32], strides = [1, 1]} : vector<10x32xf32> to vector<8x32xf32>
    %937 = vector.extract_strided_slice %924 {offsets = [1, 0], sizes = [1, 32], strides = [1, 1]} : vector<3x32xf32> to vector<1x32xf32>
    %938 = vector.broadcast %937 : vector<1x32xf32> to vector<8x32xf32>
    %939 = arith.mulf %936, %938 : vector<8x32xf32>
    %940 = arith.addf %935, %939 : vector<8x32xf32>
    %941 = vector.extract_strided_slice %929 {offsets = [2, 0], sizes = [8, 32], strides = [1, 1]} : vector<10x32xf32> to vector<8x32xf32>
    %942 = vector.extract_strided_slice %924 {offsets = [2, 0], sizes = [1, 32], strides = [1, 1]} : vector<3x32xf32> to vector<1x32xf32>
    %943 = vector.broadcast %942 : vector<1x32xf32> to vector<8x32xf32>
    %944 = arith.mulf %941, %943 : vector<8x32xf32>
    %945 = arith.addf %940, %944 : vector<8x32xf32>
    %946 = vector.broadcast %926 : vector<1x32xf32> to vector<8x32xf32>
    %947 = arith.addf %945, %946 : vector<8x32xf32>
    %948 = arith.negf %947 : vector<8x32xf32>
    %949 = math.exp %948 : vector<8x32xf32>
    %cst_396 = arith.constant 1.000000e+00 : f32
    %950 = vector.broadcast %cst_396 : f32 to vector<8x32xf32>
    %951 = arith.addf %950, %949 : vector<8x32xf32>
    %952 = arith.divf %950, %951 : vector<8x32xf32>
    %953 = arith.mulf %947, %952 : vector<8x32xf32>
    %c0_397 = arith.constant 0 : index
    %c0_398 = arith.constant 0 : index
    %954 = vector.load %arg38[%c0_397, %c0_398] : memref<16x32xf32, #tpu.memory_space<vmem>>, vector<8x32xf32>
    tpu.vector_store %arg38[%c0_397, %c0_398], %953 {strides = array<i32>} : memref<16x32xf32, #tpu.memory_space<vmem>>, vector<8x32xf32>,
    %955 = vector.extract_strided_slice %922 {offsets = [8, 0], sizes = [8, 32], strides = [1, 1]} : vector<16x32xf32> to vector<8x32xf32>
    %c1_399 = arith.constant 1 : index
    %c0_400 = arith.constant 0 : index
    %956 = vector.load %arg39[%c1_399, %c0_400] : memref<10x32xf32, #tpu.memory_space<vmem>>, vector<8x32xf32>
    tpu.vector_store %arg39[%c1_399, %c0_400], %955 {strides = array<i32>} : memref<10x32xf32, #tpu.memory_space<vmem>>, vector<8x32xf32>,
    %c0_401 = arith.constant 0 : index
    %c0_402 = arith.constant 0 : index
    %957 = vector.load %arg39[%c0_401, %c0_402] : memref<10x32xf32, #tpu.memory_space<vmem>>, vector<10x32xf32>
    %cst_403 = arith.constant 0.000000e+00 : f32
    %958 = vector.broadcast %cst_403 : f32 to vector<8x32xf32>
    %959 = vector.extract_strided_slice %957 {offsets = [0, 0], sizes = [8, 32], strides = [1, 1]} : vector<10x32xf32> to vector<8x32xf32>
    %960 = vector.extract_strided_slice %924 {offsets = [0, 0], sizes = [1, 32], strides = [1, 1]} : vector<3x32xf32> to vector<1x32xf32>
    %961 = vector.broadcast %960 : vector<1x32xf32> to vector<8x32xf32>
    %962 = arith.mulf %959, %961 : vector<8x32xf32>
    %963 = arith.addf %958, %962 : vector<8x32xf32>
    %964 = vector.extract_strided_slice %957 {offsets = [1, 0], sizes = [8, 32], strides = [1, 1]} : vector<10x32xf32> to vector<8x32xf32>
    %965 = vector.extract_strided_slice %924 {offsets = [1, 0], sizes = [1, 32], strides = [1, 1]} : vector<3x32xf32> to vector<1x32xf32>
    %966 = vector.broadcast %965 : vector<1x32xf32> to vector<8x32xf32>
    %967 = arith.mulf %964, %966 : vector<8x32xf32>
    %968 = arith.addf %963, %967 : vector<8x32xf32>
    %969 = vector.extract_strided_slice %957 {offsets = [2, 0], sizes = [8, 32], strides = [1, 1]} : vector<10x32xf32> to vector<8x32xf32>
    %970 = vector.extract_strided_slice %924 {offsets = [2, 0], sizes = [1, 32], strides = [1, 1]} : vector<3x32xf32> to vector<1x32xf32>
    %971 = vector.broadcast %970 : vector<1x32xf32> to vector<8x32xf32>
    %972 = arith.mulf %969, %971 : vector<8x32xf32>
    %973 = arith.addf %968, %972 : vector<8x32xf32>
    %974 = vector.broadcast %926 : vector<1x32xf32> to vector<8x32xf32>
    %975 = arith.addf %973, %974 : vector<8x32xf32>
    %976 = arith.negf %975 : vector<8x32xf32>
    %977 = math.exp %976 : vector<8x32xf32>
    %cst_404 = arith.constant 1.000000e+00 : f32
    %978 = vector.broadcast %cst_404 : f32 to vector<8x32xf32>
    %979 = arith.addf %978, %977 : vector<8x32xf32>
    %980 = arith.divf %978, %979 : vector<8x32xf32>
    %981 = arith.mulf %975, %980 : vector<8x32xf32>
    %c8_405 = arith.constant 8 : index
    %c0_406 = arith.constant 0 : index
    %982 = vector.load %arg38[%c8_405, %c0_406] : memref<16x32xf32, #tpu.memory_space<vmem>>, vector<8x32xf32>
    tpu.vector_store %arg38[%c8_405, %c0_406], %981 {strides = array<i32>} : memref<16x32xf32, #tpu.memory_space<vmem>>, vector<8x32xf32>,
    %c0_407 = arith.constant 0 : index
    %c0_408 = arith.constant 0 : index
    %983 = vector.load %arg38[%c0_407, %c0_408] : memref<16x32xf32, #tpu.memory_space<vmem>>, vector<16x32xf32>
    %c1_409 = arith.constant 1 : index
    %c0_410 = arith.constant 0 : index
    %c0_411 = arith.constant 0 : index
    %984 = vector.load %arg23[%c1_409, %c0_410, %c0_411] : memref<2x32x32xf32, #tpu.memory_space<vmem>>, vector<1x32x32xf32>
    %985 = vector.shape_cast %984 : vector<1x32x32xf32> to vector<32x32xf32>
    %cst_412 = arith.constant dense<0.000000e+00> : vector<16x32xf32>
    %986 = tpu.matmul %983, %985, %cst_412 {dimension_numbers = #tpu.dot_dimension_numbers<[1], [0], [0], [1], [0, 0, 1, 1], [], []>} : vector<16x32xf32>, vector<32x32xf32>, vector<16x32xf32> -> vector<16x32xf32>
    %c1_413 = arith.constant 1 : index
    %c0_414 = arith.constant 0 : index
    %c0_415 = arith.constant 0 : index
    %987 = vector.load %arg24[%c1_413, %c0_414, %c0_415] : memref<2x1x32xf32, #tpu.memory_space<vmem>>, vector<1x1x32xf32>
    %988 = vector.shape_cast %987 : vector<1x1x32xf32> to vector<1x32xf32>
    %989 = vector.broadcast %988 : vector<1x32xf32> to vector<16x32xf32>
    %990 = arith.addf %986, %989 : vector<16x32xf32>
    %991 = arith.addf %878, %990 : vector<16x32xf32>
    %c1_416 = arith.constant 1 : index
    %c0_417 = arith.constant 0 : index
    %c0_418 = arith.constant 0 : index
    %992 = vector.load %arg25[%c1_416, %c0_417, %c0_418] : memref<2x1x32xf32, #tpu.memory_space<vmem>>, vector<1x1x32xf32>
    %993 = vector.shape_cast %992 : vector<1x1x32xf32> to vector<1x32xf32>
    %c1_419 = arith.constant 1 : index
    %c0_420 = arith.constant 0 : index
    %c0_421 = arith.constant 0 : index
    %994 = vector.load %arg26[%c1_419, %c0_420, %c0_421] : memref<2x1x32xf32, #tpu.memory_space<vmem>>, vector<1x1x32xf32>
    %995 = vector.shape_cast %994 : vector<1x1x32xf32> to vector<1x32xf32>
    %cst_422 = arith.constant dense<0.000000e+00> : vector<16xf32>
    %996 = vector.multi_reduction <add>, %991, %cst_422 [1] : vector<16x32xf32> to vector<16xf32>
    %997 = vector.shape_cast %996 : vector<16xf32> to vector<16x1xf32>
    %cst_423 = arith.constant 3.200000e+01 : f32
    %998 = vector.broadcast %cst_423 : f32 to vector<16x1xf32>
    %999 = arith.divf %997, %998 : vector<16x1xf32>
    %1000 = vector.broadcast %999 : vector<16x1xf32> to vector<16x32xf32>
    %1001 = arith.subf %991, %1000 : vector<16x32xf32>
    %1002 = arith.mulf %1001, %1001 : vector<16x32xf32>
    %cst_424 = arith.constant dense<0.000000e+00> : vector<16xf32>
    %1003 = vector.multi_reduction <add>, %1002, %cst_424 [1] : vector<16x32xf32> to vector<16xf32>
    %1004 = vector.shape_cast %1003 : vector<16xf32> to vector<16x1xf32>
    %cst_425 = arith.constant 3.200000e+01 : f32
    %1005 = vector.broadcast %cst_425 : f32 to vector<16x1xf32>
    %1006 = arith.divf %1004, %1005 : vector<16x1xf32>
    %cst_426 = arith.constant 9.99999974E-6 : f32
    %1007 = vector.broadcast %cst_426 : f32 to vector<16x1xf32>
    %1008 = arith.addf %1006, %1007 : vector<16x1xf32>
    %1009 = math.rsqrt %1008 : vector<16x1xf32>
    %1010 = vector.broadcast %1009 : vector<16x1xf32> to vector<16x32xf32>
    %1011 = arith.mulf %1001, %1010 : vector<16x32xf32>
    %1012 = vector.broadcast %993 : vector<1x32xf32> to vector<16x32xf32>
    %1013 = arith.mulf %1011, %1012 : vector<16x32xf32>
    %1014 = vector.broadcast %995 : vector<1x32xf32> to vector<16x32xf32>
    %1015 = arith.addf %1013, %1014 : vector<16x32xf32>
    %c1_427 = arith.constant 1 : index
    %c0_428 = arith.constant 0 : index
    %c0_429 = arith.constant 0 : index
    %1016 = vector.load %arg27[%c1_427, %c0_428, %c0_429] : memref<2x32x64xf32, #tpu.memory_space<vmem>>, vector<1x32x64xf32>
    %1017 = vector.shape_cast %1016 : vector<1x32x64xf32> to vector<32x64xf32>
    %cst_430 = arith.constant dense<0.000000e+00> : vector<16x64xf32>
    %1018 = tpu.matmul %1015, %1017, %cst_430 {dimension_numbers = #tpu.dot_dimension_numbers<[1], [0], [0], [1], [0, 0, 1, 1], [], []>} : vector<16x32xf32>, vector<32x64xf32>, vector<16x64xf32> -> vector<16x64xf32>
    %c1_431 = arith.constant 1 : index
    %c0_432 = arith.constant 0 : index
    %c0_433 = arith.constant 0 : index
    %1019 = vector.load %arg28[%c1_431, %c0_432, %c0_433] : memref<2x1x64xf32, #tpu.memory_space<vmem>>, vector<1x1x64xf32>
    %1020 = vector.shape_cast %1019 : vector<1x1x64xf32> to vector<1x64xf32>
    %1021 = vector.broadcast %1020 : vector<1x64xf32> to vector<16x64xf32>
    %1022 = arith.addf %1018, %1021 : vector<16x64xf32>
    %1023 = arith.negf %1022 : vector<16x64xf32>
    %1024 = math.exp %1023 : vector<16x64xf32>
    %cst_434 = arith.constant 1.000000e+00 : f32
    %1025 = vector.broadcast %cst_434 : f32 to vector<16x64xf32>
    %1026 = arith.addf %1025, %1024 : vector<16x64xf32>
    %1027 = arith.divf %1025, %1026 : vector<16x64xf32>
    %1028 = arith.mulf %1022, %1027 : vector<16x64xf32>
    %c1_435 = arith.constant 1 : index
    %c0_436 = arith.constant 0 : index
    %c0_437 = arith.constant 0 : index
    %1029 = vector.load %arg29[%c1_435, %c0_436, %c0_437] : memref<2x64x32xf32, #tpu.memory_space<vmem>>, vector<1x64x32xf32>
    %1030 = vector.shape_cast %1029 : vector<1x64x32xf32> to vector<64x32xf32>
    %cst_438 = arith.constant dense<0.000000e+00> : vector<16x32xf32>
    %1031 = tpu.matmul %1028, %1030, %cst_438 {dimension_numbers = #tpu.dot_dimension_numbers<[1], [0], [0], [1], [0, 0, 1, 1], [], []>} : vector<16x64xf32>, vector<64x32xf32>, vector<16x32xf32> -> vector<16x32xf32>
    %c1_439 = arith.constant 1 : index
    %c0_440 = arith.constant 0 : index
    %c0_441 = arith.constant 0 : index
    %1032 = vector.load %arg30[%c1_439, %c0_440, %c0_441] : memref<2x1x32xf32, #tpu.memory_space<vmem>>, vector<1x1x32xf32>
    %1033 = vector.shape_cast %1032 : vector<1x1x32xf32> to vector<1x32xf32>
    %1034 = vector.broadcast %1033 : vector<1x32xf32> to vector<16x32xf32>
    %1035 = arith.addf %1031, %1034 : vector<16x32xf32>
    %cst_442 = arith.constant 5.000000e-01 : f32
    %1036 = vector.broadcast %cst_442 : f32 to vector<16x32xf32>
    %1037 = arith.mulf %1036, %1035 : vector<16x32xf32>
    %1038 = arith.addf %991, %1037 : vector<16x32xf32>
    %c1_443 = arith.constant 1 : index
    %c0_444 = arith.constant 0 : index
    %c0_445 = arith.constant 0 : index
    %1039 = vector.load %arg31[%c1_443, %c0_444, %c0_445] : memref<2x1x32xf32, #tpu.memory_space<vmem>>, vector<1x1x32xf32>
    %1040 = vector.shape_cast %1039 : vector<1x1x32xf32> to vector<1x32xf32>
    %c1_446 = arith.constant 1 : index
    %c0_447 = arith.constant 0 : index
    %c0_448 = arith.constant 0 : index
    %1041 = vector.load %arg32[%c1_446, %c0_447, %c0_448] : memref<2x1x32xf32, #tpu.memory_space<vmem>>, vector<1x1x32xf32>
    %1042 = vector.shape_cast %1041 : vector<1x1x32xf32> to vector<1x32xf32>
    %cst_449 = arith.constant dense<0.000000e+00> : vector<16xf32>
    %1043 = vector.multi_reduction <add>, %1038, %cst_449 [1] : vector<16x32xf32> to vector<16xf32>
    %1044 = vector.shape_cast %1043 : vector<16xf32> to vector<16x1xf32>
    %cst_450 = arith.constant 3.200000e+01 : f32
    %1045 = vector.broadcast %cst_450 : f32 to vector<16x1xf32>
    %1046 = arith.divf %1044, %1045 : vector<16x1xf32>
    %1047 = vector.broadcast %1046 : vector<16x1xf32> to vector<16x32xf32>
    %1048 = arith.subf %1038, %1047 : vector<16x32xf32>
    %1049 = arith.mulf %1048, %1048 : vector<16x32xf32>
    %cst_451 = arith.constant dense<0.000000e+00> : vector<16xf32>
    %1050 = vector.multi_reduction <add>, %1049, %cst_451 [1] : vector<16x32xf32> to vector<16xf32>
    %1051 = vector.shape_cast %1050 : vector<16xf32> to vector<16x1xf32>
    %cst_452 = arith.constant 3.200000e+01 : f32
    %1052 = vector.broadcast %cst_452 : f32 to vector<16x1xf32>
    %1053 = arith.divf %1051, %1052 : vector<16x1xf32>
    %cst_453 = arith.constant 9.99999974E-6 : f32
    %1054 = vector.broadcast %cst_453 : f32 to vector<16x1xf32>
    %1055 = arith.addf %1053, %1054 : vector<16x1xf32>
    %1056 = math.rsqrt %1055 : vector<16x1xf32>
    %1057 = vector.broadcast %1056 : vector<16x1xf32> to vector<16x32xf32>
    %1058 = arith.mulf %1048, %1057 : vector<16x32xf32>
    %1059 = vector.broadcast %1040 : vector<1x32xf32> to vector<16x32xf32>
    %1060 = arith.mulf %1058, %1059 : vector<16x32xf32>
    %1061 = vector.broadcast %1042 : vector<1x32xf32> to vector<16x32xf32>
    %1062 = arith.addf %1060, %1061 : vector<16x32xf32>
    %c0_454 = arith.constant 0 : index
    %c0_455 = arith.constant 0 : index
    %1063 = vector.load %arg33[%c0_454, %c0_455] : memref<32x1xf32, #tpu.memory_space<vmem>>, vector<32x1xf32>
    %cst_456 = arith.constant dense<0.000000e+00> : vector<16x1xf32>
    %1064 = tpu.matmul %1062, %1063, %cst_456 {dimension_numbers = #tpu.dot_dimension_numbers<[1], [0], [0], [1], [0, 0, 1, 1], [], []>} : vector<16x32xf32>, vector<32x1xf32>, vector<16x1xf32> -> vector<16x1xf32>
    %c0_457 = arith.constant 0 : index
    %c0_458 = arith.constant 0 : index
    %1065 = vector.load %arg34[%c0_457, %c0_458] : memref<1x1xf32, #tpu.memory_space<vmem>>, vector<1x1xf32>
    %1066 = vector.broadcast %1065 : vector<1x1xf32> to vector<16x1xf32>
    %1067 = arith.addf %1064, %1066 : vector<16x1xf32>
    %c0_459 = arith.constant 0 : index
    %c0_460 = arith.constant 0 : index
    %1068 = vector.load %arg35[%c0_459, %c0_460] : memref<32x640xf32, #tpu.memory_space<vmem>>, vector<32x640xf32>
    %c0_461 = arith.constant 0 : index
    %c0_462 = arith.constant 0 : index
    %1069 = vector.load %arg36[%c0_461, %c0_462] : memref<1x640xf32, #tpu.memory_space<vmem>>, vector<1x640xf32>
    %1070 = vector.extract_strided_slice %1067 {offsets = [0, 0], sizes = [8, 1], strides = [1, 1]} : vector<16x1xf32> to vector<8x1xf32>
    %cst_463 = arith.constant dense<0xFF800000> : vector<1xf32>
    %1071 = vector.multi_reduction <maximumf>, %1070, %cst_463 [0] : vector<8x1xf32> to vector<1xf32>
    %1072 = vector.shape_cast %1071 : vector<1xf32> to vector<1x1xf32>
    %1073 = vector.broadcast %1072 : vector<1x1xf32> to vector<8x1xf32>
    %1074 = arith.subf %1070, %1073 : vector<8x1xf32>
    %1075 = math.exp %1074 : vector<8x1xf32>
    %cst_464 = arith.constant dense<0.000000e+00> : vector<1xf32>
    %1076 = vector.multi_reduction <add>, %1075, %cst_464 [0] : vector<8x1xf32> to vector<1xf32>
    %1077 = vector.shape_cast %1076 : vector<1xf32> to vector<1x1xf32>
    %1078 = tpu.reciprocal %1077 {approx = true} : vector<1x1xf32> -> vector<1x1xf32>
    %1079 = vector.broadcast %1078 : vector<1x1xf32> to vector<8x1xf32>
    %1080 = arith.mulf %1075, %1079 : vector<8x1xf32>
    %1081 = vector.extract_strided_slice %1062 {offsets = [0, 0], sizes = [8, 32], strides = [1, 1]} : vector<16x32xf32> to vector<8x32xf32>
    %cst_465 = arith.constant dense<0.000000e+00> : vector<1x32xf32>
    %1082 = tpu.matmul %1080, %1081, %cst_465 {dimension_numbers = #tpu.dot_dimension_numbers<[0], [0], [1], [1], [0, 1, 1, 1], [], []>} : vector<8x1xf32>, vector<8x32xf32>, vector<1x32xf32> -> vector<1x32xf32>
    %cst_466 = arith.constant dense<0.000000e+00> : vector<1x640xf32>
    %1083 = tpu.matmul %1082, %1068, %cst_466 {dimension_numbers = #tpu.dot_dimension_numbers<[1], [0], [0], [1], [0, 0, 1, 1], [], []>} : vector<1x32xf32>, vector<32x640xf32>, vector<1x640xf32> -> vector<1x640xf32>
    %1084 = arith.addf %1083, %1069 : vector<1x640xf32>
    %c0_467 = arith.constant 0 : index
    %c0_468 = arith.constant 0 : index
    %1085 = vector.load %arg37[%c0_467, %c0_468] : memref<2x640xf32, #tpu.memory_space<vmem>>, vector<1x640xf32>
    tpu.vector_store %arg37[%c0_467, %c0_468], %1084 {strides = array<i32>} : memref<2x640xf32, #tpu.memory_space<vmem>>, vector<1x640xf32>,
    %1086 = vector.extract_strided_slice %1067 {offsets = [8, 0], sizes = [8, 1], strides = [1, 1]} : vector<16x1xf32> to vector<8x1xf32>
    %cst_469 = arith.constant dense<0xFF800000> : vector<1xf32>
    %1087 = vector.multi_reduction <maximumf>, %1086, %cst_469 [0] : vector<8x1xf32> to vector<1xf32>
    %1088 = vector.shape_cast %1087 : vector<1xf32> to vector<1x1xf32>
    %1089 = vector.broadcast %1088 : vector<1x1xf32> to vector<8x1xf32>
    %1090 = arith.subf %1086, %1089 : vector<8x1xf32>
    %1091 = math.exp %1090 : vector<8x1xf32>
    %cst_470 = arith.constant dense<0.000000e+00> : vector<1xf32>
    %1092 = vector.multi_reduction <add>, %1091, %cst_470 [0] : vector<8x1xf32> to vector<1xf32>
    %1093 = vector.shape_cast %1092 : vector<1xf32> to vector<1x1xf32>
    %1094 = tpu.reciprocal %1093 {approx = true} : vector<1x1xf32> -> vector<1x1xf32>
    %1095 = vector.broadcast %1094 : vector<1x1xf32> to vector<8x1xf32>
    %1096 = arith.mulf %1091, %1095 : vector<8x1xf32>
    %1097 = vector.extract_strided_slice %1062 {offsets = [8, 0], sizes = [8, 32], strides = [1, 1]} : vector<16x32xf32> to vector<8x32xf32>
    %cst_471 = arith.constant dense<0.000000e+00> : vector<1x32xf32>
    %1098 = tpu.matmul %1096, %1097, %cst_471 {dimension_numbers = #tpu.dot_dimension_numbers<[0], [0], [1], [1], [0, 1, 1, 1], [], []>} : vector<8x1xf32>, vector<8x32xf32>, vector<1x32xf32> -> vector<1x32xf32>
    %cst_472 = arith.constant dense<0.000000e+00> : vector<1x640xf32>
    %1099 = tpu.matmul %1098, %1068, %cst_472 {dimension_numbers = #tpu.dot_dimension_numbers<[1], [0], [0], [1], [0, 0, 1, 1], [], []>} : vector<1x32xf32>, vector<32x640xf32>, vector<1x640xf32> -> vector<1x640xf32>
    %1100 = arith.addf %1099, %1069 : vector<1x640xf32>
    %c1_473 = arith.constant 1 : index
    %c0_474 = arith.constant 0 : index
    %1101 = vector.load %arg37[%c1_473, %c0_474] : memref<2x640xf32, #tpu.memory_space<vmem>>, vector<1x640xf32>
    tpu.vector_store %arg37[%c1_473, %c0_474], %1100 {strides = array<i32>} : memref<2x640xf32, #tpu.memory_space<vmem>>, vector<1x640xf32>,
    return
  }
  func.func @transform_0(%arg0: i32) -> (i32, i32) {
    %c0_i32 = arith.constant 0 : i32
    %c0_i32_0 = arith.constant 0 : i32
    %c0_i32_1 = arith.constant 0 : i32
    return %c0_i32, %c0_i32_0 : i32, i32
  }
  func.func @transform_1(%arg0: i32) -> (i32, i32) {
    %c0_i32 = arith.constant 0 : i32
    %c0_i32_0 = arith.constant 0 : i32
    %c0_i32_1 = arith.constant 0 : i32
    return %c0_i32, %c0_i32_0 : i32, i32
  }
  func.func @transform_2(%arg0: i32) -> (i32, i32, i32) {
    %c0_i32 = arith.constant 0 : i32
    %c0_i32_0 = arith.constant 0 : i32
    %c0_i32_1 = arith.constant 0 : i32
    %c0_i32_2 = arith.constant 0 : i32
    return %c0_i32, %c0_i32_0, %c0_i32_1 : i32, i32, i32
  }
  func.func @transform_3(%arg0: i32) -> (i32, i32, i32) {
    %c0_i32 = arith.constant 0 : i32
    %c0_i32_0 = arith.constant 0 : i32
    %c0_i32_1 = arith.constant 0 : i32
    %c0_i32_2 = arith.constant 0 : i32
    return %c0_i32, %c0_i32_0, %c0_i32_1 : i32, i32, i32
  }
  func.func @transform_4(%arg0: i32) -> (i32, i32, i32) {
    %c0_i32 = arith.constant 0 : i32
    %c0_i32_0 = arith.constant 0 : i32
    %c0_i32_1 = arith.constant 0 : i32
    %c0_i32_2 = arith.constant 0 : i32
    return %c0_i32, %c0_i32_0, %c0_i32_1 : i32, i32, i32
  }
  func.func @transform_5(%arg0: i32) -> (i32, i32, i32) {
    %c0_i32 = arith.constant 0 : i32
    %c0_i32_0 = arith.constant 0 : i32
    %c0_i32_1 = arith.constant 0 : i32
    %c0_i32_2 = arith.constant 0 : i32
    return %c0_i32, %c0_i32_0, %c0_i32_1 : i32, i32, i32
  }
  func.func @transform_6(%arg0: i32) -> (i32, i32, i32) {
    %c0_i32 = arith.constant 0 : i32
    %c0_i32_0 = arith.constant 0 : i32
    %c0_i32_1 = arith.constant 0 : i32
    %c0_i32_2 = arith.constant 0 : i32
    return %c0_i32, %c0_i32_0, %c0_i32_1 : i32, i32, i32
  }
  func.func @transform_7(%arg0: i32) -> (i32, i32, i32) {
    %c0_i32 = arith.constant 0 : i32
    %c0_i32_0 = arith.constant 0 : i32
    %c0_i32_1 = arith.constant 0 : i32
    %c0_i32_2 = arith.constant 0 : i32
    return %c0_i32, %c0_i32_0, %c0_i32_1 : i32, i32, i32
  }
  func.func @transform_8(%arg0: i32) -> (i32, i32, i32) {
    %c0_i32 = arith.constant 0 : i32
    %c0_i32_0 = arith.constant 0 : i32
    %c0_i32_1 = arith.constant 0 : i32
    %c0_i32_2 = arith.constant 0 : i32
    return %c0_i32, %c0_i32_0, %c0_i32_1 : i32, i32, i32
  }
  func.func @transform_9(%arg0: i32) -> (i32, i32, i32) {
    %c0_i32 = arith.constant 0 : i32
    %c0_i32_0 = arith.constant 0 : i32
    %c0_i32_1 = arith.constant 0 : i32
    %c0_i32_2 = arith.constant 0 : i32
    return %c0_i32, %c0_i32_0, %c0_i32_1 : i32, i32, i32
  }
  func.func @transform_10(%arg0: i32) -> (i32, i32, i32) {
    %c0_i32 = arith.constant 0 : i32
    %c0_i32_0 = arith.constant 0 : i32
    %c0_i32_1 = arith.constant 0 : i32
    %c0_i32_2 = arith.constant 0 : i32
    return %c0_i32, %c0_i32_0, %c0_i32_1 : i32, i32, i32
  }
  func.func @transform_11(%arg0: i32) -> (i32, i32, i32) {
    %c0_i32 = arith.constant 0 : i32
    %c0_i32_0 = arith.constant 0 : i32
    %c0_i32_1 = arith.constant 0 : i32
    %c0_i32_2 = arith.constant 0 : i32
    return %c0_i32, %c0_i32_0, %c0_i32_1 : i32, i32, i32
  }
  func.func @transform_12(%arg0: i32) -> (i32, i32, i32) {
    %c0_i32 = arith.constant 0 : i32
    %c0_i32_0 = arith.constant 0 : i32
    %c0_i32_1 = arith.constant 0 : i32
    %c0_i32_2 = arith.constant 0 : i32
    return %c0_i32, %c0_i32_0, %c0_i32_1 : i32, i32, i32
  }
  func.func @transform_13(%arg0: i32) -> (i32, i32, i32) {
    %c0_i32 = arith.constant 0 : i32
    %c0_i32_0 = arith.constant 0 : i32
    %c0_i32_1 = arith.constant 0 : i32
    %c0_i32_2 = arith.constant 0 : i32
    return %c0_i32, %c0_i32_0, %c0_i32_1 : i32, i32, i32
  }
  func.func @transform_14(%arg0: i32) -> (i32, i32, i32) {
    %c0_i32 = arith.constant 0 : i32
    %c0_i32_0 = arith.constant 0 : i32
    %c0_i32_1 = arith.constant 0 : i32
    %c0_i32_2 = arith.constant 0 : i32
    return %c0_i32, %c0_i32_0, %c0_i32_1 : i32, i32, i32
  }
  func.func @transform_15(%arg0: i32) -> (i32, i32, i32) {
    %c0_i32 = arith.constant 0 : i32
    %c0_i32_0 = arith.constant 0 : i32
    %c0_i32_1 = arith.constant 0 : i32
    %c0_i32_2 = arith.constant 0 : i32
    return %c0_i32, %c0_i32_0, %c0_i32_1 : i32, i32, i32
  }
  func.func @transform_16(%arg0: i32) -> (i32, i32, i32) {
    %c0_i32 = arith.constant 0 : i32
    %c0_i32_0 = arith.constant 0 : i32
    %c0_i32_1 = arith.constant 0 : i32
    %c0_i32_2 = arith.constant 0 : i32
    return %c0_i32, %c0_i32_0, %c0_i32_1 : i32, i32, i32
  }
  func.func @transform_17(%arg0: i32) -> (i32, i32, i32) {
    %c0_i32 = arith.constant 0 : i32
    %c0_i32_0 = arith.constant 0 : i32
    %c0_i32_1 = arith.constant 0 : i32
    %c0_i32_2 = arith.constant 0 : i32
    return %c0_i32, %c0_i32_0, %c0_i32_1 : i32, i32, i32
  }
  func.func @transform_18(%arg0: i32) -> (i32, i32, i32) {
    %c0_i32 = arith.constant 0 : i32
    %c0_i32_0 = arith.constant 0 : i32
    %c0_i32_1 = arith.constant 0 : i32
    %c0_i32_2 = arith.constant 0 : i32
    return %c0_i32, %c0_i32_0, %c0_i32_1 : i32, i32, i32
  }
  func.func @transform_19(%arg0: i32) -> (i32, i32, i32) {
    %c0_i32 = arith.constant 0 : i32
    %c0_i32_0 = arith.constant 0 : i32
    %c0_i32_1 = arith.constant 0 : i32
    %c0_i32_2 = arith.constant 0 : i32
    return %c0_i32, %c0_i32_0, %c0_i32_1 : i32, i32, i32
  }
  func.func @transform_20(%arg0: i32) -> (i32, i32, i32) {
    %c0_i32 = arith.constant 0 : i32
    %c0_i32_0 = arith.constant 0 : i32
    %c0_i32_1 = arith.constant 0 : i32
    %c0_i32_2 = arith.constant 0 : i32
    return %c0_i32, %c0_i32_0, %c0_i32_1 : i32, i32, i32
  }
  func.func @transform_21(%arg0: i32) -> (i32, i32, i32) {
    %c0_i32 = arith.constant 0 : i32
    %c0_i32_0 = arith.constant 0 : i32
    %c0_i32_1 = arith.constant 0 : i32
    %c0_i32_2 = arith.constant 0 : i32
    return %c0_i32, %c0_i32_0, %c0_i32_1 : i32, i32, i32
  }
  func.func @transform_22(%arg0: i32) -> (i32, i32, i32) {
    %c0_i32 = arith.constant 0 : i32
    %c0_i32_0 = arith.constant 0 : i32
    %c0_i32_1 = arith.constant 0 : i32
    %c0_i32_2 = arith.constant 0 : i32
    return %c0_i32, %c0_i32_0, %c0_i32_1 : i32, i32, i32
  }
  func.func @transform_23(%arg0: i32) -> (i32, i32, i32) {
    %c0_i32 = arith.constant 0 : i32
    %c0_i32_0 = arith.constant 0 : i32
    %c0_i32_1 = arith.constant 0 : i32
    %c0_i32_2 = arith.constant 0 : i32
    return %c0_i32, %c0_i32_0, %c0_i32_1 : i32, i32, i32
  }
  func.func @transform_24(%arg0: i32) -> (i32, i32, i32) {
    %c0_i32 = arith.constant 0 : i32
    %c0_i32_0 = arith.constant 0 : i32
    %c0_i32_1 = arith.constant 0 : i32
    %c0_i32_2 = arith.constant 0 : i32
    return %c0_i32, %c0_i32_0, %c0_i32_1 : i32, i32, i32
  }
  func.func @transform_25(%arg0: i32) -> (i32, i32, i32) {
    %c0_i32 = arith.constant 0 : i32
    %c0_i32_0 = arith.constant 0 : i32
    %c0_i32_1 = arith.constant 0 : i32
    %c0_i32_2 = arith.constant 0 : i32
    return %c0_i32, %c0_i32_0, %c0_i32_1 : i32, i32, i32
  }
  func.func @transform_26(%arg0: i32) -> (i32, i32, i32) {
    %c0_i32 = arith.constant 0 : i32
    %c0_i32_0 = arith.constant 0 : i32
    %c0_i32_1 = arith.constant 0 : i32
    %c0_i32_2 = arith.constant 0 : i32
    return %c0_i32, %c0_i32_0, %c0_i32_1 : i32, i32, i32
  }
  func.func @transform_27(%arg0: i32) -> (i32, i32, i32) {
    %c0_i32 = arith.constant 0 : i32
    %c0_i32_0 = arith.constant 0 : i32
    %c0_i32_1 = arith.constant 0 : i32
    %c0_i32_2 = arith.constant 0 : i32
    return %c0_i32, %c0_i32_0, %c0_i32_1 : i32, i32, i32
  }
  func.func @transform_28(%arg0: i32) -> (i32, i32, i32) {
    %c0_i32 = arith.constant 0 : i32
    %c0_i32_0 = arith.constant 0 : i32
    %c0_i32_1 = arith.constant 0 : i32
    %c0_i32_2 = arith.constant 0 : i32
    return %c0_i32, %c0_i32_0, %c0_i32_1 : i32, i32, i32
  }
  func.func @transform_29(%arg0: i32) -> (i32, i32, i32) {
    %c0_i32 = arith.constant 0 : i32
    %c0_i32_0 = arith.constant 0 : i32
    %c0_i32_1 = arith.constant 0 : i32
    %c0_i32_2 = arith.constant 0 : i32
    return %c0_i32, %c0_i32_0, %c0_i32_1 : i32, i32, i32
  }
  func.func @transform_30(%arg0: i32) -> (i32, i32, i32) {
    %c0_i32 = arith.constant 0 : i32
    %c0_i32_0 = arith.constant 0 : i32
    %c0_i32_1 = arith.constant 0 : i32
    %c0_i32_2 = arith.constant 0 : i32
    return %c0_i32, %c0_i32_0, %c0_i32_1 : i32, i32, i32
  }
  func.func @transform_31(%arg0: i32) -> (i32, i32, i32) {
    %c0_i32 = arith.constant 0 : i32
    %c0_i32_0 = arith.constant 0 : i32
    %c0_i32_1 = arith.constant 0 : i32
    %c0_i32_2 = arith.constant 0 : i32
    return %c0_i32, %c0_i32_0, %c0_i32_1 : i32, i32, i32
  }
  func.func @transform_32(%arg0: i32) -> (i32, i32) {
    %c0_i32 = arith.constant 0 : i32
    %c0_i32_0 = arith.constant 0 : i32
    %c0_i32_1 = arith.constant 0 : i32
    return %c0_i32, %c0_i32_0 : i32, i32
  }
  func.func @transform_33(%arg0: i32) -> (i32, i32) {
    %c0_i32 = arith.constant 0 : i32
    %c0_i32_0 = arith.constant 0 : i32
    %c0_i32_1 = arith.constant 0 : i32
    return %c0_i32, %c0_i32_0 : i32, i32
  }
  func.func @transform_34(%arg0: i32) -> (i32, i32) {
    %c0_i32 = arith.constant 0 : i32
    %c0_i32_0 = arith.constant 0 : i32
    %c0_i32_1 = arith.constant 0 : i32
    return %c0_i32, %c0_i32_0 : i32, i32
  }
  func.func @transform_35(%arg0: i32) -> (i32, i32) {
    %c0_i32 = arith.constant 0 : i32
    %c0_i32_0 = arith.constant 0 : i32
    %c0_i32_1 = arith.constant 0 : i32
    return %c0_i32, %c0_i32_0 : i32, i32
  }
  func.func @transform_36(%arg0: i32) -> (i32, i32) {
    %c0_i32 = arith.constant 0 : i32
    %c0_i32_0 = arith.constant 0 : i32
    %c0_i32_1 = arith.constant 0 : i32
    return %c0_i32, %c0_i32_0 : i32, i32
  }
}

</mosaic_0001>

<llo_original>
// kernel: conformer_attn_pool_no_prenet.1
$region0: #{conformer_attn_pool_no_prenet.1}
  #allocation0 [shape = 'u32[]', space=smem, size = 0x4, offset = 0x4, fixed_abs, tag = 'smem constant byte address 0x4 - core index']
  #allocation1 [shape = 'u32[144,128]{1,0:T(1,128)}', space=vmem, size = 0x12000, scoped, tag = 'internal scratch']
  #allocation2 [shape = 'f32[16,32]{1,0:T(8,128)}', space=vmem, size = 0x2000, scoped, tag = 'scratch operand']
  #allocation3 [shape = 'f32[10,32]{1,0:T(8,128)}', space=vmem, size = 0x2000, scoped, tag = 'scratch operand']
  #allocation4 [shape = 'f32[1,1]{1,0:T(1,128)S(1)}', space=vmem, size = 0x200, scoped, tag = 'scoped memory for conformer_attn_pool_no_prenet.1']
  %s0 = inlined_call_operand.smem [shape: u32[37], index: -1, kind: input, shape index: {}]
  %s1 = sld [smem:[%s0]]
  %s2 = scalar_lea.smem %s0, 1
  %s3 = sld [smem:[%s2]]
  %s4 = scalar_lea.smem %s0, 2
  %s5 = sld [smem:[%s4]]
  %s6 = scalar_lea.smem %s0, 3
  %s7 = sld [smem:[%s6]]
  %s8 = scalar_lea.smem %s0, 4
  %s9 = sld [smem:[%s8]]
  %s10 = scalar_lea.smem %s0, 5
  %s11 = sld [smem:[%s10]]
  %s12 = scalar_lea.smem %s0, 6
  %s13 = sld [smem:[%s12]]
  %s14 = scalar_lea.smem %s0, 7
  %s15 = sld [smem:[%s14]]
  %s16 = scalar_lea.smem %s0, 8
  %s17 = sld [smem:[%s16]]
  %s18 = scalar_lea.smem %s0, 9
  %s19 = sld [smem:[%s18]]
  %s20 = scalar_lea.smem %s0, 10
  %s21 = sld [smem:[%s20]]
  %s22 = scalar_lea.smem %s0, 11
  %s23 = sld [smem:[%s22]]
  %s24 = scalar_lea.smem %s0, 12
  %s25 = sld [smem:[%s24]]
  %s26 = scalar_lea.smem %s0, 13
  %s27 = sld [smem:[%s26]]
  %s28 = scalar_lea.smem %s0, 14
  %s29 = sld [smem:[%s28]]
  %s30 = scalar_lea.smem %s0, 15
  %s31 = sld [smem:[%s30]]
  %s32 = scalar_lea.smem %s0, 16
  %s33 = sld [smem:[%s32]]
  %s34 = scalar_lea.smem %s0, 17
  %s35 = sld [smem:[%s34]]
  %s36 = scalar_lea.smem %s0, 18
  %s37 = sld [smem:[%s36]]
  %s38 = scalar_lea.smem %s0, 19
  %s39 = sld [smem:[%s38]]
  %s40 = scalar_lea.smem %s0, 20
  %s41 = sld [smem:[%s40]]
  %s42 = scalar_lea.smem %s0, 21
  %s43 = sld [smem:[%s42]]
  %s44 = scalar_lea.smem %s0, 22
  %s45 = sld [smem:[%s44]]
  %s46 = scalar_lea.smem %s0, 23
  %s47 = sld [smem:[%s46]]
  %s48 = scalar_lea.smem %s0, 24
  %s49 = sld [smem:[%s48]]
  %s50 = scalar_lea.smem %s0, 25
  %s51 = sld [smem:[%s50]]
  %s52 = scalar_lea.smem %s0, 26
  %s53 = sld [smem:[%s52]]
  %s54 = scalar_lea.smem %s0, 27
  %s55 = sld [smem:[%s54]]
  %s56 = scalar_lea.smem %s0, 28
  %s57 = sld [smem:[%s56]]
  %s58 = scalar_lea.smem %s0, 29
  %s59 = sld [smem:[%s58]]
  %s60 = scalar_lea.smem %s0, 30
  %s61 = sld [smem:[%s60]]
  %s62 = scalar_lea.smem %s0, 31
  %s63 = sld [smem:[%s62]]
  %s64 = scalar_lea.smem %s0, 32
  %s65 = sld [smem:[%s64]]
  %s66 = scalar_lea.smem %s0, 33
  %s67 = sld [smem:[%s66]]
  %s68 = scalar_lea.smem %s0, 34
  %s69 = sld [smem:[%s68]]
  %s70 = scalar_lea.smem %s0, 35
  %s71 = sld [smem:[%s70]]
  %s72 = scalar_lea.smem %s0, 36
  %s73 = sld [smem:[%s72]]
  %s74 = sld [smem:[#allocation0]]
  $region226: #{conformer_attn_pool_no_prenet.1} parent=0
    _
  %s76 = ssub.s32 1, %s74
  %s77 = scalar_select 0, %s76, %s74
  %v78 = vstv %s67
  %79 = vst [vmem:[#allocation4] sm:$0x1] %v78
  $region1: #{conformer_attn_pool_no_prenet.1} parent=0
    #allocation5 [shape = 'u8[8192]{0}', space=vmem, size = 0x2000, scoped, tag = 'input window, operand 0, single buffered']
    #allocation6 [shape = 's32[1]{0}', space=sflag, size = 0x4, scoped, tag = 'scoped memory for conformer_attn_pool_no_prenet.1']
    #allocation7 [shape = 's32[1]{0}', space=sflag, size = 0x4, scoped, tag = 'scoped memory for conformer_attn_pool_no_prenet.1']
    #allocation8 [shape = 'u8[1024]{0}', space=vmem, size = 0x400, scoped, tag = 'input window, operand 2, single buffered']
    #allocation9 [shape = 's32[1]{0}', space=sflag, size = 0x4, scoped, tag = 'scoped memory for conformer_attn_pool_no_prenet.1']
    #allocation10 [shape = 'u8[1024]{0}', space=vmem, size = 0x400, scoped, tag = 'input window, operand 3, single buffered']
    #allocation11 [shape = 'u8[1024]{0}', space=vmem, size = 0x400, scoped, tag = 'input window, operand 5, single buffered']
    #allocation12 [shape = 's32[1]{0}', space=sflag, size = 0x4, scoped, tag = 'scoped memory for conformer_attn_pool_no_prenet.1']
    #allocation13 [shape = 'u8[1024]{0}', space=vmem, size = 0x400, scoped, tag = 'input window, operand 7, single buffered']
    #allocation14 [shape = 'u8[1024]{0}', space=vmem, size = 0x400, scoped, tag = 'input window, operand 8, single buffered']
    #allocation15 [shape = 's32[1]{0}', space=sflag, size = 0x4, scoped, tag = 'scoped memory for conformer_attn_pool_no_prenet.1']
    #allocation16 [shape = 'u8[1024]{0}', space=vmem, size = 0x400, scoped, tag = 'input window, operand 9, single buffered']
    #allocation17 [shape = 'u8[1024]{0}', space=vmem, size = 0x400, scoped, tag = 'input window, operand 11, single buffered']
    #allocation18 [shape = 's32[1]{0}', space=sflag, size = 0x4, scoped, tag = 'scoped memory for conformer_attn_pool_no_prenet.1']
    #allocation19 [shape = 'u8[1024]{0}', space=vmem, size = 0x400, scoped, tag = 'input window, operand 13, single buffered']
    #allocation20 [shape = 'u8[1024]{0}', space=vmem, size = 0x400, scoped, tag = 'input window, operand 14, single buffered']
    #allocation21 [shape = 's32[1]{0}', space=sflag, size = 0x4, scoped, tag = 'scoped memory for conformer_attn_pool_no_prenet.1']
    #allocation22 [shape = 'u8[1024]{0}', space=vmem, size = 0x400, scoped, tag = 'input window, operand 15, single buffered']
    #allocation23 [shape = 'u8[1024]{0}', space=vmem, size = 0x400, scoped, tag = 'input window, operand 17, single buffered']
    #allocation24 [shape = 's32[1]{0}', space=sflag, size = 0x4, scoped, tag = 'scoped memory for conformer_attn_pool_no_prenet.1']
    #allocation25 [shape = 'u8[32768]{0}', space=vmem, size = 0x8000, scoped, tag = 'input window, operand 18, single buffered']
    #allocation26 [shape = 'u8[1024]{0}', space=vmem, size = 0x400, scoped, tag = 'input window, operand 19, single buffered']
    #allocation27 [shape = 's32[1]{0}', space=sflag, size = 0x4, scoped, tag = 'scoped memory for conformer_attn_pool_no_prenet.1']
    #allocation28 [shape = 'u8[1024]{0}', space=vmem, size = 0x400, scoped, tag = 'input window, operand 21, single buffered']
    #allocation29 [shape = 'u8[1024]{0}', space=vmem, size = 0x400, scoped, tag = 'input window, operand 23, single buffered']
    #allocation30 [shape = 's32[1]{0}', space=sflag, size = 0x4, scoped, tag = 'scoped memory for conformer_attn_pool_no_prenet.1']
    #allocation31 [shape = 'u8[32768]{0}', space=vmem, size = 0x8000, scoped, tag = 'input window, operand 26, single buffered']
    #allocation32 [shape = 'u8[2560]{0}', space=vmem, size = 0xc00, scoped, tag = 'input window, operand 35, single buffered']
    #allocation33 [shape = 's32[1]{0}', space=sflag, size = 0x4, scoped, tag = 'scoped memory for conformer_attn_pool_no_prenet.1']
    #allocation34 [shape = 'u8[5120]{0}', space=vmem, size = 0x1400, scoped, tag = 'output window, operand 0, single buffered']
    %80 = vsyncpa [#allocation6], 0
    %81 = vsyncpa [#allocation9], 0
    %82 = vsyncpa [#allocation12], 0
    %83 = vsyncpa [#allocation15], 0
    %84 = vsyncpa [#allocation18], 0
    %85 = vsyncpa [#allocation21], 0
    %86 = vsyncpa [#allocation24], 0
    %87 = vsyncpa [#allocation27], 0
    %88 = vsyncpa [#allocation30], 0
    %89 = vsyncpa [#allocation33], 0
    %90 = vsyncpa [#allocation7], 0
    // Predicated region
    $region2: #{conformer_attn_pool_no_prenet.1} parent=1 // pred_check
      _
    $region3: #{conformer_attn_pool_no_prenet.1} parent=1 // pred_check_branch
      %92 = sbr.rel (0) target = $region5
    $region4: #{conformer_attn_pool_no_prenet.1} parent=1 // pred_region
      %s94 = ssub.s32 256, 256
      %95 = vsyncadd [#allocation6], %s94
      %s96 = sshll.u32 [#allocation5], 4
      %s97 = int_to_ptr.vmem [resolvable:$true] %s96
      %102 = dma.hbm_to_vmem [thread:$0]  %s1, 256, %s97, [#allocation6], 128, 128, 8
    $region5: #{conformer_attn_pool_no_prenet.1} parent=1 // pred_fallthru
      _
    // Predicated region
    $region6: #{conformer_attn_pool_no_prenet.1} parent=1 // pred_check
      _
    $region7: #{conformer_attn_pool_no_prenet.1} parent=1 // pred_check_branch
      %104 = sbr.rel (0) target = $region9
    $region8: #{conformer_attn_pool_no_prenet.1} parent=1 // pred_region
      _
    $region9: #{conformer_attn_pool_no_prenet.1} parent=1 // pred_fallthru
      _
    // Predicated region
    $region10: #{conformer_attn_pool_no_prenet.1} parent=1 // pred_check
      _
    $region11: #{conformer_attn_pool_no_prenet.1} parent=1 // pred_check_branch
      %106 = sbr.rel (0) target = $region13
    $region12: #{conformer_attn_pool_no_prenet.1} parent=1 // pred_region
      %s108 = ssub.s32 32, 32
      %109 = vsyncadd [#allocation9], %s108
      %s110 = sshll.u32 [#allocation8], 4
      %s111 = int_to_ptr.vmem [resolvable:$true] %s110
      %116 = dma.hbm_to_vmem [thread:$0]  %s5, 32, %s111, [#allocation9], 16, 16, 1
    $region13: #{conformer_attn_pool_no_prenet.1} parent=1 // pred_fallthru
      _
    // Predicated region
    $region14: #{conformer_attn_pool_no_prenet.1} parent=1 // pred_check
      _
    $region15: #{conformer_attn_pool_no_prenet.1} parent=1 // pred_check_branch
      %118 = sbr.rel (0) target = $region17
    $region16: #{conformer_attn_pool_no_prenet.1} parent=1 // pred_region
      %s120 = ssub.s32 32, 32
      %121 = vsyncadd [#allocation9], %s120
      %s122 = sshll.u32 [#allocation10], 4
      %s123 = int_to_ptr.vmem [resolvable:$true] %s122
      %128 = dma.hbm_to_vmem [thread:$0]  %s7, 32, %s123, [#allocation9], 16, 16, 1
    $region17: #{conformer_attn_pool_no_prenet.1} parent=1 // pred_fallthru
      _
    // Predicated region
    $region18: #{conformer_attn_pool_no_prenet.1} parent=1 // pred_check
      _
    $region19: #{conformer_attn_pool_no_prenet.1} parent=1 // pred_check_branch
      %130 = sbr.rel (0) target = $region21
    $region20: #{conformer_attn_pool_no_prenet.1} parent=1 // pred_region
      _
    $region21: #{conformer_attn_pool_no_prenet.1} parent=1 // pred_fallthru
      _
    // Predicated region
    $region22: #{conformer_attn_pool_no_prenet.1} parent=1 // pred_check
      _
    $region23: #{conformer_attn_pool_no_prenet.1} parent=1 // pred_check_branch
      %132 = sbr.rel (0) target = $region25
    $region24: #{conformer_attn_pool_no_prenet.1} parent=1 // pred_region
      %s134 = ssub.s32 32, 32
      %135 = vsyncadd [#allocation12], %s134
      %s136 = sshll.u32 [#allocation11], 4
      %s137 = int_to_ptr.vmem [resolvable:$true] %s136
      %142 = dma.hbm_to_vmem [thread:$0]  %s11, 32, %s137, [#allocation12], 16, 16, 1
    $region25: #{conformer_attn_pool_no_prenet.1} parent=1 // pred_fallthru
      _
    // Predicated region
    $region26: #{conformer_attn_pool_no_prenet.1} parent=1 // pred_check
      _
    $region27: #{conformer_attn_pool_no_prenet.1} parent=1 // pred_check_branch
      %144 = sbr.rel (0) target = $region29
    $region28: #{conformer_attn_pool_no_prenet.1} parent=1 // pred_region
      _
    $region29: #{conformer_attn_pool_no_prenet.1} parent=1 // pred_fallthru
      _
    // Predicated region
    $region30: #{conformer_attn_pool_no_prenet.1} parent=1 // pred_check
      _
    $region31: #{conformer_attn_pool_no_prenet.1} parent=1 // pred_check_branch
      %146 = sbr.rel (0) target = $region33
    $region32: #{conformer_attn_pool_no_prenet.1} parent=1 // pred_region
      %s148 = ssub.s32 32, 32
      %149 = vsyncadd [#allocation12], %s148
      %s150 = sshll.u32 [#allocation13], 4
      %s151 = int_to_ptr.vmem [resolvable:$true] %s150
      %156 = dma.hbm_to_vmem [thread:$0]  %s15, 32, %s151, [#allocation12], 16, 16, 1
    $region33: #{conformer_attn_pool_no_prenet.1} parent=1 // pred_fallthru
      _
    // Predicated region
    $region34: #{conformer_attn_pool_no_prenet.1} parent=1 // pred_check
      _
    $region35: #{conformer_attn_pool_no_prenet.1} parent=1 // pred_check_branch
      %158 = sbr.rel (0) target = $region37
    $region36: #{conformer_attn_pool_no_prenet.1} parent=1 // pred_region
      %s160 = ssub.s32 32, 32
      %161 = vsyncadd [#allocation15], %s160
      %s162 = sshll.u32 [#allocation14], 4
      %s163 = int_to_ptr.vmem [resolvable:$true] %s162
      %168 = dma.hbm_to_vmem [thread:$0]  %s17, 32, %s163, [#allocation15], 16, 16, 1
    $region37: #{conformer_attn_pool_no_prenet.1} parent=1 // pred_fallthru
      _
    // Predicated region
    $region38: #{conformer_attn_pool_no_prenet.1} parent=1 // pred_check
      _
    $region39: #{conformer_attn_pool_no_prenet.1} parent=1 // pred_check_branch
      %170 = sbr.rel (0) target = $region41
    $region40: #{conformer_attn_pool_no_prenet.1} parent=1 // pred_region
      %s172 = ssub.s32 32, 32
      %173 = vsyncadd [#allocation15], %s172
      %s174 = sshll.u32 [#allocation16], 4
      %s175 = int_to_ptr.vmem [resolvable:$true] %s174
      %180 = dma.hbm_to_vmem [thread:$0]  %s19, 32, %s175, [#allocation15], 16, 16, 1
    $region41: #{conformer_attn_pool_no_prenet.1} parent=1 // pred_fallthru
      _
    // Predicated region
    $region42: #{conformer_attn_pool_no_prenet.1} parent=1 // pred_check
      _
    $region43: #{conformer_attn_pool_no_prenet.1} parent=1 // pred_check_branch
      %182 = sbr.rel (0) target = $region45
    $region44: #{conformer_attn_pool_no_prenet.1} parent=1 // pred_region
      _
    $region45: #{conformer_attn_pool_no_prenet.1} parent=1 // pred_fallthru
      _
    // Predicated region
    $region46: #{conformer_attn_pool_no_prenet.1} parent=1 // pred_check
      _
    $region47: #{conformer_attn_pool_no_prenet.1} parent=1 // pred_check_branch
      %184 = sbr.rel (0) target = $region49
    $region48: #{conformer_attn_pool_no_prenet.1} parent=1 // pred_region
      %s186 = ssub.s32 32, 32
      %187 = vsyncadd [#allocation18], %s186
      %s188 = sshll.u32 [#allocation17], 4
      %s189 = int_to_ptr.vmem [resolvable:$true] %s188
      %194 = dma.hbm_to_vmem [thread:$0]  %s23, 32, %s189, [#allocation18], 16, 16, 1
    $region49: #{conformer_attn_pool_no_prenet.1} parent=1 // pred_fallthru
      _
    // Predicated region
    $region50: #{conformer_attn_pool_no_prenet.1} parent=1 // pred_check
      _
    $region51: #{conformer_attn_pool_no_prenet.1} parent=1 // pred_check_branch
      %196 = sbr.rel (0) target = $region53
    $region52: #{conformer_attn_pool_no_prenet.1} parent=1 // pred_region
      _
    $region53: #{conformer_attn_pool_no_prenet.1} parent=1 // pred_fallthru
      _
    // Predicated region
    $region54: #{conformer_attn_pool_no_prenet.1} parent=1 // pred_check
      _
    $region55: #{conformer_attn_pool_no_prenet.1} parent=1 // pred_check_branch
      %198 = sbr.rel (0) target = $region57
    $region56: #{conformer_attn_pool_no_prenet.1} parent=1 // pred_region
      %s200 = ssub.s32 32, 32
      %201 = vsyncadd [#allocation18], %s200
      %s202 = sshll.u32 [#allocation19], 4
      %s203 = int_to_ptr.vmem [resolvable:$true] %s202
      %208 = dma.hbm_to_vmem [thread:$0]  %s27, 32, %s203, [#allocation18], 16, 16, 1
    $region57: #{conformer_attn_pool_no_prenet.1} parent=1 // pred_fallthru
      _
    // Predicated region
    $region58: #{conformer_attn_pool_no_prenet.1} parent=1 // pred_check
      _
    $region59: #{conformer_attn_pool_no_prenet.1} parent=1 // pred_check_branch
      %210 = sbr.rel (0) target = $region61
    $region60: #{conformer_attn_pool_no_prenet.1} parent=1 // pred_region
      %s212 = ssub.s32 32, 32
      %213 = vsyncadd [#allocation21], %s212
      %s214 = sshll.u32 [#allocation20], 4
      %s215 = int_to_ptr.vmem [resolvable:$true] %s214
      %220 = dma.hbm_to_vmem [thread:$0]  %s29, 32, %s215, [#allocation21], 16, 16, 1
    $region61: #{conformer_attn_pool_no_prenet.1} parent=1 // pred_fallthru
      _
    // Predicated region
    $region62: #{conformer_attn_pool_no_prenet.1} parent=1 // pred_check
      _
    $region63: #{conformer_attn_pool_no_prenet.1} parent=1 // pred_check_branch
      %222 = sbr.rel (0) target = $region65
    $region64: #{conformer_attn_pool_no_prenet.1} parent=1 // pred_region
      %s224 = ssub.s32 32, 32
      %225 = vsyncadd [#allocation21], %s224
      %s226 = sshll.u32 [#allocation22], 4
      %s227 = int_to_ptr.vmem [resolvable:$true] %s226
      %232 = dma.hbm_to_vmem [thread:$0]  %s31, 32, %s227, [#allocation21], 16, 16, 1
    $region65: #{conformer_attn_pool_no_prenet.1} parent=1 // pred_fallthru
      _
    // Predicated region
    $region66: #{conformer_attn_pool_no_prenet.1} parent=1 // pred_check
      _
    $region67: #{conformer_attn_pool_no_prenet.1} parent=1 // pred_check_branch
      %234 = sbr.rel (0) target = $region69
    $region68: #{conformer_attn_pool_no_prenet.1} parent=1 // pred_region
      _
    $region69: #{conformer_attn_pool_no_prenet.1} parent=1 // pred_fallthru
      _
    // Predicated region
    $region70: #{conformer_attn_pool_no_prenet.1} parent=1 // pred_check
      _
    $region71: #{conformer_attn_pool_no_prenet.1} parent=1 // pred_check_branch
      %236 = sbr.rel (0) target = $region73
    $region72: #{conformer_attn_pool_no_prenet.1} parent=1 // pred_region
      %s238 = ssub.s32 32, 32
      %239 = vsyncadd [#allocation24], %s238
      %s240 = sshll.u32 [#allocation23], 4
      %s241 = int_to_ptr.vmem [resolvable:$true] %s240
      %246 = dma.hbm_to_vmem [thread:$0]  %s35, 32, %s241, [#allocation24], 16, 16, 1
    $region73: #{conformer_attn_pool_no_prenet.1} parent=1 // pred_fallthru
      _
    // Predicated region
    $region74: #{conformer_attn_pool_no_prenet.1} parent=1 // pred_check
      _
    $region75: #{conformer_attn_pool_no_prenet.1} parent=1 // pred_check_branch
      %248 = sbr.rel (0) target = $region77
    $region76: #{conformer_attn_pool_no_prenet.1} parent=1 // pred_region
      %s250 = ssub.s32 1024, 1024
      %251 = vsyncadd [#allocation24], %s250
      %s252 = sshll.u32 [#allocation25], 4
      %s253 = int_to_ptr.vmem [resolvable:$true] %s252
      %258 = dma.hbm_to_vmem [thread:$0]  %s37, 1024, %s253, [#allocation24], 128, 128, 8
    $region77: #{conformer_attn_pool_no_prenet.1} parent=1 // pred_fallthru
      _
    // Predicated region
    $region78: #{conformer_attn_pool_no_prenet.1} parent=1 // pred_check
      _
    $region79: #{conformer_attn_pool_no_prenet.1} parent=1 // pred_check_branch
      %260 = sbr.rel (0) target = $region81
    $region80: #{conformer_attn_pool_no_prenet.1} parent=1 // pred_region
      %s262 = ssub.s32 32, 32
      %263 = vsyncadd [#allocation27], %s262
      %s264 = sshll.u32 [#allocation26], 4
      %s265 = int_to_ptr.vmem [resolvable:$true] %s264
      %270 = dma.hbm_to_vmem [thread:$0]  %s39, 32, %s265, [#allocation27], 16, 16, 1
    $region81: #{conformer_attn_pool_no_prenet.1} parent=1 // pred_fallthru
      _
    // Predicated region
    $region82: #{conformer_attn_pool_no_prenet.1} parent=1 // pred_check
      _
    $region83: #{conformer_attn_pool_no_prenet.1} parent=1 // pred_check_branch
      %272 = sbr.rel (0) target = $region85
    $region84: #{conformer_attn_pool_no_prenet.1} parent=1 // pred_region
      _
    $region85: #{conformer_attn_pool_no_prenet.1} parent=1 // pred_fallthru
      _
    // Predicated region
    $region86: #{conformer_attn_pool_no_prenet.1} parent=1 // pred_check
      _
    $region87: #{conformer_attn_pool_no_prenet.1} parent=1 // pred_check_branch
      %274 = sbr.rel (0) target = $region89
    $region88: #{conformer_attn_pool_no_prenet.1} parent=1 // pred_region
      %s276 = ssub.s32 32, 32
      %277 = vsyncadd [#allocation27], %s276
      %s278 = sshll.u32 [#allocation28], 4
      %s279 = int_to_ptr.vmem [resolvable:$true] %s278
      %284 = dma.hbm_to_vmem [thread:$0]  %s43, 32, %s279, [#allocation27], 16, 16, 1
    $region89: #{conformer_attn_pool_no_prenet.1} parent=1 // pred_fallthru
      _
    // Predicated region
    $region90: #{conformer_attn_pool_no_prenet.1} parent=1 // pred_check
      _
    $region91: #{conformer_attn_pool_no_prenet.1} parent=1 // pred_check_branch
      %286 = sbr.rel (0) target = $region93
    $region92: #{conformer_attn_pool_no_prenet.1} parent=1 // pred_region
      _
    $region93: #{conformer_attn_pool_no_prenet.1} parent=1 // pred_fallthru
      _
    // Predicated region
    $region94: #{conformer_attn_pool_no_prenet.1} parent=1 // pred_check
      _
    $region95: #{conformer_attn_pool_no_prenet.1} parent=1 // pred_check_branch
      %288 = sbr.rel (0) target = $region97
    $region96: #{conformer_attn_pool_no_prenet.1} parent=1 // pred_region
      %s290 = ssub.s32 32, 32
      %291 = vsyncadd [#allocation30], %s290
      %s292 = sshll.u32 [#allocation29], 4
      %s293 = int_to_ptr.vmem [resolvable:$true] %s292
      %298 = dma.hbm_to_vmem [thread:$0]  %s47, 32, %s293, [#allocation30], 16, 16, 1
    $region97: #{conformer_attn_pool_no_prenet.1} parent=1 // pred_fallthru
      _
    // Predicated region
    $region98: #{conformer_attn_pool_no_prenet.1} parent=1 // pred_check
      _
    $region99: #{conformer_attn_pool_no_prenet.1} parent=1 // pred_check_branch
      %300 = sbr.rel (0) target = $region101
    $region100: #{conformer_attn_pool_no_prenet.1} parent=1 // pred_region
      _
    $region101: #{conformer_attn_pool_no_prenet.1} parent=1 // pred_fallthru
      _
    // Predicated region
    $region102: #{conformer_attn_pool_no_prenet.1} parent=1 // pred_check
      _
    $region103: #{conformer_attn_pool_no_prenet.1} parent=1 // pred_check_branch
      %302 = sbr.rel (0) target = $region105
    $region104: #{conformer_attn_pool_no_prenet.1} parent=1 // pred_region
      _
    $region105: #{conformer_attn_pool_no_prenet.1} parent=1 // pred_fallthru
      _
    // Predicated region
    $region106: #{conformer_attn_pool_no_prenet.1} parent=1 // pred_check
      _
    $region107: #{conformer_attn_pool_no_prenet.1} parent=1 // pred_check_branch
      %304 = sbr.rel (0) target = $region109
    $region108: #{conformer_attn_pool_no_prenet.1} parent=1 // pred_region
      %s306 = ssub.s32 1024, 1024
      %307 = vsyncadd [#allocation30], %s306
      %s308 = sshll.u32 [#allocation31], 4
      %s309 = int_to_ptr.vmem [resolvable:$true] %s308
      %314 = dma.hbm_to_vmem [thread:$0]  %s53, 1024, %s309, [#allocation30], 128, 128, 8
    $region109: #{conformer_attn_pool_no_prenet.1} parent=1 // pred_fallthru
      _
    // Predicated region
    $region110: #{conformer_attn_pool_no_prenet.1} parent=1 // pred_check
      _
    $region111: #{conformer_attn_pool_no_prenet.1} parent=1 // pred_check_branch
      %316 = sbr.rel (0) target = $region113
    $region112: #{conformer_attn_pool_no_prenet.1} parent=1 // pred_region
      _
    $region113: #{conformer_attn_pool_no_prenet.1} parent=1 // pred_fallthru
      _
    // Predicated region
    $region114: #{conformer_attn_pool_no_prenet.1} parent=1 // pred_check
      _
    $region115: #{conformer_attn_pool_no_prenet.1} parent=1 // pred_check_branch
      %318 = sbr.rel (0) target = $region117
    $region116: #{conformer_attn_pool_no_prenet.1} parent=1 // pred_region
      _
    $region117: #{conformer_attn_pool_no_prenet.1} parent=1 // pred_fallthru
      _
    // Predicated region
    $region118: #{conformer_attn_pool_no_prenet.1} parent=1 // pred_check
      _
    $region119: #{conformer_attn_pool_no_prenet.1} parent=1 // pred_check_branch
      %320 = sbr.rel (0) target = $region121
    $region120: #{conformer_attn_pool_no_prenet.1} parent=1 // pred_region
      _
    $region121: #{conformer_attn_pool_no_prenet.1} parent=1 // pred_fallthru
      _
    // Predicated region
    $region122: #{conformer_attn_pool_no_prenet.1} parent=1 // pred_check
      _
    $region123: #{conformer_attn_pool_no_prenet.1} parent=1 // pred_check_branch
      %322 = sbr.rel (0) target = $region125
    $region124: #{conformer_attn_pool_no_prenet.1} parent=1 // pred_region
      _
    $region125: #{conformer_attn_pool_no_prenet.1} parent=1 // pred_fallthru
      _
    // Predicated region
    $region126: #{conformer_attn_pool_no_prenet.1} parent=1 // pred_check
      _
    $region127: #{conformer_attn_pool_no_prenet.1} parent=1 // pred_check_branch
      %324 = sbr.rel (0) target = $region129
    $region128: #{conformer_attn_pool_no_prenet.1} parent=1 // pred_region
      _
    $region129: #{conformer_attn_pool_no_prenet.1} parent=1 // pred_fallthru
      _
    // Predicated region
    $region130: #{conformer_attn_pool_no_prenet.1} parent=1 // pred_check
      _
    $region131: #{conformer_attn_pool_no_prenet.1} parent=1 // pred_check_branch
      %326 = sbr.rel (0) target = $region133
    $region132: #{conformer_attn_pool_no_prenet.1} parent=1 // pred_region
      _
    $region133: #{conformer_attn_pool_no_prenet.1} parent=1 // pred_fallthru
      _
    // Predicated region
    $region134: #{conformer_attn_pool_no_prenet.1} parent=1 // pred_check
      _
    $region135: #{conformer_attn_pool_no_prenet.1} parent=1 // pred_check_branch
      %328 = sbr.rel (0) target = $region137
    $region136: #{conformer_attn_pool_no_prenet.1} parent=1 // pred_region
      _
    $region137: #{conformer_attn_pool_no_prenet.1} parent=1 // pred_fallthru
      _
    // Predicated region
    $region138: #{conformer_attn_pool_no_prenet.1} parent=1 // pred_check
      _
    $region139: #{conformer_attn_pool_no_prenet.1} parent=1 // pred_check_branch
      %330 = sbr.rel (0) target = $region141
    $region140: #{conformer_attn_pool_no_prenet.1} parent=1 // pred_region
      _
    $region141: #{conformer_attn_pool_no_prenet.1} parent=1 // pred_fallthru
      _
    // Predicated region
    $region142: #{conformer_attn_pool_no_prenet.1} parent=1 // pred_check
      _
    $region143: #{conformer_attn_pool_no_prenet.1} parent=1 // pred_check_branch
      %332 = sbr.rel (0) target = $region145
    $region144: #{conformer_attn_pool_no_prenet.1} parent=1 // pred_region
      %s334 = ssub.s32 80, 80
      %335 = vsyncadd [#allocation33], %s334
      %s337 = sshll.u32 [#allocation32], 4
      %s338 = int_to_ptr.vmem [resolvable:$true] %s337
      %340 = dma.hbm_to_vmem [thread:$0]  %s71, 80, %s338, [#allocation33]
    $region145: #{conformer_attn_pool_no_prenet.1} parent=1 // pred_fallthru
      _
    // Predicated region
    $region146: #{conformer_attn_pool_no_prenet.1} parent=1 // pred_check
      _
    $region147: #{conformer_attn_pool_no_prenet.1} parent=1 // pred_check_branch
      %342 = sbr.rel (0) target = $region149
    $region148: #{conformer_attn_pool_no_prenet.1} parent=1 // pred_region
      %343 = dma.done [#allocation6], 256
    $region149: #{conformer_attn_pool_no_prenet.1} parent=1 // pred_fallthru
      _
    // Predicated region
    $region150: #{conformer_attn_pool_no_prenet.1} parent=1 // pred_check
      _
    $region151: #{conformer_attn_pool_no_prenet.1} parent=1 // pred_check_branch
      %345 = sbr.rel (0) target = $region153
    $region152: #{conformer_attn_pool_no_prenet.1} parent=1 // pred_region
      %346 = dma.done [#allocation9], 32
    $region153: #{conformer_attn_pool_no_prenet.1} parent=1 // pred_fallthru
      _
    // Predicated region
    $region154: #{conformer_attn_pool_no_prenet.1} parent=1 // pred_check
      _
    $region155: #{conformer_attn_pool_no_prenet.1} parent=1 // pred_check_branch
      %348 = sbr.rel (0) target = $region157
    $region156: #{conformer_attn_pool_no_prenet.1} parent=1 // pred_region
      %349 = dma.done [#allocation9], 32
    $region157: #{conformer_attn_pool_no_prenet.1} parent=1 // pred_fallthru
      _
    // Predicated region
    $region158: #{conformer_attn_pool_no_prenet.1} parent=1 // pred_check
      _
    $region159: #{conformer_attn_pool_no_prenet.1} parent=1 // pred_check_branch
      %351 = sbr.rel (0) target = $region161
    $region160: #{conformer_attn_pool_no_prenet.1} parent=1 // pred_region
      %352 = dma.done [#allocation12], 32
    $region161: #{conformer_attn_pool_no_prenet.1} parent=1 // pred_fallthru
      _
    // Predicated region
    $region162: #{conformer_attn_pool_no_prenet.1} parent=1 // pred_check
      _
    $region163: #{conformer_attn_pool_no_prenet.1} parent=1 // pred_check_branch
      %354 = sbr.rel (0) target = $region165
    $region164: #{conformer_attn_pool_no_prenet.1} parent=1 // pred_region
      %355 = dma.done [#allocation12], 32
    $region165: #{conformer_attn_pool_no_prenet.1} parent=1 // pred_fallthru
      _
    // Predicated region
    $region166: #{conformer_attn_pool_no_prenet.1} parent=1 // pred_check
      _
    $region167: #{conformer_attn_pool_no_prenet.1} parent=1 // pred_check_branch
      %357 = sbr.rel (0) target = $region169
    $region168: #{conformer_attn_pool_no_prenet.1} parent=1 // pred_region
      %358 = dma.done [#allocation15], 32
    $region169: #{conformer_attn_pool_no_prenet.1} parent=1 // pred_fallthru
      _
    // Predicated region
    $region170: #{conformer_attn_pool_no_prenet.1} parent=1 // pred_check
      _
    $region171: #{conformer_attn_pool_no_prenet.1} parent=1 // pred_check_branch
      %360 = sbr.rel (0) target = $region173
    $region172: #{conformer_attn_pool_no_prenet.1} parent=1 // pred_region
      %361 = dma.done [#allocation15], 32
    $region173: #{conformer_attn_pool_no_prenet.1} parent=1 // pred_fallthru
      _
    // Predicated region
    $region174: #{conformer_attn_pool_no_prenet.1} parent=1 // pred_check
      _
    $region175: #{conformer_attn_pool_no_prenet.1} parent=1 // pred_check_branch
      %363 = sbr.rel (0) target = $region177
    $region176: #{conformer_attn_pool_no_prenet.1} parent=1 // pred_region
      %364 = dma.done [#allocation18], 32
    $region177: #{conformer_attn_pool_no_prenet.1} parent=1 // pred_fallthru
      _
    // Predicated region
    $region178: #{conformer_attn_pool_no_prenet.1} parent=1 // pred_check
      _
    $region179: #{conformer_attn_pool_no_prenet.1} parent=1 // pred_check_branch
      %366 = sbr.rel (0) target = $region181
    $region180: #{conformer_attn_pool_no_prenet.1} parent=1 // pred_region
      %367 = dma.done [#allocation18], 32
    $region181: #{conformer_attn_pool_no_prenet.1} parent=1 // pred_fallthru
      _
    // Predicated region
    $region182: #{conformer_attn_pool_no_prenet.1} parent=1 // pred_check
      _
    $region183: #{conformer_attn_pool_no_prenet.1} parent=1 // pred_check_branch
      %369 = sbr.rel (0) target = $region185
    $region184: #{conformer_attn_pool_no_prenet.1} parent=1 // pred_region
      %370 = dma.done [#allocation21], 32
    $region185: #{conformer_attn_pool_no_prenet.1} parent=1 // pred_fallthru
      _
    // Predicated region
    $region186: #{conformer_attn_pool_no_prenet.1} parent=1 // pred_check
      _
    $region187: #{conformer_attn_pool_no_prenet.1} parent=1 // pred_check_branch
      %372 = sbr.rel (0) target = $region189
    $region188: #{conformer_attn_pool_no_prenet.1} parent=1 // pred_region
      %373 = dma.done [#allocation21], 32
    $region189: #{conformer_attn_pool_no_prenet.1} parent=1 // pred_fallthru
      _
    // Predicated region
    $region190: #{conformer_attn_pool_no_prenet.1} parent=1 // pred_check
      _
    $region191: #{conformer_attn_pool_no_prenet.1} parent=1 // pred_check_branch
      %375 = sbr.rel (0) target = $region193
    $region192: #{conformer_attn_pool_no_prenet.1} parent=1 // pred_region
      %376 = dma.done [#allocation24], 32
    $region193: #{conformer_attn_pool_no_prenet.1} parent=1 // pred_fallthru
      _
    // Predicated region
    $region194: #{conformer_attn_pool_no_prenet.1} parent=1 // pred_check
      _
    $region195: #{conformer_attn_pool_no_prenet.1} parent=1 // pred_check_branch
      %378 = sbr.rel (0) target = $region197
    $region196: #{conformer_attn_pool_no_prenet.1} parent=1 // pred_region
      %379 = dma.done [#allocation24], 1024
    $region197: #{conformer_attn_pool_no_prenet.1} parent=1 // pred_fallthru
      _
    // Predicated region
    $region198: #{conformer_attn_pool_no_prenet.1} parent=1 // pred_check
      _
    $region199: #{conformer_attn_pool_no_prenet.1} parent=1 // pred_check_branch
      %381 = sbr.rel (0) target = $region201
    $region200: #{conformer_attn_pool_no_prenet.1} parent=1 // pred_region
      %382 = dma.done [#allocation27], 32
    $region201: #{conformer_attn_pool_no_prenet.1} parent=1 // pred_fallthru
      _
    // Predicated region
    $region202: #{conformer_attn_pool_no_prenet.1} parent=1 // pred_check
      _
    $region203: #{conformer_attn_pool_no_prenet.1} parent=1 // pred_check_branch
      %384 = sbr.rel (0) target = $region205
    $region204: #{conformer_attn_pool_no_prenet.1} parent=1 // pred_region
      %385 = dma.done [#allocation27], 32
    $region205: #{conformer_attn_pool_no_prenet.1} parent=1 // pred_fallthru
      _
    // Predicated region
    $region206: #{conformer_attn_pool_no_prenet.1} parent=1 // pred_check
      _
    $region207: #{conformer_attn_pool_no_prenet.1} parent=1 // pred_check_branch
      %387 = sbr.rel (0) target = $region209
    $region208: #{conformer_attn_pool_no_prenet.1} parent=1 // pred_region
      %388 = dma.done [#allocation30], 32
    $region209: #{conformer_attn_pool_no_prenet.1} parent=1 // pred_fallthru
      _
    // Predicated region
    $region210: #{conformer_attn_pool_no_prenet.1} parent=1 // pred_check
      _
    $region211: #{conformer_attn_pool_no_prenet.1} parent=1 // pred_check_branch
      %390 = sbr.rel (0) target = $region213
    $region212: #{conformer_attn_pool_no_prenet.1} parent=1 // pred_region
      %391 = dma.done [#allocation30], 1024
    $region213: #{conformer_attn_pool_no_prenet.1} parent=1 // pred_fallthru
      _
    // Predicated region
    $region214: #{conformer_attn_pool_no_prenet.1} parent=1 // pred_check
      _
    $region215: #{conformer_attn_pool_no_prenet.1} parent=1 // pred_check_branch
      %393 = sbr.rel (0) target = $region217
    $region216: #{conformer_attn_pool_no_prenet.1} parent=1 // pred_region
      %394 = dma.done [#allocation33], 80
    $region217: #{conformer_attn_pool_no_prenet.1} parent=1 // pred_fallthru
      _
    %v395 = vld [vmem:[#allocation5] sm:$0xff]
    %v396 = vld [vmem:[#allocation5 + $0x8] sm:$0xff]
    %v397 = vld [vmem:[%s3] sm:$0x3]
    %vm398 = vcmask 261120
    %399 = vst.msk [vmem:[#allocation3] sm:$0xff] %vm398, 0.0
    %vm400 = vcmask 254976
    %401 = vst.msk [vmem:[#allocation3 + $0x8] sm:$0x3] %vm400, 0.0
    %v402 = vlaneseq
    %v403 = vand.u32 %v402, 127
    %v404 = vld [vmem:[#allocation8] sm:$0x1]
    %v405 = vld [vmem:[#allocation10] sm:$0x1]
    %v406 = vsel %vm398, %v395, 0.0
    %407 = vadd.xlane.f32.xlu0 %v406
    %v408 = vpop.xlane.xlu0 %407
    %v409 = vsel %vm398, %v396, 0.0
    %410 = vadd.xlane.f32.xlu0 %v409
    %v411 = vpop.xlane.xlu0 %410
    %v412 = vrcp.pop 32.0
    %v413 = vmul.f32 %v408, %v412
    %v414 = vmul.f32 %v411, %v412
    %v415 = vsub.f32 %v395, %v413
    %v416 = vsub.f32 %v396, %v414
    %v417 = vmul.f32 %v415, %v415
    %v418 = vmul.f32 %v416, %v416
    %v419 = vsel %vm398, %v417, 0.0
    %420 = vadd.xlane.f32.xlu0 %v419
    %v421 = vpop.xlane.xlu0 %420
    %v422 = vsel %vm398, %v418, 0.0
    %423 = vadd.xlane.f32.xlu0 %v422
    %v424 = vpop.xlane.xlu0 %423
    %v425 = vmul.f32 %v421, %v412
    %v426 = vmul.f32 %v424, %v412
    %v427 = vadd.f32 %v425, 1e-05
    %v428 = vadd.f32 %v426, 1e-05
    %v429 = vrsqrt.pop %v427
    %v430 = vrsqrt.pop %v428
    %v431 = vmul.f32 %v415, %v429
    %v432 = vmul.f32 %v416, %v430
    %v434 = vlaneseq
    %v435 = vshrl.u32 %v434, 7
    %v436 = vsub.s32 0, %v435
    %v437 = vrot.slane %v404, %v436
    %v439 = vmul.f32 %v431, %v437
    %v440 = vmul.f32 %v432, %v437
    %v442 = vlaneseq
    %v443 = vshrl.u32 %v442, 7
    %v444 = vsub.s32 0, %v443
    %v445 = vrot.slane %v405, %v444
    %v447 = vadd.f32 %v439, %v445
    %v448 = vadd.f32 %v440, %v445
    %v449 = vld [vmem:[%s9] sm:$0xff]
    %v450 = vld [vmem:[%s9 + $0x8] sm:$0xff]
    %v451 = vld [vmem:[%s9 + $0x10] sm:$0xff]
    %v452 = vld [vmem:[%s9 + $0x18] sm:$0xff]
    %v453 = vld [vmem:[#allocation11] sm:$0x1]
    %v455 = vlaneseq
    %v456 = vshrl.u32 %v455, 7
    %v457 = vsub.s32 0, %v456
    %v458 = vrot.slane %v453, %v457
    %v461 = vsel %vm398, %v447, 0
    %v464 = vsel %vm398, %v448, 0
    %466 = vmatprep.subr.mxu0 0.0
    %467 = vmatpush1.msra.mxu0 0.0
    %468 = vmatprep.subr.mxu0 0.0
    %469 = vmatpush1.msra.mxu0 0.0
    %470 = vmatprep.subr.mxu0 0.0
    %471 = vmatpush1.msra.mxu0 0.0
    %472 = vmatprep.subr.mxu0 0.0
    %473 = vmatpush1.msra.mxu0 0.0
    %474 = vmatprep.subr.mxu0 0.0
    %475 = vmatpush1.msra.mxu0 0.0
    %476 = vmatprep.subr.mxu0 0.0
    %477 = vmatpush1.msra.mxu0 0.0
    %478 = vmatprep.subr.mxu0 0.0
    %479 = vmatpush1.msra.mxu0 0.0
    %480 = vmatprep.subr.mxu0 0.0
    %481 = vmatpush1.msra.mxu0 0.0
    %482 = vmatprep.subr.mxu0 0.0
    %483 = vmatpush1.msra.mxu0 0.0
    %484 = vmatprep.subr.mxu0 0.0
    %485 = vmatpush1.msra.mxu0 0.0
    %486 = vmatprep.subr.mxu0 0.0
    %487 = vmatpush1.msra.mxu0 0.0
    %488 = vmatprep.subr.mxu0 0.0
    %489 = vmatpush1.msra.mxu0 0.0
    %490 = vmatprep.subr.mxu0 0.0
    %491 = vmatpush1.msra.mxu0 %v452
    %492 = vmatprep.subr.mxu0 0.0
    %493 = vmatpush1.msra.mxu0 %v451
    %494 = vmatprep.subr.mxu0 0.0
    %495 = vmatpush1.msra.mxu0 %v450
    %496 = vmatprep.subr.mxu0 0.0
    %497 = vmatpush1.msra.mxu0 %v449
    %498 = vmatprep.subr.mxu0 0.0
    %499 = vmatpush2.msra.mxu0 0.0
    %500 = vmatprep.subr.mxu0 0.0
    %501 = vmatpush2.msra.mxu0 0.0
    %502 = vmatprep.subr.mxu0 0.0
    %503 = vmatpush2.msra.mxu0 0.0
    %504 = vmatprep.subr.mxu0 0.0
    %505 = vmatpush2.msra.mxu0 0.0
    %506 = vmatprep.subr.mxu0 0.0
    %507 = vmatpush2.msra.mxu0 0.0
    %508 = vmatprep.subr.mxu0 0.0
    %509 = vmatpush2.msra.mxu0 0.0
    %510 = vmatprep.subr.mxu0 0.0
    %511 = vmatpush2.msra.mxu0 0.0
    %512 = vmatprep.subr.mxu0 0.0
    %513 = vmatpush2.msra.mxu0 0.0
    %514 = vmatprep.subr.mxu0 0.0
    %515 = vmatpush2.msra.mxu0 0.0
    %516 = vmatprep.subr.mxu0 0.0
    %517 = vmatpush2.msra.mxu0 0.0
    %518 = vmatprep.subr.mxu0 0.0
    %519 = vmatpush2.msra.mxu0 0.0
    %520 = vmatprep.subr.mxu0 0.0
    %521 = vmatpush2.msra.mxu0 0.0
    %522 = vmatprep.subr.mxu0 0.0
    %523 = vmatpush2.msra.mxu0 0.0
    %524 = vmatprep.subr.mxu0 0.0
    %525 = vmatpush2.msra.mxu0 0.0
    %526 = vmatprep.subr.mxu0 0.0
    %527 = vmatpush2.msra.mxu0 0.0
    %528 = vmatprep.subr.mxu0 0.0
    %529 = vmatpush2.msra.mxu0 0.0
    %530 = vmatprep.mubr.f32.mxu0 0.0
    %531 = vmatmul.mubr.f32.gmra.mxu0 %v461
    %v532 = vpop.f32.mrf.mxu0
    %v533 = vadd.f32 %v458, %v532
    %v534 = vpop.f32.mrf.mxu0
    %535 = vmatprep.mubr.f32.mxu0 0.0
    %536 = vmatmul.mubr.f32.gmra.mxu0 %v464
    %v537 = vpop.f32.mrf.mxu0
    %v538 = vadd.f32 %v458, %v537
    %v539 = vpop.f32.mrf.mxu0
    %540 = vdwg.mxu0
    %v541 = vxor.u32 %v533, 2147483648
    %v542 = vxor.u32 %v538, 2147483648
    %v543 = vmul.f32 %v541, 1.442695
    %v544 = vpow.pop %v543
    %v545 = vmul.f32 %v542, 1.442695
    %v546 = vpow.pop %v545
    %v547 = vadd.f32 %v544, 1.0
    %v548 = vadd.f32 %v546, 1.0
    %v549 = vrcp.pop %v547
    %v550 = vmul.f32 1.0, %v549
    %v551 = vrcp.pop %v548
    %v552 = vmul.f32 1.0, %v551
    %v553 = vmul.f32 %v533, %v550
    %v554 = vmul.f32 %v538, %v552
    %v555 = vld [vmem:[%s13] sm:$0xff]
    %v556 = vld [vmem:[%s13 + $0x8] sm:$0xff]
    %v557 = vld [vmem:[%s13 + $0x10] sm:$0xff]
    %v558 = vld [vmem:[%s13 + $0x18] sm:$0xff]
    %v559 = vld [vmem:[%s13 + $0x20] sm:$0xff]
    %v560 = vld [vmem:[%s13 + $0x28] sm:$0xff]
    %v561 = vld [vmem:[%s13 + $0x30] sm:$0xff]
    %v562 = vld [vmem:[%s13 + $0x38] sm:$0xff]
    %v563 = vld [vmem:[#allocation13] sm:$0x1]
    %v565 = vlaneseq
    %v566 = vshrl.u32 %v565, 7
    %v567 = vsub.s32 0, %v566
    %v568 = vrot.slane %v563, %v567
    %vm570 = vcmask 523264
    %v572 = vsel %vm570, %v553, 0
    %v575 = vsel %vm570, %v554, 0
    %577 = vmatprep.subr.mxu0 0.0
    %578 = vmatpush1.msra.mxu0 0.0
    %579 = vmatprep.subr.mxu0 0.0
    %580 = vmatpush1.msra.mxu0 0.0
    %581 = vmatprep.subr.mxu0 0.0
    %582 = vmatpush1.msra.mxu0 0.0
    %583 = vmatprep.subr.mxu0 0.0
    %584 = vmatpush1.msra.mxu0 0.0
    %585 = vmatprep.subr.mxu0 0.0
    %586 = vmatpush1.msra.mxu0 0.0
    %587 = vmatprep.subr.mxu0 0.0
    %588 = vmatpush1.msra.mxu0 0.0
    %589 = vmatprep.subr.mxu0 0.0
    %590 = vmatpush1.msra.mxu0 0.0
    %591 = vmatprep.subr.mxu0 0.0
    %592 = vmatpush1.msra.mxu0 0.0
    %593 = vmatprep.subr.mxu0 0.0
    %594 = vmatpush1.msra.mxu0 %v562
    %595 = vmatprep.subr.mxu0 0.0
    %596 = vmatpush1.msra.mxu0 %v561
    %597 = vmatprep.subr.mxu0 0.0
    %598 = vmatpush1.msra.mxu0 %v560
    %599 = vmatprep.subr.mxu0 0.0
    %600 = vmatpush1.msra.mxu0 %v559
    %601 = vmatprep.subr.mxu0 0.0
    %602 = vmatpush1.msra.mxu0 %v558
    %603 = vmatprep.subr.mxu0 0.0
    %604 = vmatpush1.msra.mxu0 %v557
    %605 = vmatprep.subr.mxu0 0.0
    %606 = vmatpush1.msra.mxu0 %v556
    %607 = vmatprep.subr.mxu0 0.0
    %608 = vmatpush1.msra.mxu0 %v555
    %609 = vmatprep.subr.mxu0 0.0
    %610 = vmatpush2.msra.mxu0 0.0
    %611 = vmatprep.subr.mxu0 0.0
    %612 = vmatpush2.msra.mxu0 0.0
    %613 = vmatprep.subr.mxu0 0.0
    %614 = vmatpush2.msra.mxu0 0.0
    %615 = vmatprep.subr.mxu0 0.0
    %616 = vmatpush2.msra.mxu0 0.0
    %617 = vmatprep.subr.mxu0 0.0
    %618 = vmatpush2.msra.mxu0 0.0
    %619 = vmatprep.subr.mxu0 0.0
    %620 = vmatpush2.msra.mxu0 0.0
    %621 = vmatprep.subr.mxu0 0.0
    %622 = vmatpush2.msra.mxu0 0.0
    %623 = vmatprep.subr.mxu0 0.0
    %624 = vmatpush2.msra.mxu0 0.0
    %625 = vmatprep.subr.mxu0 0.0
    %626 = vmatpush2.msra.mxu0 0.0
    %627 = vmatprep.subr.mxu0 0.0
    %628 = vmatpush2.msra.mxu0 0.0
    %629 = vmatprep.subr.mxu0 0.0
    %630 = vmatpush2.msra.mxu0 0.0
    %631 = vmatprep.subr.mxu0 0.0
    %632 = vmatpush2.msra.mxu0 0.0
    %633 = vmatprep.subr.mxu0 0.0
    %634 = vmatpush2.msra.mxu0 0.0
    %635 = vmatprep.subr.mxu0 0.0
    %636 = vmatpush2.msra.mxu0 0.0
    %637 = vmatprep.subr.mxu0 0.0
    %638 = vmatpush2.msra.mxu0 0.0
    %639 = vmatprep.subr.mxu0 0.0
    %640 = vmatpush2.msra.mxu0 0.0
    %641 = vmatprep.mubr.f32.mxu0 0.0
    %642 = vmatmul.mubr.f32.gmra.mxu0 %v572
    %v643 = vpop.f32.mrf.mxu0
    %v644 = vadd.f32 %v568, %v643
    %v645 = vpop.f32.mrf.mxu0
    %646 = vmatprep.mubr.f32.mxu0 0.0
    %647 = vmatmul.mubr.f32.gmra.mxu0 %v575
    %v648 = vpop.f32.mrf.mxu0
    %v649 = vadd.f32 %v568, %v648
    %v650 = vpop.f32.mrf.mxu0
    %651 = vdwg.mxu0
    %v652 = vmul.f32 %v644, 0.5
    %v653 = vmul.f32 %v649, 0.5
    %v654 = vadd.f32 %v395, %v652
    %v655 = vadd.f32 %v396, %v653
    %v656 = vld [vmem:[#allocation14] sm:$0x1]
    %v657 = vld [vmem:[#allocation16] sm:$0x1]
    %v658 = vsel %vm398, %v654, 0.0
    %659 = vadd.xlane.f32.xlu0 %v658
    %v660 = vpop.xlane.xlu0 %659
    %v661 = vsel %vm398, %v655, 0.0
    %662 = vadd.xlane.f32.xlu0 %v661
    %v663 = vpop.xlane.xlu0 %662
    %v664 = vmul.f32 %v660, %v412
    %v665 = vmul.f32 %v663, %v412
    %v666 = vsub.f32 %v654, %v664
    %v667 = vsub.f32 %v655, %v665
    %v668 = vmul.f32 %v666, %v666
    %v669 = vmul.f32 %v667, %v667
    %v670 = vsel %vm398, %v668, 0.0
    %671 = vadd.xlane.f32.xlu0 %v670
    %v672 = vpop.xlane.xlu0 %671
    %v673 = vsel %vm398, %v669, 0.0
    %674 = vadd.xlane.f32.xlu0 %v673
    %v675 = vpop.xlane.xlu0 %674
    %v676 = vmul.f32 %v672, %v412
    %v677 = vmul.f32 %v675, %v412
    %v678 = vadd.f32 %v676, 1e-05
    %v679 = vadd.f32 %v677, 1e-05
    %v680 = vrsqrt.pop %v678
    %v681 = vrsqrt.pop %v679
    %v682 = vmul.f32 %v666, %v680
    %v683 = vmul.f32 %v667, %v681
    %v685 = vlaneseq
    %v686 = vshrl.u32 %v685, 7
    %v687 = vsub.s32 0, %v686
    %v688 = vrot.slane %v656, %v687
    %v690 = vmul.f32 %v682, %v688
    %v691 = vmul.f32 %v683, %v688
    %v693 = vlaneseq
    %v694 = vshrl.u32 %v693, 7
    %v695 = vsub.s32 0, %v694
    %v696 = vrot.slane %v657, %v695
    %v698 = vadd.f32 %v690, %v696
    %v699 = vadd.f32 %v691, %v696
    %v700 = vld [vmem:[%s21] sm:$0xff]
    %v701 = vld [vmem:[%s21 + $0x8] sm:$0xff]
    %v702 = vld [vmem:[%s21 + $0x10] sm:$0xff]
    %v703 = vld [vmem:[%s21 + $0x18] sm:$0xff]
    %v704 = vld [vmem:[#allocation17] sm:$0x1]
    %v706 = vlaneseq
    %v707 = vshrl.u32 %v706, 7
    %v708 = vsub.s32 0, %v707
    %v709 = vrot.slane %v704, %v708
    %v712 = vsel %vm398, %v698, 0
    %v715 = vsel %vm398, %v699, 0
    %717 = vmatprep.subr.mxu0 0.0
    %718 = vmatpush1.msra.mxu0 0.0
    %719 = vmatprep.subr.mxu0 0.0
    %720 = vmatpush1.msra.mxu0 0.0
    %721 = vmatprep.subr.mxu0 0.0
    %722 = vmatpush1.msra.mxu0 0.0
    %723 = vmatprep.subr.mxu0 0.0
    %724 = vmatpush1.msra.mxu0 0.0
    %725 = vmatprep.subr.mxu0 0.0
    %726 = vmatpush1.msra.mxu0 0.0
    %727 = vmatprep.subr.mxu0 0.0
    %728 = vmatpush1.msra.mxu0 0.0
    %729 = vmatprep.subr.mxu0 0.0
    %730 = vmatpush1.msra.mxu0 0.0
    %731 = vmatprep.subr.mxu0 0.0
    %732 = vmatpush1.msra.mxu0 0.0
    %733 = vmatprep.subr.mxu0 0.0
    %734 = vmatpush1.msra.mxu0 0.0
    %735 = vmatprep.subr.mxu0 0.0
    %736 = vmatpush1.msra.mxu0 0.0
    %737 = vmatprep.subr.mxu0 0.0
    %738 = vmatpush1.msra.mxu0 0.0
    %739 = vmatprep.subr.mxu0 0.0
    %740 = vmatpush1.msra.mxu0 0.0
    %741 = vmatprep.subr.mxu0 0.0
    %742 = vmatpush1.msra.mxu0 %v703
    %743 = vmatprep.subr.mxu0 0.0
    %744 = vmatpush1.msra.mxu0 %v702
    %745 = vmatprep.subr.mxu0 0.0
    %746 = vmatpush1.msra.mxu0 %v701
    %747 = vmatprep.subr.mxu0 0.0
    %748 = vmatpush1.msra.mxu0 %v700
    %749 = vmatprep.subr.mxu0 0.0
    %750 = vmatpush2.msra.mxu0 0.0
    %751 = vmatprep.subr.mxu0 0.0
    %752 = vmatpush2.msra.mxu0 0.0
    %753 = vmatprep.subr.mxu0 0.0
    %754 = vmatpush2.msra.mxu0 0.0
    %755 = vmatprep.subr.mxu0 0.0
    %756 = vmatpush2.msra.mxu0 0.0
    %757 = vmatprep.subr.mxu0 0.0
    %758 = vmatpush2.msra.mxu0 0.0
    %759 = vmatprep.subr.mxu0 0.0
    %760 = vmatpush2.msra.mxu0 0.0
    %761 = vmatprep.subr.mxu0 0.0
    %762 = vmatpush2.msra.mxu0 0.0
    %763 = vmatprep.subr.mxu0 0.0
    %764 = vmatpush2.msra.mxu0 0.0
    %765 = vmatprep.subr.mxu0 0.0
    %766 = vmatpush2.msra.mxu0 0.0
    %767 = vmatprep.subr.mxu0 0.0
    %768 = vmatpush2.msra.mxu0 0.0
    %769 = vmatprep.subr.mxu0 0.0
    %770 = vmatpush2.msra.mxu0 0.0
    %771 = vmatprep.subr.mxu0 0.0
    %772 = vmatpush2.msra.mxu0 0.0
    %773 = vmatprep.subr.mxu0 0.0
    %774 = vmatpush2.msra.mxu0 0.0
    %775 = vmatprep.subr.mxu0 0.0
    %776 = vmatpush2.msra.mxu0 0.0
    %777 = vmatprep.subr.mxu0 0.0
    %778 = vmatpush2.msra.mxu0 0.0
    %779 = vmatprep.subr.mxu0 0.0
    %780 = vmatpush2.msra.mxu0 0.0
    %781 = vmatprep.mubr.f32.mxu0 0.0
    %782 = vmatmul.mubr.f32.gmra.mxu0 %v712
    %v783 = vpop.f32.mrf.mxu0
    %v784 = vadd.f32 %v709, %v783
    %v785 = vpop.f32.mrf.mxu0
    %786 = vmatprep.mubr.f32.mxu0 0.0
    %787 = vmatmul.mubr.f32.gmra.mxu0 %v715
    %v788 = vpop.f32.mrf.mxu0
    %v789 = vadd.f32 %v709, %v788
    %v790 = vpop.f32.mrf.mxu0
    %791 = vdwg.mxu0
    %v792 = vld [vmem:[%s25] sm:$0xff]
    %v793 = vld [vmem:[%s25 + $0x8] sm:$0xff]
    %v794 = vld [vmem:[%s25 + $0x10] sm:$0xff]
    %v795 = vld [vmem:[%s25 + $0x18] sm:$0xff]
    %v796 = vld [vmem:[#allocation19] sm:$0x1]
    %vm797 = vcmp.ge.s32.totalorder %v403, 0
    %vm798 = vcmp.lt.s32.totalorder %v403, 8
    %vm799 = vmand %vm797, %vm798
    %v800 = vsel %vm799, 1, 0
    %vm801 = vcmp.eq.s32.totalorder %v800, 1
    %v802 = vsel %vm801, %v784, 0.0
    %804 = vrot.lane.b32.xlu0 %v784, 64
    %v805 = vpop.permute.xlu0 %804
    %v807 = vsel %vm801, %v805, 0.0
    %808 = vrot.lane.b32.xlu0 %v784, 96
    %v809 = vpop.permute.xlu0 %808
    %v811 = vsel %vm398, %v802, 0
    %v813 = vsel %vm398, %v809, 0
    %815 = vmatprep.subr.mxu0 0.0
    %816 = vmatpush1.xpose.msra.mxu0 0.0
    %817 = vmatprep.subr.mxu0 0.0
    %818 = vmatpush1.xpose.msra.mxu0 0.0
    %819 = vmatprep.subr.mxu0 0.0
    %820 = vmatpush1.xpose.msra.mxu0 0.0
    %821 = vmatprep.subr.mxu0 0.0
    %822 = vmatpush1.xpose.msra.mxu0 0.0
    %823 = vmatprep.subr.mxu0 0.0
    %824 = vmatpush1.xpose.msra.mxu0 0.0
    %825 = vmatprep.subr.mxu0 0.0
    %826 = vmatpush1.xpose.msra.mxu0 0.0
    %827 = vmatprep.subr.mxu0 0.0
    %828 = vmatpush1.xpose.msra.mxu0 0.0
    %829 = vmatprep.subr.mxu0 0.0
    %830 = vmatpush1.xpose.msra.mxu0 0.0
    %831 = vmatprep.subr.mxu0 0.0
    %832 = vmatpush1.xpose.msra.mxu0 0.0
    %833 = vmatprep.subr.mxu0 0.0
    %834 = vmatpush1.xpose.msra.mxu0 0.0
    %835 = vmatprep.subr.mxu0 0.0
    %836 = vmatpush1.xpose.msra.mxu0 0.0
    %837 = vmatprep.subr.mxu0 0.0
    %838 = vmatpush1.xpose.msra.mxu0 0.0
    %839 = vmatprep.subr.mxu0 0.0
    %840 = vmatpush1.xpose.msra.mxu0 0.0
    %841 = vmatprep.subr.mxu0 0.0
    %842 = vmatpush1.xpose.msra.mxu0 0.0
    %843 = vmatprep.subr.mxu0 0.0
    %844 = vmatpush1.xpose.msra.mxu0 0.0
    %845 = vmatprep.subr.mxu0 0.0
    %846 = vmatpush1.xpose.msra.mxu0 %v813
    %847 = vmatprep.subr.mxu0 0.0
    %848 = vmatpush2.xpose.msra.mxu0 0.0
    %849 = vmatprep.subr.mxu0 0.0
    %850 = vmatpush2.xpose.msra.mxu0 0.0
    %851 = vmatprep.subr.mxu0 0.0
    %852 = vmatpush2.xpose.msra.mxu0 0.0
    %853 = vmatprep.subr.mxu0 0.0
    %854 = vmatpush2.xpose.msra.mxu0 0.0
    %855 = vmatprep.subr.mxu0 0.0
    %856 = vmatpush2.xpose.msra.mxu0 0.0
    %857 = vmatprep.subr.mxu0 0.0
    %858 = vmatpush2.xpose.msra.mxu0 0.0
    %859 = vmatprep.subr.mxu0 0.0
    %860 = vmatpush2.xpose.msra.mxu0 0.0
    %861 = vmatprep.subr.mxu0 0.0
    %862 = vmatpush2.xpose.msra.mxu0 0.0
    %863 = vmatprep.subr.mxu0 0.0
    %864 = vmatpush2.xpose.msra.mxu0 0.0
    %865 = vmatprep.subr.mxu0 0.0
    %866 = vmatpush2.xpose.msra.mxu0 0.0
    %867 = vmatprep.subr.mxu0 0.0
    %868 = vmatpush2.xpose.msra.mxu0 0.0
    %869 = vmatprep.subr.mxu0 0.0
    %870 = vmatpush2.xpose.msra.mxu0 0.0
    %871 = vmatprep.subr.mxu0 0.0
    %872 = vmatpush2.xpose.msra.mxu0 0.0
    %873 = vmatprep.subr.mxu0 0.0
    %874 = vmatpush2.xpose.msra.mxu0 0.0
    %875 = vmatprep.subr.mxu0 0.0
    %876 = vmatpush2.xpose.msra.mxu0 0.0
    %877 = vmatprep.subr.mxu0 0.0
    %878 = vmatpush2.xpose.msra.mxu0 0.0
    %879 = vmatprep.mubr.f32.mxu0 0.0
    %880 = vmatmul.mubr.f32.gmra.mxu0 %v811
    %v881 = vpop.f32.mrf.mxu0
    %v882 = vadd.f32 0.0, %v881
    %v883 = vpop.f32.mrf.mxu0
    %884 = vdwg.mxu0
    %v885 = vmul.f32 %v882, 0.35355338
    %v886 = vlaneseq
    %v887 = vshrl.u32 %v886, 7
    %v888 = vsub.s32 0, %v887
    %v889 = vrot.slane %v397, %v888
    %v890 = vadd.f32 %v885, %v889
    %vm891 = vcmask 64512
    %v892 = vsel %vm891, %v890, -inf
    %893 = vmax.xlane.f32.xlu0 %v892
    %v894 = vpop.xlane.xlu0 %893
    %v895 = vsub.f32 %v890, %v894
    %v896 = vmul.f32 %v895, 1.442695
    %v897 = vpow.pop %v896
    %v898 = vsel %vm891, %v897, 0.0
    %899 = vadd.xlane.f32.xlu0 %v898
    %v900 = vpop.xlane.xlu0 %899
    %v901 = vrcp.pop %v900
    %v902 = vmul.f32 %v897, %v901
    %vm903 = vcmp.ge.s32.totalorder %v403, 8
    %vm904 = vcmp.lt.s32.totalorder %v403, 16
    %vm905 = vmand %vm903, %vm904
    %v906 = vsel %vm905, 1, 0
    %vm907 = vcmp.eq.s32.totalorder %v906, 1
    %v908 = vsel %vm907, %v784, 0.0
    %v909 = vsel %vm907, %v805, 0.0
    %v911 = vsel %vm398, %v908, 0
    %913 = vmatprep.subr.mxu0 0.0
    %914 = vmatpush1.xpose.msra.mxu0 0.0
    %915 = vmatprep.subr.mxu0 0.0
    %916 = vmatpush1.xpose.msra.mxu0 0.0
    %917 = vmatprep.subr.mxu0 0.0
    %918 = vmatpush1.xpose.msra.mxu0 0.0
    %919 = vmatprep.subr.mxu0 0.0
    %920 = vmatpush1.xpose.msra.mxu0 0.0
    %921 = vmatprep.subr.mxu0 0.0
    %922 = vmatpush1.xpose.msra.mxu0 0.0
    %923 = vmatprep.subr.mxu0 0.0
    %924 = vmatpush1.xpose.msra.mxu0 0.0
    %925 = vmatprep.subr.mxu0 0.0
    %926 = vmatpush1.xpose.msra.mxu0 0.0
    %927 = vmatprep.subr.mxu0 0.0
    %928 = vmatpush1.xpose.msra.mxu0 0.0
    %929 = vmatprep.subr.mxu0 0.0
    %930 = vmatpush1.xpose.msra.mxu0 0.0
    %931 = vmatprep.subr.mxu0 0.0
    %932 = vmatpush1.xpose.msra.mxu0 0.0
    %933 = vmatprep.subr.mxu0 0.0
    %934 = vmatpush1.xpose.msra.mxu0 0.0
    %935 = vmatprep.subr.mxu0 0.0
    %936 = vmatpush1.xpose.msra.mxu0 0.0
    %937 = vmatprep.subr.mxu0 0.0
    %938 = vmatpush1.xpose.msra.mxu0 0.0
    %939 = vmatprep.subr.mxu0 0.0
    %940 = vmatpush1.xpose.msra.mxu0 0.0
    %941 = vmatprep.subr.mxu0 0.0
    %942 = vmatpush1.xpose.msra.mxu0 0.0
    %943 = vmatprep.subr.mxu0 0.0
    %944 = vmatpush1.xpose.msra.mxu0 %v813
    %945 = vmatprep.subr.mxu0 0.0
    %946 = vmatpush2.xpose.msra.mxu0 0.0
    %947 = vmatprep.subr.mxu0 0.0
    %948 = vmatpush2.xpose.msra.mxu0 0.0
    %949 = vmatprep.subr.mxu0 0.0
    %950 = vmatpush2.xpose.msra.mxu0 0.0
    %951 = vmatprep.subr.mxu0 0.0
    %952 = vmatpush2.xpose.msra.mxu0 0.0
    %953 = vmatprep.subr.mxu0 0.0
    %954 = vmatpush2.xpose.msra.mxu0 0.0
    %955 = vmatprep.subr.mxu0 0.0
    %956 = vmatpush2.xpose.msra.mxu0 0.0
    %957 = vmatprep.subr.mxu0 0.0
    %958 = vmatpush2.xpose.msra.mxu0 0.0
    %959 = vmatprep.subr.mxu0 0.0
    %960 = vmatpush2.xpose.msra.mxu0 0.0
    %961 = vmatprep.subr.mxu0 0.0
    %962 = vmatpush2.xpose.msra.mxu0 0.0
    %963 = vmatprep.subr.mxu0 0.0
    %964 = vmatpush2.xpose.msra.mxu0 0.0
    %965 = vmatprep.subr.mxu0 0.0
    %966 = vmatpush2.xpose.msra.mxu0 0.0
    %967 = vmatprep.subr.mxu0 0.0
    %968 = vmatpush2.xpose.msra.mxu0 0.0
    %969 = vmatprep.subr.mxu0 0.0
    %970 = vmatpush2.xpose.msra.mxu0 0.0
    %971 = vmatprep.subr.mxu0 0.0
    %972 = vmatpush2.xpose.msra.mxu0 0.0
    %973 = vmatprep.subr.mxu0 0.0
    %974 = vmatpush2.xpose.msra.mxu0 0.0
    %975 = vmatprep.subr.mxu0 0.0
    %976 = vmatpush2.xpose.msra.mxu0 0.0
    %977 = vmatprep.mubr.f32.mxu0 0.0
    %978 = vmatmul.mubr.f32.gmra.mxu0 %v911
    %v979 = vpop.f32.mrf.mxu0
    %v980 = vadd.f32 0.0, %v979
    %v981 = vpop.f32.mrf.mxu0
    %982 = vdwg.mxu0
    %v983 = vmul.f32 %v980, 0.35355338
    %v984 = vadd.f32 %v983, %v889
    %v985 = vsel %vm891, %v984, -inf
    %986 = vmax.xlane.f32.xlu0 %v985
    %v987 = vpop.xlane.xlu0 %986
    %v988 = vsub.f32 %v984, %v987
    %v989 = vmul.f32 %v988, 1.442695
    %v990 = vpow.pop %v989
    %v991 = vsel %vm891, %v990, 0.0
    %992 = vadd.xlane.f32.xlu0 %v991
    %v993 = vpop.xlane.xlu0 %992
    %v994 = vrcp.pop %v993
    %v995 = vmul.f32 %v990, %v994
    %v997 = vsel %vm891, %v995, 0
    %999 = vmatprep.subr.mxu0 0.0
    %1000 = vmatpush1.msra.mxu0 0.0
    %1001 = vmatprep.subr.mxu0 0.0
    %1002 = vmatpush1.msra.mxu0 0.0
    %1003 = vmatprep.subr.mxu0 0.0
    %1004 = vmatpush1.msra.mxu0 0.0
    %1005 = vmatprep.subr.mxu0 0.0
    %1006 = vmatpush1.msra.mxu0 0.0
    %1007 = vmatprep.subr.mxu0 0.0
    %1008 = vmatpush1.msra.mxu0 0.0
    %1009 = vmatprep.subr.mxu0 0.0
    %1010 = vmatpush1.msra.mxu0 0.0
    %1011 = vmatprep.subr.mxu0 0.0
    %1012 = vmatpush1.msra.mxu0 0.0
    %1013 = vmatprep.subr.mxu0 0.0
    %1014 = vmatpush1.msra.mxu0 0.0
    %1015 = vmatprep.subr.mxu0 0.0
    %1016 = vmatpush1.msra.mxu0 0.0
    %1017 = vmatprep.subr.mxu0 0.0
    %1018 = vmatpush1.msra.mxu0 0.0
    %1019 = vmatprep.subr.mxu0 0.0
    %1020 = vmatpush1.msra.mxu0 0.0
    %1021 = vmatprep.subr.mxu0 0.0
    %1022 = vmatpush1.msra.mxu0 0.0
    %1023 = vmatprep.subr.mxu0 0.0
    %1024 = vmatpush1.msra.mxu0 0.0
    %1025 = vmatprep.subr.mxu0 0.0
    %1026 = vmatpush1.msra.mxu0 0.0
    %1027 = vmatprep.subr.mxu0 0.0
    %1028 = vmatpush1.msra.mxu0 0.0
    %1029 = vmatprep.subr.mxu0 0.0
    %1030 = vmatpush1.msra.mxu0 %v909
    %1031 = vmatprep.subr.mxu0 0.0
    %1032 = vmatpush2.msra.mxu0 0.0
    %1033 = vmatprep.subr.mxu0 0.0
    %1034 = vmatpush2.msra.mxu0 0.0
    %1035 = vmatprep.subr.mxu0 0.0
    %1036 = vmatpush2.msra.mxu0 0.0
    %1037 = vmatprep.subr.mxu0 0.0
    %1038 = vmatpush2.msra.mxu0 0.0
    %1039 = vmatprep.subr.mxu0 0.0
    %1040 = vmatpush2.msra.mxu0 0.0
    %1041 = vmatprep.subr.mxu0 0.0
    %1042 = vmatpush2.msra.mxu0 0.0
    %1043 = vmatprep.subr.mxu0 0.0
    %1044 = vmatpush2.msra.mxu0 0.0
    %1045 = vmatprep.subr.mxu0 0.0
    %1046 = vmatpush2.msra.mxu0 0.0
    %1047 = vmatprep.subr.mxu0 0.0
    %1048 = vmatpush2.msra.mxu0 0.0
    %1049 = vmatprep.subr.mxu0 0.0
    %1050 = vmatpush2.msra.mxu0 0.0
    %1051 = vmatprep.subr.mxu0 0.0
    %1052 = vmatpush2.msra.mxu0 0.0
    %1053 = vmatprep.subr.mxu0 0.0
    %1054 = vmatpush2.msra.mxu0 0.0
    %1055 = vmatprep.subr.mxu0 0.0
    %1056 = vmatpush2.msra.mxu0 0.0
    %1057 = vmatprep.subr.mxu0 0.0
    %1058 = vmatpush2.msra.mxu0 0.0
    %1059 = vmatprep.subr.mxu0 0.0
    %1060 = vmatpush2.msra.mxu0 0.0
    %1061 = vmatprep.subr.mxu0 0.0
    %1062 = vmatpush2.msra.mxu0 0.0
    %1063 = vmatprep.mubr.f32.mxu0 0.0
    %1064 = vmatmul.mubr.f32.gmra.mxu0 %v997
    %v1065 = vpop.f32.mrf.mxu0
    %v1066 = vadd.f32 0.0, %v1065
    %v1067 = vpop.f32.mrf.mxu0
    %1068 = vdwg.mxu0
    %v1070 = vsel %vm891, %v902, 0
    %1072 = vmatprep.subr.mxu0 0.0
    %1073 = vmatpush1.msra.mxu0 0.0
    %1074 = vmatprep.subr.mxu0 0.0
    %1075 = vmatpush1.msra.mxu0 0.0
    %1076 = vmatprep.subr.mxu0 0.0
    %1077 = vmatpush1.msra.mxu0 0.0
    %1078 = vmatprep.subr.mxu0 0.0
    %1079 = vmatpush1.msra.mxu0 0.0
    %1080 = vmatprep.subr.mxu0 0.0
    %1081 = vmatpush1.msra.mxu0 0.0
    %1082 = vmatprep.subr.mxu0 0.0
    %1083 = vmatpush1.msra.mxu0 0.0
    %1084 = vmatprep.subr.mxu0 0.0
    %1085 = vmatpush1.msra.mxu0 0.0
    %1086 = vmatprep.subr.mxu0 0.0
    %1087 = vmatpush1.msra.mxu0 0.0
    %1088 = vmatprep.subr.mxu0 0.0
    %1089 = vmatpush1.msra.mxu0 0.0
    %1090 = vmatprep.subr.mxu0 0.0
    %1091 = vmatpush1.msra.mxu0 0.0
    %1092 = vmatprep.subr.mxu0 0.0
    %1093 = vmatpush1.msra.mxu0 0.0
    %1094 = vmatprep.subr.mxu0 0.0
    %1095 = vmatpush1.msra.mxu0 0.0
    %1096 = vmatprep.subr.mxu0 0.0
    %1097 = vmatpush1.msra.mxu0 0.0
    %1098 = vmatprep.subr.mxu0 0.0
    %1099 = vmatpush1.msra.mxu0 0.0
    %1100 = vmatprep.subr.mxu0 0.0
    %1101 = vmatpush1.msra.mxu0 0.0
    %1102 = vmatprep.subr.mxu0 0.0
    %1103 = vmatpush1.msra.mxu0 %v807
    %1104 = vmatprep.subr.mxu0 0.0
    %1105 = vmatpush2.msra.mxu0 0.0
    %1106 = vmatprep.subr.mxu0 0.0
    %1107 = vmatpush2.msra.mxu0 0.0
    %1108 = vmatprep.subr.mxu0 0.0
    %1109 = vmatpush2.msra.mxu0 0.0
    %1110 = vmatprep.subr.mxu0 0.0
    %1111 = vmatpush2.msra.mxu0 0.0
    %1112 = vmatprep.subr.mxu0 0.0
    %1113 = vmatpush2.msra.mxu0 0.0
    %1114 = vmatprep.subr.mxu0 0.0
    %1115 = vmatpush2.msra.mxu0 0.0
    %1116 = vmatprep.subr.mxu0 0.0
    %1117 = vmatpush2.msra.mxu0 0.0
    %1118 = vmatprep.subr.mxu0 0.0
    %1119 = vmatpush2.msra.mxu0 0.0
    %1120 = vmatprep.subr.mxu0 0.0
    %1121 = vmatpush2.msra.mxu0 0.0
    %1122 = vmatprep.subr.mxu0 0.0
    %1123 = vmatpush2.msra.mxu0 0.0
    %1124 = vmatprep.subr.mxu0 0.0
    %1125 = vmatpush2.msra.mxu0 0.0
    %1126 = vmatprep.subr.mxu0 0.0
    %1127 = vmatpush2.msra.mxu0 0.0
    %1128 = vmatprep.subr.mxu0 0.0
    %1129 = vmatpush2.msra.mxu0 0.0
    %1130 = vmatprep.subr.mxu0 0.0
    %1131 = vmatpush2.msra.mxu0 0.0
    %1132 = vmatprep.subr.mxu0 0.0
    %1133 = vmatpush2.msra.mxu0 0.0
    %1134 = vmatprep.subr.mxu0 0.0
    %1135 = vmatpush2.msra.mxu0 0.0
    %1136 = vmatprep.mubr.f32.mxu0 0.0
    %1137 = vmatmul.mubr.f32.gmra.mxu0 %v1070
    %v1138 = vpop.f32.mrf.mxu0
    %v1139 = vadd.f32 %v1066, %v1138
    %v1140 = vpop.f32.mrf.mxu0
    %1141 = vdwg.mxu0
    %vm1142 = vcmp.ge.s32.totalorder %v403, 16
    %vm1143 = vcmp.lt.s32.totalorder %v403, 24
    %vm1144 = vmand %vm1142, %vm1143
    %v1145 = vsel %vm1144, 1, 0
    %vm1146 = vcmp.eq.s32.totalorder %v1145, 1
    %v1147 = vsel %vm1146, %v784, 0.0
    %v1148 = vsel %vm1146, %v805, 0.0
    %v1150 = vsel %vm398, %v1147, 0
    %1152 = vmatprep.subr.mxu0 0.0
    %1153 = vmatpush1.xpose.msra.mxu0 0.0
    %1154 = vmatprep.subr.mxu0 0.0
    %1155 = vmatpush1.xpose.msra.mxu0 0.0
    %1156 = vmatprep.subr.mxu0 0.0
    %1157 = vmatpush1.xpose.msra.mxu0 0.0
    %1158 = vmatprep.subr.mxu0 0.0
    %1159 = vmatpush1.xpose.msra.mxu0 0.0
    %1160 = vmatprep.subr.mxu0 0.0
    %1161 = vmatpush1.xpose.msra.mxu0 0.0
    %1162 = vmatprep.subr.mxu0 0.0
    %1163 = vmatpush1.xpose.msra.mxu0 0.0
    %1164 = vmatprep.subr.mxu0 0.0
    %1165 = vmatpush1.xpose.msra.mxu0 0.0
    %1166 = vmatprep.subr.mxu0 0.0
    %1167 = vmatpush1.xpose.msra.mxu0 0.0
    %1168 = vmatprep.subr.mxu0 0.0
    %1169 = vmatpush1.xpose.msra.mxu0 0.0
    %1170 = vmatprep.subr.mxu0 0.0
    %1171 = vmatpush1.xpose.msra.mxu0 0.0
    %1172 = vmatprep.subr.mxu0 0.0
    %1173 = vmatpush1.xpose.msra.mxu0 0.0
    %1174 = vmatprep.subr.mxu0 0.0
    %1175 = vmatpush1.xpose.msra.mxu0 0.0
    %1176 = vmatprep.subr.mxu0 0.0
    %1177 = vmatpush1.xpose.msra.mxu0 0.0
    %1178 = vmatprep.subr.mxu0 0.0
    %1179 = vmatpush1.xpose.msra.mxu0 0.0
    %1180 = vmatprep.subr.mxu0 0.0
    %1181 = vmatpush1.xpose.msra.mxu0 0.0
    %1182 = vmatprep.subr.mxu0 0.0
    %1183 = vmatpush1.xpose.msra.mxu0 %v813
    %1184 = vmatprep.subr.mxu0 0.0
    %1185 = vmatpush2.xpose.msra.mxu0 0.0
    %1186 = vmatprep.subr.mxu0 0.0
    %1187 = vmatpush2.xpose.msra.mxu0 0.0
    %1188 = vmatprep.subr.mxu0 0.0
    %1189 = vmatpush2.xpose.msra.mxu0 0.0
    %1190 = vmatprep.subr.mxu0 0.0
    %1191 = vmatpush2.xpose.msra.mxu0 0.0
    %1192 = vmatprep.subr.mxu0 0.0
    %1193 = vmatpush2.xpose.msra.mxu0 0.0
    %1194 = vmatprep.subr.mxu0 0.0
    %1195 = vmatpush2.xpose.msra.mxu0 0.0
    %1196 = vmatprep.subr.mxu0 0.0
    %1197 = vmatpush2.xpose.msra.mxu0 0.0
    %1198 = vmatprep.subr.mxu0 0.0
    %1199 = vmatpush2.xpose.msra.mxu0 0.0
    %1200 = vmatprep.subr.mxu0 0.0
    %1201 = vmatpush2.xpose.msra.mxu0 0.0
    %1202 = vmatprep.subr.mxu0 0.0
    %1203 = vmatpush2.xpose.msra.mxu0 0.0
    %1204 = vmatprep.subr.mxu0 0.0
    %1205 = vmatpush2.xpose.msra.mxu0 0.0
    %1206 = vmatprep.subr.mxu0 0.0
    %1207 = vmatpush2.xpose.msra.mxu0 0.0
    %1208 = vmatprep.subr.mxu0 0.0
    %1209 = vmatpush2.xpose.msra.mxu0 0.0
    %1210 = vmatprep.subr.mxu0 0.0
    %1211 = vmatpush2.xpose.msra.mxu0 0.0
    %1212 = vmatprep.subr.mxu0 0.0
    %1213 = vmatpush2.xpose.msra.mxu0 0.0
    %1214 = vmatprep.subr.mxu0 0.0
    %1215 = vmatpush2.xpose.msra.mxu0 0.0
    %1216 = vmatprep.mubr.f32.mxu0 0.0
    %1217 = vmatmul.mubr.f32.gmra.mxu0 %v1150
    %v1218 = vpop.f32.mrf.mxu0
    %v1219 = vadd.f32 0.0, %v1218
    %v1220 = vpop.f32.mrf.mxu0
    %1221 = vdwg.mxu0
    %v1222 = vmul.f32 %v1219, 0.35355338
    %v1223 = vadd.f32 %v1222, %v889
    %v1224 = vsel %vm891, %v1223, -inf
    %1225 = vmax.xlane.f32.xlu0 %v1224
    %v1226 = vpop.xlane.xlu0 %1225
    %v1227 = vsub.f32 %v1223, %v1226
    %v1228 = vmul.f32 %v1227, 1.442695
    %v1229 = vpow.pop %v1228
    %v1230 = vsel %vm891, %v1229, 0.0
    %1231 = vadd.xlane.f32.xlu0 %v1230
    %v1232 = vpop.xlane.xlu0 %1231
    %v1233 = vrcp.pop %v1232
    %v1234 = vmul.f32 %v1229, %v1233
    %v1236 = vsel %vm891, %v1234, 0
    %1238 = vmatprep.subr.mxu0 0.0
    %1239 = vmatpush1.msra.mxu0 0.0
    %1240 = vmatprep.subr.mxu0 0.0
    %1241 = vmatpush1.msra.mxu0 0.0
    %1242 = vmatprep.subr.mxu0 0.0
    %1243 = vmatpush1.msra.mxu0 0.0
    %1244 = vmatprep.subr.mxu0 0.0
    %1245 = vmatpush1.msra.mxu0 0.0
    %1246 = vmatprep.subr.mxu0 0.0
    %1247 = vmatpush1.msra.mxu0 0.0
    %1248 = vmatprep.subr.mxu0 0.0
    %1249 = vmatpush1.msra.mxu0 0.0
    %1250 = vmatprep.subr.mxu0 0.0
    %1251 = vmatpush1.msra.mxu0 0.0
    %1252 = vmatprep.subr.mxu0 0.0
    %1253 = vmatpush1.msra.mxu0 0.0
    %1254 = vmatprep.subr.mxu0 0.0
    %1255 = vmatpush1.msra.mxu0 0.0
    %1256 = vmatprep.subr.mxu0 0.0
    %1257 = vmatpush1.msra.mxu0 0.0
    %1258 = vmatprep.subr.mxu0 0.0
    %1259 = vmatpush1.msra.mxu0 0.0
    %1260 = vmatprep.subr.mxu0 0.0
    %1261 = vmatpush1.msra.mxu0 0.0
    %1262 = vmatprep.subr.mxu0 0.0
    %1263 = vmatpush1.msra.mxu0 0.0
    %1264 = vmatprep.subr.mxu0 0.0
    %1265 = vmatpush1.msra.mxu0 0.0
    %1266 = vmatprep.subr.mxu0 0.0
    %1267 = vmatpush1.msra.mxu0 0.0
    %1268 = vmatprep.subr.mxu0 0.0
    %1269 = vmatpush1.msra.mxu0 %v1148
    %1270 = vmatprep.subr.mxu0 0.0
    %1271 = vmatpush2.msra.mxu0 0.0
    %1272 = vmatprep.subr.mxu0 0.0
    %1273 = vmatpush2.msra.mxu0 0.0
    %1274 = vmatprep.subr.mxu0 0.0
    %1275 = vmatpush2.msra.mxu0 0.0
    %1276 = vmatprep.subr.mxu0 0.0
    %1277 = vmatpush2.msra.mxu0 0.0
    %1278 = vmatprep.subr.mxu0 0.0
    %1279 = vmatpush2.msra.mxu0 0.0
    %1280 = vmatprep.subr.mxu0 0.0
    %1281 = vmatpush2.msra.mxu0 0.0
    %1282 = vmatprep.subr.mxu0 0.0
    %1283 = vmatpush2.msra.mxu0 0.0
    %1284 = vmatprep.subr.mxu0 0.0
    %1285 = vmatpush2.msra.mxu0 0.0
    %1286 = vmatprep.subr.mxu0 0.0
    %1287 = vmatpush2.msra.mxu0 0.0
    %1288 = vmatprep.subr.mxu0 0.0
    %1289 = vmatpush2.msra.mxu0 0.0
    %1290 = vmatprep.subr.mxu0 0.0
    %1291 = vmatpush2.msra.mxu0 0.0
    %1292 = vmatprep.subr.mxu0 0.0
    %1293 = vmatpush2.msra.mxu0 0.0
    %1294 = vmatprep.subr.mxu0 0.0
    %1295 = vmatpush2.msra.mxu0 0.0
    %1296 = vmatprep.subr.mxu0 0.0
    %1297 = vmatpush2.msra.mxu0 0.0
    %1298 = vmatprep.subr.mxu0 0.0
    %1299 = vmatpush2.msra.mxu0 0.0
    %1300 = vmatprep.subr.mxu0 0.0
    %1301 = vmatpush2.msra.mxu0 0.0
    %1302 = vmatprep.mubr.f32.mxu0 0.0
    %1303 = vmatmul.mubr.f32.gmra.mxu0 %v1236
    %v1304 = vpop.f32.mrf.mxu0
    %v1305 = vadd.f32 0.0, %v1304
    %v1306 = vpop.f32.mrf.mxu0
    %1307 = vdwg.mxu0
    %v1308 = vadd.f32 %v1139, %v1305
    %vm1309 = vcmp.ge.s32.totalorder %v403, 24
    %vm1310 = vcmp.lt.s32.totalorder %v403, 32
    %vm1311 = vmand %vm1309, %vm1310
    %v1312 = vsel %vm1311, 1, 0
    %vm1313 = vcmp.eq.s32.totalorder %v1312, 1
    %v1314 = vsel %vm1313, %v784, 0.0
    %v1315 = vsel %vm1313, %v805, 0.0
    %v1317 = vsel %vm398, %v1314, 0
    %1319 = vmatprep.subr.mxu0 0.0
    %1320 = vmatpush1.xpose.msra.mxu0 0.0
    %1321 = vmatprep.subr.mxu0 0.0
    %1322 = vmatpush1.xpose.msra.mxu0 0.0
    %1323 = vmatprep.subr.mxu0 0.0
    %1324 = vmatpush1.xpose.msra.mxu0 0.0
    %1325 = vmatprep.subr.mxu0 0.0
    %1326 = vmatpush1.xpose.msra.mxu0 0.0
    %1327 = vmatprep.subr.mxu0 0.0
    %1328 = vmatpush1.xpose.msra.mxu0 0.0
    %1329 = vmatprep.subr.mxu0 0.0
    %1330 = vmatpush1.xpose.msra.mxu0 0.0
    %1331 = vmatprep.subr.mxu0 0.0
    %1332 = vmatpush1.xpose.msra.mxu0 0.0
    %1333 = vmatprep.subr.mxu0 0.0
    %1334 = vmatpush1.xpose.msra.mxu0 0.0
    %1335 = vmatprep.subr.mxu0 0.0
    %1336 = vmatpush1.xpose.msra.mxu0 0.0
    %1337 = vmatprep.subr.mxu0 0.0
    %1338 = vmatpush1.xpose.msra.mxu0 0.0
    %1339 = vmatprep.subr.mxu0 0.0
    %1340 = vmatpush1.xpose.msra.mxu0 0.0
    %1341 = vmatprep.subr.mxu0 0.0
    %1342 = vmatpush1.xpose.msra.mxu0 0.0
    %1343 = vmatprep.subr.mxu0 0.0
    %1344 = vmatpush1.xpose.msra.mxu0 0.0
    %1345 = vmatprep.subr.mxu0 0.0
    %1346 = vmatpush1.xpose.msra.mxu0 0.0
    %1347 = vmatprep.subr.mxu0 0.0
    %1348 = vmatpush1.xpose.msra.mxu0 0.0
    %1349 = vmatprep.subr.mxu0 0.0
    %1350 = vmatpush1.xpose.msra.mxu0 %v813
    %1351 = vmatprep.subr.mxu0 0.0
    %1352 = vmatpush2.xpose.msra.mxu0 0.0
    %1353 = vmatprep.subr.mxu0 0.0
    %1354 = vmatpush2.xpose.msra.mxu0 0.0
    %1355 = vmatprep.subr.mxu0 0.0
    %1356 = vmatpush2.xpose.msra.mxu0 0.0
    %1357 = vmatprep.subr.mxu0 0.0
    %1358 = vmatpush2.xpose.msra.mxu0 0.0
    %1359 = vmatprep.subr.mxu0 0.0
    %1360 = vmatpush2.xpose.msra.mxu0 0.0
    %1361 = vmatprep.subr.mxu0 0.0
    %1362 = vmatpush2.xpose.msra.mxu0 0.0
    %1363 = vmatprep.subr.mxu0 0.0
    %1364 = vmatpush2.xpose.msra.mxu0 0.0
    %1365 = vmatprep.subr.mxu0 0.0
    %1366 = vmatpush2.xpose.msra.mxu0 0.0
    %1367 = vmatprep.subr.mxu0 0.0
    %1368 = vmatpush2.xpose.msra.mxu0 0.0
    %1369 = vmatprep.subr.mxu0 0.0
    %1370 = vmatpush2.xpose.msra.mxu0 0.0
    %1371 = vmatprep.subr.mxu0 0.0
    %1372 = vmatpush2.xpose.msra.mxu0 0.0
    %1373 = vmatprep.subr.mxu0 0.0
    %1374 = vmatpush2.xpose.msra.mxu0 0.0
    %1375 = vmatprep.subr.mxu0 0.0
    %1376 = vmatpush2.xpose.msra.mxu0 0.0
    %1377 = vmatprep.subr.mxu0 0.0
    %1378 = vmatpush2.xpose.msra.mxu0 0.0
    %1379 = vmatprep.subr.mxu0 0.0
    %1380 = vmatpush2.xpose.msra.mxu0 0.0
    %1381 = vmatprep.subr.mxu0 0.0
    %1382 = vmatpush2.xpose.msra.mxu0 0.0
    %1383 = vmatprep.mubr.f32.mxu0 0.0
    %1384 = vmatmul.mubr.f32.gmra.mxu0 %v1317
    %v1385 = vpop.f32.mrf.mxu0
    %v1386 = vadd.f32 0.0, %v1385
    %v1387 = vpop.f32.mrf.mxu0
    %1388 = vdwg.mxu0
    %v1389 = vmul.f32 %v1386, 0.35355338
    %v1390 = vadd.f32 %v1389, %v889
    %v1391 = vsel %vm891, %v1390, -inf
    %1392 = vmax.xlane.f32.xlu0 %v1391
    %v1393 = vpop.xlane.xlu0 %1392
    %v1394 = vsub.f32 %v1390, %v1393
    %v1395 = vmul.f32 %v1394, 1.442695
    %v1396 = vpow.pop %v1395
    %v1397 = vsel %vm891, %v1396, 0.0
    %1398 = vadd.xlane.f32.xlu0 %v1397
    %v1399 = vpop.xlane.xlu0 %1398
    %v1400 = vrcp.pop %v1399
    %v1401 = vmul.f32 %v1396, %v1400
    %v1403 = vsel %vm891, %v1401, 0
    %1405 = vmatprep.subr.mxu0 0.0
    %1406 = vmatpush1.msra.mxu0 0.0
    %1407 = vmatprep.subr.mxu0 0.0
    %1408 = vmatpush1.msra.mxu0 0.0
    %1409 = vmatprep.subr.mxu0 0.0
    %1410 = vmatpush1.msra.mxu0 0.0
    %1411 = vmatprep.subr.mxu0 0.0
    %1412 = vmatpush1.msra.mxu0 0.0
    %1413 = vmatprep.subr.mxu0 0.0
    %1414 = vmatpush1.msra.mxu0 0.0
    %1415 = vmatprep.subr.mxu0 0.0
    %1416 = vmatpush1.msra.mxu0 0.0
    %1417 = vmatprep.subr.mxu0 0.0
    %1418 = vmatpush1.msra.mxu0 0.0
    %1419 = vmatprep.subr.mxu0 0.0
    %1420 = vmatpush1.msra.mxu0 0.0
    %1421 = vmatprep.subr.mxu0 0.0
    %1422 = vmatpush1.msra.mxu0 0.0
    %1423 = vmatprep.subr.mxu0 0.0
    %1424 = vmatpush1.msra.mxu0 0.0
    %1425 = vmatprep.subr.mxu0 0.0
    %1426 = vmatpush1.msra.mxu0 0.0
    %1427 = vmatprep.subr.mxu0 0.0
    %1428 = vmatpush1.msra.mxu0 0.0
    %1429 = vmatprep.subr.mxu0 0.0
    %1430 = vmatpush1.msra.mxu0 0.0
    %1431 = vmatprep.subr.mxu0 0.0
    %1432 = vmatpush1.msra.mxu0 0.0
    %1433 = vmatprep.subr.mxu0 0.0
    %1434 = vmatpush1.msra.mxu0 0.0
    %1435 = vmatprep.subr.mxu0 0.0
    %1436 = vmatpush1.msra.mxu0 %v1315
    %1437 = vmatprep.subr.mxu0 0.0
    %1438 = vmatpush2.msra.mxu0 0.0
    %1439 = vmatprep.subr.mxu0 0.0
    %1440 = vmatpush2.msra.mxu0 0.0
    %1441 = vmatprep.subr.mxu0 0.0
    %1442 = vmatpush2.msra.mxu0 0.0
    %1443 = vmatprep.subr.mxu0 0.0
    %1444 = vmatpush2.msra.mxu0 0.0
    %1445 = vmatprep.subr.mxu0 0.0
    %1446 = vmatpush2.msra.mxu0 0.0
    %1447 = vmatprep.subr.mxu0 0.0
    %1448 = vmatpush2.msra.mxu0 0.0
    %1449 = vmatprep.subr.mxu0 0.0
    %1450 = vmatpush2.msra.mxu0 0.0
    %1451 = vmatprep.subr.mxu0 0.0
    %1452 = vmatpush2.msra.mxu0 0.0
    %1453 = vmatprep.subr.mxu0 0.0
    %1454 = vmatpush2.msra.mxu0 0.0
    %1455 = vmatprep.subr.mxu0 0.0
    %1456 = vmatpush2.msra.mxu0 0.0
    %1457 = vmatprep.subr.mxu0 0.0
    %1458 = vmatpush2.msra.mxu0 0.0
    %1459 = vmatprep.subr.mxu0 0.0
    %1460 = vmatpush2.msra.mxu0 0.0
    %1461 = vmatprep.subr.mxu0 0.0
    %1462 = vmatpush2.msra.mxu0 0.0
    %1463 = vmatprep.subr.mxu0 0.0
    %1464 = vmatpush2.msra.mxu0 0.0
    %1465 = vmatprep.subr.mxu0 0.0
    %1466 = vmatpush2.msra.mxu0 0.0
    %1467 = vmatprep.subr.mxu0 0.0
    %1468 = vmatpush2.msra.mxu0 0.0
    %1469 = vmatprep.mubr.f32.mxu0 0.0
    %1470 = vmatmul.mubr.f32.gmra.mxu0 %v1403
    %v1471 = vpop.f32.mrf.mxu0
    %v1472 = vadd.f32 0.0, %v1471
    %v1473 = vpop.f32.mrf.mxu0
    %1474 = vdwg.mxu0
    %v1475 = vadd.f32 %v1308, %v1472
    %v1477 = vlaneseq
    %v1478 = vshrl.u32 %v1477, 7
    %v1479 = vsub.s32 0, %v1478
    %v1480 = vrot.slane %v796, %v1479
    %v1483 = vsel %vm398, %v1475, 0
    %1485 = vmatprep.subr.mxu0 0.0
    %1486 = vmatpush1.msra.mxu0 0.0
    %1487 = vmatprep.subr.mxu0 0.0
    %1488 = vmatpush1.msra.mxu0 0.0
    %1489 = vmatprep.subr.mxu0 0.0
    %1490 = vmatpush1.msra.mxu0 0.0
    %1491 = vmatprep.subr.mxu0 0.0
    %1492 = vmatpush1.msra.mxu0 0.0
    %1493 = vmatprep.subr.mxu0 0.0
    %1494 = vmatpush1.msra.mxu0 0.0
    %1495 = vmatprep.subr.mxu0 0.0
    %1496 = vmatpush1.msra.mxu0 0.0
    %1497 = vmatprep.subr.mxu0 0.0
    %1498 = vmatpush1.msra.mxu0 0.0
    %1499 = vmatprep.subr.mxu0 0.0
    %1500 = vmatpush1.msra.mxu0 0.0
    %1501 = vmatprep.subr.mxu0 0.0
    %1502 = vmatpush1.msra.mxu0 0.0
    %1503 = vmatprep.subr.mxu0 0.0
    %1504 = vmatpush1.msra.mxu0 0.0
    %1505 = vmatprep.subr.mxu0 0.0
    %1506 = vmatpush1.msra.mxu0 0.0
    %1507 = vmatprep.subr.mxu0 0.0
    %1508 = vmatpush1.msra.mxu0 0.0
    %1509 = vmatprep.subr.mxu0 0.0
    %1510 = vmatpush1.msra.mxu0 %v795
    %1511 = vmatprep.subr.mxu0 0.0
    %1512 = vmatpush1.msra.mxu0 %v794
    %1513 = vmatprep.subr.mxu0 0.0
    %1514 = vmatpush1.msra.mxu0 %v793
    %1515 = vmatprep.subr.mxu0 0.0
    %1516 = vmatpush1.msra.mxu0 %v792
    %1517 = vmatprep.subr.mxu0 0.0
    %1518 = vmatpush2.msra.mxu0 0.0
    %1519 = vmatprep.subr.mxu0 0.0
    %1520 = vmatpush2.msra.mxu0 0.0
    %1521 = vmatprep.subr.mxu0 0.0
    %1522 = vmatpush2.msra.mxu0 0.0
    %1523 = vmatprep.subr.mxu0 0.0
    %1524 = vmatpush2.msra.mxu0 0.0
    %1525 = vmatprep.subr.mxu0 0.0
    %1526 = vmatpush2.msra.mxu0 0.0
    %1527 = vmatprep.subr.mxu0 0.0
    %1528 = vmatpush2.msra.mxu0 0.0
    %1529 = vmatprep.subr.mxu0 0.0
    %1530 = vmatpush2.msra.mxu0 0.0
    %1531 = vmatprep.subr.mxu0 0.0
    %1532 = vmatpush2.msra.mxu0 0.0
    %1533 = vmatprep.subr.mxu0 0.0
    %1534 = vmatpush2.msra.mxu0 0.0
    %1535 = vmatprep.subr.mxu0 0.0
    %1536 = vmatpush2.msra.mxu0 0.0
    %1537 = vmatprep.subr.mxu0 0.0
    %1538 = vmatpush2.msra.mxu0 0.0
    %1539 = vmatprep.subr.mxu0 0.0
    %1540 = vmatpush2.msra.mxu0 0.0
    %1541 = vmatprep.subr.mxu0 0.0
    %1542 = vmatpush2.msra.mxu0 0.0
    %1543 = vmatprep.subr.mxu0 0.0
    %1544 = vmatpush2.msra.mxu0 0.0
    %1545 = vmatprep.subr.mxu0 0.0
    %1546 = vmatpush2.msra.mxu0 0.0
    %1547 = vmatprep.subr.mxu0 0.0
    %1548 = vmatpush2.msra.mxu0 0.0
    %1549 = vmatprep.mubr.f32.mxu0 0.0
    %1550 = vmatmul.mubr.f32.gmra.mxu0 %v1483
    %v1551 = vpop.f32.mrf.mxu0
    %v1552 = vadd.f32 %v1480, %v1551
    %v1553 = vpop.f32.mrf.mxu0
    %1554 = vdwg.mxu0
    %1555 = vst.msk [vmem:[#allocation2] sm:$0xff] %vm398, %v1552
    %v1556 = vsel %vm801, %v789, 0.0
    %1558 = vrot.lane.b32.xlu0 %v789, 64
    %v1559 = vpop.permute.xlu0 %1558
    %v1561 = vsel %vm801, %v1559, 0.0
    %1562 = vrot.lane.b32.xlu0 %v789, 96
    %v1563 = vpop.permute.xlu0 %1562
    %v1565 = vsel %vm398, %v1556, 0
    %v1567 = vsel %vm398, %v1563, 0
    %1569 = vmatprep.subr.mxu0 0.0
    %1570 = vmatpush1.xpose.msra.mxu0 0.0
    %1571 = vmatprep.subr.mxu0 0.0
    %1572 = vmatpush1.xpose.msra.mxu0 0.0
    %1573 = vmatprep.subr.mxu0 0.0
    %1574 = vmatpush1.xpose.msra.mxu0 0.0
    %1575 = vmatprep.subr.mxu0 0.0
    %1576 = vmatpush1.xpose.msra.mxu0 0.0
    %1577 = vmatprep.subr.mxu0 0.0
    %1578 = vmatpush1.xpose.msra.mxu0 0.0
    %1579 = vmatprep.subr.mxu0 0.0
    %1580 = vmatpush1.xpose.msra.mxu0 0.0
    %1581 = vmatprep.subr.mxu0 0.0
    %1582 = vmatpush1.xpose.msra.mxu0 0.0
    %1583 = vmatprep.subr.mxu0 0.0
    %1584 = vmatpush1.xpose.msra.mxu0 0.0
    %1585 = vmatprep.subr.mxu0 0.0
    %1586 = vmatpush1.xpose.msra.mxu0 0.0
    %1587 = vmatprep.subr.mxu0 0.0
    %1588 = vmatpush1.xpose.msra.mxu0 0.0
    %1589 = vmatprep.subr.mxu0 0.0
    %1590 = vmatpush1.xpose.msra.mxu0 0.0
    %1591 = vmatprep.subr.mxu0 0.0
    %1592 = vmatpush1.xpose.msra.mxu0 0.0
    %1593 = vmatprep.subr.mxu0 0.0
    %1594 = vmatpush1.xpose.msra.mxu0 0.0
    %1595 = vmatprep.subr.mxu0 0.0
    %1596 = vmatpush1.xpose.msra.mxu0 0.0
    %1597 = vmatprep.subr.mxu0 0.0
    %1598 = vmatpush1.xpose.msra.mxu0 0.0
    %1599 = vmatprep.subr.mxu0 0.0
    %1600 = vmatpush1.xpose.msra.mxu0 %v1567
    %1601 = vmatprep.subr.mxu0 0.0
    %1602 = vmatpush2.xpose.msra.mxu0 0.0
    %1603 = vmatprep.subr.mxu0 0.0
    %1604 = vmatpush2.xpose.msra.mxu0 0.0
    %1605 = vmatprep.subr.mxu0 0.0
    %1606 = vmatpush2.xpose.msra.mxu0 0.0
    %1607 = vmatprep.subr.mxu0 0.0
    %1608 = vmatpush2.xpose.msra.mxu0 0.0
    %1609 = vmatprep.subr.mxu0 0.0
    %1610 = vmatpush2.xpose.msra.mxu0 0.0
    %1611 = vmatprep.subr.mxu0 0.0
    %1612 = vmatpush2.xpose.msra.mxu0 0.0
    %1613 = vmatprep.subr.mxu0 0.0
    %1614 = vmatpush2.xpose.msra.mxu0 0.0
    %1615 = vmatprep.subr.mxu0 0.0
    %1616 = vmatpush2.xpose.msra.mxu0 0.0
    %1617 = vmatprep.subr.mxu0 0.0
    %1618 = vmatpush2.xpose.msra.mxu0 0.0
    %1619 = vmatprep.subr.mxu0 0.0
    %1620 = vmatpush2.xpose.msra.mxu0 0.0
    %1621 = vmatprep.subr.mxu0 0.0
    %1622 = vmatpush2.xpose.msra.mxu0 0.0
    %1623 = vmatprep.subr.mxu0 0.0
    %1624 = vmatpush2.xpose.msra.mxu0 0.0
    %1625 = vmatprep.subr.mxu0 0.0
    %1626 = vmatpush2.xpose.msra.mxu0 0.0
    %1627 = vmatprep.subr.mxu0 0.0
    %1628 = vmatpush2.xpose.msra.mxu0 0.0
    %1629 = vmatprep.subr.mxu0 0.0
    %1630 = vmatpush2.xpose.msra.mxu0 0.0
    %1631 = vmatprep.subr.mxu0 0.0
    %1632 = vmatpush2.xpose.msra.mxu0 0.0
    %1633 = vmatprep.mubr.f32.mxu0 0.0
    %1634 = vmatmul.mubr.f32.gmra.mxu0 %v1565
    %v1635 = vpop.f32.mrf.mxu0
    %v1636 = vadd.f32 0.0, %v1635
    %v1637 = vpop.f32.mrf.mxu0
    %1638 = vdwg.mxu0
    %v1639 = vmul.f32 %v1636, 0.35355338
    %v1640 = vlaneseq
    %v1641 = vshrl.u32 %v1640, 7
    %v1642 = vsub.s32 1, %v1641
    %v1643 = vrot.slane %v397, %v1642
    %v1644 = vadd.f32 %v1639, %v1643
    %v1645 = vsel %vm891, %v1644, -inf
    %1646 = vmax.xlane.f32.xlu0 %v1645
    %v1647 = vpop.xlane.xlu0 %1646
    %v1648 = vsub.f32 %v1644, %v1647
    %v1649 = vmul.f32 %v1648, 1.442695
    %v1650 = vpow.pop %v1649
    %v1651 = vsel %vm891, %v1650, 0.0
    %1652 = vadd.xlane.f32.xlu0 %v1651
    %v1653 = vpop.xlane.xlu0 %1652
    %v1654 = vrcp.pop %v1653
    %v1655 = vmul.f32 %v1650, %v1654
    %v1656 = vsel %vm907, %v789, 0.0
    %v1657 = vsel %vm907, %v1559, 0.0
    %v1659 = vsel %vm398, %v1656, 0
    %1661 = vmatprep.subr.mxu0 0.0
    %1662 = vmatpush1.xpose.msra.mxu0 0.0
    %1663 = vmatprep.subr.mxu0 0.0
    %1664 = vmatpush1.xpose.msra.mxu0 0.0
    %1665 = vmatprep.subr.mxu0 0.0
    %1666 = vmatpush1.xpose.msra.mxu0 0.0
    %1667 = vmatprep.subr.mxu0 0.0
    %1668 = vmatpush1.xpose.msra.mxu0 0.0
    %1669 = vmatprep.subr.mxu0 0.0
    %1670 = vmatpush1.xpose.msra.mxu0 0.0
    %1671 = vmatprep.subr.mxu0 0.0
    %1672 = vmatpush1.xpose.msra.mxu0 0.0
    %1673 = vmatprep.subr.mxu0 0.0
    %1674 = vmatpush1.xpose.msra.mxu0 0.0
    %1675 = vmatprep.subr.mxu0 0.0
    %1676 = vmatpush1.xpose.msra.mxu0 0.0
    %1677 = vmatprep.subr.mxu0 0.0
    %1678 = vmatpush1.xpose.msra.mxu0 0.0
    %1679 = vmatprep.subr.mxu0 0.0
    %1680 = vmatpush1.xpose.msra.mxu0 0.0
    %1681 = vmatprep.subr.mxu0 0.0
    %1682 = vmatpush1.xpose.msra.mxu0 0.0
    %1683 = vmatprep.subr.mxu0 0.0
    %1684 = vmatpush1.xpose.msra.mxu0 0.0
    %1685 = vmatprep.subr.mxu0 0.0
    %1686 = vmatpush1.xpose.msra.mxu0 0.0
    %1687 = vmatprep.subr.mxu0 0.0
    %1688 = vmatpush1.xpose.msra.mxu0 0.0
    %1689 = vmatprep.subr.mxu0 0.0
    %1690 = vmatpush1.xpose.msra.mxu0 0.0
    %1691 = vmatprep.subr.mxu0 0.0
    %1692 = vmatpush1.xpose.msra.mxu0 %v1567
    %1693 = vmatprep.subr.mxu0 0.0
    %1694 = vmatpush2.xpose.msra.mxu0 0.0
    %1695 = vmatprep.subr.mxu0 0.0
    %1696 = vmatpush2.xpose.msra.mxu0 0.0
    %1697 = vmatprep.subr.mxu0 0.0
    %1698 = vmatpush2.xpose.msra.mxu0 0.0
    %1699 = vmatprep.subr.mxu0 0.0
    %1700 = vmatpush2.xpose.msra.mxu0 0.0
    %1701 = vmatprep.subr.mxu0 0.0
    %1702 = vmatpush2.xpose.msra.mxu0 0.0
    %1703 = vmatprep.subr.mxu0 0.0
    %1704 = vmatpush2.xpose.msra.mxu0 0.0
    %1705 = vmatprep.subr.mxu0 0.0
    %1706 = vmatpush2.xpose.msra.mxu0 0.0
    %1707 = vmatprep.subr.mxu0 0.0
    %1708 = vmatpush2.xpose.msra.mxu0 0.0
    %1709 = vmatprep.subr.mxu0 0.0
    %1710 = vmatpush2.xpose.msra.mxu0 0.0
    %1711 = vmatprep.subr.mxu0 0.0
    %1712 = vmatpush2.xpose.msra.mxu0 0.0
    %1713 = vmatprep.subr.mxu0 0.0
    %1714 = vmatpush2.xpose.msra.mxu0 0.0
    %1715 = vmatprep.subr.mxu0 0.0
    %1716 = vmatpush2.xpose.msra.mxu0 0.0
    %1717 = vmatprep.subr.mxu0 0.0
    %1718 = vmatpush2.xpose.msra.mxu0 0.0
    %1719 = vmatprep.subr.mxu0 0.0
    %1720 = vmatpush2.xpose.msra.mxu0 0.0
    %1721 = vmatprep.subr.mxu0 0.0
    %1722 = vmatpush2.xpose.msra.mxu0 0.0
    %1723 = vmatprep.subr.mxu0 0.0
    %1724 = vmatpush2.xpose.msra.mxu0 0.0
    %1725 = vmatprep.mubr.f32.mxu0 0.0
    %1726 = vmatmul.mubr.f32.gmra.mxu0 %v1659
    %v1727 = vpop.f32.mrf.mxu0
    %v1728 = vadd.f32 0.0, %v1727
    %v1729 = vpop.f32.mrf.mxu0
    %1730 = vdwg.mxu0
    %v1731 = vmul.f32 %v1728, 0.35355338
    %v1732 = vadd.f32 %v1731, %v1643
    %v1733 = vsel %vm891, %v1732, -inf
    %1734 = vmax.xlane.f32.xlu0 %v1733
    %v1735 = vpop.xlane.xlu0 %1734
    %v1736 = vsub.f32 %v1732, %v1735
    %v1737 = vmul.f32 %v1736, 1.442695
    %v1738 = vpow.pop %v1737
    %v1739 = vsel %vm891, %v1738, 0.0
    %1740 = vadd.xlane.f32.xlu0 %v1739
    %v1741 = vpop.xlane.xlu0 %1740
    %v1742 = vrcp.pop %v1741
    %v1743 = vmul.f32 %v1738, %v1742
    %v1745 = vsel %vm891, %v1743, 0
    %1747 = vmatprep.subr.mxu0 0.0
    %1748 = vmatpush1.msra.mxu0 0.0
    %1749 = vmatprep.subr.mxu0 0.0
    %1750 = vmatpush1.msra.mxu0 0.0
    %1751 = vmatprep.subr.mxu0 0.0
    %1752 = vmatpush1.msra.mxu0 0.0
    %1753 = vmatprep.subr.mxu0 0.0
    %1754 = vmatpush1.msra.mxu0 0.0
    %1755 = vmatprep.subr.mxu0 0.0
    %1756 = vmatpush1.msra.mxu0 0.0
    %1757 = vmatprep.subr.mxu0 0.0
    %1758 = vmatpush1.msra.mxu0 0.0
    %1759 = vmatprep.subr.mxu0 0.0
    %1760 = vmatpush1.msra.mxu0 0.0
    %1761 = vmatprep.subr.mxu0 0.0
    %1762 = vmatpush1.msra.mxu0 0.0
    %1763 = vmatprep.subr.mxu0 0.0
    %1764 = vmatpush1.msra.mxu0 0.0
    %1765 = vmatprep.subr.mxu0 0.0
    %1766 = vmatpush1.msra.mxu0 0.0
    %1767 = vmatprep.subr.mxu0 0.0
    %1768 = vmatpush1.msra.mxu0 0.0
    %1769 = vmatprep.subr.mxu0 0.0
    %1770 = vmatpush1.msra.mxu0 0.0
    %1771 = vmatprep.subr.mxu0 0.0
    %1772 = vmatpush1.msra.mxu0 0.0
    %1773 = vmatprep.subr.mxu0 0.0
    %1774 = vmatpush1.msra.mxu0 0.0
    %1775 = vmatprep.subr.mxu0 0.0
    %1776 = vmatpush1.msra.mxu0 0.0
    %1777 = vmatprep.subr.mxu0 0.0
    %1778 = vmatpush1.msra.mxu0 %v1657
    %1779 = vmatprep.subr.mxu0 0.0
    %1780 = vmatpush2.msra.mxu0 0.0
    %1781 = vmatprep.subr.mxu0 0.0
    %1782 = vmatpush2.msra.mxu0 0.0
    %1783 = vmatprep.subr.mxu0 0.0
    %1784 = vmatpush2.msra.mxu0 0.0
    %1785 = vmatprep.subr.mxu0 0.0
    %1786 = vmatpush2.msra.mxu0 0.0
    %1787 = vmatprep.subr.mxu0 0.0
    %1788 = vmatpush2.msra.mxu0 0.0
    %1789 = vmatprep.subr.mxu0 0.0
    %1790 = vmatpush2.msra.mxu0 0.0
    %1791 = vmatprep.subr.mxu0 0.0
    %1792 = vmatpush2.msra.mxu0 0.0
    %1793 = vmatprep.subr.mxu0 0.0
    %1794 = vmatpush2.msra.mxu0 0.0
    %1795 = vmatprep.subr.mxu0 0.0
    %1796 = vmatpush2.msra.mxu0 0.0
    %1797 = vmatprep.subr.mxu0 0.0
    %1798 = vmatpush2.msra.mxu0 0.0
    %1799 = vmatprep.subr.mxu0 0.0
    %1800 = vmatpush2.msra.mxu0 0.0
    %1801 = vmatprep.subr.mxu0 0.0
    %1802 = vmatpush2.msra.mxu0 0.0
    %1803 = vmatprep.subr.mxu0 0.0
    %1804 = vmatpush2.msra.mxu0 0.0
    %1805 = vmatprep.subr.mxu0 0.0
    %1806 = vmatpush2.msra.mxu0 0.0
    %1807 = vmatprep.subr.mxu0 0.0
    %1808 = vmatpush2.msra.mxu0 0.0
    %1809 = vmatprep.subr.mxu0 0.0
    %1810 = vmatpush2.msra.mxu0 0.0
    %1811 = vmatprep.mubr.f32.mxu0 0.0
    %1812 = vmatmul.mubr.f32.gmra.mxu0 %v1745
    %v1813 = vpop.f32.mrf.mxu0
    %v1814 = vadd.f32 0.0, %v1813
    %v1815 = vpop.f32.mrf.mxu0
    %1816 = vdwg.mxu0
    %v1818 = vsel %vm891, %v1655, 0
    %1820 = vmatprep.subr.mxu0 0.0
    %1821 = vmatpush1.msra.mxu0 0.0
    %1822 = vmatprep.subr.mxu0 0.0
    %1823 = vmatpush1.msra.mxu0 0.0
    %1824 = vmatprep.subr.mxu0 0.0
    %1825 = vmatpush1.msra.mxu0 0.0
    %1826 = vmatprep.subr.mxu0 0.0
    %1827 = vmatpush1.msra.mxu0 0.0
    %1828 = vmatprep.subr.mxu0 0.0
    %1829 = vmatpush1.msra.mxu0 0.0
    %1830 = vmatprep.subr.mxu0 0.0
    %1831 = vmatpush1.msra.mxu0 0.0
    %1832 = vmatprep.subr.mxu0 0.0
    %1833 = vmatpush1.msra.mxu0 0.0
    %1834 = vmatprep.subr.mxu0 0.0
    %1835 = vmatpush1.msra.mxu0 0.0
    %1836 = vmatprep.subr.mxu0 0.0
    %1837 = vmatpush1.msra.mxu0 0.0
    %1838 = vmatprep.subr.mxu0 0.0
    %1839 = vmatpush1.msra.mxu0 0.0
    %1840 = vmatprep.subr.mxu0 0.0
    %1841 = vmatpush1.msra.mxu0 0.0
    %1842 = vmatprep.subr.mxu0 0.0
    %1843 = vmatpush1.msra.mxu0 0.0
    %1844 = vmatprep.subr.mxu0 0.0
    %1845 = vmatpush1.msra.mxu0 0.0
    %1846 = vmatprep.subr.mxu0 0.0
    %1847 = vmatpush1.msra.mxu0 0.0
    %1848 = vmatprep.subr.mxu0 0.0
    %1849 = vmatpush1.msra.mxu0 0.0
    %1850 = vmatprep.subr.mxu0 0.0
    %1851 = vmatpush1.msra.mxu0 %v1561
    %1852 = vmatprep.subr.mxu0 0.0
    %1853 = vmatpush2.msra.mxu0 0.0
    %1854 = vmatprep.subr.mxu0 0.0
    %1855 = vmatpush2.msra.mxu0 0.0
    %1856 = vmatprep.subr.mxu0 0.0
    %1857 = vmatpush2.msra.mxu0 0.0
    %1858 = vmatprep.subr.mxu0 0.0
    %1859 = vmatpush2.msra.mxu0 0.0
    %1860 = vmatprep.subr.mxu0 0.0
    %1861 = vmatpush2.msra.mxu0 0.0
    %1862 = vmatprep.subr.mxu0 0.0
    %1863 = vmatpush2.msra.mxu0 0.0
    %1864 = vmatprep.subr.mxu0 0.0
    %1865 = vmatpush2.msra.mxu0 0.0
    %1866 = vmatprep.subr.mxu0 0.0
    %1867 = vmatpush2.msra.mxu0 0.0
    %1868 = vmatprep.subr.mxu0 0.0
    %1869 = vmatpush2.msra.mxu0 0.0
    %1870 = vmatprep.subr.mxu0 0.0
    %1871 = vmatpush2.msra.mxu0 0.0
    %1872 = vmatprep.subr.mxu0 0.0
    %1873 = vmatpush2.msra.mxu0 0.0
    %1874 = vmatprep.subr.mxu0 0.0
    %1875 = vmatpush2.msra.mxu0 0.0
    %1876 = vmatprep.subr.mxu0 0.0
    %1877 = vmatpush2.msra.mxu0 0.0
    %1878 = vmatprep.subr.mxu0 0.0
    %1879 = vmatpush2.msra.mxu0 0.0
    %1880 = vmatprep.subr.mxu0 0.0
    %1881 = vmatpush2.msra.mxu0 0.0
    %1882 = vmatprep.subr.mxu0 0.0
    %1883 = vmatpush2.msra.mxu0 0.0
    %1884 = vmatprep.mubr.f32.mxu0 0.0
    %1885 = vmatmul.mubr.f32.gmra.mxu0 %v1818
    %v1886 = vpop.f32.mrf.mxu0
    %v1887 = vadd.f32 %v1814, %v1886
    %v1888 = vpop.f32.mrf.mxu0
    %1889 = vdwg.mxu0
    %v1890 = vsel %vm1146, %v789, 0.0
    %v1891 = vsel %vm1146, %v1559, 0.0
    %v1893 = vsel %vm398, %v1890, 0
    %1895 = vmatprep.subr.mxu0 0.0
    %1896 = vmatpush1.xpose.msra.mxu0 0.0
    %1897 = vmatprep.subr.mxu0 0.0
    %1898 = vmatpush1.xpose.msra.mxu0 0.0
    %1899 = vmatprep.subr.mxu0 0.0
    %1900 = vmatpush1.xpose.msra.mxu0 0.0
    %1901 = vmatprep.subr.mxu0 0.0
    %1902 = vmatpush1.xpose.msra.mxu0 0.0
    %1903 = vmatprep.subr.mxu0 0.0
    %1904 = vmatpush1.xpose.msra.mxu0 0.0
    %1905 = vmatprep.subr.mxu0 0.0
    %1906 = vmatpush1.xpose.msra.mxu0 0.0
    %1907 = vmatprep.subr.mxu0 0.0
    %1908 = vmatpush1.xpose.msra.mxu0 0.0
    %1909 = vmatprep.subr.mxu0 0.0
    %1910 = vmatpush1.xpose.msra.mxu0 0.0
    %1911 = vmatprep.subr.mxu0 0.0
    %1912 = vmatpush1.xpose.msra.mxu0 0.0
    %1913 = vmatprep.subr.mxu0 0.0
    %1914 = vmatpush1.xpose.msra.mxu0 0.0
    %1915 = vmatprep.subr.mxu0 0.0
    %1916 = vmatpush1.xpose.msra.mxu0 0.0
    %1917 = vmatprep.subr.mxu0 0.0
    %1918 = vmatpush1.xpose.msra.mxu0 0.0
    %1919 = vmatprep.subr.mxu0 0.0
    %1920 = vmatpush1.xpose.msra.mxu0 0.0
    %1921 = vmatprep.subr.mxu0 0.0
    %1922 = vmatpush1.xpose.msra.mxu0 0.0
    %1923 = vmatprep.subr.mxu0 0.0
    %1924 = vmatpush1.xpose.msra.mxu0 0.0
    %1925 = vmatprep.subr.mxu0 0.0
    %1926 = vmatpush1.xpose.msra.mxu0 %v1567
    %1927 = vmatprep.subr.mxu0 0.0
    %1928 = vmatpush2.xpose.msra.mxu0 0.0
    %1929 = vmatprep.subr.mxu0 0.0
    %1930 = vmatpush2.xpose.msra.mxu0 0.0
    %1931 = vmatprep.subr.mxu0 0.0
    %1932 = vmatpush2.xpose.msra.mxu0 0.0
    %1933 = vmatprep.subr.mxu0 0.0
    %1934 = vmatpush2.xpose.msra.mxu0 0.0
    %1935 = vmatprep.subr.mxu0 0.0
    %1936 = vmatpush2.xpose.msra.mxu0 0.0
    %1937 = vmatprep.subr.mxu0 0.0
    %1938 = vmatpush2.xpose.msra.mxu0 0.0
    %1939 = vmatprep.subr.mxu0 0.0
    %1940 = vmatpush2.xpose.msra.mxu0 0.0
    %1941 = vmatprep.subr.mxu0 0.0
    %1942 = vmatpush2.xpose.msra.mxu0 0.0
    %1943 = vmatprep.subr.mxu0 0.0
    %1944 = vmatpush2.xpose.msra.mxu0 0.0
    %1945 = vmatprep.subr.mxu0 0.0
    %1946 = vmatpush2.xpose.msra.mxu0 0.0
    %1947 = vmatprep.subr.mxu0 0.0
    %1948 = vmatpush2.xpose.msra.mxu0 0.0
    %1949 = vmatprep.subr.mxu0 0.0
    %1950 = vmatpush2.xpose.msra.mxu0 0.0
    %1951 = vmatprep.subr.mxu0 0.0
    %1952 = vmatpush2.xpose.msra.mxu0 0.0
    %1953 = vmatprep.subr.mxu0 0.0
    %1954 = vmatpush2.xpose.msra.mxu0 0.0
    %1955 = vmatprep.subr.mxu0 0.0
    %1956 = vmatpush2.xpose.msra.mxu0 0.0
    %1957 = vmatprep.subr.mxu0 0.0
    %1958 = vmatpush2.xpose.msra.mxu0 0.0
    %1959 = vmatprep.mubr.f32.mxu0 0.0
    %1960 = vmatmul.mubr.f32.gmra.mxu0 %v1893
    %v1961 = vpop.f32.mrf.mxu0
    %v1962 = vadd.f32 0.0, %v1961
    %v1963 = vpop.f32.mrf.mxu0
    %1964 = vdwg.mxu0
    %v1965 = vmul.f32 %v1962, 0.35355338
    %v1966 = vadd.f32 %v1965, %v1643
    %v1967 = vsel %vm891, %v1966, -inf
    %1968 = vmax.xlane.f32.xlu0 %v1967
    %v1969 = vpop.xlane.xlu0 %1968
    %v1970 = vsub.f32 %v1966, %v1969
    %v1971 = vmul.f32 %v1970, 1.442695
    %v1972 = vpow.pop %v1971
    %v1973 = vsel %vm891, %v1972, 0.0
    %1974 = vadd.xlane.f32.xlu0 %v1973
    %v1975 = vpop.xlane.xlu0 %1974
    %v1976 = vrcp.pop %v1975
    %v1977 = vmul.f32 %v1972, %v1976
    %v1979 = vsel %vm891, %v1977, 0
    %1981 = vmatprep.subr.mxu0 0.0
    %1982 = vmatpush1.msra.mxu0 0.0
    %1983 = vmatprep.subr.mxu0 0.0
    %1984 = vmatpush1.msra.mxu0 0.0
    %1985 = vmatprep.subr.mxu0 0.0
    %1986 = vmatpush1.msra.mxu0 0.0
    %1987 = vmatprep.subr.mxu0 0.0
    %1988 = vmatpush1.msra.mxu0 0.0
    %1989 = vmatprep.subr.mxu0 0.0
    %1990 = vmatpush1.msra.mxu0 0.0
    %1991 = vmatprep.subr.mxu0 0.0
    %1992 = vmatpush1.msra.mxu0 0.0
    %1993 = vmatprep.subr.mxu0 0.0
    %1994 = vmatpush1.msra.mxu0 0.0
    %1995 = vmatprep.subr.mxu0 0.0
    %1996 = vmatpush1.msra.mxu0 0.0
    %1997 = vmatprep.subr.mxu0 0.0
    %1998 = vmatpush1.msra.mxu0 0.0
    %1999 = vmatprep.subr.mxu0 0.0
    %2000 = vmatpush1.msra.mxu0 0.0
    %2001 = vmatprep.subr.mxu0 0.0
    %2002 = vmatpush1.msra.mxu0 0.0
    %2003 = vmatprep.subr.mxu0 0.0
    %2004 = vmatpush1.msra.mxu0 0.0
    %2005 = vmatprep.subr.mxu0 0.0
    %2006 = vmatpush1.msra.mxu0 0.0
    %2007 = vmatprep.subr.mxu0 0.0
    %2008 = vmatpush1.msra.mxu0 0.0
    %2009 = vmatprep.subr.mxu0 0.0
    %2010 = vmatpush1.msra.mxu0 0.0
    %2011 = vmatprep.subr.mxu0 0.0
    %2012 = vmatpush1.msra.mxu0 %v1891
    %2013 = vmatprep.subr.mxu0 0.0
    %2014 = vmatpush2.msra.mxu0 0.0
    %2015 = vmatprep.subr.mxu0 0.0
    %2016 = vmatpush2.msra.mxu0 0.0
    %2017 = vmatprep.subr.mxu0 0.0
    %2018 = vmatpush2.msra.mxu0 0.0
    %2019 = vmatprep.subr.mxu0 0.0
    %2020 = vmatpush2.msra.mxu0 0.0
    %2021 = vmatprep.subr.mxu0 0.0
    %2022 = vmatpush2.msra.mxu0 0.0
    %2023 = vmatprep.subr.mxu0 0.0
    %2024 = vmatpush2.msra.mxu0 0.0
    %2025 = vmatprep.subr.mxu0 0.0
    %2026 = vmatpush2.msra.mxu0 0.0
    %2027 = vmatprep.subr.mxu0 0.0
    %2028 = vmatpush2.msra.mxu0 0.0
    %2029 = vmatprep.subr.mxu0 0.0
    %2030 = vmatpush2.msra.mxu0 0.0
    %2031 = vmatprep.subr.mxu0 0.0
    %2032 = vmatpush2.msra.mxu0 0.0
    %2033 = vmatprep.subr.mxu0 0.0
    %2034 = vmatpush2.msra.mxu0 0.0
    %2035 = vmatprep.subr.mxu0 0.0
    %2036 = vmatpush2.msra.mxu0 0.0
    %2037 = vmatprep.subr.mxu0 0.0
    %2038 = vmatpush2.msra.mxu0 0.0
    %2039 = vmatprep.subr.mxu0 0.0
    %2040 = vmatpush2.msra.mxu0 0.0
    %2041 = vmatprep.subr.mxu0 0.0
    %2042 = vmatpush2.msra.mxu0 0.0
    %2043 = vmatprep.subr.mxu0 0.0
    %2044 = vmatpush2.msra.mxu0 0.0
    %2045 = vmatprep.mubr.f32.mxu0 0.0
    %2046 = vmatmul.mubr.f32.gmra.mxu0 %v1979
    %v2047 = vpop.f32.mrf.mxu0
    %v2048 = vadd.f32 0.0, %v2047
    %v2049 = vpop.f32.mrf.mxu0
    %2050 = vdwg.mxu0
    %v2051 = vadd.f32 %v1887, %v2048
    %v2052 = vsel %vm1313, %v789, 0.0
    %v2053 = vsel %vm1313, %v1559, 0.0
    %v2055 = vsel %vm398, %v2052, 0
    %2057 = vmatprep.subr.mxu0 0.0
    %2058 = vmatpush1.xpose.msra.mxu0 0.0
    %2059 = vmatprep.subr.mxu0 0.0
    %2060 = vmatpush1.xpose.msra.mxu0 0.0
    %2061 = vmatprep.subr.mxu0 0.0
    %2062 = vmatpush1.xpose.msra.mxu0 0.0
    %2063 = vmatprep.subr.mxu0 0.0
    %2064 = vmatpush1.xpose.msra.mxu0 0.0
    %2065 = vmatprep.subr.mxu0 0.0
    %2066 = vmatpush1.xpose.msra.mxu0 0.0
    %2067 = vmatprep.subr.mxu0 0.0
    %2068 = vmatpush1.xpose.msra.mxu0 0.0
    %2069 = vmatprep.subr.mxu0 0.0
    %2070 = vmatpush1.xpose.msra.mxu0 0.0
    %2071 = vmatprep.subr.mxu0 0.0
    %2072 = vmatpush1.xpose.msra.mxu0 0.0
    %2073 = vmatprep.subr.mxu0 0.0
    %2074 = vmatpush1.xpose.msra.mxu0 0.0
    %2075 = vmatprep.subr.mxu0 0.0
    %2076 = vmatpush1.xpose.msra.mxu0 0.0
    %2077 = vmatprep.subr.mxu0 0.0
    %2078 = vmatpush1.xpose.msra.mxu0 0.0
    %2079 = vmatprep.subr.mxu0 0.0
    %2080 = vmatpush1.xpose.msra.mxu0 0.0
    %2081 = vmatprep.subr.mxu0 0.0
    %2082 = vmatpush1.xpose.msra.mxu0 0.0
    %2083 = vmatprep.subr.mxu0 0.0
    %2084 = vmatpush1.xpose.msra.mxu0 0.0
    %2085 = vmatprep.subr.mxu0 0.0
    %2086 = vmatpush1.xpose.msra.mxu0 0.0
    %2087 = vmatprep.subr.mxu0 0.0
    %2088 = vmatpush1.xpose.msra.mxu0 %v1567
    %2089 = vmatprep.subr.mxu0 0.0
    %2090 = vmatpush2.xpose.msra.mxu0 0.0
    %2091 = vmatprep.subr.mxu0 0.0
    %2092 = vmatpush2.xpose.msra.mxu0 0.0
    %2093 = vmatprep.subr.mxu0 0.0
    %2094 = vmatpush2.xpose.msra.mxu0 0.0
    %2095 = vmatprep.subr.mxu0 0.0
    %2096 = vmatpush2.xpose.msra.mxu0 0.0
    %2097 = vmatprep.subr.mxu0 0.0
    %2098 = vmatpush2.xpose.msra.mxu0 0.0
    %2099 = vmatprep.subr.mxu0 0.0
    %2100 = vmatpush2.xpose.msra.mxu0 0.0
    %2101 = vmatprep.subr.mxu0 0.0
    %2102 = vmatpush2.xpose.msra.mxu0 0.0
    %2103 = vmatprep.subr.mxu0 0.0
    %2104 = vmatpush2.xpose.msra.mxu0 0.0
    %2105 = vmatprep.subr.mxu0 0.0
    %2106 = vmatpush2.xpose.msra.mxu0 0.0
    %2107 = vmatprep.subr.mxu0 0.0
    %2108 = vmatpush2.xpose.msra.mxu0 0.0
    %2109 = vmatprep.subr.mxu0 0.0
    %2110 = vmatpush2.xpose.msra.mxu0 0.0
    %2111 = vmatprep.subr.mxu0 0.0
    %2112 = vmatpush2.xpose.msra.mxu0 0.0
    %2113 = vmatprep.subr.mxu0 0.0
    %2114 = vmatpush2.xpose.msra.mxu0 0.0
    %2115 = vmatprep.subr.mxu0 0.0
    %2116 = vmatpush2.xpose.msra.mxu0 0.0
    %2117 = vmatprep.subr.mxu0 0.0
    %2118 = vmatpush2.xpose.msra.mxu0 0.0
    %2119 = vmatprep.subr.mxu0 0.0
    %2120 = vmatpush2.xpose.msra.mxu0 0.0
    %2121 = vmatprep.mubr.f32.mxu0 0.0
    %2122 = vmatmul.mubr.f32.gmra.mxu0 %v2055
    %v2123 = vpop.f32.mrf.mxu0
    %v2124 = vadd.f32 0.0, %v2123
    %v2125 = vpop.f32.mrf.mxu0
    %2126 = vdwg.mxu0
    %v2127 = vmul.f32 %v2124, 0.35355338
    %v2128 = vadd.f32 %v2127, %v1643
    %v2129 = vsel %vm891, %v2128, -inf
    %2130 = vmax.xlane.f32.xlu0 %v2129
    %v2131 = vpop.xlane.xlu0 %2130
    %v2132 = vsub.f32 %v2128, %v2131
    %v2133 = vmul.f32 %v2132, 1.442695
    %v2134 = vpow.pop %v2133
    %v2135 = vsel %vm891, %v2134, 0.0
    %2136 = vadd.xlane.f32.xlu0 %v2135
    %v2137 = vpop.xlane.xlu0 %2136
    %v2138 = vrcp.pop %v2137
    %v2139 = vmul.f32 %v2134, %v2138
    %v2141 = vsel %vm891, %v2139, 0
    %2143 = vmatprep.subr.mxu0 0.0
    %2144 = vmatpush1.msra.mxu0 0.0
    %2145 = vmatprep.subr.mxu0 0.0
    %2146 = vmatpush1.msra.mxu0 0.0
    %2147 = vmatprep.subr.mxu0 0.0
    %2148 = vmatpush1.msra.mxu0 0.0
    %2149 = vmatprep.subr.mxu0 0.0
    %2150 = vmatpush1.msra.mxu0 0.0
    %2151 = vmatprep.subr.mxu0 0.0
    %2152 = vmatpush1.msra.mxu0 0.0
    %2153 = vmatprep.subr.mxu0 0.0
    %2154 = vmatpush1.msra.mxu0 0.0
    %2155 = vmatprep.subr.mxu0 0.0
    %2156 = vmatpush1.msra.mxu0 0.0
    %2157 = vmatprep.subr.mxu0 0.0
    %2158 = vmatpush1.msra.mxu0 0.0
    %2159 = vmatprep.subr.mxu0 0.0
    %2160 = vmatpush1.msra.mxu0 0.0
    %2161 = vmatprep.subr.mxu0 0.0
    %2162 = vmatpush1.msra.mxu0 0.0
    %2163 = vmatprep.subr.mxu0 0.0
    %2164 = vmatpush1.msra.mxu0 0.0
    %2165 = vmatprep.subr.mxu0 0.0
    %2166 = vmatpush1.msra.mxu0 0.0
    %2167 = vmatprep.subr.mxu0 0.0
    %2168 = vmatpush1.msra.mxu0 0.0
    %2169 = vmatprep.subr.mxu0 0.0
    %2170 = vmatpush1.msra.mxu0 0.0
    %2171 = vmatprep.subr.mxu0 0.0
    %2172 = vmatpush1.msra.mxu0 0.0
    %2173 = vmatprep.subr.mxu0 0.0
    %2174 = vmatpush1.msra.mxu0 %v2053
    %2175 = vmatprep.subr.mxu0 0.0
    %2176 = vmatpush2.msra.mxu0 0.0
    %2177 = vmatprep.subr.mxu0 0.0
    %2178 = vmatpush2.msra.mxu0 0.0
    %2179 = vmatprep.subr.mxu0 0.0
    %2180 = vmatpush2.msra.mxu0 0.0
    %2181 = vmatprep.subr.mxu0 0.0
    %2182 = vmatpush2.msra.mxu0 0.0
    %2183 = vmatprep.subr.mxu0 0.0
    %2184 = vmatpush2.msra.mxu0 0.0
    %2185 = vmatprep.subr.mxu0 0.0
    %2186 = vmatpush2.msra.mxu0 0.0
    %2187 = vmatprep.subr.mxu0 0.0
    %2188 = vmatpush2.msra.mxu0 0.0
    %2189 = vmatprep.subr.mxu0 0.0
    %2190 = vmatpush2.msra.mxu0 0.0
    %2191 = vmatprep.subr.mxu0 0.0
    %2192 = vmatpush2.msra.mxu0 0.0
    %2193 = vmatprep.subr.mxu0 0.0
    %2194 = vmatpush2.msra.mxu0 0.0
    %2195 = vmatprep.subr.mxu0 0.0
    %2196 = vmatpush2.msra.mxu0 0.0
    %2197 = vmatprep.subr.mxu0 0.0
    %2198 = vmatpush2.msra.mxu0 0.0
    %2199 = vmatprep.subr.mxu0 0.0
    %2200 = vmatpush2.msra.mxu0 0.0
    %2201 = vmatprep.subr.mxu0 0.0
    %2202 = vmatpush2.msra.mxu0 0.0
    %2203 = vmatprep.subr.mxu0 0.0
    %2204 = vmatpush2.msra.mxu0 0.0
    %2205 = vmatprep.subr.mxu0 0.0
    %2206 = vmatpush2.msra.mxu0 0.0
    %2207 = vmatprep.mubr.f32.mxu0 0.0
    %2208 = vmatmul.mubr.f32.gmra.mxu0 %v2141
    %v2209 = vpop.f32.mrf.mxu0
    %v2210 = vadd.f32 0.0, %v2209
    %v2211 = vpop.f32.mrf.mxu0
    %2212 = vdwg.mxu0
    %v2213 = vadd.f32 %v2051, %v2210
    %v2215 = vsel %vm398, %v2213, 0
    %2217 = vmatprep.subr.mxu0 0.0
    %2218 = vmatpush1.msra.mxu0 0.0
    %2219 = vmatprep.subr.mxu0 0.0
    %2220 = vmatpush1.msra.mxu0 0.0
    %2221 = vmatprep.subr.mxu0 0.0
    %2222 = vmatpush1.msra.mxu0 0.0
    %2223 = vmatprep.subr.mxu0 0.0
    %2224 = vmatpush1.msra.mxu0 0.0
    %2225 = vmatprep.subr.mxu0 0.0
    %2226 = vmatpush1.msra.mxu0 0.0
    %2227 = vmatprep.subr.mxu0 0.0
    %2228 = vmatpush1.msra.mxu0 0.0
    %2229 = vmatprep.subr.mxu0 0.0
    %2230 = vmatpush1.msra.mxu0 0.0
    %2231 = vmatprep.subr.mxu0 0.0
    %2232 = vmatpush1.msra.mxu0 0.0
    %2233 = vmatprep.subr.mxu0 0.0
    %2234 = vmatpush1.msra.mxu0 0.0
    %2235 = vmatprep.subr.mxu0 0.0
    %2236 = vmatpush1.msra.mxu0 0.0
    %2237 = vmatprep.subr.mxu0 0.0
    %2238 = vmatpush1.msra.mxu0 0.0
    %2239 = vmatprep.subr.mxu0 0.0
    %2240 = vmatpush1.msra.mxu0 0.0
    %2241 = vmatprep.subr.mxu0 0.0
    %2242 = vmatpush1.msra.mxu0 %v795
    %2243 = vmatprep.subr.mxu0 0.0
    %2244 = vmatpush1.msra.mxu0 %v794
    %2245 = vmatprep.subr.mxu0 0.0
    %2246 = vmatpush1.msra.mxu0 %v793
    %2247 = vmatprep.subr.mxu0 0.0
    %2248 = vmatpush1.msra.mxu0 %v792
    %2249 = vmatprep.subr.mxu0 0.0
    %2250 = vmatpush2.msra.mxu0 0.0
    %2251 = vmatprep.subr.mxu0 0.0
    %2252 = vmatpush2.msra.mxu0 0.0
    %2253 = vmatprep.subr.mxu0 0.0
    %2254 = vmatpush2.msra.mxu0 0.0
    %2255 = vmatprep.subr.mxu0 0.0
    %2256 = vmatpush2.msra.mxu0 0.0
    %2257 = vmatprep.subr.mxu0 0.0
    %2258 = vmatpush2.msra.mxu0 0.0
    %2259 = vmatprep.subr.mxu0 0.0
    %2260 = vmatpush2.msra.mxu0 0.0
    %2261 = vmatprep.subr.mxu0 0.0
    %2262 = vmatpush2.msra.mxu0 0.0
    %2263 = vmatprep.subr.mxu0 0.0
    %2264 = vmatpush2.msra.mxu0 0.0
    %2265 = vmatprep.subr.mxu0 0.0
    %2266 = vmatpush2.msra.mxu0 0.0
    %2267 = vmatprep.subr.mxu0 0.0
    %2268 = vmatpush2.msra.mxu0 0.0
    %2269 = vmatprep.subr.mxu0 0.0
    %2270 = vmatpush2.msra.mxu0 0.0
    %2271 = vmatprep.subr.mxu0 0.0
    %2272 = vmatpush2.msra.mxu0 0.0
    %2273 = vmatprep.subr.mxu0 0.0
    %2274 = vmatpush2.msra.mxu0 0.0
    %2275 = vmatprep.subr.mxu0 0.0
    %2276 = vmatpush2.msra.mxu0 0.0
    %2277 = vmatprep.subr.mxu0 0.0
    %2278 = vmatpush2.msra.mxu0 0.0
    %2279 = vmatprep.subr.mxu0 0.0
    %2280 = vmatpush2.msra.mxu0 0.0
    %2281 = vmatprep.mubr.f32.mxu0 0.0
    %2282 = vmatmul.mubr.f32.gmra.mxu0 %v2215
    %v2283 = vpop.f32.mrf.mxu0
    %v2284 = vadd.f32 %v1480, %v2283
    %v2285 = vpop.f32.mrf.mxu0
    %2286 = vdwg.mxu0
    %2287 = vst.msk [vmem:[#allocation2 + $0x8] sm:$0xff] %vm398, %v2284
    %v2288 = vld [vmem:[#allocation2] sm:$0xff]
    %v2289 = vld [vmem:[#allocation2 + $0x8] sm:$0xff]
    %v2290 = vadd.f32 %v654, %v2288
    %v2291 = vadd.f32 %v655, %v2289
    %v2292 = vld [vmem:[#allocation20] sm:$0x1]
    %v2293 = vld [vmem:[#allocation22] sm:$0x1]
    %v2294 = vsel %vm398, %v2290, 0.0
    %2295 = vadd.xlane.f32.xlu0 %v2294
    %v2296 = vpop.xlane.xlu0 %2295
    %v2297 = vsel %vm398, %v2291, 0.0
    %2298 = vadd.xlane.f32.xlu0 %v2297
    %v2299 = vpop.xlane.xlu0 %2298
    %v2300 = vmul.f32 %v2296, %v412
    %v2301 = vmul.f32 %v2299, %v412
    %v2302 = vsub.f32 %v2290, %v2300
    %v2303 = vsub.f32 %v2291, %v2301
    %v2304 = vmul.f32 %v2302, %v2302
    %v2305 = vmul.f32 %v2303, %v2303
    %v2306 = vsel %vm398, %v2304, 0.0
    %2307 = vadd.xlane.f32.xlu0 %v2306
    %v2308 = vpop.xlane.xlu0 %2307
    %v2309 = vsel %vm398, %v2305, 0.0
    %2310 = vadd.xlane.f32.xlu0 %v2309
    %v2311 = vpop.xlane.xlu0 %2310
    %v2312 = vmul.f32 %v2308, %v412
    %v2313 = vmul.f32 %v2311, %v412
    %v2314 = vadd.f32 %v2312, 1e-05
    %v2315 = vadd.f32 %v2313, 1e-05
    %v2316 = vrsqrt.pop %v2314
    %v2317 = vrsqrt.pop %v2315
    %v2318 = vmul.f32 %v2302, %v2316
    %v2319 = vmul.f32 %v2303, %v2317
    %v2321 = vlaneseq
    %v2322 = vshrl.u32 %v2321, 7
    %v2323 = vsub.s32 0, %v2322
    %v2324 = vrot.slane %v2292, %v2323
    %v2326 = vmul.f32 %v2318, %v2324
    %v2327 = vmul.f32 %v2319, %v2324
    %v2329 = vlaneseq
    %v2330 = vshrl.u32 %v2329, 7
    %v2331 = vsub.s32 0, %v2330
    %v2332 = vrot.slane %v2293, %v2331
    %v2334 = vadd.f32 %v2326, %v2332
    %v2335 = vadd.f32 %v2327, %v2332
    %v2336 = vld [vmem:[%s33] sm:$0xff]
    %v2337 = vld [vmem:[%s33 + $0x8] sm:$0xff]
    %v2338 = vld [vmem:[%s33 + $0x10] sm:$0xff]
    %v2339 = vld [vmem:[%s33 + $0x18] sm:$0xff]
    %v2340 = vld [vmem:[#allocation23] sm:$0x1]
    %v2342 = vlaneseq
    %v2343 = vshrl.u32 %v2342, 7
    %v2344 = vsub.s32 0, %v2343
    %v2345 = vrot.slane %v2340, %v2344
    %v2348 = vsel %vm398, %v2334, 0
    %v2351 = vsel %vm398, %v2335, 0
    %2353 = vmatprep.subr.mxu0 0.0
    %2354 = vmatpush1.msra.mxu0 0.0
    %2355 = vmatprep.subr.mxu0 0.0
    %2356 = vmatpush1.msra.mxu0 0.0
    %2357 = vmatprep.subr.mxu0 0.0
    %2358 = vmatpush1.msra.mxu0 0.0
    %2359 = vmatprep.subr.mxu0 0.0
    %2360 = vmatpush1.msra.mxu0 0.0
    %2361 = vmatprep.subr.mxu0 0.0
    %2362 = vmatpush1.msra.mxu0 0.0
    %2363 = vmatprep.subr.mxu0 0.0
    %2364 = vmatpush1.msra.mxu0 0.0
    %2365 = vmatprep.subr.mxu0 0.0
    %2366 = vmatpush1.msra.mxu0 0.0
    %2367 = vmatprep.subr.mxu0 0.0
    %2368 = vmatpush1.msra.mxu0 0.0
    %2369 = vmatprep.subr.mxu0 0.0
    %2370 = vmatpush1.msra.mxu0 0.0
    %2371 = vmatprep.subr.mxu0 0.0
    %2372 = vmatpush1.msra.mxu0 0.0
    %2373 = vmatprep.subr.mxu0 0.0
    %2374 = vmatpush1.msra.mxu0 0.0
    %2375 = vmatprep.subr.mxu0 0.0
    %2376 = vmatpush1.msra.mxu0 0.0
    %2377 = vmatprep.subr.mxu0 0.0
    %2378 = vmatpush1.msra.mxu0 %v2339
    %2379 = vmatprep.subr.mxu0 0.0
    %2380 = vmatpush1.msra.mxu0 %v2338
    %2381 = vmatprep.subr.mxu0 0.0
    %2382 = vmatpush1.msra.mxu0 %v2337
    %2383 = vmatprep.subr.mxu0 0.0
    %2384 = vmatpush1.msra.mxu0 %v2336
    %2385 = vmatprep.subr.mxu0 0.0
    %2386 = vmatpush2.msra.mxu0 0.0
    %2387 = vmatprep.subr.mxu0 0.0
    %2388 = vmatpush2.msra.mxu0 0.0
    %2389 = vmatprep.subr.mxu0 0.0
    %2390 = vmatpush2.msra.mxu0 0.0
    %2391 = vmatprep.subr.mxu0 0.0
    %2392 = vmatpush2.msra.mxu0 0.0
    %2393 = vmatprep.subr.mxu0 0.0
    %2394 = vmatpush2.msra.mxu0 0.0
    %2395 = vmatprep.subr.mxu0 0.0
    %2396 = vmatpush2.msra.mxu0 0.0
    %2397 = vmatprep.subr.mxu0 0.0
    %2398 = vmatpush2.msra.mxu0 0.0
    %2399 = vmatprep.subr.mxu0 0.0
    %2400 = vmatpush2.msra.mxu0 0.0
    %2401 = vmatprep.subr.mxu0 0.0
    %2402 = vmatpush2.msra.mxu0 0.0
    %2403 = vmatprep.subr.mxu0 0.0
    %2404 = vmatpush2.msra.mxu0 0.0
    %2405 = vmatprep.subr.mxu0 0.0
    %2406 = vmatpush2.msra.mxu0 0.0
    %2407 = vmatprep.subr.mxu0 0.0
    %2408 = vmatpush2.msra.mxu0 0.0
    %2409 = vmatprep.subr.mxu0 0.0
    %2410 = vmatpush2.msra.mxu0 0.0
    %2411 = vmatprep.subr.mxu0 0.0
    %2412 = vmatpush2.msra.mxu0 0.0
    %2413 = vmatprep.subr.mxu0 0.0
    %2414 = vmatpush2.msra.mxu0 0.0
    %2415 = vmatprep.subr.mxu0 0.0
    %2416 = vmatpush2.msra.mxu0 0.0
    %2417 = vmatprep.mubr.f32.mxu0 0.0
    %2418 = vmatmul.mubr.f32.gmra.mxu0 %v2348
    %v2419 = vpop.f32.mrf.mxu0
    %v2420 = vadd.f32 %v2345, %v2419
    %v2421 = vpop.f32.mrf.mxu0
    %2422 = vmatprep.mubr.f32.mxu0 0.0
    %2423 = vmatmul.mubr.f32.gmra.mxu0 %v2351
    %v2424 = vpop.f32.mrf.mxu0
    %v2425 = vadd.f32 %v2345, %v2424
    %v2426 = vpop.f32.mrf.mxu0
    %2427 = vdwg.mxu0
    %v2428 = vld [vmem:[#allocation25] sm:$0xff]
    %v2429 = vld [vmem:[#allocation25 + $0x8] sm:$0xff]
    %v2430 = vld [vmem:[#allocation25 + $0x10] sm:$0xff]
    %v2431 = vld [vmem:[#allocation25 + $0x18] sm:$0xff]
    %v2432 = vld [vmem:[#allocation26] sm:$0x1]
    %v2434 = vlaneseq
    %v2435 = vshrl.u32 %v2434, 7
    %v2436 = vsub.s32 0, %v2435
    %v2437 = vrot.slane %v2432, %v2436
    %2439 = vmatprep.subr.mxu0 0.0
    %2440 = vmatpush1.msra.mxu0 0.0
    %2441 = vmatprep.subr.mxu0 0.0
    %2442 = vmatpush1.msra.mxu0 0.0
    %2443 = vmatprep.subr.mxu0 0.0
    %2444 = vmatpush1.msra.mxu0 0.0
    %2445 = vmatprep.subr.mxu0 0.0
    %2446 = vmatpush1.msra.mxu0 0.0
    %2447 = vmatprep.subr.mxu0 0.0
    %2448 = vmatpush1.msra.mxu0 0.0
    %2449 = vmatprep.subr.mxu0 0.0
    %2450 = vmatpush1.msra.mxu0 0.0
    %2451 = vmatprep.subr.mxu0 0.0
    %2452 = vmatpush1.msra.mxu0 0.0
    %2453 = vmatprep.subr.mxu0 0.0
    %2454 = vmatpush1.msra.mxu0 0.0
    %2455 = vmatprep.subr.mxu0 0.0
    %2456 = vmatpush1.msra.mxu0 0.0
    %2457 = vmatprep.subr.mxu0 0.0
    %2458 = vmatpush1.msra.mxu0 0.0
    %2459 = vmatprep.subr.mxu0 0.0
    %2460 = vmatpush1.msra.mxu0 0.0
    %2461 = vmatprep.subr.mxu0 0.0
    %2462 = vmatpush1.msra.mxu0 0.0
    %2463 = vmatprep.subr.mxu0 0.0
    %2464 = vmatpush1.msra.mxu0 %v2431
    %2465 = vmatprep.subr.mxu0 0.0
    %2466 = vmatpush1.msra.mxu0 %v2430
    %2467 = vmatprep.subr.mxu0 0.0
    %2468 = vmatpush1.msra.mxu0 %v2429
    %2469 = vmatprep.subr.mxu0 0.0
    %2470 = vmatpush1.msra.mxu0 %v2428
    %2471 = vmatprep.subr.mxu0 0.0
    %2472 = vmatpush2.msra.mxu0 0.0
    %2473 = vmatprep.subr.mxu0 0.0
    %2474 = vmatpush2.msra.mxu0 0.0
    %2475 = vmatprep.subr.mxu0 0.0
    %2476 = vmatpush2.msra.mxu0 0.0
    %2477 = vmatprep.subr.mxu0 0.0
    %2478 = vmatpush2.msra.mxu0 0.0
    %2479 = vmatprep.subr.mxu0 0.0
    %2480 = vmatpush2.msra.mxu0 0.0
    %2481 = vmatprep.subr.mxu0 0.0
    %2482 = vmatpush2.msra.mxu0 0.0
    %2483 = vmatprep.subr.mxu0 0.0
    %2484 = vmatpush2.msra.mxu0 0.0
    %2485 = vmatprep.subr.mxu0 0.0
    %2486 = vmatpush2.msra.mxu0 0.0
    %2487 = vmatprep.subr.mxu0 0.0
    %2488 = vmatpush2.msra.mxu0 0.0
    %2489 = vmatprep.subr.mxu0 0.0
    %2490 = vmatpush2.msra.mxu0 0.0
    %2491 = vmatprep.subr.mxu0 0.0
    %2492 = vmatpush2.msra.mxu0 0.0
    %2493 = vmatprep.subr.mxu0 0.0
    %2494 = vmatpush2.msra.mxu0 0.0
    %2495 = vmatprep.subr.mxu0 0.0
    %2496 = vmatpush2.msra.mxu0 0.0
    %2497 = vmatprep.subr.mxu0 0.0
    %2498 = vmatpush2.msra.mxu0 0.0
    %2499 = vmatprep.subr.mxu0 0.0
    %2500 = vmatpush2.msra.mxu0 0.0
    %2501 = vmatprep.subr.mxu0 0.0
    %2502 = vmatpush2.msra.mxu0 0.0
    %2503 = vmatprep.mubr.f32.mxu0 0.0
    %2504 = vmatmul.mubr.f32.gmra.mxu0 %v2348
    %v2505 = vpop.f32.mrf.mxu0
    %v2506 = vadd.f32 %v2437, %v2505
    %v2507 = vpop.f32.mrf.mxu0
    %2508 = vmatprep.mubr.f32.mxu0 0.0
    %2509 = vmatmul.mubr.f32.gmra.mxu0 %v2351
    %v2510 = vpop.f32.mrf.mxu0
    %v2511 = vadd.f32 %v2437, %v2510
    %v2512 = vpop.f32.mrf.mxu0
    %2513 = vdwg.mxu0
    %v2514 = vxor.u32 %v2506, 2147483648
    %v2515 = vxor.u32 %v2511, 2147483648
    %v2516 = vmul.f32 %v2514, 1.442695
    %v2517 = vpow.pop %v2516
    %v2518 = vmul.f32 %v2515, 1.442695
    %v2519 = vpow.pop %v2518
    %v2520 = vadd.f32 %v2517, 1.0
    %v2521 = vadd.f32 %v2519, 1.0
    %v2522 = vrcp.pop %v2520
    %v2523 = vmul.f32 1.0, %v2522
    %v2524 = vrcp.pop %v2521
    %v2525 = vmul.f32 1.0, %v2524
    %v2526 = vmul.f32 %v2420, %v2523
    %v2527 = vmul.f32 %v2425, %v2525
    %v2528 = vld [vmem:[%s41] sm:$0x7]
    %v2529 = vld [vmem:[#allocation28] sm:$0x1]
    %2530 = vst.msk [vmem:[#allocation3 + $0x1] sm:$0xff] %vm398, %v2526
    %v2531 = vld [vmem:[#allocation3] sm:$0xff]
    %v2532 = vld [vmem:[#allocation3 + $0x8] sm:$0x3]
    %v2533 = vlaneseq
    %v2534 = vshrl.u32 %v2533, 7
    %v2535 = vsub.s32 0, %v2534
    %v2536 = vrot.slane %v2528, %v2535
    %v2537 = vmul.f32 %v2531, %v2536
    %v2538 = vadd.f32 %v2537, 0.0
    %v2539 = vlaneseq
    %v2540 = vshrl.u32 %v2539, 7
    %v2541 = vsub.s32 1, %v2540
    %v2542 = vrot.slane %v2528, %v2541
    %v2543 = vmul.f32 %v2531, %v2542
    %v2544 = vmul.f32 %v2532, %v2542
    %vm2547 = vcmask 1046528
    %v2548 = vrot.slane %v2543, 1
    %v2549 = vrot.slane %v2544, 1
    %v2550 = vsel %vm2547, %v2548, %v2549
    %v2552 = vadd.f32 %v2538, %v2550
    %v2553 = vlaneseq
    %v2554 = vshrl.u32 %v2553, 7
    %v2555 = vsub.s32 2, %v2554
    %v2556 = vrot.slane %v2528, %v2555
    %v2557 = vmul.f32 %v2531, %v2556
    %v2558 = vmul.f32 %v2532, %v2556
    %vm2561 = vcmask 1045504
    %v2562 = vrot.slane %v2557, 2
    %v2563 = vrot.slane %v2558, 2
    %v2564 = vsel %vm2561, %v2562, %v2563
    %v2566 = vadd.f32 %v2552, %v2564
    %v2568 = vlaneseq
    %v2569 = vshrl.u32 %v2568, 7
    %v2570 = vsub.s32 0, %v2569
    %v2571 = vrot.slane %v2529, %v2570
    %v2573 = vadd.f32 %v2566, %v2571
    %v2574 = vxor.u32 %v2573, 2147483648
    %v2575 = vmul.f32 %v2574, 1.442695
    %v2576 = vpow.pop %v2575
    %v2577 = vadd.f32 %v2576, 1.0
    %v2578 = vrcp.pop %v2577
    %v2579 = vmul.f32 1.0, %v2578
    %v2580 = vmul.f32 %v2573, %v2579
    %2581 = vst.msk [vmem:[#allocation2] sm:$0xff] %vm398, %v2580
    %2582 = vst.msk [vmem:[#allocation3 + $0x1] sm:$0xff] %vm398, %v2527
    %v2583 = vld [vmem:[#allocation3] sm:$0xff]
    %v2584 = vld [vmem:[#allocation3 + $0x8] sm:$0x3]
    %v2585 = vmul.f32 %v2583, %v2536
    %v2586 = vadd.f32 %v2585, 0.0
    %v2587 = vmul.f32 %v2583, %v2542
    %v2588 = vmul.f32 %v2584, %v2542
    %v2591 = vrot.slane %v2587, 1
    %v2592 = vrot.slane %v2588, 1
    %v2593 = vsel %vm2547, %v2591, %v2592
    %v2595 = vadd.f32 %v2586, %v2593
    %v2596 = vmul.f32 %v2583, %v2556
    %v2597 = vmul.f32 %v2584, %v2556
    %v2600 = vrot.slane %v2596, 2
    %v2601 = vrot.slane %v2597, 2
    %v2602 = vsel %vm2561, %v2600, %v2601
    %v2604 = vadd.f32 %v2595, %v2602
    %v2605 = vadd.f32 %v2604, %v2571
    %v2606 = vxor.u32 %v2605, 2147483648
    %v2607 = vmul.f32 %v2606, 1.442695
    %v2608 = vpow.pop %v2607
    %v2609 = vadd.f32 %v2608, 1.0
    %v2610 = vrcp.pop %v2609
    %v2611 = vmul.f32 1.0, %v2610
    %v2612 = vmul.f32 %v2605, %v2611
    %2613 = vst.msk [vmem:[#allocation2 + $0x8] sm:$0xff] %vm398, %v2612
    %v2614 = vld [vmem:[#allocation2] sm:$0xff]
    %v2615 = vld [vmem:[#allocation2 + $0x8] sm:$0xff]
    %v2616 = vld [vmem:[%s45] sm:$0xff]
    %v2617 = vld [vmem:[%s45 + $0x8] sm:$0xff]
    %v2618 = vld [vmem:[%s45 + $0x10] sm:$0xff]
    %v2619 = vld [vmem:[%s45 + $0x18] sm:$0xff]
    %v2620 = vld [vmem:[#allocation29] sm:$0x1]
    %v2622 = vlaneseq
    %v2623 = vshrl.u32 %v2622, 7
    %v2624 = vsub.s32 0, %v2623
    %v2625 = vrot.slane %v2620, %v2624
    %v2628 = vsel %vm398, %v2614, 0
    %v2631 = vsel %vm398, %v2615, 0
    %2633 = vmatprep.subr.mxu0 0.0
    %2634 = vmatpush1.msra.mxu0 0.0
    %2635 = vmatprep.subr.mxu0 0.0
    %2636 = vmatpush1.msra.mxu0 0.0
    %2637 = vmatprep.subr.mxu0 0.0
    %2638 = vmatpush1.msra.mxu0 0.0
    %2639 = vmatprep.subr.mxu0 0.0
    %2640 = vmatpush1.msra.mxu0 0.0
    %2641 = vmatprep.subr.mxu0 0.0
    %2642 = vmatpush1.msra.mxu0 0.0
    %2643 = vmatprep.subr.mxu0 0.0
    %2644 = vmatpush1.msra.mxu0 0.0
    %2645 = vmatprep.subr.mxu0 0.0
    %2646 = vmatpush1.msra.mxu0 0.0
    %2647 = vmatprep.subr.mxu0 0.0
    %2648 = vmatpush1.msra.mxu0 0.0
    %2649 = vmatprep.subr.mxu0 0.0
    %2650 = vmatpush1.msra.mxu0 0.0
    %2651 = vmatprep.subr.mxu0 0.0
    %2652 = vmatpush1.msra.mxu0 0.0
    %2653 = vmatprep.subr.mxu0 0.0
    %2654 = vmatpush1.msra.mxu0 0.0
    %2655 = vmatprep.subr.mxu0 0.0
    %2656 = vmatpush1.msra.mxu0 0.0
    %2657 = vmatprep.subr.mxu0 0.0
    %2658 = vmatpush1.msra.mxu0 %v2619
    %2659 = vmatprep.subr.mxu0 0.0
    %2660 = vmatpush1.msra.mxu0 %v2618
    %2661 = vmatprep.subr.mxu0 0.0
    %2662 = vmatpush1.msra.mxu0 %v2617
    %2663 = vmatprep.subr.mxu0 0.0
    %2664 = vmatpush1.msra.mxu0 %v2616
    %2665 = vmatprep.subr.mxu0 0.0
    %2666 = vmatpush2.msra.mxu0 0.0
    %2667 = vmatprep.subr.mxu0 0.0
    %2668 = vmatpush2.msra.mxu0 0.0
    %2669 = vmatprep.subr.mxu0 0.0
    %2670 = vmatpush2.msra.mxu0 0.0
    %2671 = vmatprep.subr.mxu0 0.0
    %2672 = vmatpush2.msra.mxu0 0.0
    %2673 = vmatprep.subr.mxu0 0.0
    %2674 = vmatpush2.msra.mxu0 0.0
    %2675 = vmatprep.subr.mxu0 0.0
    %2676 = vmatpush2.msra.mxu0 0.0
    %2677 = vmatprep.subr.mxu0 0.0
    %2678 = vmatpush2.msra.mxu0 0.0
    %2679 = vmatprep.subr.mxu0 0.0
    %2680 = vmatpush2.msra.mxu0 0.0
    %2681 = vmatprep.subr.mxu0 0.0
    %2682 = vmatpush2.msra.mxu0 0.0
    %2683 = vmatprep.subr.mxu0 0.0
    %2684 = vmatpush2.msra.mxu0 0.0
    %2685 = vmatprep.subr.mxu0 0.0
    %2686 = vmatpush2.msra.mxu0 0.0
    %2687 = vmatprep.subr.mxu0 0.0
    %2688 = vmatpush2.msra.mxu0 0.0
    %2689 = vmatprep.subr.mxu0 0.0
    %2690 = vmatpush2.msra.mxu0 0.0
    %2691 = vmatprep.subr.mxu0 0.0
    %2692 = vmatpush2.msra.mxu0 0.0
    %2693 = vmatprep.subr.mxu0 0.0
    %2694 = vmatpush2.msra.mxu0 0.0
    %2695 = vmatprep.subr.mxu0 0.0
    %2696 = vmatpush2.msra.mxu0 0.0
    %2697 = vmatprep.mubr.f32.mxu0 0.0
    %2698 = vmatmul.mubr.f32.gmra.mxu0 %v2628
    %v2699 = vpop.f32.mrf.mxu0
    %v2700 = vadd.f32 %v2625, %v2699
    %v2701 = vpop.f32.mrf.mxu0
    %2702 = vmatprep.mubr.f32.mxu0 0.0
    %2703 = vmatmul.mubr.f32.gmra.mxu0 %v2631
    %v2704 = vpop.f32.mrf.mxu0
    %v2705 = vadd.f32 %v2625, %v2704
    %v2706 = vpop.f32.mrf.mxu0
    %2707 = vdwg.mxu0
    %v2708 = vadd.f32 %v2290, %v2700
    %v2709 = vadd.f32 %v2291, %v2705
    %v2710 = vld [vmem:[%s49] sm:$0x1]
    %v2711 = vld [vmem:[%s51] sm:$0x1]
    %v2712 = vsel %vm398, %v2708, 0.0
    %2713 = vadd.xlane.f32.xlu0 %v2712
    %v2714 = vpop.xlane.xlu0 %2713
    %v2715 = vsel %vm398, %v2709, 0.0
    %2716 = vadd.xlane.f32.xlu0 %v2715
    %v2717 = vpop.xlane.xlu0 %2716
    %v2718 = vmul.f32 %v2714, %v412
    %v2719 = vmul.f32 %v2717, %v412
    %v2720 = vsub.f32 %v2708, %v2718
    %v2721 = vsub.f32 %v2709, %v2719
    %v2722 = vmul.f32 %v2720, %v2720
    %v2723 = vmul.f32 %v2721, %v2721
    %v2724 = vsel %vm398, %v2722, 0.0
    %2725 = vadd.xlane.f32.xlu0 %v2724
    %v2726 = vpop.xlane.xlu0 %2725
    %v2727 = vsel %vm398, %v2723, 0.0
    %2728 = vadd.xlane.f32.xlu0 %v2727
    %v2729 = vpop.xlane.xlu0 %2728
    %v2730 = vmul.f32 %v2726, %v412
    %v2731 = vmul.f32 %v2729, %v412
    %v2732 = vadd.f32 %v2730, 1e-05
    %v2733 = vadd.f32 %v2731, 1e-05
    %v2734 = vrsqrt.pop %v2732
    %v2735 = vrsqrt.pop %v2733
    %v2736 = vmul.f32 %v2720, %v2734
    %v2737 = vmul.f32 %v2721, %v2735
    %v2739 = vlaneseq
    %v2740 = vshrl.u32 %v2739, 7
    %v2741 = vsub.s32 0, %v2740
    %v2742 = vrot.slane %v2710, %v2741
    %v2744 = vmul.f32 %v2736, %v2742
    %v2745 = vmul.f32 %v2737, %v2742
    %v2747 = vlaneseq
    %v2748 = vshrl.u32 %v2747, 7
    %v2749 = vsub.s32 0, %v2748
    %v2750 = vrot.slane %v2711, %v2749
    %v2752 = vadd.f32 %v2744, %v2750
    %v2753 = vadd.f32 %v2745, %v2750
    %v2754 = vld [vmem:[#allocation31] sm:$0xff]
    %v2755 = vld [vmem:[#allocation31 + $0x8] sm:$0xff]
    %v2756 = vld [vmem:[#allocation31 + $0x10] sm:$0xff]
    %v2757 = vld [vmem:[#allocation31 + $0x18] sm:$0xff]
    %v2758 = vld [vmem:[%s55] sm:$0x1]
    %v2760 = vlaneseq
    %v2761 = vshrl.u32 %v2760, 7
    %v2762 = vsub.s32 0, %v2761
    %v2763 = vrot.slane %v2758, %v2762
    %v2766 = vsel %vm398, %v2752, 0
    %v2769 = vsel %vm398, %v2753, 0
    %2771 = vmatprep.subr.mxu0 0.0
    %2772 = vmatpush1.msra.mxu0 0.0
    %2773 = vmatprep.subr.mxu0 0.0
    %2774 = vmatpush1.msra.mxu0 0.0
    %2775 = vmatprep.subr.mxu0 0.0
    %2776 = vmatpush1.msra.mxu0 0.0
    %2777 = vmatprep.subr.mxu0 0.0
    %2778 = vmatpush1.msra.mxu0 0.0
    %2779 = vmatprep.subr.mxu0 0.0
    %2780 = vmatpush1.msra.mxu0 0.0
    %2781 = vmatprep.subr.mxu0 0.0
    %2782 = vmatpush1.msra.mxu0 0.0
    %2783 = vmatprep.subr.mxu0 0.0
    %2784 = vmatpush1.msra.mxu0 0.0
    %2785 = vmatprep.subr.mxu0 0.0
    %2786 = vmatpush1.msra.mxu0 0.0
    %2787 = vmatprep.subr.mxu0 0.0
    %2788 = vmatpush1.msra.mxu0 0.0
    %2789 = vmatprep.subr.mxu0 0.0
    %2790 = vmatpush1.msra.mxu0 0.0
    %2791 = vmatprep.subr.mxu0 0.0
    %2792 = vmatpush1.msra.mxu0 0.0
    %2793 = vmatprep.subr.mxu0 0.0
    %2794 = vmatpush1.msra.mxu0 0.0
    %2795 = vmatprep.subr.mxu0 0.0
    %2796 = vmatpush1.msra.mxu0 %v2757
    %2797 = vmatprep.subr.mxu0 0.0
    %2798 = vmatpush1.msra.mxu0 %v2756
    %2799 = vmatprep.subr.mxu0 0.0
    %2800 = vmatpush1.msra.mxu0 %v2755
    %2801 = vmatprep.subr.mxu0 0.0
    %2802 = vmatpush1.msra.mxu0 %v2754
    %2803 = vmatprep.subr.mxu0 0.0
    %2804 = vmatpush2.msra.mxu0 0.0
    %2805 = vmatprep.subr.mxu0 0.0
    %2806 = vmatpush2.msra.mxu0 0.0
    %2807 = vmatprep.subr.mxu0 0.0
    %2808 = vmatpush2.msra.mxu0 0.0
    %2809 = vmatprep.subr.mxu0 0.0
    %2810 = vmatpush2.msra.mxu0 0.0
    %2811 = vmatprep.subr.mxu0 0.0
    %2812 = vmatpush2.msra.mxu0 0.0
    %2813 = vmatprep.subr.mxu0 0.0
    %2814 = vmatpush2.msra.mxu0 0.0
    %2815 = vmatprep.subr.mxu0 0.0
    %2816 = vmatpush2.msra.mxu0 0.0
    %2817 = vmatprep.subr.mxu0 0.0
    %2818 = vmatpush2.msra.mxu0 0.0
    %2819 = vmatprep.subr.mxu0 0.0
    %2820 = vmatpush2.msra.mxu0 0.0
    %2821 = vmatprep.subr.mxu0 0.0
    %2822 = vmatpush2.msra.mxu0 0.0
    %2823 = vmatprep.subr.mxu0 0.0
    %2824 = vmatpush2.msra.mxu0 0.0
    %2825 = vmatprep.subr.mxu0 0.0
    %2826 = vmatpush2.msra.mxu0 0.0
    %2827 = vmatprep.subr.mxu0 0.0
    %2828 = vmatpush2.msra.mxu0 0.0
    %2829 = vmatprep.subr.mxu0 0.0
    %2830 = vmatpush2.msra.mxu0 0.0
    %2831 = vmatprep.subr.mxu0 0.0
    %2832 = vmatpush2.msra.mxu0 0.0
    %2833 = vmatprep.subr.mxu0 0.0
    %2834 = vmatpush2.msra.mxu0 0.0
    %2835 = vmatprep.mubr.f32.mxu0 0.0
    %2836 = vmatmul.mubr.f32.gmra.mxu0 %v2766
    %v2837 = vpop.f32.mrf.mxu0
    %v2838 = vadd.f32 %v2763, %v2837
    %v2839 = vpop.f32.mrf.mxu0
    %2840 = vmatprep.mubr.f32.mxu0 0.0
    %2841 = vmatmul.mubr.f32.gmra.mxu0 %v2769
    %v2842 = vpop.f32.mrf.mxu0
    %v2843 = vadd.f32 %v2763, %v2842
    %v2844 = vpop.f32.mrf.mxu0
    %2845 = vdwg.mxu0
    %v2846 = vxor.u32 %v2838, 2147483648
    %v2847 = vxor.u32 %v2843, 2147483648
    %v2848 = vmul.f32 %v2846, 1.442695
    %v2849 = vpow.pop %v2848
    %v2850 = vmul.f32 %v2847, 1.442695
    %v2851 = vpow.pop %v2850
    %v2852 = vadd.f32 %v2849, 1.0
    %v2853 = vadd.f32 %v2851, 1.0
    %v2854 = vrcp.pop %v2852
    %v2855 = vmul.f32 1.0, %v2854
    %v2856 = vrcp.pop %v2853
    %v2857 = vmul.f32 1.0, %v2856
    %v2858 = vmul.f32 %v2838, %v2855
    %v2859 = vmul.f32 %v2843, %v2857
    %v2860 = vld [vmem:[%s57] sm:$0xff]
    %v2861 = vld [vmem:[%s57 + $0x8] sm:$0xff]
    %v2862 = vld [vmem:[%s57 + $0x10] sm:$0xff]
    %v2863 = vld [vmem:[%s57 + $0x18] sm:$0xff]
    %v2864 = vld [vmem:[%s57 + $0x20] sm:$0xff]
    %v2865 = vld [vmem:[%s57 + $0x28] sm:$0xff]
    %v2866 = vld [vmem:[%s57 + $0x30] sm:$0xff]
    %v2867 = vld [vmem:[%s57 + $0x38] sm:$0xff]
    %v2868 = vld [vmem:[%s59] sm:$0x1]
    %v2870 = vlaneseq
    %v2871 = vshrl.u32 %v2870, 7
    %v2872 = vsub.s32 0, %v2871
    %v2873 = vrot.slane %v2868, %v2872
    %v2876 = vsel %vm570, %v2858, 0
    %v2879 = vsel %vm570, %v2859, 0
    %2881 = vmatprep.subr.mxu0 0.0
    %2882 = vmatpush1.msra.mxu0 0.0
    %2883 = vmatprep.subr.mxu0 0.0
    %2884 = vmatpush1.msra.mxu0 0.0
    %2885 = vmatprep.subr.mxu0 0.0
    %2886 = vmatpush1.msra.mxu0 0.0
    %2887 = vmatprep.subr.mxu0 0.0
    %2888 = vmatpush1.msra.mxu0 0.0
    %2889 = vmatprep.subr.mxu0 0.0
    %2890 = vmatpush1.msra.mxu0 0.0
    %2891 = vmatprep.subr.mxu0 0.0
    %2892 = vmatpush1.msra.mxu0 0.0
    %2893 = vmatprep.subr.mxu0 0.0
    %2894 = vmatpush1.msra.mxu0 0.0
    %2895 = vmatprep.subr.mxu0 0.0
    %2896 = vmatpush1.msra.mxu0 0.0
    %2897 = vmatprep.subr.mxu0 0.0
    %2898 = vmatpush1.msra.mxu0 %v2867
    %2899 = vmatprep.subr.mxu0 0.0
    %2900 = vmatpush1.msra.mxu0 %v2866
    %2901 = vmatprep.subr.mxu0 0.0
    %2902 = vmatpush1.msra.mxu0 %v2865
    %2903 = vmatprep.subr.mxu0 0.0
    %2904 = vmatpush1.msra.mxu0 %v2864
    %2905 = vmatprep.subr.mxu0 0.0
    %2906 = vmatpush1.msra.mxu0 %v2863
    %2907 = vmatprep.subr.mxu0 0.0
    %2908 = vmatpush1.msra.mxu0 %v2862
    %2909 = vmatprep.subr.mxu0 0.0
    %2910 = vmatpush1.msra.mxu0 %v2861
    %2911 = vmatprep.subr.mxu0 0.0
    %2912 = vmatpush1.msra.mxu0 %v2860
    %2913 = vmatprep.subr.mxu0 0.0
    %2914 = vmatpush2.msra.mxu0 0.0
    %2915 = vmatprep.subr.mxu0 0.0
    %2916 = vmatpush2.msra.mxu0 0.0
    %2917 = vmatprep.subr.mxu0 0.0
    %2918 = vmatpush2.msra.mxu0 0.0
    %2919 = vmatprep.subr.mxu0 0.0
    %2920 = vmatpush2.msra.mxu0 0.0
    %2921 = vmatprep.subr.mxu0 0.0
    %2922 = vmatpush2.msra.mxu0 0.0
    %2923 = vmatprep.subr.mxu0 0.0
    %2924 = vmatpush2.msra.mxu0 0.0
    %2925 = vmatprep.subr.mxu0 0.0
    %2926 = vmatpush2.msra.mxu0 0.0
    %2927 = vmatprep.subr.mxu0 0.0
    %2928 = vmatpush2.msra.mxu0 0.0
    %2929 = vmatprep.subr.mxu0 0.0
    %2930 = vmatpush2.msra.mxu0 0.0
    %2931 = vmatprep.subr.mxu0 0.0
    %2932 = vmatpush2.msra.mxu0 0.0
    %2933 = vmatprep.subr.mxu0 0.0
    %2934 = vmatpush2.msra.mxu0 0.0
    %2935 = vmatprep.subr.mxu0 0.0
    %2936 = vmatpush2.msra.mxu0 0.0
    %2937 = vmatprep.subr.mxu0 0.0
    %2938 = vmatpush2.msra.mxu0 0.0
    %2939 = vmatprep.subr.mxu0 0.0
    %2940 = vmatpush2.msra.mxu0 0.0
    %2941 = vmatprep.subr.mxu0 0.0
    %2942 = vmatpush2.msra.mxu0 0.0
    %2943 = vmatprep.subr.mxu0 0.0
    %2944 = vmatpush2.msra.mxu0 0.0
    %2945 = vmatprep.mubr.f32.mxu0 0.0
    %2946 = vmatmul.mubr.f32.gmra.mxu0 %v2876
    %v2947 = vpop.f32.mrf.mxu0
    %v2948 = vadd.f32 %v2873, %v2947
    %v2949 = vpop.f32.mrf.mxu0
    %2950 = vmatprep.mubr.f32.mxu0 0.0
    %2951 = vmatmul.mubr.f32.gmra.mxu0 %v2879
    %v2952 = vpop.f32.mrf.mxu0
    %v2953 = vadd.f32 %v2873, %v2952
    %v2954 = vpop.f32.mrf.mxu0
    %2955 = vdwg.mxu0
    %v2956 = vmul.f32 %v2948, 0.5
    %v2957 = vmul.f32 %v2953, 0.5
    %v2958 = vadd.f32 %v2708, %v2956
    %v2959 = vadd.f32 %v2709, %v2957
    %v2960 = vld [vmem:[%s61] sm:$0x1]
    %v2961 = vld [vmem:[%s63] sm:$0x1]
    %v2962 = vsel %vm398, %v2958, 0.0
    %2963 = vadd.xlane.f32.xlu0 %v2962
    %v2964 = vpop.xlane.xlu0 %2963
    %v2965 = vsel %vm398, %v2959, 0.0
    %2966 = vadd.xlane.f32.xlu0 %v2965
    %v2967 = vpop.xlane.xlu0 %2966
    %v2968 = vmul.f32 %v2964, %v412
    %v2969 = vmul.f32 %v2967, %v412
    %v2970 = vsub.f32 %v2958, %v2968
    %v2971 = vsub.f32 %v2959, %v2969
    %v2972 = vmul.f32 %v2970, %v2970
    %v2973 = vmul.f32 %v2971, %v2971
    %v2974 = vsel %vm398, %v2972, 0.0
    %2975 = vadd.xlane.f32.xlu0 %v2974
    %v2976 = vpop.xlane.xlu0 %2975
    %v2977 = vsel %vm398, %v2973, 0.0
    %2978 = vadd.xlane.f32.xlu0 %v2977
    %v2979 = vpop.xlane.xlu0 %2978
    %v2980 = vmul.f32 %v2976, %v412
    %v2981 = vmul.f32 %v2979, %v412
    %v2982 = vadd.f32 %v2980, 1e-05
    %v2983 = vadd.f32 %v2981, 1e-05
    %v2984 = vrsqrt.pop %v2982
    %v2985 = vrsqrt.pop %v2983
    %v2986 = vmul.f32 %v2970, %v2984
    %v2987 = vmul.f32 %v2971, %v2985
    %v2989 = vlaneseq
    %v2990 = vshrl.u32 %v2989, 7
    %v2991 = vsub.s32 0, %v2990
    %v2992 = vrot.slane %v2960, %v2991
    %v2994 = vmul.f32 %v2986, %v2992
    %v2995 = vmul.f32 %v2987, %v2992
    %v2997 = vlaneseq
    %v2998 = vshrl.u32 %v2997, 7
    %v2999 = vsub.s32 0, %v2998
    %v3000 = vrot.slane %v2961, %v2999
    %v3002 = vadd.f32 %v2994, %v3000
    %v3003 = vadd.f32 %v2995, %v3000
    %s3004 = scalar_lea.vmem [#allocation8], 1
    %v3005 = vld [vmem:[%s3004] sm:$0x1]
    %s3006 = scalar_lea.vmem [#allocation10], 1
    %v3007 = vld [vmem:[%s3006] sm:$0x1]
    %v3008 = vsel %vm398, %v3002, 0.0
    %3009 = vadd.xlane.f32.xlu0 %v3008
    %v3010 = vpop.xlane.xlu0 %3009
    %v3011 = vsel %vm398, %v3003, 0.0
    %3012 = vadd.xlane.f32.xlu0 %v3011
    %v3013 = vpop.xlane.xlu0 %3012
    %v3014 = vmul.f32 %v3010, %v412
    %v3015 = vmul.f32 %v3013, %v412
    %v3016 = vsub.f32 %v3002, %v3014
    %v3017 = vsub.f32 %v3003, %v3015
    %v3018 = vmul.f32 %v3016, %v3016
    %v3019 = vmul.f32 %v3017, %v3017
    %v3020 = vsel %vm398, %v3018, 0.0
    %3021 = vadd.xlane.f32.xlu0 %v3020
    %v3022 = vpop.xlane.xlu0 %3021
    %v3023 = vsel %vm398, %v3019, 0.0
    %3024 = vadd.xlane.f32.xlu0 %v3023
    %v3025 = vpop.xlane.xlu0 %3024
    %v3026 = vmul.f32 %v3022, %v412
    %v3027 = vmul.f32 %v3025, %v412
    %v3028 = vadd.f32 %v3026, 1e-05
    %v3029 = vadd.f32 %v3027, 1e-05
    %v3030 = vrsqrt.pop %v3028
    %v3031 = vrsqrt.pop %v3029
    %v3032 = vmul.f32 %v3016, %v3030
    %v3033 = vmul.f32 %v3017, %v3031
    %v3035 = vlaneseq
    %v3036 = vshrl.u32 %v3035, 7
    %v3037 = vsub.s32 0, %v3036
    %v3038 = vrot.slane %v3005, %v3037
    %v3040 = vmul.f32 %v3032, %v3038
    %v3041 = vmul.f32 %v3033, %v3038
    %v3043 = vlaneseq
    %v3044 = vshrl.u32 %v3043, 7
    %v3045 = vsub.s32 0, %v3044
    %v3046 = vrot.slane %v3007, %v3045
    %v3048 = vadd.f32 %v3040, %v3046
    %v3049 = vadd.f32 %v3041, %v3046
    %s3050 = scalar_lea.vmem %s9, 32
    %v3051 = vld [vmem:[%s3050] sm:$0xff]
    %v3052 = vld [vmem:[%s3050 + $0x8] sm:$0xff]
    %v3053 = vld [vmem:[%s3050 + $0x10] sm:$0xff]
    %v3054 = vld [vmem:[%s3050 + $0x18] sm:$0xff]
    %s3055 = scalar_lea.vmem [#allocation11], 1
    %v3056 = vld [vmem:[%s3055] sm:$0x1]
    %v3058 = vlaneseq
    %v3059 = vshrl.u32 %v3058, 7
    %v3060 = vsub.s32 0, %v3059
    %v3061 = vrot.slane %v3056, %v3060
    %v3064 = vsel %vm398, %v3048, 0
    %v3067 = vsel %vm398, %v3049, 0
    %3069 = vmatprep.subr.mxu0 0.0
    %3070 = vmatpush1.msra.mxu0 0.0
    %3071 = vmatprep.subr.mxu0 0.0
    %3072 = vmatpush1.msra.mxu0 0.0
    %3073 = vmatprep.subr.mxu0 0.0
    %3074 = vmatpush1.msra.mxu0 0.0
    %3075 = vmatprep.subr.mxu0 0.0
    %3076 = vmatpush1.msra.mxu0 0.0
    %3077 = vmatprep.subr.mxu0 0.0
    %3078 = vmatpush1.msra.mxu0 0.0
    %3079 = vmatprep.subr.mxu0 0.0
    %3080 = vmatpush1.msra.mxu0 0.0
    %3081 = vmatprep.subr.mxu0 0.0
    %3082 = vmatpush1.msra.mxu0 0.0
    %3083 = vmatprep.subr.mxu0 0.0
    %3084 = vmatpush1.msra.mxu0 0.0
    %3085 = vmatprep.subr.mxu0 0.0
    %3086 = vmatpush1.msra.mxu0 0.0
    %3087 = vmatprep.subr.mxu0 0.0
    %3088 = vmatpush1.msra.mxu0 0.0
    %3089 = vmatprep.subr.mxu0 0.0
    %3090 = vmatpush1.msra.mxu0 0.0
    %3091 = vmatprep.subr.mxu0 0.0
    %3092 = vmatpush1.msra.mxu0 0.0
    %3093 = vmatprep.subr.mxu0 0.0
    %3094 = vmatpush1.msra.mxu0 %v3054
    %3095 = vmatprep.subr.mxu0 0.0
    %3096 = vmatpush1.msra.mxu0 %v3053
    %3097 = vmatprep.subr.mxu0 0.0
    %3098 = vmatpush1.msra.mxu0 %v3052
    %3099 = vmatprep.subr.mxu0 0.0
    %3100 = vmatpush1.msra.mxu0 %v3051
    %3101 = vmatprep.subr.mxu0 0.0
    %3102 = vmatpush2.msra.mxu0 0.0
    %3103 = vmatprep.subr.mxu0 0.0
    %3104 = vmatpush2.msra.mxu0 0.0
    %3105 = vmatprep.subr.mxu0 0.0
    %3106 = vmatpush2.msra.mxu0 0.0
    %3107 = vmatprep.subr.mxu0 0.0
    %3108 = vmatpush2.msra.mxu0 0.0
    %3109 = vmatprep.subr.mxu0 0.0
    %3110 = vmatpush2.msra.mxu0 0.0
    %3111 = vmatprep.subr.mxu0 0.0
    %3112 = vmatpush2.msra.mxu0 0.0
    %3113 = vmatprep.subr.mxu0 0.0
    %3114 = vmatpush2.msra.mxu0 0.0
    %3115 = vmatprep.subr.mxu0 0.0
    %3116 = vmatpush2.msra.mxu0 0.0
    %3117 = vmatprep.subr.mxu0 0.0
    %3118 = vmatpush2.msra.mxu0 0.0
    %3119 = vmatprep.subr.mxu0 0.0
    %3120 = vmatpush2.msra.mxu0 0.0
    %3121 = vmatprep.subr.mxu0 0.0
    %3122 = vmatpush2.msra.mxu0 0.0
    %3123 = vmatprep.subr.mxu0 0.0
    %3124 = vmatpush2.msra.mxu0 0.0
    %3125 = vmatprep.subr.mxu0 0.0
    %3126 = vmatpush2.msra.mxu0 0.0
    %3127 = vmatprep.subr.mxu0 0.0
    %3128 = vmatpush2.msra.mxu0 0.0
    %3129 = vmatprep.subr.mxu0 0.0
    %3130 = vmatpush2.msra.mxu0 0.0
    %3131 = vmatprep.subr.mxu0 0.0
    %3132 = vmatpush2.msra.mxu0 0.0
    %3133 = vmatprep.mubr.f32.mxu0 0.0
    %3134 = vmatmul.mubr.f32.gmra.mxu0 %v3064
    %v3135 = vpop.f32.mrf.mxu0
    %v3136 = vadd.f32 %v3061, %v3135
    %v3137 = vpop.f32.mrf.mxu0
    %3138 = vmatprep.mubr.f32.mxu0 0.0
    %3139 = vmatmul.mubr.f32.gmra.mxu0 %v3067
    %v3140 = vpop.f32.mrf.mxu0
    %v3141 = vadd.f32 %v3061, %v3140
    %v3142 = vpop.f32.mrf.mxu0
    %3143 = vdwg.mxu0
    %v3144 = vxor.u32 %v3136, 2147483648
    %v3145 = vxor.u32 %v3141, 2147483648
    %v3146 = vmul.f32 %v3144, 1.442695
    %v3147 = vpow.pop %v3146
    %v3148 = vmul.f32 %v3145, 1.442695
    %v3149 = vpow.pop %v3148
    %v3150 = vadd.f32 %v3147, 1.0
    %v3151 = vadd.f32 %v3149, 1.0
    %v3152 = vrcp.pop %v3150
    %v3153 = vmul.f32 1.0, %v3152
    %v3154 = vrcp.pop %v3151
    %v3155 = vmul.f32 1.0, %v3154
    %v3156 = vmul.f32 %v3136, %v3153
    %v3157 = vmul.f32 %v3141, %v3155
    %s3158 = scalar_lea.vmem %s13, 64
    %v3159 = vld [vmem:[%s3158] sm:$0xff]
    %v3160 = vld [vmem:[%s3158 + $0x8] sm:$0xff]
    %v3161 = vld [vmem:[%s3158 + $0x10] sm:$0xff]
    %v3162 = vld [vmem:[%s3158 + $0x18] sm:$0xff]
    %v3163 = vld [vmem:[%s3158 + $0x20] sm:$0xff]
    %v3164 = vld [vmem:[%s3158 + $0x28] sm:$0xff]
    %v3165 = vld [vmem:[%s3158 + $0x30] sm:$0xff]
    %v3166 = vld [vmem:[%s3158 + $0x38] sm:$0xff]
    %s3167 = scalar_lea.vmem [#allocation13], 1
    %v3168 = vld [vmem:[%s3167] sm:$0x1]
    %v3170 = vlaneseq
    %v3171 = vshrl.u32 %v3170, 7
    %v3172 = vsub.s32 0, %v3171
    %v3173 = vrot.slane %v3168, %v3172
    %v3176 = vsel %vm570, %v3156, 0
    %v3179 = vsel %vm570, %v3157, 0
    %3181 = vmatprep.subr.mxu0 0.0
    %3182 = vmatpush1.msra.mxu0 0.0
    %3183 = vmatprep.subr.mxu0 0.0
    %3184 = vmatpush1.msra.mxu0 0.0
    %3185 = vmatprep.subr.mxu0 0.0
    %3186 = vmatpush1.msra.mxu0 0.0
    %3187 = vmatprep.subr.mxu0 0.0
    %3188 = vmatpush1.msra.mxu0 0.0
    %3189 = vmatprep.subr.mxu0 0.0
    %3190 = vmatpush1.msra.mxu0 0.0
    %3191 = vmatprep.subr.mxu0 0.0
    %3192 = vmatpush1.msra.mxu0 0.0
    %3193 = vmatprep.subr.mxu0 0.0
    %3194 = vmatpush1.msra.mxu0 0.0
    %3195 = vmatprep.subr.mxu0 0.0
    %3196 = vmatpush1.msra.mxu0 0.0
    %3197 = vmatprep.subr.mxu0 0.0
    %3198 = vmatpush1.msra.mxu0 %v3166
    %3199 = vmatprep.subr.mxu0 0.0
    %3200 = vmatpush1.msra.mxu0 %v3165
    %3201 = vmatprep.subr.mxu0 0.0
    %3202 = vmatpush1.msra.mxu0 %v3164
    %3203 = vmatprep.subr.mxu0 0.0
    %3204 = vmatpush1.msra.mxu0 %v3163
    %3205 = vmatprep.subr.mxu0 0.0
    %3206 = vmatpush1.msra.mxu0 %v3162
    %3207 = vmatprep.subr.mxu0 0.0
    %3208 = vmatpush1.msra.mxu0 %v3161
    %3209 = vmatprep.subr.mxu0 0.0
    %3210 = vmatpush1.msra.mxu0 %v3160
    %3211 = vmatprep.subr.mxu0 0.0
    %3212 = vmatpush1.msra.mxu0 %v3159
    %3213 = vmatprep.subr.mxu0 0.0
    %3214 = vmatpush2.msra.mxu0 0.0
    %3215 = vmatprep.subr.mxu0 0.0
    %3216 = vmatpush2.msra.mxu0 0.0
    %3217 = vmatprep.subr.mxu0 0.0
    %3218 = vmatpush2.msra.mxu0 0.0
    %3219 = vmatprep.subr.mxu0 0.0
    %3220 = vmatpush2.msra.mxu0 0.0
    %3221 = vmatprep.subr.mxu0 0.0
    %3222 = vmatpush2.msra.mxu0 0.0
    %3223 = vmatprep.subr.mxu0 0.0
    %3224 = vmatpush2.msra.mxu0 0.0
    %3225 = vmatprep.subr.mxu0 0.0
    %3226 = vmatpush2.msra.mxu0 0.0
    %3227 = vmatprep.subr.mxu0 0.0
    %3228 = vmatpush2.msra.mxu0 0.0
    %3229 = vmatprep.subr.mxu0 0.0
    %3230 = vmatpush2.msra.mxu0 0.0
    %3231 = vmatprep.subr.mxu0 0.0
    %3232 = vmatpush2.msra.mxu0 0.0
    %3233 = vmatprep.subr.mxu0 0.0
    %3234 = vmatpush2.msra.mxu0 0.0
    %3235 = vmatprep.subr.mxu0 0.0
    %3236 = vmatpush2.msra.mxu0 0.0
    %3237 = vmatprep.subr.mxu0 0.0
    %3238 = vmatpush2.msra.mxu0 0.0
    %3239 = vmatprep.subr.mxu0 0.0
    %3240 = vmatpush2.msra.mxu0 0.0
    %3241 = vmatprep.subr.mxu0 0.0
    %3242 = vmatpush2.msra.mxu0 0.0
    %3243 = vmatprep.subr.mxu0 0.0
    %3244 = vmatpush2.msra.mxu0 0.0
    %3245 = vmatprep.mubr.f32.mxu0 0.0
    %3246 = vmatmul.mubr.f32.gmra.mxu0 %v3176
    %v3247 = vpop.f32.mrf.mxu0
    %v3248 = vadd.f32 %v3173, %v3247
    %v3249 = vpop.f32.mrf.mxu0
    %3250 = vmatprep.mubr.f32.mxu0 0.0
    %3251 = vmatmul.mubr.f32.gmra.mxu0 %v3179
    %v3252 = vpop.f32.mrf.mxu0
    %v3253 = vadd.f32 %v3173, %v3252
    %v3254 = vpop.f32.mrf.mxu0
    %3255 = vdwg.mxu0
    %v3256 = vmul.f32 %v3248, 0.5
    %v3257 = vmul.f32 %v3253, 0.5
    %v3258 = vadd.f32 %v3002, %v3256
    %v3259 = vadd.f32 %v3003, %v3257
    %s3260 = scalar_lea.vmem [#allocation14], 1
    %v3261 = vld [vmem:[%s3260] sm:$0x1]
    %s3262 = scalar_lea.vmem [#allocation16], 1
    %v3263 = vld [vmem:[%s3262] sm:$0x1]
    %v3264 = vsel %vm398, %v3258, 0.0
    %3265 = vadd.xlane.f32.xlu0 %v3264
    %v3266 = vpop.xlane.xlu0 %3265
    %v3267 = vsel %vm398, %v3259, 0.0
    %3268 = vadd.xlane.f32.xlu0 %v3267
    %v3269 = vpop.xlane.xlu0 %3268
    %v3270 = vmul.f32 %v3266, %v412
    %v3271 = vmul.f32 %v3269, %v412
    %v3272 = vsub.f32 %v3258, %v3270
    %v3273 = vsub.f32 %v3259, %v3271
    %v3274 = vmul.f32 %v3272, %v3272
    %v3275 = vmul.f32 %v3273, %v3273
    %v3276 = vsel %vm398, %v3274, 0.0
    %3277 = vadd.xlane.f32.xlu0 %v3276
    %v3278 = vpop.xlane.xlu0 %3277
    %v3279 = vsel %vm398, %v3275, 0.0
    %3280 = vadd.xlane.f32.xlu0 %v3279
    %v3281 = vpop.xlane.xlu0 %3280
    %v3282 = vmul.f32 %v3278, %v412
    %v3283 = vmul.f32 %v3281, %v412
    %v3284 = vadd.f32 %v3282, 1e-05
    %v3285 = vadd.f32 %v3283, 1e-05
    %v3286 = vrsqrt.pop %v3284
    %v3287 = vrsqrt.pop %v3285
    %v3288 = vmul.f32 %v3272, %v3286
    %v3289 = vmul.f32 %v3273, %v3287
    %v3291 = vlaneseq
    %v3292 = vshrl.u32 %v3291, 7
    %v3293 = vsub.s32 0, %v3292
    %v3294 = vrot.slane %v3261, %v3293
    %v3296 = vmul.f32 %v3288, %v3294
    %v3297 = vmul.f32 %v3289, %v3294
    %v3299 = vlaneseq
    %v3300 = vshrl.u32 %v3299, 7
    %v3301 = vsub.s32 0, %v3300
    %v3302 = vrot.slane %v3263, %v3301
    %v3304 = vadd.f32 %v3296, %v3302
    %v3305 = vadd.f32 %v3297, %v3302
    %s3306 = scalar_lea.vmem %s21, 32
    %v3307 = vld [vmem:[%s3306] sm:$0xff]
    %v3308 = vld [vmem:[%s3306 + $0x8] sm:$0xff]
    %v3309 = vld [vmem:[%s3306 + $0x10] sm:$0xff]
    %v3310 = vld [vmem:[%s3306 + $0x18] sm:$0xff]
    %s3311 = scalar_lea.vmem [#allocation17], 1
    %v3312 = vld [vmem:[%s3311] sm:$0x1]
    %v3314 = vlaneseq
    %v3315 = vshrl.u32 %v3314, 7
    %v3316 = vsub.s32 0, %v3315
    %v3317 = vrot.slane %v3312, %v3316
    %v3320 = vsel %vm398, %v3304, 0
    %v3323 = vsel %vm398, %v3305, 0
    %3325 = vmatprep.subr.mxu0 0.0
    %3326 = vmatpush1.msra.mxu0 0.0
    %3327 = vmatprep.subr.mxu0 0.0
    %3328 = vmatpush1.msra.mxu0 0.0
    %3329 = vmatprep.subr.mxu0 0.0
    %3330 = vmatpush1.msra.mxu0 0.0
    %3331 = vmatprep.subr.mxu0 0.0
    %3332 = vmatpush1.msra.mxu0 0.0
    %3333 = vmatprep.subr.mxu0 0.0
    %3334 = vmatpush1.msra.mxu0 0.0
    %3335 = vmatprep.subr.mxu0 0.0
    %3336 = vmatpush1.msra.mxu0 0.0
    %3337 = vmatprep.subr.mxu0 0.0
    %3338 = vmatpush1.msra.mxu0 0.0
    %3339 = vmatprep.subr.mxu0 0.0
    %3340 = vmatpush1.msra.mxu0 0.0
    %3341 = vmatprep.subr.mxu0 0.0
    %3342 = vmatpush1.msra.mxu0 0.0
    %3343 = vmatprep.subr.mxu0 0.0
    %3344 = vmatpush1.msra.mxu0 0.0
    %3345 = vmatprep.subr.mxu0 0.0
    %3346 = vmatpush1.msra.mxu0 0.0
    %3347 = vmatprep.subr.mxu0 0.0
    %3348 = vmatpush1.msra.mxu0 0.0
    %3349 = vmatprep.subr.mxu0 0.0
    %3350 = vmatpush1.msra.mxu0 %v3310
    %3351 = vmatprep.subr.mxu0 0.0
    %3352 = vmatpush1.msra.mxu0 %v3309
    %3353 = vmatprep.subr.mxu0 0.0
    %3354 = vmatpush1.msra.mxu0 %v3308
    %3355 = vmatprep.subr.mxu0 0.0
    %3356 = vmatpush1.msra.mxu0 %v3307
    %3357 = vmatprep.subr.mxu0 0.0
    %3358 = vmatpush2.msra.mxu0 0.0
    %3359 = vmatprep.subr.mxu0 0.0
    %3360 = vmatpush2.msra.mxu0 0.0
    %3361 = vmatprep.subr.mxu0 0.0
    %3362 = vmatpush2.msra.mxu0 0.0
    %3363 = vmatprep.subr.mxu0 0.0
    %3364 = vmatpush2.msra.mxu0 0.0
    %3365 = vmatprep.subr.mxu0 0.0
    %3366 = vmatpush2.msra.mxu0 0.0
    %3367 = vmatprep.subr.mxu0 0.0
    %3368 = vmatpush2.msra.mxu0 0.0
    %3369 = vmatprep.subr.mxu0 0.0
    %3370 = vmatpush2.msra.mxu0 0.0
    %3371 = vmatprep.subr.mxu0 0.0
    %3372 = vmatpush2.msra.mxu0 0.0
    %3373 = vmatprep.subr.mxu0 0.0
    %3374 = vmatpush2.msra.mxu0 0.0
    %3375 = vmatprep.subr.mxu0 0.0
    %3376 = vmatpush2.msra.mxu0 0.0
    %3377 = vmatprep.subr.mxu0 0.0
    %3378 = vmatpush2.msra.mxu0 0.0
    %3379 = vmatprep.subr.mxu0 0.0
    %3380 = vmatpush2.msra.mxu0 0.0
    %3381 = vmatprep.subr.mxu0 0.0
    %3382 = vmatpush2.msra.mxu0 0.0
    %3383 = vmatprep.subr.mxu0 0.0
    %3384 = vmatpush2.msra.mxu0 0.0
    %3385 = vmatprep.subr.mxu0 0.0
    %3386 = vmatpush2.msra.mxu0 0.0
    %3387 = vmatprep.subr.mxu0 0.0
    %3388 = vmatpush2.msra.mxu0 0.0
    %3389 = vmatprep.mubr.f32.mxu0 0.0
    %3390 = vmatmul.mubr.f32.gmra.mxu0 %v3320
    %v3391 = vpop.f32.mrf.mxu0
    %v3392 = vadd.f32 %v3317, %v3391
    %v3393 = vpop.f32.mrf.mxu0
    %3394 = vmatprep.mubr.f32.mxu0 0.0
    %3395 = vmatmul.mubr.f32.gmra.mxu0 %v3323
    %v3396 = vpop.f32.mrf.mxu0
    %v3397 = vadd.f32 %v3317, %v3396
    %v3398 = vpop.f32.mrf.mxu0
    %3399 = vdwg.mxu0
    %s3400 = scalar_lea.vmem %s25, 32
    %v3401 = vld [vmem:[%s3400] sm:$0xff]
    %v3402 = vld [vmem:[%s3400 + $0x8] sm:$0xff]
    %v3403 = vld [vmem:[%s3400 + $0x10] sm:$0xff]
    %v3404 = vld [vmem:[%s3400 + $0x18] sm:$0xff]
    %s3405 = scalar_lea.vmem [#allocation19], 1
    %v3406 = vld [vmem:[%s3405] sm:$0x1]
    %v3407 = vsel %vm801, %v3392, 0.0
    %3409 = vrot.lane.b32.xlu0 %v3392, 64
    %v3410 = vpop.permute.xlu0 %3409
    %v3412 = vsel %vm801, %v3410, 0.0
    %3413 = vrot.lane.b32.xlu0 %v3392, 96
    %v3414 = vpop.permute.xlu0 %3413
    %v3416 = vsel %vm398, %v3407, 0
    %v3418 = vsel %vm398, %v3414, 0
    %3420 = vmatprep.subr.mxu0 0.0
    %3421 = vmatpush1.xpose.msra.mxu0 0.0
    %3422 = vmatprep.subr.mxu0 0.0
    %3423 = vmatpush1.xpose.msra.mxu0 0.0
    %3424 = vmatprep.subr.mxu0 0.0
    %3425 = vmatpush1.xpose.msra.mxu0 0.0
    %3426 = vmatprep.subr.mxu0 0.0
    %3427 = vmatpush1.xpose.msra.mxu0 0.0
    %3428 = vmatprep.subr.mxu0 0.0
    %3429 = vmatpush1.xpose.msra.mxu0 0.0
    %3430 = vmatprep.subr.mxu0 0.0
    %3431 = vmatpush1.xpose.msra.mxu0 0.0
    %3432 = vmatprep.subr.mxu0 0.0
    %3433 = vmatpush1.xpose.msra.mxu0 0.0
    %3434 = vmatprep.subr.mxu0 0.0
    %3435 = vmatpush1.xpose.msra.mxu0 0.0
    %3436 = vmatprep.subr.mxu0 0.0
    %3437 = vmatpush1.xpose.msra.mxu0 0.0
    %3438 = vmatprep.subr.mxu0 0.0
    %3439 = vmatpush1.xpose.msra.mxu0 0.0
    %3440 = vmatprep.subr.mxu0 0.0
    %3441 = vmatpush1.xpose.msra.mxu0 0.0
    %3442 = vmatprep.subr.mxu0 0.0
    %3443 = vmatpush1.xpose.msra.mxu0 0.0
    %3444 = vmatprep.subr.mxu0 0.0
    %3445 = vmatpush1.xpose.msra.mxu0 0.0
    %3446 = vmatprep.subr.mxu0 0.0
    %3447 = vmatpush1.xpose.msra.mxu0 0.0
    %3448 = vmatprep.subr.mxu0 0.0
    %3449 = vmatpush1.xpose.msra.mxu0 0.0
    %3450 = vmatprep.subr.mxu0 0.0
    %3451 = vmatpush1.xpose.msra.mxu0 %v3418
    %3452 = vmatprep.subr.mxu0 0.0
    %3453 = vmatpush2.xpose.msra.mxu0 0.0
    %3454 = vmatprep.subr.mxu0 0.0
    %3455 = vmatpush2.xpose.msra.mxu0 0.0
    %3456 = vmatprep.subr.mxu0 0.0
    %3457 = vmatpush2.xpose.msra.mxu0 0.0
    %3458 = vmatprep.subr.mxu0 0.0
    %3459 = vmatpush2.xpose.msra.mxu0 0.0
    %3460 = vmatprep.subr.mxu0 0.0
    %3461 = vmatpush2.xpose.msra.mxu0 0.0
    %3462 = vmatprep.subr.mxu0 0.0
    %3463 = vmatpush2.xpose.msra.mxu0 0.0
    %3464 = vmatprep.subr.mxu0 0.0
    %3465 = vmatpush2.xpose.msra.mxu0 0.0
    %3466 = vmatprep.subr.mxu0 0.0
    %3467 = vmatpush2.xpose.msra.mxu0 0.0
    %3468 = vmatprep.subr.mxu0 0.0
    %3469 = vmatpush2.xpose.msra.mxu0 0.0
    %3470 = vmatprep.subr.mxu0 0.0
    %3471 = vmatpush2.xpose.msra.mxu0 0.0
    %3472 = vmatprep.subr.mxu0 0.0
    %3473 = vmatpush2.xpose.msra.mxu0 0.0
    %3474 = vmatprep.subr.mxu0 0.0
    %3475 = vmatpush2.xpose.msra.mxu0 0.0
    %3476 = vmatprep.subr.mxu0 0.0
    %3477 = vmatpush2.xpose.msra.mxu0 0.0
    %3478 = vmatprep.subr.mxu0 0.0
    %3479 = vmatpush2.xpose.msra.mxu0 0.0
    %3480 = vmatprep.subr.mxu0 0.0
    %3481 = vmatpush2.xpose.msra.mxu0 0.0
    %3482 = vmatprep.subr.mxu0 0.0
    %3483 = vmatpush2.xpose.msra.mxu0 0.0
    %3484 = vmatprep.mubr.f32.mxu0 0.0
    %3485 = vmatmul.mubr.f32.gmra.mxu0 %v3416
    %v3486 = vpop.f32.mrf.mxu0
    %v3487 = vadd.f32 0.0, %v3486
    %v3488 = vpop.f32.mrf.mxu0
    %3489 = vdwg.mxu0
    %v3490 = vmul.f32 %v3487, 0.35355338
    %v3491 = vadd.f32 %v3490, %v889
    %v3492 = vsel %vm891, %v3491, -inf
    %3493 = vmax.xlane.f32.xlu0 %v3492
    %v3494 = vpop.xlane.xlu0 %3493
    %v3495 = vsub.f32 %v3491, %v3494
    %v3496 = vmul.f32 %v3495, 1.442695
    %v3497 = vpow.pop %v3496
    %v3498 = vsel %vm891, %v3497, 0.0
    %3499 = vadd.xlane.f32.xlu0 %v3498
    %v3500 = vpop.xlane.xlu0 %3499
    %v3501 = vrcp.pop %v3500
    %v3502 = vmul.f32 %v3497, %v3501
    %v3503 = vsel %vm907, %v3392, 0.0
    %v3504 = vsel %vm907, %v3410, 0.0
    %v3506 = vsel %vm398, %v3503, 0
    %3508 = vmatprep.subr.mxu0 0.0
    %3509 = vmatpush1.xpose.msra.mxu0 0.0
    %3510 = vmatprep.subr.mxu0 0.0
    %3511 = vmatpush1.xpose.msra.mxu0 0.0
    %3512 = vmatprep.subr.mxu0 0.0
    %3513 = vmatpush1.xpose.msra.mxu0 0.0
    %3514 = vmatprep.subr.mxu0 0.0
    %3515 = vmatpush1.xpose.msra.mxu0 0.0
    %3516 = vmatprep.subr.mxu0 0.0
    %3517 = vmatpush1.xpose.msra.mxu0 0.0
    %3518 = vmatprep.subr.mxu0 0.0
    %3519 = vmatpush1.xpose.msra.mxu0 0.0
    %3520 = vmatprep.subr.mxu0 0.0
    %3521 = vmatpush1.xpose.msra.mxu0 0.0
    %3522 = vmatprep.subr.mxu0 0.0
    %3523 = vmatpush1.xpose.msra.mxu0 0.0
    %3524 = vmatprep.subr.mxu0 0.0
    %3525 = vmatpush1.xpose.msra.mxu0 0.0
    %3526 = vmatprep.subr.mxu0 0.0
    %3527 = vmatpush1.xpose.msra.mxu0 0.0
    %3528 = vmatprep.subr.mxu0 0.0
    %3529 = vmatpush1.xpose.msra.mxu0 0.0
    %3530 = vmatprep.subr.mxu0 0.0
    %3531 = vmatpush1.xpose.msra.mxu0 0.0
    %3532 = vmatprep.subr.mxu0 0.0
    %3533 = vmatpush1.xpose.msra.mxu0 0.0
    %3534 = vmatprep.subr.mxu0 0.0
    %3535 = vmatpush1.xpose.msra.mxu0 0.0
    %3536 = vmatprep.subr.mxu0 0.0
    %3537 = vmatpush1.xpose.msra.mxu0 0.0
    %3538 = vmatprep.subr.mxu0 0.0
    %3539 = vmatpush1.xpose.msra.mxu0 %v3418
    %3540 = vmatprep.subr.mxu0 0.0
    %3541 = vmatpush2.xpose.msra.mxu0 0.0
    %3542 = vmatprep.subr.mxu0 0.0
    %3543 = vmatpush2.xpose.msra.mxu0 0.0
    %3544 = vmatprep.subr.mxu0 0.0
    %3545 = vmatpush2.xpose.msra.mxu0 0.0
    %3546 = vmatprep.subr.mxu0 0.0
    %3547 = vmatpush2.xpose.msra.mxu0 0.0
    %3548 = vmatprep.subr.mxu0 0.0
    %3549 = vmatpush2.xpose.msra.mxu0 0.0
    %3550 = vmatprep.subr.mxu0 0.0
    %3551 = vmatpush2.xpose.msra.mxu0 0.0
    %3552 = vmatprep.subr.mxu0 0.0
    %3553 = vmatpush2.xpose.msra.mxu0 0.0
    %3554 = vmatprep.subr.mxu0 0.0
    %3555 = vmatpush2.xpose.msra.mxu0 0.0
    %3556 = vmatprep.subr.mxu0 0.0
    %3557 = vmatpush2.xpose.msra.mxu0 0.0
    %3558 = vmatprep.subr.mxu0 0.0
    %3559 = vmatpush2.xpose.msra.mxu0 0.0
    %3560 = vmatprep.subr.mxu0 0.0
    %3561 = vmatpush2.xpose.msra.mxu0 0.0
    %3562 = vmatprep.subr.mxu0 0.0
    %3563 = vmatpush2.xpose.msra.mxu0 0.0
    %3564 = vmatprep.subr.mxu0 0.0
    %3565 = vmatpush2.xpose.msra.mxu0 0.0
    %3566 = vmatprep.subr.mxu0 0.0
    %3567 = vmatpush2.xpose.msra.mxu0 0.0
    %3568 = vmatprep.subr.mxu0 0.0
    %3569 = vmatpush2.xpose.msra.mxu0 0.0
    %3570 = vmatprep.subr.mxu0 0.0
    %3571 = vmatpush2.xpose.msra.mxu0 0.0
    %3572 = vmatprep.mubr.f32.mxu0 0.0
    %3573 = vmatmul.mubr.f32.gmra.mxu0 %v3506
    %v3574 = vpop.f32.mrf.mxu0
    %v3575 = vadd.f32 0.0, %v3574
    %v3576 = vpop.f32.mrf.mxu0
    %3577 = vdwg.mxu0
    %v3578 = vmul.f32 %v3575, 0.35355338
    %v3579 = vadd.f32 %v3578, %v889
    %v3580 = vsel %vm891, %v3579, -inf
    %3581 = vmax.xlane.f32.xlu0 %v3580
    %v3582 = vpop.xlane.xlu0 %3581
    %v3583 = vsub.f32 %v3579, %v3582
    %v3584 = vmul.f32 %v3583, 1.442695
    %v3585 = vpow.pop %v3584
    %v3586 = vsel %vm891, %v3585, 0.0
    %3587 = vadd.xlane.f32.xlu0 %v3586
    %v3588 = vpop.xlane.xlu0 %3587
    %v3589 = vrcp.pop %v3588
    %v3590 = vmul.f32 %v3585, %v3589
    %v3592 = vsel %vm891, %v3590, 0
    %3594 = vmatprep.subr.mxu0 0.0
    %3595 = vmatpush1.msra.mxu0 0.0
    %3596 = vmatprep.subr.mxu0 0.0
    %3597 = vmatpush1.msra.mxu0 0.0
    %3598 = vmatprep.subr.mxu0 0.0
    %3599 = vmatpush1.msra.mxu0 0.0
    %3600 = vmatprep.subr.mxu0 0.0
    %3601 = vmatpush1.msra.mxu0 0.0
    %3602 = vmatprep.subr.mxu0 0.0
    %3603 = vmatpush1.msra.mxu0 0.0
    %3604 = vmatprep.subr.mxu0 0.0
    %3605 = vmatpush1.msra.mxu0 0.0
    %3606 = vmatprep.subr.mxu0 0.0
    %3607 = vmatpush1.msra.mxu0 0.0
    %3608 = vmatprep.subr.mxu0 0.0
    %3609 = vmatpush1.msra.mxu0 0.0
    %3610 = vmatprep.subr.mxu0 0.0
    %3611 = vmatpush1.msra.mxu0 0.0
    %3612 = vmatprep.subr.mxu0 0.0
    %3613 = vmatpush1.msra.mxu0 0.0
    %3614 = vmatprep.subr.mxu0 0.0
    %3615 = vmatpush1.msra.mxu0 0.0
    %3616 = vmatprep.subr.mxu0 0.0
    %3617 = vmatpush1.msra.mxu0 0.0
    %3618 = vmatprep.subr.mxu0 0.0
    %3619 = vmatpush1.msra.mxu0 0.0
    %3620 = vmatprep.subr.mxu0 0.0
    %3621 = vmatpush1.msra.mxu0 0.0
    %3622 = vmatprep.subr.mxu0 0.0
    %3623 = vmatpush1.msra.mxu0 0.0
    %3624 = vmatprep.subr.mxu0 0.0
    %3625 = vmatpush1.msra.mxu0 %v3504
    %3626 = vmatprep.subr.mxu0 0.0
    %3627 = vmatpush2.msra.mxu0 0.0
    %3628 = vmatprep.subr.mxu0 0.0
    %3629 = vmatpush2.msra.mxu0 0.0
    %3630 = vmatprep.subr.mxu0 0.0
    %3631 = vmatpush2.msra.mxu0 0.0
    %3632 = vmatprep.subr.mxu0 0.0
    %3633 = vmatpush2.msra.mxu0 0.0
    %3634 = vmatprep.subr.mxu0 0.0
    %3635 = vmatpush2.msra.mxu0 0.0
    %3636 = vmatprep.subr.mxu0 0.0
    %3637 = vmatpush2.msra.mxu0 0.0
    %3638 = vmatprep.subr.mxu0 0.0
    %3639 = vmatpush2.msra.mxu0 0.0
    %3640 = vmatprep.subr.mxu0 0.0
    %3641 = vmatpush2.msra.mxu0 0.0
    %3642 = vmatprep.subr.mxu0 0.0
    %3643 = vmatpush2.msra.mxu0 0.0
    %3644 = vmatprep.subr.mxu0 0.0
    %3645 = vmatpush2.msra.mxu0 0.0
    %3646 = vmatprep.subr.mxu0 0.0
    %3647 = vmatpush2.msra.mxu0 0.0
    %3648 = vmatprep.subr.mxu0 0.0
    %3649 = vmatpush2.msra.mxu0 0.0
    %3650 = vmatprep.subr.mxu0 0.0
    %3651 = vmatpush2.msra.mxu0 0.0
    %3652 = vmatprep.subr.mxu0 0.0
    %3653 = vmatpush2.msra.mxu0 0.0
    %3654 = vmatprep.subr.mxu0 0.0
    %3655 = vmatpush2.msra.mxu0 0.0
    %3656 = vmatprep.subr.mxu0 0.0
    %3657 = vmatpush2.msra.mxu0 0.0
    %3658 = vmatprep.mubr.f32.mxu0 0.0
    %3659 = vmatmul.mubr.f32.gmra.mxu0 %v3592
    %v3660 = vpop.f32.mrf.mxu0
    %v3661 = vadd.f32 0.0, %v3660
    %v3662 = vpop.f32.mrf.mxu0
    %3663 = vdwg.mxu0
    %v3665 = vsel %vm891, %v3502, 0
    %3667 = vmatprep.subr.mxu0 0.0
    %3668 = vmatpush1.msra.mxu0 0.0
    %3669 = vmatprep.subr.mxu0 0.0
    %3670 = vmatpush1.msra.mxu0 0.0
    %3671 = vmatprep.subr.mxu0 0.0
    %3672 = vmatpush1.msra.mxu0 0.0
    %3673 = vmatprep.subr.mxu0 0.0
    %3674 = vmatpush1.msra.mxu0 0.0
    %3675 = vmatprep.subr.mxu0 0.0
    %3676 = vmatpush1.msra.mxu0 0.0
    %3677 = vmatprep.subr.mxu0 0.0
    %3678 = vmatpush1.msra.mxu0 0.0
    %3679 = vmatprep.subr.mxu0 0.0
    %3680 = vmatpush1.msra.mxu0 0.0
    %3681 = vmatprep.subr.mxu0 0.0
    %3682 = vmatpush1.msra.mxu0 0.0
    %3683 = vmatprep.subr.mxu0 0.0
    %3684 = vmatpush1.msra.mxu0 0.0
    %3685 = vmatprep.subr.mxu0 0.0
    %3686 = vmatpush1.msra.mxu0 0.0
    %3687 = vmatprep.subr.mxu0 0.0
    %3688 = vmatpush1.msra.mxu0 0.0
    %3689 = vmatprep.subr.mxu0 0.0
    %3690 = vmatpush1.msra.mxu0 0.0
    %3691 = vmatprep.subr.mxu0 0.0
    %3692 = vmatpush1.msra.mxu0 0.0
    %3693 = vmatprep.subr.mxu0 0.0
    %3694 = vmatpush1.msra.mxu0 0.0
    %3695 = vmatprep.subr.mxu0 0.0
    %3696 = vmatpush1.msra.mxu0 0.0
    %3697 = vmatprep.subr.mxu0 0.0
    %3698 = vmatpush1.msra.mxu0 %v3412
    %3699 = vmatprep.subr.mxu0 0.0
    %3700 = vmatpush2.msra.mxu0 0.0
    %3701 = vmatprep.subr.mxu0 0.0
    %3702 = vmatpush2.msra.mxu0 0.0
    %3703 = vmatprep.subr.mxu0 0.0
    %3704 = vmatpush2.msra.mxu0 0.0
    %3705 = vmatprep.subr.mxu0 0.0
    %3706 = vmatpush2.msra.mxu0 0.0
    %3707 = vmatprep.subr.mxu0 0.0
    %3708 = vmatpush2.msra.mxu0 0.0
    %3709 = vmatprep.subr.mxu0 0.0
    %3710 = vmatpush2.msra.mxu0 0.0
    %3711 = vmatprep.subr.mxu0 0.0
    %3712 = vmatpush2.msra.mxu0 0.0
    %3713 = vmatprep.subr.mxu0 0.0
    %3714 = vmatpush2.msra.mxu0 0.0
    %3715 = vmatprep.subr.mxu0 0.0
    %3716 = vmatpush2.msra.mxu0 0.0
    %3717 = vmatprep.subr.mxu0 0.0
    %3718 = vmatpush2.msra.mxu0 0.0
    %3719 = vmatprep.subr.mxu0 0.0
    %3720 = vmatpush2.msra.mxu0 0.0
    %3721 = vmatprep.subr.mxu0 0.0
    %3722 = vmatpush2.msra.mxu0 0.0
    %3723 = vmatprep.subr.mxu0 0.0
    %3724 = vmatpush2.msra.mxu0 0.0
    %3725 = vmatprep.subr.mxu0 0.0
    %3726 = vmatpush2.msra.mxu0 0.0
    %3727 = vmatprep.subr.mxu0 0.0
    %3728 = vmatpush2.msra.mxu0 0.0
    %3729 = vmatprep.subr.mxu0 0.0
    %3730 = vmatpush2.msra.mxu0 0.0
    %3731 = vmatprep.mubr.f32.mxu0 0.0
    %3732 = vmatmul.mubr.f32.gmra.mxu0 %v3665
    %v3733 = vpop.f32.mrf.mxu0
    %v3734 = vadd.f32 %v3661, %v3733
    %v3735 = vpop.f32.mrf.mxu0
    %3736 = vdwg.mxu0
    %v3737 = vsel %vm1146, %v3392, 0.0
    %v3738 = vsel %vm1146, %v3410, 0.0
    %v3740 = vsel %vm398, %v3737, 0
    %3742 = vmatprep.subr.mxu0 0.0
    %3743 = vmatpush1.xpose.msra.mxu0 0.0
    %3744 = vmatprep.subr.mxu0 0.0
    %3745 = vmatpush1.xpose.msra.mxu0 0.0
    %3746 = vmatprep.subr.mxu0 0.0
    %3747 = vmatpush1.xpose.msra.mxu0 0.0
    %3748 = vmatprep.subr.mxu0 0.0
    %3749 = vmatpush1.xpose.msra.mxu0 0.0
    %3750 = vmatprep.subr.mxu0 0.0
    %3751 = vmatpush1.xpose.msra.mxu0 0.0
    %3752 = vmatprep.subr.mxu0 0.0
    %3753 = vmatpush1.xpose.msra.mxu0 0.0
    %3754 = vmatprep.subr.mxu0 0.0
    %3755 = vmatpush1.xpose.msra.mxu0 0.0
    %3756 = vmatprep.subr.mxu0 0.0
    %3757 = vmatpush1.xpose.msra.mxu0 0.0
    %3758 = vmatprep.subr.mxu0 0.0
    %3759 = vmatpush1.xpose.msra.mxu0 0.0
    %3760 = vmatprep.subr.mxu0 0.0
    %3761 = vmatpush1.xpose.msra.mxu0 0.0
    %3762 = vmatprep.subr.mxu0 0.0
    %3763 = vmatpush1.xpose.msra.mxu0 0.0
    %3764 = vmatprep.subr.mxu0 0.0
    %3765 = vmatpush1.xpose.msra.mxu0 0.0
    %3766 = vmatprep.subr.mxu0 0.0
    %3767 = vmatpush1.xpose.msra.mxu0 0.0
    %3768 = vmatprep.subr.mxu0 0.0
    %3769 = vmatpush1.xpose.msra.mxu0 0.0
    %3770 = vmatprep.subr.mxu0 0.0
    %3771 = vmatpush1.xpose.msra.mxu0 0.0
    %3772 = vmatprep.subr.mxu0 0.0
    %3773 = vmatpush1.xpose.msra.mxu0 %v3418
    %3774 = vmatprep.subr.mxu0 0.0
    %3775 = vmatpush2.xpose.msra.mxu0 0.0
    %3776 = vmatprep.subr.mxu0 0.0
    %3777 = vmatpush2.xpose.msra.mxu0 0.0
    %3778 = vmatprep.subr.mxu0 0.0
    %3779 = vmatpush2.xpose.msra.mxu0 0.0
    %3780 = vmatprep.subr.mxu0 0.0
    %3781 = vmatpush2.xpose.msra.mxu0 0.0
    %3782 = vmatprep.subr.mxu0 0.0
    %3783 = vmatpush2.xpose.msra.mxu0 0.0
    %3784 = vmatprep.subr.mxu0 0.0
    %3785 = vmatpush2.xpose.msra.mxu0 0.0
    %3786 = vmatprep.subr.mxu0 0.0
    %3787 = vmatpush2.xpose.msra.mxu0 0.0
    %3788 = vmatprep.subr.mxu0 0.0
    %3789 = vmatpush2.xpose.msra.mxu0 0.0
    %3790 = vmatprep.subr.mxu0 0.0
    %3791 = vmatpush2.xpose.msra.mxu0 0.0
    %3792 = vmatprep.subr.mxu0 0.0
    %3793 = vmatpush2.xpose.msra.mxu0 0.0
    %3794 = vmatprep.subr.mxu0 0.0
    %3795 = vmatpush2.xpose.msra.mxu0 0.0
    %3796 = vmatprep.subr.mxu0 0.0
    %3797 = vmatpush2.xpose.msra.mxu0 0.0
    %3798 = vmatprep.subr.mxu0 0.0
    %3799 = vmatpush2.xpose.msra.mxu0 0.0
    %3800 = vmatprep.subr.mxu0 0.0
    %3801 = vmatpush2.xpose.msra.mxu0 0.0
    %3802 = vmatprep.subr.mxu0 0.0
    %3803 = vmatpush2.xpose.msra.mxu0 0.0
    %3804 = vmatprep.subr.mxu0 0.0
    %3805 = vmatpush2.xpose.msra.mxu0 0.0
    %3806 = vmatprep.mubr.f32.mxu0 0.0
    %3807 = vmatmul.mubr.f32.gmra.mxu0 %v3740
    %v3808 = vpop.f32.mrf.mxu0
    %v3809 = vadd.f32 0.0, %v3808
    %v3810 = vpop.f32.mrf.mxu0
    %3811 = vdwg.mxu0
    %v3812 = vmul.f32 %v3809, 0.35355338
    %v3813 = vadd.f32 %v3812, %v889
    %v3814 = vsel %vm891, %v3813, -inf
    %3815 = vmax.xlane.f32.xlu0 %v3814
    %v3816 = vpop.xlane.xlu0 %3815
    %v3817 = vsub.f32 %v3813, %v3816
    %v3818 = vmul.f32 %v3817, 1.442695
    %v3819 = vpow.pop %v3818
    %v3820 = vsel %vm891, %v3819, 0.0
    %3821 = vadd.xlane.f32.xlu0 %v3820
    %v3822 = vpop.xlane.xlu0 %3821
    %v3823 = vrcp.pop %v3822
    %v3824 = vmul.f32 %v3819, %v3823
    %v3826 = vsel %vm891, %v3824, 0
    %3828 = vmatprep.subr.mxu0 0.0
    %3829 = vmatpush1.msra.mxu0 0.0
    %3830 = vmatprep.subr.mxu0 0.0
    %3831 = vmatpush1.msra.mxu0 0.0
    %3832 = vmatprep.subr.mxu0 0.0
    %3833 = vmatpush1.msra.mxu0 0.0
    %3834 = vmatprep.subr.mxu0 0.0
    %3835 = vmatpush1.msra.mxu0 0.0
    %3836 = vmatprep.subr.mxu0 0.0
    %3837 = vmatpush1.msra.mxu0 0.0
    %3838 = vmatprep.subr.mxu0 0.0
    %3839 = vmatpush1.msra.mxu0 0.0
    %3840 = vmatprep.subr.mxu0 0.0
    %3841 = vmatpush1.msra.mxu0 0.0
    %3842 = vmatprep.subr.mxu0 0.0
    %3843 = vmatpush1.msra.mxu0 0.0
    %3844 = vmatprep.subr.mxu0 0.0
    %3845 = vmatpush1.msra.mxu0 0.0
    %3846 = vmatprep.subr.mxu0 0.0
    %3847 = vmatpush1.msra.mxu0 0.0
    %3848 = vmatprep.subr.mxu0 0.0
    %3849 = vmatpush1.msra.mxu0 0.0
    %3850 = vmatprep.subr.mxu0 0.0
    %3851 = vmatpush1.msra.mxu0 0.0
    %3852 = vmatprep.subr.mxu0 0.0
    %3853 = vmatpush1.msra.mxu0 0.0
    %3854 = vmatprep.subr.mxu0 0.0
    %3855 = vmatpush1.msra.mxu0 0.0
    %3856 = vmatprep.subr.mxu0 0.0
    %3857 = vmatpush1.msra.mxu0 0.0
    %3858 = vmatprep.subr.mxu0 0.0
    %3859 = vmatpush1.msra.mxu0 %v3738
    %3860 = vmatprep.subr.mxu0 0.0
    %3861 = vmatpush2.msra.mxu0 0.0
    %3862 = vmatprep.subr.mxu0 0.0
    %3863 = vmatpush2.msra.mxu0 0.0
    %3864 = vmatprep.subr.mxu0 0.0
    %3865 = vmatpush2.msra.mxu0 0.0
    %3866 = vmatprep.subr.mxu0 0.0
    %3867 = vmatpush2.msra.mxu0 0.0
    %3868 = vmatprep.subr.mxu0 0.0
    %3869 = vmatpush2.msra.mxu0 0.0
    %3870 = vmatprep.subr.mxu0 0.0
    %3871 = vmatpush2.msra.mxu0 0.0
    %3872 = vmatprep.subr.mxu0 0.0
    %3873 = vmatpush2.msra.mxu0 0.0
    %3874 = vmatprep.subr.mxu0 0.0
    %3875 = vmatpush2.msra.mxu0 0.0
    %3876 = vmatprep.subr.mxu0 0.0
    %3877 = vmatpush2.msra.mxu0 0.0
    %3878 = vmatprep.subr.mxu0 0.0
    %3879 = vmatpush2.msra.mxu0 0.0
    %3880 = vmatprep.subr.mxu0 0.0
    %3881 = vmatpush2.msra.mxu0 0.0
    %3882 = vmatprep.subr.mxu0 0.0
    %3883 = vmatpush2.msra.mxu0 0.0
    %3884 = vmatprep.subr.mxu0 0.0
    %3885 = vmatpush2.msra.mxu0 0.0
    %3886 = vmatprep.subr.mxu0 0.0
    %3887 = vmatpush2.msra.mxu0 0.0
    %3888 = vmatprep.subr.mxu0 0.0
    %3889 = vmatpush2.msra.mxu0 0.0
    %3890 = vmatprep.subr.mxu0 0.0
    %3891 = vmatpush2.msra.mxu0 0.0
    %3892 = vmatprep.mubr.f32.mxu0 0.0
    %3893 = vmatmul.mubr.f32.gmra.mxu0 %v3826
    %v3894 = vpop.f32.mrf.mxu0
    %v3895 = vadd.f32 0.0, %v3894
    %v3896 = vpop.f32.mrf.mxu0
    %3897 = vdwg.mxu0
    %v3898 = vadd.f32 %v3734, %v3895
    %v3899 = vsel %vm1313, %v3392, 0.0
    %v3900 = vsel %vm1313, %v3410, 0.0
    %v3902 = vsel %vm398, %v3899, 0
    %3904 = vmatprep.subr.mxu0 0.0
    %3905 = vmatpush1.xpose.msra.mxu0 0.0
    %3906 = vmatprep.subr.mxu0 0.0
    %3907 = vmatpush1.xpose.msra.mxu0 0.0
    %3908 = vmatprep.subr.mxu0 0.0
    %3909 = vmatpush1.xpose.msra.mxu0 0.0
    %3910 = vmatprep.subr.mxu0 0.0
    %3911 = vmatpush1.xpose.msra.mxu0 0.0
    %3912 = vmatprep.subr.mxu0 0.0
    %3913 = vmatpush1.xpose.msra.mxu0 0.0
    %3914 = vmatprep.subr.mxu0 0.0
    %3915 = vmatpush1.xpose.msra.mxu0 0.0
    %3916 = vmatprep.subr.mxu0 0.0
    %3917 = vmatpush1.xpose.msra.mxu0 0.0
    %3918 = vmatprep.subr.mxu0 0.0
    %3919 = vmatpush1.xpose.msra.mxu0 0.0
    %3920 = vmatprep.subr.mxu0 0.0
    %3921 = vmatpush1.xpose.msra.mxu0 0.0
    %3922 = vmatprep.subr.mxu0 0.0
    %3923 = vmatpush1.xpose.msra.mxu0 0.0
    %3924 = vmatprep.subr.mxu0 0.0
    %3925 = vmatpush1.xpose.msra.mxu0 0.0
    %3926 = vmatprep.subr.mxu0 0.0
    %3927 = vmatpush1.xpose.msra.mxu0 0.0
    %3928 = vmatprep.subr.mxu0 0.0
    %3929 = vmatpush1.xpose.msra.mxu0 0.0
    %3930 = vmatprep.subr.mxu0 0.0
    %3931 = vmatpush1.xpose.msra.mxu0 0.0
    %3932 = vmatprep.subr.mxu0 0.0
    %3933 = vmatpush1.xpose.msra.mxu0 0.0
    %3934 = vmatprep.subr.mxu0 0.0
    %3935 = vmatpush1.xpose.msra.mxu0 %v3418
    %3936 = vmatprep.subr.mxu0 0.0
    %3937 = vmatpush2.xpose.msra.mxu0 0.0
    %3938 = vmatprep.subr.mxu0 0.0
    %3939 = vmatpush2.xpose.msra.mxu0 0.0
    %3940 = vmatprep.subr.mxu0 0.0
    %3941 = vmatpush2.xpose.msra.mxu0 0.0
    %3942 = vmatprep.subr.mxu0 0.0
    %3943 = vmatpush2.xpose.msra.mxu0 0.0
    %3944 = vmatprep.subr.mxu0 0.0
    %3945 = vmatpush2.xpose.msra.mxu0 0.0
    %3946 = vmatprep.subr.mxu0 0.0
    %3947 = vmatpush2.xpose.msra.mxu0 0.0
    %3948 = vmatprep.subr.mxu0 0.0
    %3949 = vmatpush2.xpose.msra.mxu0 0.0
    %3950 = vmatprep.subr.mxu0 0.0
    %3951 = vmatpush2.xpose.msra.mxu0 0.0
    %3952 = vmatprep.subr.mxu0 0.0
    %3953 = vmatpush2.xpose.msra.mxu0 0.0
    %3954 = vmatprep.subr.mxu0 0.0
    %3955 = vmatpush2.xpose.msra.mxu0 0.0
    %3956 = vmatprep.subr.mxu0 0.0
    %3957 = vmatpush2.xpose.msra.mxu0 0.0
    %3958 = vmatprep.subr.mxu0 0.0
    %3959 = vmatpush2.xpose.msra.mxu0 0.0
    %3960 = vmatprep.subr.mxu0 0.0
    %3961 = vmatpush2.xpose.msra.mxu0 0.0
    %3962 = vmatprep.subr.mxu0 0.0
    %3963 = vmatpush2.xpose.msra.mxu0 0.0
    %3964 = vmatprep.subr.mxu0 0.0
    %3965 = vmatpush2.xpose.msra.mxu0 0.0
    %3966 = vmatprep.subr.mxu0 0.0
    %3967 = vmatpush2.xpose.msra.mxu0 0.0
    %3968 = vmatprep.mubr.f32.mxu0 0.0
    %3969 = vmatmul.mubr.f32.gmra.mxu0 %v3902
    %v3970 = vpop.f32.mrf.mxu0
    %v3971 = vadd.f32 0.0, %v3970
    %v3972 = vpop.f32.mrf.mxu0
    %3973 = vdwg.mxu0
    %v3974 = vmul.f32 %v3971, 0.35355338
    %v3975 = vadd.f32 %v3974, %v889
    %v3976 = vsel %vm891, %v3975, -inf
    %3977 = vmax.xlane.f32.xlu0 %v3976
    %v3978 = vpop.xlane.xlu0 %3977
    %v3979 = vsub.f32 %v3975, %v3978
    %v3980 = vmul.f32 %v3979, 1.442695
    %v3981 = vpow.pop %v3980
    %v3982 = vsel %vm891, %v3981, 0.0
    %3983 = vadd.xlane.f32.xlu0 %v3982
    %v3984 = vpop.xlane.xlu0 %3983
    %v3985 = vrcp.pop %v3984
    %v3986 = vmul.f32 %v3981, %v3985
    %v3988 = vsel %vm891, %v3986, 0
    %3990 = vmatprep.subr.mxu0 0.0
    %3991 = vmatpush1.msra.mxu0 0.0
    %3992 = vmatprep.subr.mxu0 0.0
    %3993 = vmatpush1.msra.mxu0 0.0
    %3994 = vmatprep.subr.mxu0 0.0
    %3995 = vmatpush1.msra.mxu0 0.0
    %3996 = vmatprep.subr.mxu0 0.0
    %3997 = vmatpush1.msra.mxu0 0.0
    %3998 = vmatprep.subr.mxu0 0.0
    %3999 = vmatpush1.msra.mxu0 0.0
    %4000 = vmatprep.subr.mxu0 0.0
    %4001 = vmatpush1.msra.mxu0 0.0
    %4002 = vmatprep.subr.mxu0 0.0
    %4003 = vmatpush1.msra.mxu0 0.0
    %4004 = vmatprep.subr.mxu0 0.0
    %4005 = vmatpush1.msra.mxu0 0.0
    %4006 = vmatprep.subr.mxu0 0.0
    %4007 = vmatpush1.msra.mxu0 0.0
    %4008 = vmatprep.subr.mxu0 0.0
    %4009 = vmatpush1.msra.mxu0 0.0
    %4010 = vmatprep.subr.mxu0 0.0
    %4011 = vmatpush1.msra.mxu0 0.0
    %4012 = vmatprep.subr.mxu0 0.0
    %4013 = vmatpush1.msra.mxu0 0.0
    %4014 = vmatprep.subr.mxu0 0.0
    %4015 = vmatpush1.msra.mxu0 0.0
    %4016 = vmatprep.subr.mxu0 0.0
    %4017 = vmatpush1.msra.mxu0 0.0
    %4018 = vmatprep.subr.mxu0 0.0
    %4019 = vmatpush1.msra.mxu0 0.0
    %4020 = vmatprep.subr.mxu0 0.0
    %4021 = vmatpush1.msra.mxu0 %v3900
    %4022 = vmatprep.subr.mxu0 0.0
    %4023 = vmatpush2.msra.mxu0 0.0
    %4024 = vmatprep.subr.mxu0 0.0
    %4025 = vmatpush2.msra.mxu0 0.0
    %4026 = vmatprep.subr.mxu0 0.0
    %4027 = vmatpush2.msra.mxu0 0.0
    %4028 = vmatprep.subr.mxu0 0.0
    %4029 = vmatpush2.msra.mxu0 0.0
    %4030 = vmatprep.subr.mxu0 0.0
    %4031 = vmatpush2.msra.mxu0 0.0
    %4032 = vmatprep.subr.mxu0 0.0
    %4033 = vmatpush2.msra.mxu0 0.0
    %4034 = vmatprep.subr.mxu0 0.0
    %4035 = vmatpush2.msra.mxu0 0.0
    %4036 = vmatprep.subr.mxu0 0.0
    %4037 = vmatpush2.msra.mxu0 0.0
    %4038 = vmatprep.subr.mxu0 0.0
    %4039 = vmatpush2.msra.mxu0 0.0
    %4040 = vmatprep.subr.mxu0 0.0
    %4041 = vmatpush2.msra.mxu0 0.0
    %4042 = vmatprep.subr.mxu0 0.0
    %4043 = vmatpush2.msra.mxu0 0.0
    %4044 = vmatprep.subr.mxu0 0.0
    %4045 = vmatpush2.msra.mxu0 0.0
    %4046 = vmatprep.subr.mxu0 0.0
    %4047 = vmatpush2.msra.mxu0 0.0
    %4048 = vmatprep.subr.mxu0 0.0
    %4049 = vmatpush2.msra.mxu0 0.0
    %4050 = vmatprep.subr.mxu0 0.0
    %4051 = vmatpush2.msra.mxu0 0.0
    %4052 = vmatprep.subr.mxu0 0.0
    %4053 = vmatpush2.msra.mxu0 0.0
    %4054 = vmatprep.mubr.f32.mxu0 0.0
    %4055 = vmatmul.mubr.f32.gmra.mxu0 %v3988
    %v4056 = vpop.f32.mrf.mxu0
    %v4057 = vadd.f32 0.0, %v4056
    %v4058 = vpop.f32.mrf.mxu0
    %4059 = vdwg.mxu0
    %v4060 = vadd.f32 %v3898, %v4057
    %v4062 = vlaneseq
    %v4063 = vshrl.u32 %v4062, 7
    %v4064 = vsub.s32 0, %v4063
    %v4065 = vrot.slane %v3406, %v4064
    %v4068 = vsel %vm398, %v4060, 0
    %4070 = vmatprep.subr.mxu0 0.0
    %4071 = vmatpush1.msra.mxu0 0.0
    %4072 = vmatprep.subr.mxu0 0.0
    %4073 = vmatpush1.msra.mxu0 0.0
    %4074 = vmatprep.subr.mxu0 0.0
    %4075 = vmatpush1.msra.mxu0 0.0
    %4076 = vmatprep.subr.mxu0 0.0
    %4077 = vmatpush1.msra.mxu0 0.0
    %4078 = vmatprep.subr.mxu0 0.0
    %4079 = vmatpush1.msra.mxu0 0.0
    %4080 = vmatprep.subr.mxu0 0.0
    %4081 = vmatpush1.msra.mxu0 0.0
    %4082 = vmatprep.subr.mxu0 0.0
    %4083 = vmatpush1.msra.mxu0 0.0
    %4084 = vmatprep.subr.mxu0 0.0
    %4085 = vmatpush1.msra.mxu0 0.0
    %4086 = vmatprep.subr.mxu0 0.0
    %4087 = vmatpush1.msra.mxu0 0.0
    %4088 = vmatprep.subr.mxu0 0.0
    %4089 = vmatpush1.msra.mxu0 0.0
    %4090 = vmatprep.subr.mxu0 0.0
    %4091 = vmatpush1.msra.mxu0 0.0
    %4092 = vmatprep.subr.mxu0 0.0
    %4093 = vmatpush1.msra.mxu0 0.0
    %4094 = vmatprep.subr.mxu0 0.0
    %4095 = vmatpush1.msra.mxu0 %v3404
    %4096 = vmatprep.subr.mxu0 0.0
    %4097 = vmatpush1.msra.mxu0 %v3403
    %4098 = vmatprep.subr.mxu0 0.0
    %4099 = vmatpush1.msra.mxu0 %v3402
    %4100 = vmatprep.subr.mxu0 0.0
    %4101 = vmatpush1.msra.mxu0 %v3401
    %4102 = vmatprep.subr.mxu0 0.0
    %4103 = vmatpush2.msra.mxu0 0.0
    %4104 = vmatprep.subr.mxu0 0.0
    %4105 = vmatpush2.msra.mxu0 0.0
    %4106 = vmatprep.subr.mxu0 0.0
    %4107 = vmatpush2.msra.mxu0 0.0
    %4108 = vmatprep.subr.mxu0 0.0
    %4109 = vmatpush2.msra.mxu0 0.0
    %4110 = vmatprep.subr.mxu0 0.0
    %4111 = vmatpush2.msra.mxu0 0.0
    %4112 = vmatprep.subr.mxu0 0.0
    %4113 = vmatpush2.msra.mxu0 0.0
    %4114 = vmatprep.subr.mxu0 0.0
    %4115 = vmatpush2.msra.mxu0 0.0
    %4116 = vmatprep.subr.mxu0 0.0
    %4117 = vmatpush2.msra.mxu0 0.0
    %4118 = vmatprep.subr.mxu0 0.0
    %4119 = vmatpush2.msra.mxu0 0.0
    %4120 = vmatprep.subr.mxu0 0.0
    %4121 = vmatpush2.msra.mxu0 0.0
    %4122 = vmatprep.subr.mxu0 0.0
    %4123 = vmatpush2.msra.mxu0 0.0
    %4124 = vmatprep.subr.mxu0 0.0
    %4125 = vmatpush2.msra.mxu0 0.0
    %4126 = vmatprep.subr.mxu0 0.0
    %4127 = vmatpush2.msra.mxu0 0.0
    %4128 = vmatprep.subr.mxu0 0.0
    %4129 = vmatpush2.msra.mxu0 0.0
    %4130 = vmatprep.subr.mxu0 0.0
    %4131 = vmatpush2.msra.mxu0 0.0
    %4132 = vmatprep.subr.mxu0 0.0
    %4133 = vmatpush2.msra.mxu0 0.0
    %4134 = vmatprep.mubr.f32.mxu0 0.0
    %4135 = vmatmul.mubr.f32.gmra.mxu0 %v4068
    %v4136 = vpop.f32.mrf.mxu0
    %v4137 = vadd.f32 %v4065, %v4136
    %v4138 = vpop.f32.mrf.mxu0
    %4139 = vdwg.mxu0
    %4140 = vst.msk [vmem:[#allocation2] sm:$0xff] %vm398, %v4137
    %v4141 = vsel %vm801, %v3397, 0.0
    %4143 = vrot.lane.b32.xlu0 %v3397, 64
    %v4144 = vpop.permute.xlu0 %4143
    %v4146 = vsel %vm801, %v4144, 0.0
    %4147 = vrot.lane.b32.xlu0 %v3397, 96
    %v4148 = vpop.permute.xlu0 %4147
    %v4150 = vsel %vm398, %v4141, 0
    %v4152 = vsel %vm398, %v4148, 0
    %4154 = vmatprep.subr.mxu0 0.0
    %4155 = vmatpush1.xpose.msra.mxu0 0.0
    %4156 = vmatprep.subr.mxu0 0.0
    %4157 = vmatpush1.xpose.msra.mxu0 0.0
    %4158 = vmatprep.subr.mxu0 0.0
    %4159 = vmatpush1.xpose.msra.mxu0 0.0
    %4160 = vmatprep.subr.mxu0 0.0
    %4161 = vmatpush1.xpose.msra.mxu0 0.0
    %4162 = vmatprep.subr.mxu0 0.0
    %4163 = vmatpush1.xpose.msra.mxu0 0.0
    %4164 = vmatprep.subr.mxu0 0.0
    %4165 = vmatpush1.xpose.msra.mxu0 0.0
    %4166 = vmatprep.subr.mxu0 0.0
    %4167 = vmatpush1.xpose.msra.mxu0 0.0
    %4168 = vmatprep.subr.mxu0 0.0
    %4169 = vmatpush1.xpose.msra.mxu0 0.0
    %4170 = vmatprep.subr.mxu0 0.0
    %4171 = vmatpush1.xpose.msra.mxu0 0.0
    %4172 = vmatprep.subr.mxu0 0.0
    %4173 = vmatpush1.xpose.msra.mxu0 0.0
    %4174 = vmatprep.subr.mxu0 0.0
    %4175 = vmatpush1.xpose.msra.mxu0 0.0
    %4176 = vmatprep.subr.mxu0 0.0
    %4177 = vmatpush1.xpose.msra.mxu0 0.0
    %4178 = vmatprep.subr.mxu0 0.0
    %4179 = vmatpush1.xpose.msra.mxu0 0.0
    %4180 = vmatprep.subr.mxu0 0.0
    %4181 = vmatpush1.xpose.msra.mxu0 0.0
    %4182 = vmatprep.subr.mxu0 0.0
    %4183 = vmatpush1.xpose.msra.mxu0 0.0
    %4184 = vmatprep.subr.mxu0 0.0
    %4185 = vmatpush1.xpose.msra.mxu0 %v4152
    %4186 = vmatprep.subr.mxu0 0.0
    %4187 = vmatpush2.xpose.msra.mxu0 0.0
    %4188 = vmatprep.subr.mxu0 0.0
    %4189 = vmatpush2.xpose.msra.mxu0 0.0
    %4190 = vmatprep.subr.mxu0 0.0
    %4191 = vmatpush2.xpose.msra.mxu0 0.0
    %4192 = vmatprep.subr.mxu0 0.0
    %4193 = vmatpush2.xpose.msra.mxu0 0.0
    %4194 = vmatprep.subr.mxu0 0.0
    %4195 = vmatpush2.xpose.msra.mxu0 0.0
    %4196 = vmatprep.subr.mxu0 0.0
    %4197 = vmatpush2.xpose.msra.mxu0 0.0
    %4198 = vmatprep.subr.mxu0 0.0
    %4199 = vmatpush2.xpose.msra.mxu0 0.0
    %4200 = vmatprep.subr.mxu0 0.0
    %4201 = vmatpush2.xpose.msra.mxu0 0.0
    %4202 = vmatprep.subr.mxu0 0.0
    %4203 = vmatpush2.xpose.msra.mxu0 0.0
    %4204 = vmatprep.subr.mxu0 0.0
    %4205 = vmatpush2.xpose.msra.mxu0 0.0
    %4206 = vmatprep.subr.mxu0 0.0
    %4207 = vmatpush2.xpose.msra.mxu0 0.0
    %4208 = vmatprep.subr.mxu0 0.0
    %4209 = vmatpush2.xpose.msra.mxu0 0.0
    %4210 = vmatprep.subr.mxu0 0.0
    %4211 = vmatpush2.xpose.msra.mxu0 0.0
    %4212 = vmatprep.subr.mxu0 0.0
    %4213 = vmatpush2.xpose.msra.mxu0 0.0
    %4214 = vmatprep.subr.mxu0 0.0
    %4215 = vmatpush2.xpose.msra.mxu0 0.0
    %4216 = vmatprep.subr.mxu0 0.0
    %4217 = vmatpush2.xpose.msra.mxu0 0.0
    %4218 = vmatprep.mubr.f32.mxu0 0.0
    %4219 = vmatmul.mubr.f32.gmra.mxu0 %v4150
    %v4220 = vpop.f32.mrf.mxu0
    %v4221 = vadd.f32 0.0, %v4220
    %v4222 = vpop.f32.mrf.mxu0
    %4223 = vdwg.mxu0
    %v4224 = vmul.f32 %v4221, 0.35355338
    %v4225 = vadd.f32 %v4224, %v1643
    %v4226 = vsel %vm891, %v4225, -inf
    %4227 = vmax.xlane.f32.xlu0 %v4226
    %v4228 = vpop.xlane.xlu0 %4227
    %v4229 = vsub.f32 %v4225, %v4228
    %v4230 = vmul.f32 %v4229, 1.442695
    %v4231 = vpow.pop %v4230
    %v4232 = vsel %vm891, %v4231, 0.0
    %4233 = vadd.xlane.f32.xlu0 %v4232
    %v4234 = vpop.xlane.xlu0 %4233
    %v4235 = vrcp.pop %v4234
    %v4236 = vmul.f32 %v4231, %v4235
    %v4237 = vsel %vm907, %v3397, 0.0
    %v4238 = vsel %vm907, %v4144, 0.0
    %v4240 = vsel %vm398, %v4237, 0
    %4242 = vmatprep.subr.mxu0 0.0
    %4243 = vmatpush1.xpose.msra.mxu0 0.0
    %4244 = vmatprep.subr.mxu0 0.0
    %4245 = vmatpush1.xpose.msra.mxu0 0.0
    %4246 = vmatprep.subr.mxu0 0.0
    %4247 = vmatpush1.xpose.msra.mxu0 0.0
    %4248 = vmatprep.subr.mxu0 0.0
    %4249 = vmatpush1.xpose.msra.mxu0 0.0
    %4250 = vmatprep.subr.mxu0 0.0
    %4251 = vmatpush1.xpose.msra.mxu0 0.0
    %4252 = vmatprep.subr.mxu0 0.0
    %4253 = vmatpush1.xpose.msra.mxu0 0.0
    %4254 = vmatprep.subr.mxu0 0.0
    %4255 = vmatpush1.xpose.msra.mxu0 0.0
    %4256 = vmatprep.subr.mxu0 0.0
    %4257 = vmatpush1.xpose.msra.mxu0 0.0
    %4258 = vmatprep.subr.mxu0 0.0
    %4259 = vmatpush1.xpose.msra.mxu0 0.0
    %4260 = vmatprep.subr.mxu0 0.0
    %4261 = vmatpush1.xpose.msra.mxu0 0.0
    %4262 = vmatprep.subr.mxu0 0.0
    %4263 = vmatpush1.xpose.msra.mxu0 0.0
    %4264 = vmatprep.subr.mxu0 0.0
    %4265 = vmatpush1.xpose.msra.mxu0 0.0
    %4266 = vmatprep.subr.mxu0 0.0
    %4267 = vmatpush1.xpose.msra.mxu0 0.0
    %4268 = vmatprep.subr.mxu0 0.0
    %4269 = vmatpush1.xpose.msra.mxu0 0.0
    %4270 = vmatprep.subr.mxu0 0.0
    %4271 = vmatpush1.xpose.msra.mxu0 0.0
    %4272 = vmatprep.subr.mxu0 0.0
    %4273 = vmatpush1.xpose.msra.mxu0 %v4152
    %4274 = vmatprep.subr.mxu0 0.0
    %4275 = vmatpush2.xpose.msra.mxu0 0.0
    %4276 = vmatprep.subr.mxu0 0.0
    %4277 = vmatpush2.xpose.msra.mxu0 0.0
    %4278 = vmatprep.subr.mxu0 0.0
    %4279 = vmatpush2.xpose.msra.mxu0 0.0
    %4280 = vmatprep.subr.mxu0 0.0
    %4281 = vmatpush2.xpose.msra.mxu0 0.0
    %4282 = vmatprep.subr.mxu0 0.0
    %4283 = vmatpush2.xpose.msra.mxu0 0.0
    %4284 = vmatprep.subr.mxu0 0.0
    %4285 = vmatpush2.xpose.msra.mxu0 0.0
    %4286 = vmatprep.subr.mxu0 0.0
    %4287 = vmatpush2.xpose.msra.mxu0 0.0
    %4288 = vmatprep.subr.mxu0 0.0
    %4289 = vmatpush2.xpose.msra.mxu0 0.0
    %4290 = vmatprep.subr.mxu0 0.0
    %4291 = vmatpush2.xpose.msra.mxu0 0.0
    %4292 = vmatprep.subr.mxu0 0.0
    %4293 = vmatpush2.xpose.msra.mxu0 0.0
    %4294 = vmatprep.subr.mxu0 0.0
    %4295 = vmatpush2.xpose.msra.mxu0 0.0
    %4296 = vmatprep.subr.mxu0 0.0
    %4297 = vmatpush2.xpose.msra.mxu0 0.0
    %4298 = vmatprep.subr.mxu0 0.0
    %4299 = vmatpush2.xpose.msra.mxu0 0.0
    %4300 = vmatprep.subr.mxu0 0.0
    %4301 = vmatpush2.xpose.msra.mxu0 0.0
    %4302 = vmatprep.subr.mxu0 0.0
    %4303 = vmatpush2.xpose.msra.mxu0 0.0
    %4304 = vmatprep.subr.mxu0 0.0
    %4305 = vmatpush2.xpose.msra.mxu0 0.0
    %4306 = vmatprep.mubr.f32.mxu0 0.0
    %4307 = vmatmul.mubr.f32.gmra.mxu0 %v4240
    %v4308 = vpop.f32.mrf.mxu0
    %v4309 = vadd.f32 0.0, %v4308
    %v4310 = vpop.f32.mrf.mxu0
    %4311 = vdwg.mxu0
    %v4312 = vmul.f32 %v4309, 0.35355338
    %v4313 = vadd.f32 %v4312, %v1643
    %v4314 = vsel %vm891, %v4313, -inf
    %4315 = vmax.xlane.f32.xlu0 %v4314
    %v4316 = vpop.xlane.xlu0 %4315
    %v4317 = vsub.f32 %v4313, %v4316
    %v4318 = vmul.f32 %v4317, 1.442695
    %v4319 = vpow.pop %v4318
    %v4320 = vsel %vm891, %v4319, 0.0
    %4321 = vadd.xlane.f32.xlu0 %v4320
    %v4322 = vpop.xlane.xlu0 %4321
    %v4323 = vrcp.pop %v4322
    %v4324 = vmul.f32 %v4319, %v4323
    %v4326 = vsel %vm891, %v4324, 0
    %4328 = vmatprep.subr.mxu0 0.0
    %4329 = vmatpush1.msra.mxu0 0.0
    %4330 = vmatprep.subr.mxu0 0.0
    %4331 = vmatpush1.msra.mxu0 0.0
    %4332 = vmatprep.subr.mxu0 0.0
    %4333 = vmatpush1.msra.mxu0 0.0
    %4334 = vmatprep.subr.mxu0 0.0
    %4335 = vmatpush1.msra.mxu0 0.0
    %4336 = vmatprep.subr.mxu0 0.0
    %4337 = vmatpush1.msra.mxu0 0.0
    %4338 = vmatprep.subr.mxu0 0.0
    %4339 = vmatpush1.msra.mxu0 0.0
    %4340 = vmatprep.subr.mxu0 0.0
    %4341 = vmatpush1.msra.mxu0 0.0
    %4342 = vmatprep.subr.mxu0 0.0
    %4343 = vmatpush1.msra.mxu0 0.0
    %4344 = vmatprep.subr.mxu0 0.0
    %4345 = vmatpush1.msra.mxu0 0.0
    %4346 = vmatprep.subr.mxu0 0.0
    %4347 = vmatpush1.msra.mxu0 0.0
    %4348 = vmatprep.subr.mxu0 0.0
    %4349 = vmatpush1.msra.mxu0 0.0
    %4350 = vmatprep.subr.mxu0 0.0
    %4351 = vmatpush1.msra.mxu0 0.0
    %4352 = vmatprep.subr.mxu0 0.0
    %4353 = vmatpush1.msra.mxu0 0.0
    %4354 = vmatprep.subr.mxu0 0.0
    %4355 = vmatpush1.msra.mxu0 0.0
    %4356 = vmatprep.subr.mxu0 0.0
    %4357 = vmatpush1.msra.mxu0 0.0
    %4358 = vmatprep.subr.mxu0 0.0
    %4359 = vmatpush1.msra.mxu0 %v4238
    %4360 = vmatprep.subr.mxu0 0.0
    %4361 = vmatpush2.msra.mxu0 0.0
    %4362 = vmatprep.subr.mxu0 0.0
    %4363 = vmatpush2.msra.mxu0 0.0
    %4364 = vmatprep.subr.mxu0 0.0
    %4365 = vmatpush2.msra.mxu0 0.0
    %4366 = vmatprep.subr.mxu0 0.0
    %4367 = vmatpush2.msra.mxu0 0.0
    %4368 = vmatprep.subr.mxu0 0.0
    %4369 = vmatpush2.msra.mxu0 0.0
    %4370 = vmatprep.subr.mxu0 0.0
    %4371 = vmatpush2.msra.mxu0 0.0
    %4372 = vmatprep.subr.mxu0 0.0
    %4373 = vmatpush2.msra.mxu0 0.0
    %4374 = vmatprep.subr.mxu0 0.0
    %4375 = vmatpush2.msra.mxu0 0.0
    %4376 = vmatprep.subr.mxu0 0.0
    %4377 = vmatpush2.msra.mxu0 0.0
    %4378 = vmatprep.subr.mxu0 0.0
    %4379 = vmatpush2.msra.mxu0 0.0
    %4380 = vmatprep.subr.mxu0 0.0
    %4381 = vmatpush2.msra.mxu0 0.0
    %4382 = vmatprep.subr.mxu0 0.0
    %4383 = vmatpush2.msra.mxu0 0.0
    %4384 = vmatprep.subr.mxu0 0.0
    %4385 = vmatpush2.msra.mxu0 0.0
    %4386 = vmatprep.subr.mxu0 0.0
    %4387 = vmatpush2.msra.mxu0 0.0
    %4388 = vmatprep.subr.mxu0 0.0
    %4389 = vmatpush2.msra.mxu0 0.0
    %4390 = vmatprep.subr.mxu0 0.0
    %4391 = vmatpush2.msra.mxu0 0.0
    %4392 = vmatprep.mubr.f32.mxu0 0.0
    %4393 = vmatmul.mubr.f32.gmra.mxu0 %v4326
    %v4394 = vpop.f32.mrf.mxu0
    %v4395 = vadd.f32 0.0, %v4394
    %v4396 = vpop.f32.mrf.mxu0
    %4397 = vdwg.mxu0
    %v4399 = vsel %vm891, %v4236, 0
    %4401 = vmatprep.subr.mxu0 0.0
    %4402 = vmatpush1.msra.mxu0 0.0
    %4403 = vmatprep.subr.mxu0 0.0
    %4404 = vmatpush1.msra.mxu0 0.0
    %4405 = vmatprep.subr.mxu0 0.0
    %4406 = vmatpush1.msra.mxu0 0.0
    %4407 = vmatprep.subr.mxu0 0.0
    %4408 = vmatpush1.msra.mxu0 0.0
    %4409 = vmatprep.subr.mxu0 0.0
    %4410 = vmatpush1.msra.mxu0 0.0
    %4411 = vmatprep.subr.mxu0 0.0
    %4412 = vmatpush1.msra.mxu0 0.0
    %4413 = vmatprep.subr.mxu0 0.0
    %4414 = vmatpush1.msra.mxu0 0.0
    %4415 = vmatprep.subr.mxu0 0.0
    %4416 = vmatpush1.msra.mxu0 0.0
    %4417 = vmatprep.subr.mxu0 0.0
    %4418 = vmatpush1.msra.mxu0 0.0
    %4419 = vmatprep.subr.mxu0 0.0
    %4420 = vmatpush1.msra.mxu0 0.0
    %4421 = vmatprep.subr.mxu0 0.0
    %4422 = vmatpush1.msra.mxu0 0.0
    %4423 = vmatprep.subr.mxu0 0.0
    %4424 = vmatpush1.msra.mxu0 0.0
    %4425 = vmatprep.subr.mxu0 0.0
    %4426 = vmatpush1.msra.mxu0 0.0
    %4427 = vmatprep.subr.mxu0 0.0
    %4428 = vmatpush1.msra.mxu0 0.0
    %4429 = vmatprep.subr.mxu0 0.0
    %4430 = vmatpush1.msra.mxu0 0.0
    %4431 = vmatprep.subr.mxu0 0.0
    %4432 = vmatpush1.msra.mxu0 %v4146
    %4433 = vmatprep.subr.mxu0 0.0
    %4434 = vmatpush2.msra.mxu0 0.0
    %4435 = vmatprep.subr.mxu0 0.0
    %4436 = vmatpush2.msra.mxu0 0.0
    %4437 = vmatprep.subr.mxu0 0.0
    %4438 = vmatpush2.msra.mxu0 0.0
    %4439 = vmatprep.subr.mxu0 0.0
    %4440 = vmatpush2.msra.mxu0 0.0
    %4441 = vmatprep.subr.mxu0 0.0
    %4442 = vmatpush2.msra.mxu0 0.0
    %4443 = vmatprep.subr.mxu0 0.0
    %4444 = vmatpush2.msra.mxu0 0.0
    %4445 = vmatprep.subr.mxu0 0.0
    %4446 = vmatpush2.msra.mxu0 0.0
    %4447 = vmatprep.subr.mxu0 0.0
    %4448 = vmatpush2.msra.mxu0 0.0
    %4449 = vmatprep.subr.mxu0 0.0
    %4450 = vmatpush2.msra.mxu0 0.0
    %4451 = vmatprep.subr.mxu0 0.0
    %4452 = vmatpush2.msra.mxu0 0.0
    %4453 = vmatprep.subr.mxu0 0.0
    %4454 = vmatpush2.msra.mxu0 0.0
    %4455 = vmatprep.subr.mxu0 0.0
    %4456 = vmatpush2.msra.mxu0 0.0
    %4457 = vmatprep.subr.mxu0 0.0
    %4458 = vmatpush2.msra.mxu0 0.0
    %4459 = vmatprep.subr.mxu0 0.0
    %4460 = vmatpush2.msra.mxu0 0.0
    %4461 = vmatprep.subr.mxu0 0.0
    %4462 = vmatpush2.msra.mxu0 0.0
    %4463 = vmatprep.subr.mxu0 0.0
    %4464 = vmatpush2.msra.mxu0 0.0
    %4465 = vmatprep.mubr.f32.mxu0 0.0
    %4466 = vmatmul.mubr.f32.gmra.mxu0 %v4399
    %v4467 = vpop.f32.mrf.mxu0
    %v4468 = vadd.f32 %v4395, %v4467
    %v4469 = vpop.f32.mrf.mxu0
    %4470 = vdwg.mxu0
    %v4471 = vsel %vm1146, %v3397, 0.0
    %v4472 = vsel %vm1146, %v4144, 0.0
    %v4474 = vsel %vm398, %v4471, 0
    %4476 = vmatprep.subr.mxu0 0.0
    %4477 = vmatpush1.xpose.msra.mxu0 0.0
    %4478 = vmatprep.subr.mxu0 0.0
    %4479 = vmatpush1.xpose.msra.mxu0 0.0
    %4480 = vmatprep.subr.mxu0 0.0
    %4481 = vmatpush1.xpose.msra.mxu0 0.0
    %4482 = vmatprep.subr.mxu0 0.0
    %4483 = vmatpush1.xpose.msra.mxu0 0.0
    %4484 = vmatprep.subr.mxu0 0.0
    %4485 = vmatpush1.xpose.msra.mxu0 0.0
    %4486 = vmatprep.subr.mxu0 0.0
    %4487 = vmatpush1.xpose.msra.mxu0 0.0
    %4488 = vmatprep.subr.mxu0 0.0
    %4489 = vmatpush1.xpose.msra.mxu0 0.0
    %4490 = vmatprep.subr.mxu0 0.0
    %4491 = vmatpush1.xpose.msra.mxu0 0.0
    %4492 = vmatprep.subr.mxu0 0.0
    %4493 = vmatpush1.xpose.msra.mxu0 0.0
    %4494 = vmatprep.subr.mxu0 0.0
    %4495 = vmatpush1.xpose.msra.mxu0 0.0
    %4496 = vmatprep.subr.mxu0 0.0
    %4497 = vmatpush1.xpose.msra.mxu0 0.0
    %4498 = vmatprep.subr.mxu0 0.0
    %4499 = vmatpush1.xpose.msra.mxu0 0.0
    %4500 = vmatprep.subr.mxu0 0.0
    %4501 = vmatpush1.xpose.msra.mxu0 0.0
    %4502 = vmatprep.subr.mxu0 0.0
    %4503 = vmatpush1.xpose.msra.mxu0 0.0
    %4504 = vmatprep.subr.mxu0 0.0
    %4505 = vmatpush1.xpose.msra.mxu0 0.0
    %4506 = vmatprep.subr.mxu0 0.0
    %4507 = vmatpush1.xpose.msra.mxu0 %v4152
    %4508 = vmatprep.subr.mxu0 0.0
    %4509 = vmatpush2.xpose.msra.mxu0 0.0
    %4510 = vmatprep.subr.mxu0 0.0
    %4511 = vmatpush2.xpose.msra.mxu0 0.0
    %4512 = vmatprep.subr.mxu0 0.0
    %4513 = vmatpush2.xpose.msra.mxu0 0.0
    %4514 = vmatprep.subr.mxu0 0.0
    %4515 = vmatpush2.xpose.msra.mxu0 0.0
    %4516 = vmatprep.subr.mxu0 0.0
    %4517 = vmatpush2.xpose.msra.mxu0 0.0
    %4518 = vmatprep.subr.mxu0 0.0
    %4519 = vmatpush2.xpose.msra.mxu0 0.0
    %4520 = vmatprep.subr.mxu0 0.0
    %4521 = vmatpush2.xpose.msra.mxu0 0.0
    %4522 = vmatprep.subr.mxu0 0.0
    %4523 = vmatpush2.xpose.msra.mxu0 0.0
    %4524 = vmatprep.subr.mxu0 0.0
    %4525 = vmatpush2.xpose.msra.mxu0 0.0
    %4526 = vmatprep.subr.mxu0 0.0
    %4527 = vmatpush2.xpose.msra.mxu0 0.0
    %4528 = vmatprep.subr.mxu0 0.0
    %4529 = vmatpush2.xpose.msra.mxu0 0.0
    %4530 = vmatprep.subr.mxu0 0.0
    %4531 = vmatpush2.xpose.msra.mxu0 0.0
    %4532 = vmatprep.subr.mxu0 0.0
    %4533 = vmatpush2.xpose.msra.mxu0 0.0
    %4534 = vmatprep.subr.mxu0 0.0
    %4535 = vmatpush2.xpose.msra.mxu0 0.0
    %4536 = vmatprep.subr.mxu0 0.0
    %4537 = vmatpush2.xpose.msra.mxu0 0.0
    %4538 = vmatprep.subr.mxu0 0.0
    %4539 = vmatpush2.xpose.msra.mxu0 0.0
    %4540 = vmatprep.mubr.f32.mxu0 0.0
    %4541 = vmatmul.mubr.f32.gmra.mxu0 %v4474
    %v4542 = vpop.f32.mrf.mxu0
    %v4543 = vadd.f32 0.0, %v4542
    %v4544 = vpop.f32.mrf.mxu0
    %4545 = vdwg.mxu0
    %v4546 = vmul.f32 %v4543, 0.35355338
    %v4547 = vadd.f32 %v4546, %v1643
    %v4548 = vsel %vm891, %v4547, -inf
    %4549 = vmax.xlane.f32.xlu0 %v4548
    %v4550 = vpop.xlane.xlu0 %4549
    %v4551 = vsub.f32 %v4547, %v4550
    %v4552 = vmul.f32 %v4551, 1.442695
    %v4553 = vpow.pop %v4552
    %v4554 = vsel %vm891, %v4553, 0.0
    %4555 = vadd.xlane.f32.xlu0 %v4554
    %v4556 = vpop.xlane.xlu0 %4555
    %v4557 = vrcp.pop %v4556
    %v4558 = vmul.f32 %v4553, %v4557
    %v4560 = vsel %vm891, %v4558, 0
    %4562 = vmatprep.subr.mxu0 0.0
    %4563 = vmatpush1.msra.mxu0 0.0
    %4564 = vmatprep.subr.mxu0 0.0
    %4565 = vmatpush1.msra.mxu0 0.0
    %4566 = vmatprep.subr.mxu0 0.0
    %4567 = vmatpush1.msra.mxu0 0.0
    %4568 = vmatprep.subr.mxu0 0.0
    %4569 = vmatpush1.msra.mxu0 0.0
    %4570 = vmatprep.subr.mxu0 0.0
    %4571 = vmatpush1.msra.mxu0 0.0
    %4572 = vmatprep.subr.mxu0 0.0
    %4573 = vmatpush1.msra.mxu0 0.0
    %4574 = vmatprep.subr.mxu0 0.0
    %4575 = vmatpush1.msra.mxu0 0.0
    %4576 = vmatprep.subr.mxu0 0.0
    %4577 = vmatpush1.msra.mxu0 0.0
    %4578 = vmatprep.subr.mxu0 0.0
    %4579 = vmatpush1.msra.mxu0 0.0
    %4580 = vmatprep.subr.mxu0 0.0
    %4581 = vmatpush1.msra.mxu0 0.0
    %4582 = vmatprep.subr.mxu0 0.0
    %4583 = vmatpush1.msra.mxu0 0.0
    %4584 = vmatprep.subr.mxu0 0.0
    %4585 = vmatpush1.msra.mxu0 0.0
    %4586 = vmatprep.subr.mxu0 0.0
    %4587 = vmatpush1.msra.mxu0 0.0
    %4588 = vmatprep.subr.mxu0 0.0
    %4589 = vmatpush1.msra.mxu0 0.0
    %4590 = vmatprep.subr.mxu0 0.0
    %4591 = vmatpush1.msra.mxu0 0.0
    %4592 = vmatprep.subr.mxu0 0.0
    %4593 = vmatpush1.msra.mxu0 %v4472
    %4594 = vmatprep.subr.mxu0 0.0
    %4595 = vmatpush2.msra.mxu0 0.0
    %4596 = vmatprep.subr.mxu0 0.0
    %4597 = vmatpush2.msra.mxu0 0.0
    %4598 = vmatprep.subr.mxu0 0.0
    %4599 = vmatpush2.msra.mxu0 0.0
    %4600 = vmatprep.subr.mxu0 0.0
    %4601 = vmatpush2.msra.mxu0 0.0
    %4602 = vmatprep.subr.mxu0 0.0
    %4603 = vmatpush2.msra.mxu0 0.0
    %4604 = vmatprep.subr.mxu0 0.0
    %4605 = vmatpush2.msra.mxu0 0.0
    %4606 = vmatprep.subr.mxu0 0.0
    %4607 = vmatpush2.msra.mxu0 0.0
    %4608 = vmatprep.subr.mxu0 0.0
    %4609 = vmatpush2.msra.mxu0 0.0
    %4610 = vmatprep.subr.mxu0 0.0
    %4611 = vmatpush2.msra.mxu0 0.0
    %4612 = vmatprep.subr.mxu0 0.0
    %4613 = vmatpush2.msra.mxu0 0.0
    %4614 = vmatprep.subr.mxu0 0.0
    %4615 = vmatpush2.msra.mxu0 0.0
    %4616 = vmatprep.subr.mxu0 0.0
    %4617 = vmatpush2.msra.mxu0 0.0
    %4618 = vmatprep.subr.mxu0 0.0
    %4619 = vmatpush2.msra.mxu0 0.0
    %4620 = vmatprep.subr.mxu0 0.0
    %4621 = vmatpush2.msra.mxu0 0.0
    %4622 = vmatprep.subr.mxu0 0.0
    %4623 = vmatpush2.msra.mxu0 0.0
    %4624 = vmatprep.subr.mxu0 0.0
    %4625 = vmatpush2.msra.mxu0 0.0
    %4626 = vmatprep.mubr.f32.mxu0 0.0
    %4627 = vmatmul.mubr.f32.gmra.mxu0 %v4560
    %v4628 = vpop.f32.mrf.mxu0
    %v4629 = vadd.f32 0.0, %v4628
    %v4630 = vpop.f32.mrf.mxu0
    %4631 = vdwg.mxu0
    %v4632 = vadd.f32 %v4468, %v4629
    %v4633 = vsel %vm1313, %v3397, 0.0
    %v4634 = vsel %vm1313, %v4144, 0.0
    %v4636 = vsel %vm398, %v4633, 0
    %4638 = vmatprep.subr.mxu0 0.0
    %4639 = vmatpush1.xpose.msra.mxu0 0.0
    %4640 = vmatprep.subr.mxu0 0.0
    %4641 = vmatpush1.xpose.msra.mxu0 0.0
    %4642 = vmatprep.subr.mxu0 0.0
    %4643 = vmatpush1.xpose.msra.mxu0 0.0
    %4644 = vmatprep.subr.mxu0 0.0
    %4645 = vmatpush1.xpose.msra.mxu0 0.0
    %4646 = vmatprep.subr.mxu0 0.0
    %4647 = vmatpush1.xpose.msra.mxu0 0.0
    %4648 = vmatprep.subr.mxu0 0.0
    %4649 = vmatpush1.xpose.msra.mxu0 0.0
    %4650 = vmatprep.subr.mxu0 0.0
    %4651 = vmatpush1.xpose.msra.mxu0 0.0
    %4652 = vmatprep.subr.mxu0 0.0
    %4653 = vmatpush1.xpose.msra.mxu0 0.0
    %4654 = vmatprep.subr.mxu0 0.0
    %4655 = vmatpush1.xpose.msra.mxu0 0.0
    %4656 = vmatprep.subr.mxu0 0.0
    %4657 = vmatpush1.xpose.msra.mxu0 0.0
    %4658 = vmatprep.subr.mxu0 0.0
    %4659 = vmatpush1.xpose.msra.mxu0 0.0
    %4660 = vmatprep.subr.mxu0 0.0
    %4661 = vmatpush1.xpose.msra.mxu0 0.0
    %4662 = vmatprep.subr.mxu0 0.0
    %4663 = vmatpush1.xpose.msra.mxu0 0.0
    %4664 = vmatprep.subr.mxu0 0.0
    %4665 = vmatpush1.xpose.msra.mxu0 0.0
    %4666 = vmatprep.subr.mxu0 0.0
    %4667 = vmatpush1.xpose.msra.mxu0 0.0
    %4668 = vmatprep.subr.mxu0 0.0
    %4669 = vmatpush1.xpose.msra.mxu0 %v4152
    %4670 = vmatprep.subr.mxu0 0.0
    %4671 = vmatpush2.xpose.msra.mxu0 0.0
    %4672 = vmatprep.subr.mxu0 0.0
    %4673 = vmatpush2.xpose.msra.mxu0 0.0
    %4674 = vmatprep.subr.mxu0 0.0
    %4675 = vmatpush2.xpose.msra.mxu0 0.0
    %4676 = vmatprep.subr.mxu0 0.0
    %4677 = vmatpush2.xpose.msra.mxu0 0.0
    %4678 = vmatprep.subr.mxu0 0.0
    %4679 = vmatpush2.xpose.msra.mxu0 0.0
    %4680 = vmatprep.subr.mxu0 0.0
    %4681 = vmatpush2.xpose.msra.mxu0 0.0
    %4682 = vmatprep.subr.mxu0 0.0
    %4683 = vmatpush2.xpose.msra.mxu0 0.0
    %4684 = vmatprep.subr.mxu0 0.0
    %4685 = vmatpush2.xpose.msra.mxu0 0.0
    %4686 = vmatprep.subr.mxu0 0.0
    %4687 = vmatpush2.xpose.msra.mxu0 0.0
    %4688 = vmatprep.subr.mxu0 0.0
    %4689 = vmatpush2.xpose.msra.mxu0 0.0
    %4690 = vmatprep.subr.mxu0 0.0
    %4691 = vmatpush2.xpose.msra.mxu0 0.0
    %4692 = vmatprep.subr.mxu0 0.0
    %4693 = vmatpush2.xpose.msra.mxu0 0.0
    %4694 = vmatprep.subr.mxu0 0.0
    %4695 = vmatpush2.xpose.msra.mxu0 0.0
    %4696 = vmatprep.subr.mxu0 0.0
    %4697 = vmatpush2.xpose.msra.mxu0 0.0
    %4698 = vmatprep.subr.mxu0 0.0
    %4699 = vmatpush2.xpose.msra.mxu0 0.0
    %4700 = vmatprep.subr.mxu0 0.0
    %4701 = vmatpush2.xpose.msra.mxu0 0.0
    %4702 = vmatprep.mubr.f32.mxu0 0.0
    %4703 = vmatmul.mubr.f32.gmra.mxu0 %v4636
    %v4704 = vpop.f32.mrf.mxu0
    %v4705 = vadd.f32 0.0, %v4704
    %v4706 = vpop.f32.mrf.mxu0
    %4707 = vdwg.mxu0
    %v4708 = vmul.f32 %v4705, 0.35355338
    %v4709 = vadd.f32 %v4708, %v1643
    %v4710 = vsel %vm891, %v4709, -inf
    %4711 = vmax.xlane.f32.xlu0 %v4710
    %v4712 = vpop.xlane.xlu0 %4711
    %v4713 = vsub.f32 %v4709, %v4712
    %v4714 = vmul.f32 %v4713, 1.442695
    %v4715 = vpow.pop %v4714
    %v4716 = vsel %vm891, %v4715, 0.0
    %4717 = vadd.xlane.f32.xlu0 %v4716
    %v4718 = vpop.xlane.xlu0 %4717
    %v4719 = vrcp.pop %v4718
    %v4720 = vmul.f32 %v4715, %v4719
    %v4722 = vsel %vm891, %v4720, 0
    %4724 = vmatprep.subr.mxu0 0.0
    %4725 = vmatpush1.msra.mxu0 0.0
    %4726 = vmatprep.subr.mxu0 0.0
    %4727 = vmatpush1.msra.mxu0 0.0
    %4728 = vmatprep.subr.mxu0 0.0
    %4729 = vmatpush1.msra.mxu0 0.0
    %4730 = vmatprep.subr.mxu0 0.0
    %4731 = vmatpush1.msra.mxu0 0.0
    %4732 = vmatprep.subr.mxu0 0.0
    %4733 = vmatpush1.msra.mxu0 0.0
    %4734 = vmatprep.subr.mxu0 0.0
    %4735 = vmatpush1.msra.mxu0 0.0
    %4736 = vmatprep.subr.mxu0 0.0
    %4737 = vmatpush1.msra.mxu0 0.0
    %4738 = vmatprep.subr.mxu0 0.0
    %4739 = vmatpush1.msra.mxu0 0.0
    %4740 = vmatprep.subr.mxu0 0.0
    %4741 = vmatpush1.msra.mxu0 0.0
    %4742 = vmatprep.subr.mxu0 0.0
    %4743 = vmatpush1.msra.mxu0 0.0
    %4744 = vmatprep.subr.mxu0 0.0
    %4745 = vmatpush1.msra.mxu0 0.0
    %4746 = vmatprep.subr.mxu0 0.0
    %4747 = vmatpush1.msra.mxu0 0.0
    %4748 = vmatprep.subr.mxu0 0.0
    %4749 = vmatpush1.msra.mxu0 0.0
    %4750 = vmatprep.subr.mxu0 0.0
    %4751 = vmatpush1.msra.mxu0 0.0
    %4752 = vmatprep.subr.mxu0 0.0
    %4753 = vmatpush1.msra.mxu0 0.0
    %4754 = vmatprep.subr.mxu0 0.0
    %4755 = vmatpush1.msra.mxu0 %v4634
    %4756 = vmatprep.subr.mxu0 0.0
    %4757 = vmatpush2.msra.mxu0 0.0
    %4758 = vmatprep.subr.mxu0 0.0
    %4759 = vmatpush2.msra.mxu0 0.0
    %4760 = vmatprep.subr.mxu0 0.0
    %4761 = vmatpush2.msra.mxu0 0.0
    %4762 = vmatprep.subr.mxu0 0.0
    %4763 = vmatpush2.msra.mxu0 0.0
    %4764 = vmatprep.subr.mxu0 0.0
    %4765 = vmatpush2.msra.mxu0 0.0
    %4766 = vmatprep.subr.mxu0 0.0
    %4767 = vmatpush2.msra.mxu0 0.0
    %4768 = vmatprep.subr.mxu0 0.0
    %4769 = vmatpush2.msra.mxu0 0.0
    %4770 = vmatprep.subr.mxu0 0.0
    %4771 = vmatpush2.msra.mxu0 0.0
    %4772 = vmatprep.subr.mxu0 0.0
    %4773 = vmatpush2.msra.mxu0 0.0
    %4774 = vmatprep.subr.mxu0 0.0
    %4775 = vmatpush2.msra.mxu0 0.0
    %4776 = vmatprep.subr.mxu0 0.0
    %4777 = vmatpush2.msra.mxu0 0.0
    %4778 = vmatprep.subr.mxu0 0.0
    %4779 = vmatpush2.msra.mxu0 0.0
    %4780 = vmatprep.subr.mxu0 0.0
    %4781 = vmatpush2.msra.mxu0 0.0
    %4782 = vmatprep.subr.mxu0 0.0
    %4783 = vmatpush2.msra.mxu0 0.0
    %4784 = vmatprep.subr.mxu0 0.0
    %4785 = vmatpush2.msra.mxu0 0.0
    %4786 = vmatprep.subr.mxu0 0.0
    %4787 = vmatpush2.msra.mxu0 0.0
    %4788 = vmatprep.mubr.f32.mxu0 0.0
    %4789 = vmatmul.mubr.f32.gmra.mxu0 %v4722
    %v4790 = vpop.f32.mrf.mxu0
    %v4791 = vadd.f32 0.0, %v4790
    %v4792 = vpop.f32.mrf.mxu0
    %4793 = vdwg.mxu0
    %v4794 = vadd.f32 %v4632, %v4791
    %v4796 = vsel %vm398, %v4794, 0
    %4798 = vmatprep.subr.mxu0 0.0
    %4799 = vmatpush1.msra.mxu0 0.0
    %4800 = vmatprep.subr.mxu0 0.0
    %4801 = vmatpush1.msra.mxu0 0.0
    %4802 = vmatprep.subr.mxu0 0.0
    %4803 = vmatpush1.msra.mxu0 0.0
    %4804 = vmatprep.subr.mxu0 0.0
    %4805 = vmatpush1.msra.mxu0 0.0
    %4806 = vmatprep.subr.mxu0 0.0
    %4807 = vmatpush1.msra.mxu0 0.0
    %4808 = vmatprep.subr.mxu0 0.0
    %4809 = vmatpush1.msra.mxu0 0.0
    %4810 = vmatprep.subr.mxu0 0.0
    %4811 = vmatpush1.msra.mxu0 0.0
    %4812 = vmatprep.subr.mxu0 0.0
    %4813 = vmatpush1.msra.mxu0 0.0
    %4814 = vmatprep.subr.mxu0 0.0
    %4815 = vmatpush1.msra.mxu0 0.0
    %4816 = vmatprep.subr.mxu0 0.0
    %4817 = vmatpush1.msra.mxu0 0.0
    %4818 = vmatprep.subr.mxu0 0.0
    %4819 = vmatpush1.msra.mxu0 0.0
    %4820 = vmatprep.subr.mxu0 0.0
    %4821 = vmatpush1.msra.mxu0 0.0
    %4822 = vmatprep.subr.mxu0 0.0
    %4823 = vmatpush1.msra.mxu0 %v3404
    %4824 = vmatprep.subr.mxu0 0.0
    %4825 = vmatpush1.msra.mxu0 %v3403
    %4826 = vmatprep.subr.mxu0 0.0
    %4827 = vmatpush1.msra.mxu0 %v3402
    %4828 = vmatprep.subr.mxu0 0.0
    %4829 = vmatpush1.msra.mxu0 %v3401
    %4830 = vmatprep.subr.mxu0 0.0
    %4831 = vmatpush2.msra.mxu0 0.0
    %4832 = vmatprep.subr.mxu0 0.0
    %4833 = vmatpush2.msra.mxu0 0.0
    %4834 = vmatprep.subr.mxu0 0.0
    %4835 = vmatpush2.msra.mxu0 0.0
    %4836 = vmatprep.subr.mxu0 0.0
    %4837 = vmatpush2.msra.mxu0 0.0
    %4838 = vmatprep.subr.mxu0 0.0
    %4839 = vmatpush2.msra.mxu0 0.0
    %4840 = vmatprep.subr.mxu0 0.0
    %4841 = vmatpush2.msra.mxu0 0.0
    %4842 = vmatprep.subr.mxu0 0.0
    %4843 = vmatpush2.msra.mxu0 0.0
    %4844 = vmatprep.subr.mxu0 0.0
    %4845 = vmatpush2.msra.mxu0 0.0
    %4846 = vmatprep.subr.mxu0 0.0
    %4847 = vmatpush2.msra.mxu0 0.0
    %4848 = vmatprep.subr.mxu0 0.0
    %4849 = vmatpush2.msra.mxu0 0.0
    %4850 = vmatprep.subr.mxu0 0.0
    %4851 = vmatpush2.msra.mxu0 0.0
    %4852 = vmatprep.subr.mxu0 0.0
    %4853 = vmatpush2.msra.mxu0 0.0
    %4854 = vmatprep.subr.mxu0 0.0
    %4855 = vmatpush2.msra.mxu0 0.0
    %4856 = vmatprep.subr.mxu0 0.0
    %4857 = vmatpush2.msra.mxu0 0.0
    %4858 = vmatprep.subr.mxu0 0.0
    %4859 = vmatpush2.msra.mxu0 0.0
    %4860 = vmatprep.subr.mxu0 0.0
    %4861 = vmatpush2.msra.mxu0 0.0
    %4862 = vmatprep.mubr.f32.mxu0 0.0
    %4863 = vmatmul.mubr.f32.gmra.mxu0 %v4796
    %v4864 = vpop.f32.mrf.mxu0
    %v4865 = vadd.f32 %v4065, %v4864
    %v4866 = vpop.f32.mrf.mxu0
    %4867 = vdwg.mxu0
    %4868 = vst.msk [vmem:[#allocation2 + $0x8] sm:$0xff] %vm398, %v4865
    %v4869 = vld [vmem:[#allocation2] sm:$0xff]
    %v4870 = vld [vmem:[#allocation2 + $0x8] sm:$0xff]
    %v4871 = vadd.f32 %v3258, %v4869
    %v4872 = vadd.f32 %v3259, %v4870
    %s4873 = scalar_lea.vmem [#allocation20], 1
    %v4874 = vld [vmem:[%s4873] sm:$0x1]
    %s4875 = scalar_lea.vmem [#allocation22], 1
    %v4876 = vld [vmem:[%s4875] sm:$0x1]
    %v4877 = vsel %vm398, %v4871, 0.0
    %4878 = vadd.xlane.f32.xlu0 %v4877
    %v4879 = vpop.xlane.xlu0 %4878
    %v4880 = vsel %vm398, %v4872, 0.0
    %4881 = vadd.xlane.f32.xlu0 %v4880
    %v4882 = vpop.xlane.xlu0 %4881
    %v4883 = vmul.f32 %v4879, %v412
    %v4884 = vmul.f32 %v4882, %v412
    %v4885 = vsub.f32 %v4871, %v4883
    %v4886 = vsub.f32 %v4872, %v4884
    %v4887 = vmul.f32 %v4885, %v4885
    %v4888 = vmul.f32 %v4886, %v4886
    %v4889 = vsel %vm398, %v4887, 0.0
    %4890 = vadd.xlane.f32.xlu0 %v4889
    %v4891 = vpop.xlane.xlu0 %4890
    %v4892 = vsel %vm398, %v4888, 0.0
    %4893 = vadd.xlane.f32.xlu0 %v4892
    %v4894 = vpop.xlane.xlu0 %4893
    %v4895 = vmul.f32 %v4891, %v412
    %v4896 = vmul.f32 %v4894, %v412
    %v4897 = vadd.f32 %v4895, 1e-05
    %v4898 = vadd.f32 %v4896, 1e-05
    %v4899 = vrsqrt.pop %v4897
    %v4900 = vrsqrt.pop %v4898
    %v4901 = vmul.f32 %v4885, %v4899
    %v4902 = vmul.f32 %v4886, %v4900
    %v4904 = vlaneseq
    %v4905 = vshrl.u32 %v4904, 7
    %v4906 = vsub.s32 0, %v4905
    %v4907 = vrot.slane %v4874, %v4906
    %v4909 = vmul.f32 %v4901, %v4907
    %v4910 = vmul.f32 %v4902, %v4907
    %v4912 = vlaneseq
    %v4913 = vshrl.u32 %v4912, 7
    %v4914 = vsub.s32 0, %v4913
    %v4915 = vrot.slane %v4876, %v4914
    %v4917 = vadd.f32 %v4909, %v4915
    %v4918 = vadd.f32 %v4910, %v4915
    %s4919 = scalar_lea.vmem %s33, 32
    %v4920 = vld [vmem:[%s4919] sm:$0xff]
    %v4921 = vld [vmem:[%s4919 + $0x8] sm:$0xff]
    %v4922 = vld [vmem:[%s4919 + $0x10] sm:$0xff]
    %v4923 = vld [vmem:[%s4919 + $0x18] sm:$0xff]
    %s4924 = scalar_lea.vmem [#allocation23], 1
    %v4925 = vld [vmem:[%s4924] sm:$0x1]
    %v4927 = vlaneseq
    %v4928 = vshrl.u32 %v4927, 7
    %v4929 = vsub.s32 0, %v4928
    %v4930 = vrot.slane %v4925, %v4929
    %v4933 = vsel %vm398, %v4917, 0
    %v4936 = vsel %vm398, %v4918, 0
    %4938 = vmatprep.subr.mxu0 0.0
    %4939 = vmatpush1.msra.mxu0 0.0
    %4940 = vmatprep.subr.mxu0 0.0
    %4941 = vmatpush1.msra.mxu0 0.0
    %4942 = vmatprep.subr.mxu0 0.0
    %4943 = vmatpush1.msra.mxu0 0.0
    %4944 = vmatprep.subr.mxu0 0.0
    %4945 = vmatpush1.msra.mxu0 0.0
    %4946 = vmatprep.subr.mxu0 0.0
    %4947 = vmatpush1.msra.mxu0 0.0
    %4948 = vmatprep.subr.mxu0 0.0
    %4949 = vmatpush1.msra.mxu0 0.0
    %4950 = vmatprep.subr.mxu0 0.0
    %4951 = vmatpush1.msra.mxu0 0.0
    %4952 = vmatprep.subr.mxu0 0.0
    %4953 = vmatpush1.msra.mxu0 0.0
    %4954 = vmatprep.subr.mxu0 0.0
    %4955 = vmatpush1.msra.mxu0 0.0
    %4956 = vmatprep.subr.mxu0 0.0
    %4957 = vmatpush1.msra.mxu0 0.0
    %4958 = vmatprep.subr.mxu0 0.0
    %4959 = vmatpush1.msra.mxu0 0.0
    %4960 = vmatprep.subr.mxu0 0.0
    %4961 = vmatpush1.msra.mxu0 0.0
    %4962 = vmatprep.subr.mxu0 0.0
    %4963 = vmatpush1.msra.mxu0 %v4923
    %4964 = vmatprep.subr.mxu0 0.0
    %4965 = vmatpush1.msra.mxu0 %v4922
    %4966 = vmatprep.subr.mxu0 0.0
    %4967 = vmatpush1.msra.mxu0 %v4921
    %4968 = vmatprep.subr.mxu0 0.0
    %4969 = vmatpush1.msra.mxu0 %v4920
    %4970 = vmatprep.subr.mxu0 0.0
    %4971 = vmatpush2.msra.mxu0 0.0
    %4972 = vmatprep.subr.mxu0 0.0
    %4973 = vmatpush2.msra.mxu0 0.0
    %4974 = vmatprep.subr.mxu0 0.0
    %4975 = vmatpush2.msra.mxu0 0.0
    %4976 = vmatprep.subr.mxu0 0.0
    %4977 = vmatpush2.msra.mxu0 0.0
    %4978 = vmatprep.subr.mxu0 0.0
    %4979 = vmatpush2.msra.mxu0 0.0
    %4980 = vmatprep.subr.mxu0 0.0
    %4981 = vmatpush2.msra.mxu0 0.0
    %4982 = vmatprep.subr.mxu0 0.0
    %4983 = vmatpush2.msra.mxu0 0.0
    %4984 = vmatprep.subr.mxu0 0.0
    %4985 = vmatpush2.msra.mxu0 0.0
    %4986 = vmatprep.subr.mxu0 0.0
    %4987 = vmatpush2.msra.mxu0 0.0
    %4988 = vmatprep.subr.mxu0 0.0
    %4989 = vmatpush2.msra.mxu0 0.0
    %4990 = vmatprep.subr.mxu0 0.0
    %4991 = vmatpush2.msra.mxu0 0.0
    %4992 = vmatprep.subr.mxu0 0.0
    %4993 = vmatpush2.msra.mxu0 0.0
    %4994 = vmatprep.subr.mxu0 0.0
    %4995 = vmatpush2.msra.mxu0 0.0
    %4996 = vmatprep.subr.mxu0 0.0
    %4997 = vmatpush2.msra.mxu0 0.0
    %4998 = vmatprep.subr.mxu0 0.0
    %4999 = vmatpush2.msra.mxu0 0.0
    %5000 = vmatprep.subr.mxu0 0.0
    %5001 = vmatpush2.msra.mxu0 0.0
    %5002 = vmatprep.mubr.f32.mxu0 0.0
    %5003 = vmatmul.mubr.f32.gmra.mxu0 %v4933
    %v5004 = vpop.f32.mrf.mxu0
    %v5005 = vadd.f32 %v4930, %v5004
    %v5006 = vpop.f32.mrf.mxu0
    %5007 = vmatprep.mubr.f32.mxu0 0.0
    %5008 = vmatmul.mubr.f32.gmra.mxu0 %v4936
    %v5009 = vpop.f32.mrf.mxu0
    %v5010 = vadd.f32 %v4930, %v5009
    %v5011 = vpop.f32.mrf.mxu0
    %5012 = vdwg.mxu0
    %s5013 = scalar_lea.vmem [#allocation25], 32
    %v5014 = vld [vmem:[%s5013] sm:$0xff]
    %v5015 = vld [vmem:[%s5013 + $0x8] sm:$0xff]
    %v5016 = vld [vmem:[%s5013 + $0x10] sm:$0xff]
    %v5017 = vld [vmem:[%s5013 + $0x18] sm:$0xff]
    %s5018 = scalar_lea.vmem [#allocation26], 1
    %v5019 = vld [vmem:[%s5018] sm:$0x1]
    %v5021 = vlaneseq
    %v5022 = vshrl.u32 %v5021, 7
    %v5023 = vsub.s32 0, %v5022
    %v5024 = vrot.slane %v5019, %v5023
    %5026 = vmatprep.subr.mxu0 0.0
    %5027 = vmatpush1.msra.mxu0 0.0
    %5028 = vmatprep.subr.mxu0 0.0
    %5029 = vmatpush1.msra.mxu0 0.0
    %5030 = vmatprep.subr.mxu0 0.0
    %5031 = vmatpush1.msra.mxu0 0.0
    %5032 = vmatprep.subr.mxu0 0.0
    %5033 = vmatpush1.msra.mxu0 0.0
    %5034 = vmatprep.subr.mxu0 0.0
    %5035 = vmatpush1.msra.mxu0 0.0
    %5036 = vmatprep.subr.mxu0 0.0
    %5037 = vmatpush1.msra.mxu0 0.0
    %5038 = vmatprep.subr.mxu0 0.0
    %5039 = vmatpush1.msra.mxu0 0.0
    %5040 = vmatprep.subr.mxu0 0.0
    %5041 = vmatpush1.msra.mxu0 0.0
    %5042 = vmatprep.subr.mxu0 0.0
    %5043 = vmatpush1.msra.mxu0 0.0
    %5044 = vmatprep.subr.mxu0 0.0
    %5045 = vmatpush1.msra.mxu0 0.0
    %5046 = vmatprep.subr.mxu0 0.0
    %5047 = vmatpush1.msra.mxu0 0.0
    %5048 = vmatprep.subr.mxu0 0.0
    %5049 = vmatpush1.msra.mxu0 0.0
    %5050 = vmatprep.subr.mxu0 0.0
    %5051 = vmatpush1.msra.mxu0 %v5017
    %5052 = vmatprep.subr.mxu0 0.0
    %5053 = vmatpush1.msra.mxu0 %v5016
    %5054 = vmatprep.subr.mxu0 0.0
    %5055 = vmatpush1.msra.mxu0 %v5015
    %5056 = vmatprep.subr.mxu0 0.0
    %5057 = vmatpush1.msra.mxu0 %v5014
    %5058 = vmatprep.subr.mxu0 0.0
    %5059 = vmatpush2.msra.mxu0 0.0
    %5060 = vmatprep.subr.mxu0 0.0
    %5061 = vmatpush2.msra.mxu0 0.0
    %5062 = vmatprep.subr.mxu0 0.0
    %5063 = vmatpush2.msra.mxu0 0.0
    %5064 = vmatprep.subr.mxu0 0.0
    %5065 = vmatpush2.msra.mxu0 0.0
    %5066 = vmatprep.subr.mxu0 0.0
    %5067 = vmatpush2.msra.mxu0 0.0
    %5068 = vmatprep.subr.mxu0 0.0
    %5069 = vmatpush2.msra.mxu0 0.0
    %5070 = vmatprep.subr.mxu0 0.0
    %5071 = vmatpush2.msra.mxu0 0.0
    %5072 = vmatprep.subr.mxu0 0.0
    %5073 = vmatpush2.msra.mxu0 0.0
    %5074 = vmatprep.subr.mxu0 0.0
    %5075 = vmatpush2.msra.mxu0 0.0
    %5076 = vmatprep.subr.mxu0 0.0
    %5077 = vmatpush2.msra.mxu0 0.0
    %5078 = vmatprep.subr.mxu0 0.0
    %5079 = vmatpush2.msra.mxu0 0.0
    %5080 = vmatprep.subr.mxu0 0.0
    %5081 = vmatpush2.msra.mxu0 0.0
    %5082 = vmatprep.subr.mxu0 0.0
    %5083 = vmatpush2.msra.mxu0 0.0
    %5084 = vmatprep.subr.mxu0 0.0
    %5085 = vmatpush2.msra.mxu0 0.0
    %5086 = vmatprep.subr.mxu0 0.0
    %5087 = vmatpush2.msra.mxu0 0.0
    %5088 = vmatprep.subr.mxu0 0.0
    %5089 = vmatpush2.msra.mxu0 0.0
    %5090 = vmatprep.mubr.f32.mxu0 0.0
    %5091 = vmatmul.mubr.f32.gmra.mxu0 %v4933
    %v5092 = vpop.f32.mrf.mxu0
    %v5093 = vadd.f32 %v5024, %v5092
    %v5094 = vpop.f32.mrf.mxu0
    %5095 = vmatprep.mubr.f32.mxu0 0.0
    %5096 = vmatmul.mubr.f32.gmra.mxu0 %v4936
    %v5097 = vpop.f32.mrf.mxu0
    %v5098 = vadd.f32 %v5024, %v5097
    %v5099 = vpop.f32.mrf.mxu0
    %5100 = vdwg.mxu0
    %v5101 = vxor.u32 %v5093, 2147483648
    %v5102 = vxor.u32 %v5098, 2147483648
    %v5103 = vmul.f32 %v5101, 1.442695
    %v5104 = vpow.pop %v5103
    %v5105 = vmul.f32 %v5102, 1.442695
    %v5106 = vpow.pop %v5105
    %v5107 = vadd.f32 %v5104, 1.0
    %v5108 = vadd.f32 %v5106, 1.0
    %v5109 = vrcp.pop %v5107
    %v5110 = vmul.f32 1.0, %v5109
    %v5111 = vrcp.pop %v5108
    %v5112 = vmul.f32 1.0, %v5111
    %v5113 = vmul.f32 %v5005, %v5110
    %v5114 = vmul.f32 %v5010, %v5112
    %s5115 = scalar_lea.vmem %s41, 4
    %v5116 = vld [vmem:[%s5115] sm:$0x7]
    %s5117 = scalar_lea.vmem [#allocation28], 1
    %v5118 = vld [vmem:[%s5117] sm:$0x1]
    %5119 = vst.msk [vmem:[#allocation3 + $0x1] sm:$0xff] %vm398, %v5113
    %v5120 = vld [vmem:[#allocation3] sm:$0xff]
    %v5121 = vld [vmem:[#allocation3 + $0x8] sm:$0x3]
    %v5122 = vlaneseq
    %v5123 = vshrl.u32 %v5122, 7
    %v5124 = vsub.s32 0, %v5123
    %v5125 = vrot.slane %v5116, %v5124
    %v5126 = vmul.f32 %v5120, %v5125
    %v5127 = vadd.f32 %v5126, 0.0
    %v5128 = vlaneseq
    %v5129 = vshrl.u32 %v5128, 7
    %v5130 = vsub.s32 1, %v5129
    %v5131 = vrot.slane %v5116, %v5130
    %v5132 = vmul.f32 %v5120, %v5131
    %v5133 = vmul.f32 %v5121, %v5131
    %v5136 = vrot.slane %v5132, 1
    %v5137 = vrot.slane %v5133, 1
    %v5138 = vsel %vm2547, %v5136, %v5137
    %v5140 = vadd.f32 %v5127, %v5138
    %v5141 = vlaneseq
    %v5142 = vshrl.u32 %v5141, 7
    %v5143 = vsub.s32 2, %v5142
    %v5144 = vrot.slane %v5116, %v5143
    %v5145 = vmul.f32 %v5120, %v5144
    %v5146 = vmul.f32 %v5121, %v5144
    %v5149 = vrot.slane %v5145, 2
    %v5150 = vrot.slane %v5146, 2
    %v5151 = vsel %vm2561, %v5149, %v5150
    %v5153 = vadd.f32 %v5140, %v5151
    %v5155 = vlaneseq
    %v5156 = vshrl.u32 %v5155, 7
    %v5157 = vsub.s32 0, %v5156
    %v5158 = vrot.slane %v5118, %v5157
    %v5160 = vadd.f32 %v5153, %v5158
    %v5161 = vxor.u32 %v5160, 2147483648
    %v5162 = vmul.f32 %v5161, 1.442695
    %v5163 = vpow.pop %v5162
    %v5164 = vadd.f32 %v5163, 1.0
    %v5165 = vrcp.pop %v5164
    %v5166 = vmul.f32 1.0, %v5165
    %v5167 = vmul.f32 %v5160, %v5166
    %5168 = vst.msk [vmem:[#allocation2] sm:$0xff] %vm398, %v5167
    %5169 = vst.msk [vmem:[#allocation3 + $0x1] sm:$0xff] %vm398, %v5114
    %v5170 = vld [vmem:[#allocation3] sm:$0xff]
    %v5171 = vld [vmem:[#allocation3 + $0x8] sm:$0x3]
    %v5172 = vmul.f32 %v5170, %v5125
    %v5173 = vadd.f32 %v5172, 0.0
    %v5174 = vmul.f32 %v5170, %v5131
    %v5175 = vmul.f32 %v5171, %v5131
    %v5178 = vrot.slane %v5174, 1
    %v5179 = vrot.slane %v5175, 1
    %v5180 = vsel %vm2547, %v5178, %v5179
    %v5182 = vadd.f32 %v5173, %v5180
    %v5183 = vmul.f32 %v5170, %v5144
    %v5184 = vmul.f32 %v5171, %v5144
    %v5187 = vrot.slane %v5183, 2
    %v5188 = vrot.slane %v5184, 2
    %v5189 = vsel %vm2561, %v5187, %v5188
    %v5191 = vadd.f32 %v5182, %v5189
    %v5192 = vadd.f32 %v5191, %v5158
    %v5193 = vxor.u32 %v5192, 2147483648
    %v5194 = vmul.f32 %v5193, 1.442695
    %v5195 = vpow.pop %v5194
    %v5196 = vadd.f32 %v5195, 1.0
    %v5197 = vrcp.pop %v5196
    %v5198 = vmul.f32 1.0, %v5197
    %v5199 = vmul.f32 %v5192, %v5198
    %5200 = vst.msk [vmem:[#allocation2 + $0x8] sm:$0xff] %vm398, %v5199
    %v5201 = vld [vmem:[#allocation2] sm:$0xff]
    %v5202 = vld [vmem:[#allocation2 + $0x8] sm:$0xff]
    %s5203 = scalar_lea.vmem %s45, 32
    %v5204 = vld [vmem:[%s5203] sm:$0xff]
    %v5205 = vld [vmem:[%s5203 + $0x8] sm:$0xff]
    %v5206 = vld [vmem:[%s5203 + $0x10] sm:$0xff]
    %v5207 = vld [vmem:[%s5203 + $0x18] sm:$0xff]
    %s5208 = scalar_lea.vmem [#allocation29], 1
    %v5209 = vld [vmem:[%s5208] sm:$0x1]
    %v5211 = vlaneseq
    %v5212 = vshrl.u32 %v5211, 7
    %v5213 = vsub.s32 0, %v5212
    %v5214 = vrot.slane %v5209, %v5213
    %v5217 = vsel %vm398, %v5201, 0
    %v5220 = vsel %vm398, %v5202, 0
    %5222 = vmatprep.subr.mxu0 0.0
    %5223 = vmatpush1.msra.mxu0 0.0
    %5224 = vmatprep.subr.mxu0 0.0
    %5225 = vmatpush1.msra.mxu0 0.0
    %5226 = vmatprep.subr.mxu0 0.0
    %5227 = vmatpush1.msra.mxu0 0.0
    %5228 = vmatprep.subr.mxu0 0.0
    %5229 = vmatpush1.msra.mxu0 0.0
    %5230 = vmatprep.subr.mxu0 0.0
    %5231 = vmatpush1.msra.mxu0 0.0
    %5232 = vmatprep.subr.mxu0 0.0
    %5233 = vmatpush1.msra.mxu0 0.0
    %5234 = vmatprep.subr.mxu0 0.0
    %5235 = vmatpush1.msra.mxu0 0.0
    %5236 = vmatprep.subr.mxu0 0.0
    %5237 = vmatpush1.msra.mxu0 0.0
    %5238 = vmatprep.subr.mxu0 0.0
    %5239 = vmatpush1.msra.mxu0 0.0
    %5240 = vmatprep.subr.mxu0 0.0
    %5241 = vmatpush1.msra.mxu0 0.0
    %5242 = vmatprep.subr.mxu0 0.0
    %5243 = vmatpush1.msra.mxu0 0.0
    %5244 = vmatprep.subr.mxu0 0.0
    %5245 = vmatpush1.msra.mxu0 0.0
    %5246 = vmatprep.subr.mxu0 0.0
    %5247 = vmatpush1.msra.mxu0 %v5207
    %5248 = vmatprep.subr.mxu0 0.0
    %5249 = vmatpush1.msra.mxu0 %v5206
    %5250 = vmatprep.subr.mxu0 0.0
    %5251 = vmatpush1.msra.mxu0 %v5205
    %5252 = vmatprep.subr.mxu0 0.0
    %5253 = vmatpush1.msra.mxu0 %v5204
    %5254 = vmatprep.subr.mxu0 0.0
    %5255 = vmatpush2.msra.mxu0 0.0
    %5256 = vmatprep.subr.mxu0 0.0
    %5257 = vmatpush2.msra.mxu0 0.0
    %5258 = vmatprep.subr.mxu0 0.0
    %5259 = vmatpush2.msra.mxu0 0.0
    %5260 = vmatprep.subr.mxu0 0.0
    %5261 = vmatpush2.msra.mxu0 0.0
    %5262 = vmatprep.subr.mxu0 0.0
    %5263 = vmatpush2.msra.mxu0 0.0
    %5264 = vmatprep.subr.mxu0 0.0
    %5265 = vmatpush2.msra.mxu0 0.0
    %5266 = vmatprep.subr.mxu0 0.0
    %5267 = vmatpush2.msra.mxu0 0.0
    %5268 = vmatprep.subr.mxu0 0.0
    %5269 = vmatpush2.msra.mxu0 0.0
    %5270 = vmatprep.subr.mxu0 0.0
    %5271 = vmatpush2.msra.mxu0 0.0
    %5272 = vmatprep.subr.mxu0 0.0
    %5273 = vmatpush2.msra.mxu0 0.0
    %5274 = vmatprep.subr.mxu0 0.0
    %5275 = vmatpush2.msra.mxu0 0.0
    %5276 = vmatprep.subr.mxu0 0.0
    %5277 = vmatpush2.msra.mxu0 0.0
    %5278 = vmatprep.subr.mxu0 0.0
    %5279 = vmatpush2.msra.mxu0 0.0
    %5280 = vmatprep.subr.mxu0 0.0
    %5281 = vmatpush2.msra.mxu0 0.0
    %5282 = vmatprep.subr.mxu0 0.0
    %5283 = vmatpush2.msra.mxu0 0.0
    %5284 = vmatprep.subr.mxu0 0.0
    %5285 = vmatpush2.msra.mxu0 0.0
    %5286 = vmatprep.mubr.f32.mxu0 0.0
    %5287 = vmatmul.mubr.f32.gmra.mxu0 %v5217
    %v5288 = vpop.f32.mrf.mxu0
    %v5289 = vadd.f32 %v5214, %v5288
    %v5290 = vpop.f32.mrf.mxu0
    %5291 = vmatprep.mubr.f32.mxu0 0.0
    %5292 = vmatmul.mubr.f32.gmra.mxu0 %v5220
    %v5293 = vpop.f32.mrf.mxu0
    %v5294 = vadd.f32 %v5214, %v5293
    %v5295 = vpop.f32.mrf.mxu0
    %5296 = vdwg.mxu0
    %v5297 = vadd.f32 %v4871, %v5289
    %v5298 = vadd.f32 %v4872, %v5294
    %s5299 = scalar_lea.vmem %s49, 1
    %v5300 = vld [vmem:[%s5299] sm:$0x1]
    %s5301 = scalar_lea.vmem %s51, 1
    %v5302 = vld [vmem:[%s5301] sm:$0x1]
    %v5303 = vsel %vm398, %v5297, 0.0
    %5304 = vadd.xlane.f32.xlu0 %v5303
    %v5305 = vpop.xlane.xlu0 %5304
    %v5306 = vsel %vm398, %v5298, 0.0
    %5307 = vadd.xlane.f32.xlu0 %v5306
    %v5308 = vpop.xlane.xlu0 %5307
    %v5309 = vmul.f32 %v5305, %v412
    %v5310 = vmul.f32 %v5308, %v412
    %v5311 = vsub.f32 %v5297, %v5309
    %v5312 = vsub.f32 %v5298, %v5310
    %v5313 = vmul.f32 %v5311, %v5311
    %v5314 = vmul.f32 %v5312, %v5312
    %v5315 = vsel %vm398, %v5313, 0.0
    %5316 = vadd.xlane.f32.xlu0 %v5315
    %v5317 = vpop.xlane.xlu0 %5316
    %v5318 = vsel %vm398, %v5314, 0.0
    %5319 = vadd.xlane.f32.xlu0 %v5318
    %v5320 = vpop.xlane.xlu0 %5319
    %v5321 = vmul.f32 %v5317, %v412
    %v5322 = vmul.f32 %v5320, %v412
    %v5323 = vadd.f32 %v5321, 1e-05
    %v5324 = vadd.f32 %v5322, 1e-05
    %v5325 = vrsqrt.pop %v5323
    %v5326 = vrsqrt.pop %v5324
    %v5327 = vmul.f32 %v5311, %v5325
    %v5328 = vmul.f32 %v5312, %v5326
    %v5330 = vlaneseq
    %v5331 = vshrl.u32 %v5330, 7
    %v5332 = vsub.s32 0, %v5331
    %v5333 = vrot.slane %v5300, %v5332
    %v5335 = vmul.f32 %v5327, %v5333
    %v5336 = vmul.f32 %v5328, %v5333
    %v5338 = vlaneseq
    %v5339 = vshrl.u32 %v5338, 7
    %v5340 = vsub.s32 0, %v5339
    %v5341 = vrot.slane %v5302, %v5340
    %v5343 = vadd.f32 %v5335, %v5341
    %v5344 = vadd.f32 %v5336, %v5341
    %s5345 = scalar_lea.vmem [#allocation31], 32
    %v5346 = vld [vmem:[%s5345] sm:$0xff]
    %v5347 = vld [vmem:[%s5345 + $0x8] sm:$0xff]
    %v5348 = vld [vmem:[%s5345 + $0x10] sm:$0xff]
    %v5349 = vld [vmem:[%s5345 + $0x18] sm:$0xff]
    %s5350 = scalar_lea.vmem %s55, 1
    %v5351 = vld [vmem:[%s5350] sm:$0x1]
    %v5353 = vlaneseq
    %v5354 = vshrl.u32 %v5353, 7
    %v5355 = vsub.s32 0, %v5354
    %v5356 = vrot.slane %v5351, %v5355
    %v5359 = vsel %vm398, %v5343, 0
    %v5362 = vsel %vm398, %v5344, 0
    %5364 = vmatprep.subr.mxu0 0.0
    %5365 = vmatpush1.msra.mxu0 0.0
    %5366 = vmatprep.subr.mxu0 0.0
    %5367 = vmatpush1.msra.mxu0 0.0
    %5368 = vmatprep.subr.mxu0 0.0
    %5369 = vmatpush1.msra.mxu0 0.0
    %5370 = vmatprep.subr.mxu0 0.0
    %5371 = vmatpush1.msra.mxu0 0.0
    %5372 = vmatprep.subr.mxu0 0.0
    %5373 = vmatpush1.msra.mxu0 0.0
    %5374 = vmatprep.subr.mxu0 0.0
    %5375 = vmatpush1.msra.mxu0 0.0
    %5376 = vmatprep.subr.mxu0 0.0
    %5377 = vmatpush1.msra.mxu0 0.0
    %5378 = vmatprep.subr.mxu0 0.0
    %5379 = vmatpush1.msra.mxu0 0.0
    %5380 = vmatprep.subr.mxu0 0.0
    %5381 = vmatpush1.msra.mxu0 0.0
    %5382 = vmatprep.subr.mxu0 0.0
    %5383 = vmatpush1.msra.mxu0 0.0
    %5384 = vmatprep.subr.mxu0 0.0
    %5385 = vmatpush1.msra.mxu0 0.0
    %5386 = vmatprep.subr.mxu0 0.0
    %5387 = vmatpush1.msra.mxu0 0.0
    %5388 = vmatprep.subr.mxu0 0.0
    %5389 = vmatpush1.msra.mxu0 %v5349
    %5390 = vmatprep.subr.mxu0 0.0
    %5391 = vmatpush1.msra.mxu0 %v5348
    %5392 = vmatprep.subr.mxu0 0.0
    %5393 = vmatpush1.msra.mxu0 %v5347
    %5394 = vmatprep.subr.mxu0 0.0
    %5395 = vmatpush1.msra.mxu0 %v5346
    %5396 = vmatprep.subr.mxu0 0.0
    %5397 = vmatpush2.msra.mxu0 0.0
    %5398 = vmatprep.subr.mxu0 0.0
    %5399 = vmatpush2.msra.mxu0 0.0
    %5400 = vmatprep.subr.mxu0 0.0
    %5401 = vmatpush2.msra.mxu0 0.0
    %5402 = vmatprep.subr.mxu0 0.0
    %5403 = vmatpush2.msra.mxu0 0.0
    %5404 = vmatprep.subr.mxu0 0.0
    %5405 = vmatpush2.msra.mxu0 0.0
    %5406 = vmatprep.subr.mxu0 0.0
    %5407 = vmatpush2.msra.mxu0 0.0
    %5408 = vmatprep.subr.mxu0 0.0
    %5409 = vmatpush2.msra.mxu0 0.0
    %5410 = vmatprep.subr.mxu0 0.0
    %5411 = vmatpush2.msra.mxu0 0.0
    %5412 = vmatprep.subr.mxu0 0.0
    %5413 = vmatpush2.msra.mxu0 0.0
    %5414 = vmatprep.subr.mxu0 0.0
    %5415 = vmatpush2.msra.mxu0 0.0
    %5416 = vmatprep.subr.mxu0 0.0
    %5417 = vmatpush2.msra.mxu0 0.0
    %5418 = vmatprep.subr.mxu0 0.0
    %5419 = vmatpush2.msra.mxu0 0.0
    %5420 = vmatprep.subr.mxu0 0.0
    %5421 = vmatpush2.msra.mxu0 0.0
    %5422 = vmatprep.subr.mxu0 0.0
    %5423 = vmatpush2.msra.mxu0 0.0
    %5424 = vmatprep.subr.mxu0 0.0
    %5425 = vmatpush2.msra.mxu0 0.0
    %5426 = vmatprep.subr.mxu0 0.0
    %5427 = vmatpush2.msra.mxu0 0.0
    %5428 = vmatprep.mubr.f32.mxu0 0.0
    %5429 = vmatmul.mubr.f32.gmra.mxu0 %v5359
    %v5430 = vpop.f32.mrf.mxu0
    %v5431 = vadd.f32 %v5356, %v5430
    %v5432 = vpop.f32.mrf.mxu0
    %5433 = vmatprep.mubr.f32.mxu0 0.0
    %5434 = vmatmul.mubr.f32.gmra.mxu0 %v5362
    %v5435 = vpop.f32.mrf.mxu0
    %v5436 = vadd.f32 %v5356, %v5435
    %v5437 = vpop.f32.mrf.mxu0
    %5438 = vdwg.mxu0
    %v5439 = vxor.u32 %v5431, 2147483648
    %v5440 = vxor.u32 %v5436, 2147483648
    %v5441 = vmul.f32 %v5439, 1.442695
    %v5442 = vpow.pop %v5441
    %v5443 = vmul.f32 %v5440, 1.442695
    %v5444 = vpow.pop %v5443
    %v5445 = vadd.f32 %v5442, 1.0
    %v5446 = vadd.f32 %v5444, 1.0
    %v5447 = vrcp.pop %v5445
    %v5448 = vmul.f32 1.0, %v5447
    %v5449 = vrcp.pop %v5446
    %v5450 = vmul.f32 1.0, %v5449
    %v5451 = vmul.f32 %v5431, %v5448
    %v5452 = vmul.f32 %v5436, %v5450
    %s5453 = scalar_lea.vmem %s57, 64
    %v5454 = vld [vmem:[%s5453] sm:$0xff]
    %v5455 = vld [vmem:[%s5453 + $0x8] sm:$0xff]
    %v5456 = vld [vmem:[%s5453 + $0x10] sm:$0xff]
    %v5457 = vld [vmem:[%s5453 + $0x18] sm:$0xff]
    %v5458 = vld [vmem:[%s5453 + $0x20] sm:$0xff]
    %v5459 = vld [vmem:[%s5453 + $0x28] sm:$0xff]
    %v5460 = vld [vmem:[%s5453 + $0x30] sm:$0xff]
    %v5461 = vld [vmem:[%s5453 + $0x38] sm:$0xff]
    %s5462 = scalar_lea.vmem %s59, 1
    %v5463 = vld [vmem:[%s5462] sm:$0x1]
    %v5465 = vlaneseq
    %v5466 = vshrl.u32 %v5465, 7
    %v5467 = vsub.s32 0, %v5466
    %v5468 = vrot.slane %v5463, %v5467
    %v5471 = vsel %vm570, %v5451, 0
    %v5474 = vsel %vm570, %v5452, 0
    %5476 = vmatprep.subr.mxu0 0.0
    %5477 = vmatpush1.msra.mxu0 0.0
    %5478 = vmatprep.subr.mxu0 0.0
    %5479 = vmatpush1.msra.mxu0 0.0
    %5480 = vmatprep.subr.mxu0 0.0
    %5481 = vmatpush1.msra.mxu0 0.0
    %5482 = vmatprep.subr.mxu0 0.0
    %5483 = vmatpush1.msra.mxu0 0.0
    %5484 = vmatprep.subr.mxu0 0.0
    %5485 = vmatpush1.msra.mxu0 0.0
    %5486 = vmatprep.subr.mxu0 0.0
    %5487 = vmatpush1.msra.mxu0 0.0
    %5488 = vmatprep.subr.mxu0 0.0
    %5489 = vmatpush1.msra.mxu0 0.0
    %5490 = vmatprep.subr.mxu0 0.0
    %5491 = vmatpush1.msra.mxu0 0.0
    %5492 = vmatprep.subr.mxu0 0.0
    %5493 = vmatpush1.msra.mxu0 %v5461
    %5494 = vmatprep.subr.mxu0 0.0
    %5495 = vmatpush1.msra.mxu0 %v5460
    %5496 = vmatprep.subr.mxu0 0.0
    %5497 = vmatpush1.msra.mxu0 %v5459
    %5498 = vmatprep.subr.mxu0 0.0
    %5499 = vmatpush1.msra.mxu0 %v5458
    %5500 = vmatprep.subr.mxu0 0.0
    %5501 = vmatpush1.msra.mxu0 %v5457
    %5502 = vmatprep.subr.mxu0 0.0
    %5503 = vmatpush1.msra.mxu0 %v5456
    %5504 = vmatprep.subr.mxu0 0.0
    %5505 = vmatpush1.msra.mxu0 %v5455
    %5506 = vmatprep.subr.mxu0 0.0
    %5507 = vmatpush1.msra.mxu0 %v5454
    %5508 = vmatprep.subr.mxu0 0.0
    %5509 = vmatpush2.msra.mxu0 0.0
    %5510 = vmatprep.subr.mxu0 0.0
    %5511 = vmatpush2.msra.mxu0 0.0
    %5512 = vmatprep.subr.mxu0 0.0
    %5513 = vmatpush2.msra.mxu0 0.0
    %5514 = vmatprep.subr.mxu0 0.0
    %5515 = vmatpush2.msra.mxu0 0.0
    %5516 = vmatprep.subr.mxu0 0.0
    %5517 = vmatpush2.msra.mxu0 0.0
    %5518 = vmatprep.subr.mxu0 0.0
    %5519 = vmatpush2.msra.mxu0 0.0
    %5520 = vmatprep.subr.mxu0 0.0
    %5521 = vmatpush2.msra.mxu0 0.0
    %5522 = vmatprep.subr.mxu0 0.0
    %5523 = vmatpush2.msra.mxu0 0.0
    %5524 = vmatprep.subr.mxu0 0.0
    %5525 = vmatpush2.msra.mxu0 0.0
    %5526 = vmatprep.subr.mxu0 0.0
    %5527 = vmatpush2.msra.mxu0 0.0
    %5528 = vmatprep.subr.mxu0 0.0
    %5529 = vmatpush2.msra.mxu0 0.0
    %5530 = vmatprep.subr.mxu0 0.0
    %5531 = vmatpush2.msra.mxu0 0.0
    %5532 = vmatprep.subr.mxu0 0.0
    %5533 = vmatpush2.msra.mxu0 0.0
    %5534 = vmatprep.subr.mxu0 0.0
    %5535 = vmatpush2.msra.mxu0 0.0
    %5536 = vmatprep.subr.mxu0 0.0
    %5537 = vmatpush2.msra.mxu0 0.0
    %5538 = vmatprep.subr.mxu0 0.0
    %5539 = vmatpush2.msra.mxu0 0.0
    %5540 = vmatprep.mubr.f32.mxu0 0.0
    %5541 = vmatmul.mubr.f32.gmra.mxu0 %v5471
    %v5542 = vpop.f32.mrf.mxu0
    %v5543 = vadd.f32 %v5468, %v5542
    %v5544 = vpop.f32.mrf.mxu0
    %5545 = vmatprep.mubr.f32.mxu0 0.0
    %5546 = vmatmul.mubr.f32.gmra.mxu0 %v5474
    %v5547 = vpop.f32.mrf.mxu0
    %v5548 = vadd.f32 %v5468, %v5547
    %v5549 = vpop.f32.mrf.mxu0
    %5550 = vdwg.mxu0
    %v5551 = vmul.f32 %v5543, 0.5
    %v5552 = vmul.f32 %v5548, 0.5
    %v5553 = vadd.f32 %v5297, %v5551
    %v5554 = vadd.f32 %v5298, %v5552
    %s5555 = scalar_lea.vmem %s61, 1
    %v5556 = vld [vmem:[%s5555] sm:$0x1]
    %s5557 = scalar_lea.vmem %s63, 1
    %v5558 = vld [vmem:[%s5557] sm:$0x1]
    %v5559 = vsel %vm398, %v5553, 0.0
    %5560 = vadd.xlane.f32.xlu0 %v5559
    %v5561 = vpop.xlane.xlu0 %5560
    %v5562 = vsel %vm398, %v5554, 0.0
    %5563 = vadd.xlane.f32.xlu0 %v5562
    %v5564 = vpop.xlane.xlu0 %5563
    %v5565 = vmul.f32 %v5561, %v412
    %v5566 = vmul.f32 %v5564, %v412
    %v5567 = vsub.f32 %v5553, %v5565
    %v5568 = vsub.f32 %v5554, %v5566
    %v5569 = vmul.f32 %v5567, %v5567
    %v5570 = vmul.f32 %v5568, %v5568
    %v5571 = vsel %vm398, %v5569, 0.0
    %5572 = vadd.xlane.f32.xlu0 %v5571
    %v5573 = vpop.xlane.xlu0 %5572
    %v5574 = vsel %vm398, %v5570, 0.0
    %5575 = vadd.xlane.f32.xlu0 %v5574
    %v5576 = vpop.xlane.xlu0 %5575
    %v5577 = vmul.f32 %v5573, %v412
    %v5578 = vmul.f32 %v5576, %v412
    %v5579 = vadd.f32 %v5577, 1e-05
    %v5580 = vadd.f32 %v5578, 1e-05
    %v5581 = vrsqrt.pop %v5579
    %v5582 = vrsqrt.pop %v5580
    %v5583 = vmul.f32 %v5567, %v5581
    %v5584 = vmul.f32 %v5568, %v5582
    %v5586 = vlaneseq
    %v5587 = vshrl.u32 %v5586, 7
    %v5588 = vsub.s32 0, %v5587
    %v5589 = vrot.slane %v5556, %v5588
    %v5591 = vmul.f32 %v5583, %v5589
    %v5592 = vmul.f32 %v5584, %v5589
    %v5594 = vlaneseq
    %v5595 = vshrl.u32 %v5594, 7
    %v5596 = vsub.s32 0, %v5595
    %v5597 = vrot.slane %v5558, %v5596
    %v5599 = vadd.f32 %v5591, %v5597
    %v5600 = vadd.f32 %v5592, %v5597
    %v5601 = vld [vmem:[%s65] sm:$0xff]
    %v5602 = vld [vmem:[%s65 + $0x8] sm:$0xff]
    %v5603 = vld [vmem:[%s65 + $0x10] sm:$0xff]
    %v5604 = vld [vmem:[%s65 + $0x18] sm:$0xff]
    %v5605 = vld [vmem:[#allocation4] sm:$0x1]
    %v5607 = vlaneseq
    %v5608 = vshrl.u32 %v5607, 7
    %v5609 = vsub.s32 0, %v5608
    %v5610 = vrot.slane %v5605, %v5609
    %v5613 = vsel %vm398, %v5599, 0
    %v5616 = vsel %vm398, %v5600, 0
    %5618 = vmatprep.subr.mxu0 0.0
    %5619 = vmatpush1.msra.mxu0 0.0
    %5620 = vmatprep.subr.mxu0 0.0
    %5621 = vmatpush1.msra.mxu0 0.0
    %5622 = vmatprep.subr.mxu0 0.0
    %5623 = vmatpush1.msra.mxu0 0.0
    %5624 = vmatprep.subr.mxu0 0.0
    %5625 = vmatpush1.msra.mxu0 0.0
    %5626 = vmatprep.subr.mxu0 0.0
    %5627 = vmatpush1.msra.mxu0 0.0
    %5628 = vmatprep.subr.mxu0 0.0
    %5629 = vmatpush1.msra.mxu0 0.0
    %5630 = vmatprep.subr.mxu0 0.0
    %5631 = vmatpush1.msra.mxu0 0.0
    %5632 = vmatprep.subr.mxu0 0.0
    %5633 = vmatpush1.msra.mxu0 0.0
    %5634 = vmatprep.subr.mxu0 0.0
    %5635 = vmatpush1.msra.mxu0 0.0
    %5636 = vmatprep.subr.mxu0 0.0
    %5637 = vmatpush1.msra.mxu0 0.0
    %5638 = vmatprep.subr.mxu0 0.0
    %5639 = vmatpush1.msra.mxu0 0.0
    %5640 = vmatprep.subr.mxu0 0.0
    %5641 = vmatpush1.msra.mxu0 0.0
    %5642 = vmatprep.subr.mxu0 0.0
    %5643 = vmatpush1.msra.mxu0 %v5604
    %5644 = vmatprep.subr.mxu0 0.0
    %5645 = vmatpush1.msra.mxu0 %v5603
    %5646 = vmatprep.subr.mxu0 0.0
    %5647 = vmatpush1.msra.mxu0 %v5602
    %5648 = vmatprep.subr.mxu0 0.0
    %5649 = vmatpush1.msra.mxu0 %v5601
    %5650 = vmatprep.subr.mxu0 0.0
    %5651 = vmatpush2.msra.mxu0 0.0
    %5652 = vmatprep.subr.mxu0 0.0
    %5653 = vmatpush2.msra.mxu0 0.0
    %5654 = vmatprep.subr.mxu0 0.0
    %5655 = vmatpush2.msra.mxu0 0.0
    %5656 = vmatprep.subr.mxu0 0.0
    %5657 = vmatpush2.msra.mxu0 0.0
    %5658 = vmatprep.subr.mxu0 0.0
    %5659 = vmatpush2.msra.mxu0 0.0
    %5660 = vmatprep.subr.mxu0 0.0
    %5661 = vmatpush2.msra.mxu0 0.0
    %5662 = vmatprep.subr.mxu0 0.0
    %5663 = vmatpush2.msra.mxu0 0.0
    %5664 = vmatprep.subr.mxu0 0.0
    %5665 = vmatpush2.msra.mxu0 0.0
    %5666 = vmatprep.subr.mxu0 0.0
    %5667 = vmatpush2.msra.mxu0 0.0
    %5668 = vmatprep.subr.mxu0 0.0
    %5669 = vmatpush2.msra.mxu0 0.0
    %5670 = vmatprep.subr.mxu0 0.0
    %5671 = vmatpush2.msra.mxu0 0.0
    %5672 = vmatprep.subr.mxu0 0.0
    %5673 = vmatpush2.msra.mxu0 0.0
    %5674 = vmatprep.subr.mxu0 0.0
    %5675 = vmatpush2.msra.mxu0 0.0
    %5676 = vmatprep.subr.mxu0 0.0
    %5677 = vmatpush2.msra.mxu0 0.0
    %5678 = vmatprep.subr.mxu0 0.0
    %5679 = vmatpush2.msra.mxu0 0.0
    %5680 = vmatprep.subr.mxu0 0.0
    %5681 = vmatpush2.msra.mxu0 0.0
    %5682 = vmatprep.mubr.f32.mxu0 0.0
    %5683 = vmatmul.mubr.f32.gmra.mxu0 %v5613
    %v5684 = vpop.f32.mrf.mxu0
    %v5685 = vadd.f32 %v5610, %v5684
    %v5686 = vpop.f32.mrf.mxu0
    %5687 = vmatprep.mubr.f32.mxu0 0.0
    %5688 = vmatmul.mubr.f32.gmra.mxu0 %v5616
    %v5689 = vpop.f32.mrf.mxu0
    %v5690 = vadd.f32 %v5610, %v5689
    %v5691 = vpop.f32.mrf.mxu0
    %5692 = vdwg.mxu0
    %v5693 = vld [vmem:[%s69] sm:$0xff]
    %v5694 = vld [vmem:[%s69 + $0x8] sm:$0xff]
    %v5695 = vld [vmem:[%s69 + $0x10] sm:$0xff]
    %v5696 = vld [vmem:[%s69 + $0x18] sm:$0xff]
    %v5697 = vld [vmem:[%s69 + $0x20] sm:$0xff]
    %v5698 = vld [vmem:[%s69 + $0x28] sm:$0xff]
    %v5699 = vld [vmem:[%s69 + $0x30] sm:$0xff]
    %v5700 = vld [vmem:[%s69 + $0x38] sm:$0xff]
    %v5701 = vld [vmem:[%s69 + $0x40] sm:$0xff]
    %v5702 = vld [vmem:[%s69 + $0x48] sm:$0xff]
    %v5703 = vld [vmem:[%s69 + $0x50] sm:$0xff]
    %v5704 = vld [vmem:[%s69 + $0x58] sm:$0xff]
    %v5705 = vld [vmem:[%s69 + $0x60] sm:$0xff]
    %v5706 = vld [vmem:[%s69 + $0x68] sm:$0xff]
    %v5707 = vld [vmem:[%s69 + $0x70] sm:$0xff]
    %v5708 = vld [vmem:[%s69 + $0x78] sm:$0xff]
    %v5709 = vld [vmem:[%s69 + $0x80] sm:$0xff]
    %v5710 = vld [vmem:[%s69 + $0x88] sm:$0xff]
    %v5711 = vld [vmem:[%s69 + $0x90] sm:$0xff]
    %v5712 = vld [vmem:[%s69 + $0x98] sm:$0xff]
    %v5713 = vld [vmem:[#allocation32] sm:$0x1f]
    %vm5714 = vcmask 7168
    %v5715 = vsel %vm5714, %v5685, -inf
    %v5716 = vrot.slane %v5715, 4
    %v5717 = vmax.f32 %v5715, %v5716
    %v5718 = vrot.slane %v5717, 2
    %v5719 = vmax.f32 %v5717, %v5718
    %v5720 = vrot.slane %v5719, 1
    %v5721 = vmax.f32 %v5719, %v5720
    %v5722 = vsub.f32 %v5685, %v5721
    %v5723 = vmul.f32 %v5722, 1.442695
    %v5724 = vpow.pop %v5723
    %v5725 = vsel %vm5714, %v5724, 0.0
    %v5726 = vrot.slane %v5725, 4
    %v5727 = vadd.f32 %v5725, %v5726
    %v5728 = vrot.slane %v5727, 2
    %v5729 = vadd.f32 %v5727, %v5728
    %v5730 = vrot.slane %v5729, 1
    %v5731 = vadd.f32 %v5729, %v5730
    %v5732 = vrcp.pop %v5731
    %v5733 = vmul.f32 %v5724, %v5732
    %5734 = vxpose.xlu0.b32.start [1/16] %v5733, 128
    %5735 = vxpose.xlu0.b32.cont [2/16] 0.0, 128
    %5736 = vxpose.xlu0.b32.cont [3/16] 0.0, 128
    %5737 = vxpose.xlu0.b32.cont [4/16] 0.0, 128
    %5738 = vxpose.xlu0.b32.cont [5/16] 0.0, 128
    %5739 = vxpose.xlu0.b32.cont [6/16] 0.0, 128
    %5740 = vxpose.xlu0.b32.cont [7/16] 0.0, 128
    %5741 = vxpose.xlu0.b32.cont [8/16] 0.0, 128
    %5742 = vxpose.xlu0.b32.cont [9/16] 0.0, 128
    %5743 = vxpose.xlu0.b32.cont [10/16] 0.0, 128
    %5744 = vxpose.xlu0.b32.cont [11/16] 0.0, 128
    %5745 = vxpose.xlu0.b32.cont [12/16] 0.0, 128
    %5746 = vxpose.xlu0.b32.cont [13/16] 0.0, 128
    %5747 = vxpose.xlu0.b32.cont [14/16] 0.0, 128
    %5748 = vxpose.xlu0.b32.cont [15/16] 0.0, 128
    %5749 = vxpose.xlu0.b32.end [16/16] 0.0, 128
    %v5750 = vpop.trf.xlu0
    %v5751 = vpop.trf.xlu0
    %v5752 = vpop.trf.xlu0
    %v5753 = vpop.trf.xlu0
    %v5754 = vpop.trf.xlu0
    %v5755 = vpop.trf.xlu0
    %v5756 = vpop.trf.xlu0
    %v5757 = vpop.trf.xlu0
    %v5758 = vpop.trf.xlu0
    %v5759 = vpop.trf.xlu0
    %v5760 = vpop.trf.xlu0
    %v5761 = vpop.trf.xlu0
    %v5762 = vpop.trf.xlu0
    %v5763 = vpop.trf.xlu0
    %v5764 = vpop.trf.xlu0
    %v5765 = vpop.trf.xlu0
    %v5767 = vsel %vm891, %v5750, 0
    %5769 = vmatprep.subr.mxu0 0.0
    %5770 = vmatpush1.msra.mxu0 0.0
    %5771 = vmatprep.subr.mxu0 0.0
    %5772 = vmatpush1.msra.mxu0 0.0
    %5773 = vmatprep.subr.mxu0 0.0
    %5774 = vmatpush1.msra.mxu0 0.0
    %5775 = vmatprep.subr.mxu0 0.0
    %5776 = vmatpush1.msra.mxu0 0.0
    %5777 = vmatprep.subr.mxu0 0.0
    %5778 = vmatpush1.msra.mxu0 0.0
    %5779 = vmatprep.subr.mxu0 0.0
    %5780 = vmatpush1.msra.mxu0 0.0
    %5781 = vmatprep.subr.mxu0 0.0
    %5782 = vmatpush1.msra.mxu0 0.0
    %5783 = vmatprep.subr.mxu0 0.0
    %5784 = vmatpush1.msra.mxu0 0.0
    %5785 = vmatprep.subr.mxu0 0.0
    %5786 = vmatpush1.msra.mxu0 0.0
    %5787 = vmatprep.subr.mxu0 0.0
    %5788 = vmatpush1.msra.mxu0 0.0
    %5789 = vmatprep.subr.mxu0 0.0
    %5790 = vmatpush1.msra.mxu0 0.0
    %5791 = vmatprep.subr.mxu0 0.0
    %5792 = vmatpush1.msra.mxu0 0.0
    %5793 = vmatprep.subr.mxu0 0.0
    %5794 = vmatpush1.msra.mxu0 0.0
    %5795 = vmatprep.subr.mxu0 0.0
    %5796 = vmatpush1.msra.mxu0 0.0
    %5797 = vmatprep.subr.mxu0 0.0
    %5798 = vmatpush1.msra.mxu0 0.0
    %5799 = vmatprep.subr.mxu0 0.0
    %5800 = vmatpush1.msra.mxu0 %v5599
    %5801 = vmatprep.subr.mxu0 0.0
    %5802 = vmatpush2.msra.mxu0 0.0
    %5803 = vmatprep.subr.mxu0 0.0
    %5804 = vmatpush2.msra.mxu0 0.0
    %5805 = vmatprep.subr.mxu0 0.0
    %5806 = vmatpush2.msra.mxu0 0.0
    %5807 = vmatprep.subr.mxu0 0.0
    %5808 = vmatpush2.msra.mxu0 0.0
    %5809 = vmatprep.subr.mxu0 0.0
    %5810 = vmatpush2.msra.mxu0 0.0
    %5811 = vmatprep.subr.mxu0 0.0
    %5812 = vmatpush2.msra.mxu0 0.0
    %5813 = vmatprep.subr.mxu0 0.0
    %5814 = vmatpush2.msra.mxu0 0.0
    %5815 = vmatprep.subr.mxu0 0.0
    %5816 = vmatpush2.msra.mxu0 0.0
    %5817 = vmatprep.subr.mxu0 0.0
    %5818 = vmatpush2.msra.mxu0 0.0
    %5819 = vmatprep.subr.mxu0 0.0
    %5820 = vmatpush2.msra.mxu0 0.0
    %5821 = vmatprep.subr.mxu0 0.0
    %5822 = vmatpush2.msra.mxu0 0.0
    %5823 = vmatprep.subr.mxu0 0.0
    %5824 = vmatpush2.msra.mxu0 0.0
    %5825 = vmatprep.subr.mxu0 0.0
    %5826 = vmatpush2.msra.mxu0 0.0
    %5827 = vmatprep.subr.mxu0 0.0
    %5828 = vmatpush2.msra.mxu0 0.0
    %5829 = vmatprep.subr.mxu0 0.0
    %5830 = vmatpush2.msra.mxu0 0.0
    %5831 = vmatprep.subr.mxu0 0.0
    %5832 = vmatpush2.msra.mxu0 0.0
    %5833 = vmatprep.mubr.f32.mxu0 0.0
    %5834 = vmatmul.mubr.f32.gmra.mxu0 %v5767
    %v5835 = vpop.f32.mrf.mxu0
    %v5836 = vadd.f32 0.0, %v5835
    %v5837 = vpop.f32.mrf.mxu0
    %5838 = vdwg.mxu0
    %v5840 = vlaneseq
    %v5841 = vshrl.u32 %v5840, 7
    %v5842 = vsub.s32 0, %v5841
    %v5843 = vrot.slane %v5713, %v5842
    %v5844 = vlaneseq
    %v5845 = vshrl.u32 %v5844, 7
    %v5846 = vsub.s32 1, %v5845
    %v5847 = vrot.slane %v5713, %v5846
    %v5848 = vlaneseq
    %v5849 = vshrl.u32 %v5848, 7
    %v5850 = vsub.s32 2, %v5849
    %v5851 = vrot.slane %v5713, %v5850
    %v5852 = vlaneseq
    %v5853 = vshrl.u32 %v5852, 7
    %v5854 = vsub.s32 3, %v5853
    %v5855 = vrot.slane %v5713, %v5854
    %v5856 = vlaneseq
    %v5857 = vshrl.u32 %v5856, 7
    %v5858 = vsub.s32 4, %v5857
    %v5859 = vrot.slane %v5713, %v5858
    %v5866 = vsel %vm398, %v5836, 0
    %5868 = vmatprep.subr.mxu0 0.0
    %5869 = vmatpush1.msra.mxu0 0.0
    %5870 = vmatprep.subr.mxu0 0.0
    %5871 = vmatpush1.msra.mxu0 0.0
    %5872 = vmatprep.subr.mxu0 0.0
    %5873 = vmatpush1.msra.mxu0 0.0
    %5874 = vmatprep.subr.mxu0 0.0
    %5875 = vmatpush1.msra.mxu0 0.0
    %5876 = vmatprep.subr.mxu0 0.0
    %5877 = vmatpush1.msra.mxu0 0.0
    %5878 = vmatprep.subr.mxu0 0.0
    %5879 = vmatpush1.msra.mxu0 0.0
    %5880 = vmatprep.subr.mxu0 0.0
    %5881 = vmatpush1.msra.mxu0 0.0
    %5882 = vmatprep.subr.mxu0 0.0
    %5883 = vmatpush1.msra.mxu0 0.0
    %5884 = vmatprep.subr.mxu0 0.0
    %5885 = vmatpush1.msra.mxu0 0.0
    %5886 = vmatprep.subr.mxu0 0.0
    %5887 = vmatpush1.msra.mxu0 0.0
    %5888 = vmatprep.subr.mxu0 0.0
    %5889 = vmatpush1.msra.mxu0 0.0
    %5890 = vmatprep.subr.mxu0 0.0
    %5891 = vmatpush1.msra.mxu0 0.0
    %5892 = vmatprep.subr.mxu0 %v5709
    %5893 = vmatpush1.msra.mxu0 %v5708
    %5894 = vmatprep.subr.mxu0 %v5704
    %5895 = vmatpush1.msra.mxu0 %v5703
    %5896 = vmatprep.subr.mxu0 %v5699
    %5897 = vmatpush1.msra.mxu0 %v5698
    %5898 = vmatprep.subr.mxu0 %v5694
    %5899 = vmatpush1.msra.mxu0 %v5693
    %5900 = vmatprep.subr.mxu0 0.0
    %5901 = vmatpush2.msra.mxu0 0.0
    %5902 = vmatprep.subr.mxu0 0.0
    %5903 = vmatpush2.msra.mxu0 0.0
    %5904 = vmatprep.subr.mxu0 0.0
    %5905 = vmatpush2.msra.mxu0 0.0
    %5906 = vmatprep.subr.mxu0 0.0
    %5907 = vmatpush2.msra.mxu0 0.0
    %5908 = vmatprep.subr.mxu0 0.0
    %5909 = vmatpush2.msra.mxu0 0.0
    %5910 = vmatprep.subr.mxu0 0.0
    %5911 = vmatpush2.msra.mxu0 0.0
    %5912 = vmatprep.subr.mxu0 0.0
    %5913 = vmatpush2.msra.mxu0 0.0
    %5914 = vmatprep.subr.mxu0 0.0
    %5915 = vmatpush2.msra.mxu0 0.0
    %5916 = vmatprep.subr.mxu0 0.0
    %5917 = vmatpush2.msra.mxu0 0.0
    %5918 = vmatprep.subr.mxu0 0.0
    %5919 = vmatpush2.msra.mxu0 0.0
    %5920 = vmatprep.subr.mxu0 0.0
    %5921 = vmatpush2.msra.mxu0 0.0
    %5922 = vmatprep.subr.mxu0 0.0
    %5923 = vmatpush2.msra.mxu0 0.0
    %5924 = vmatprep.subr.mxu0 0.0
    %5925 = vmatpush2.msra.mxu0 0.0
    %5926 = vmatprep.subr.mxu0 0.0
    %5927 = vmatpush2.msra.mxu0 0.0
    %5928 = vmatprep.subr.mxu0 0.0
    %5929 = vmatpush2.msra.mxu0 0.0
    %5930 = vmatprep.subr.mxu0 0.0
    %5931 = vmatpush2.msra.mxu0 0.0
    %5932 = vmatprep.mubr.f32.mxu0 0.0
    %5933 = vmatmul.mubr.f32.gmra.mxu0 %v5866
    %v5934 = vpop.f32.mrf.mxu0
    %v5935 = vadd.f32 %v5843, %v5934
    %v5936 = vpop.f32.mrf.mxu0
    %v5937 = vadd.f32 %v5847, %v5936
    %5938 = vdwg.mxu0
    %5939 = vmatprep.subr.mxu0 0.0
    %5940 = vmatpush1.msra.mxu0 0.0
    %5941 = vmatprep.subr.mxu0 0.0
    %5942 = vmatpush1.msra.mxu0 0.0
    %5943 = vmatprep.subr.mxu0 0.0
    %5944 = vmatpush1.msra.mxu0 0.0
    %5945 = vmatprep.subr.mxu0 0.0
    %5946 = vmatpush1.msra.mxu0 0.0
    %5947 = vmatprep.subr.mxu0 0.0
    %5948 = vmatpush1.msra.mxu0 0.0
    %5949 = vmatprep.subr.mxu0 0.0
    %5950 = vmatpush1.msra.mxu0 0.0
    %5951 = vmatprep.subr.mxu0 0.0
    %5952 = vmatpush1.msra.mxu0 0.0
    %5953 = vmatprep.subr.mxu0 0.0
    %5954 = vmatpush1.msra.mxu0 0.0
    %5955 = vmatprep.subr.mxu0 0.0
    %5956 = vmatpush1.msra.mxu0 0.0
    %5957 = vmatprep.subr.mxu0 0.0
    %5958 = vmatpush1.msra.mxu0 0.0
    %5959 = vmatprep.subr.mxu0 0.0
    %5960 = vmatpush1.msra.mxu0 0.0
    %5961 = vmatprep.subr.mxu0 0.0
    %5962 = vmatpush1.msra.mxu0 0.0
    %5963 = vmatprep.subr.mxu0 %v5711
    %5964 = vmatpush1.msra.mxu0 %v5710
    %5965 = vmatprep.subr.mxu0 %v5706
    %5966 = vmatpush1.msra.mxu0 %v5705
    %5967 = vmatprep.subr.mxu0 %v5701
    %5968 = vmatpush1.msra.mxu0 %v5700
    %5969 = vmatprep.subr.mxu0 %v5696
    %5970 = vmatpush1.msra.mxu0 %v5695
    %5971 = vmatprep.subr.mxu0 0.0
    %5972 = vmatpush2.msra.mxu0 0.0
    %5973 = vmatprep.subr.mxu0 0.0
    %5974 = vmatpush2.msra.mxu0 0.0
    %5975 = vmatprep.subr.mxu0 0.0
    %5976 = vmatpush2.msra.mxu0 0.0
    %5977 = vmatprep.subr.mxu0 0.0
    %5978 = vmatpush2.msra.mxu0 0.0
    %5979 = vmatprep.subr.mxu0 0.0
    %5980 = vmatpush2.msra.mxu0 0.0
    %5981 = vmatprep.subr.mxu0 0.0
    %5982 = vmatpush2.msra.mxu0 0.0
    %5983 = vmatprep.subr.mxu0 0.0
    %5984 = vmatpush2.msra.mxu0 0.0
    %5985 = vmatprep.subr.mxu0 0.0
    %5986 = vmatpush2.msra.mxu0 0.0
    %5987 = vmatprep.subr.mxu0 0.0
    %5988 = vmatpush2.msra.mxu0 0.0
    %5989 = vmatprep.subr.mxu0 0.0
    %5990 = vmatpush2.msra.mxu0 0.0
    %5991 = vmatprep.subr.mxu0 0.0
    %5992 = vmatpush2.msra.mxu0 0.0
    %5993 = vmatprep.subr.mxu0 0.0
    %5994 = vmatpush2.msra.mxu0 0.0
    %5995 = vmatprep.subr.mxu0 0.0
    %5996 = vmatpush2.msra.mxu0 0.0
    %5997 = vmatprep.subr.mxu0 0.0
    %5998 = vmatpush2.msra.mxu0 0.0
    %5999 = vmatprep.subr.mxu0 0.0
    %6000 = vmatpush2.msra.mxu0 0.0
    %6001 = vmatprep.subr.mxu0 0.0
    %6002 = vmatpush2.msra.mxu0 0.0
    %6003 = vmatprep.mubr.f32.mxu0 0.0
    %6004 = vmatmul.mubr.f32.gmra.mxu0 %v5866
    %v6005 = vpop.f32.mrf.mxu0
    %v6006 = vadd.f32 %v5851, %v6005
    %v6007 = vpop.f32.mrf.mxu0
    %v6008 = vadd.f32 %v5855, %v6007
    %6009 = vdwg.mxu0
    %6010 = vmatprep.subr.mxu0 0.0
    %6011 = vmatpush1.msra.mxu0 0.0
    %6012 = vmatprep.subr.mxu0 0.0
    %6013 = vmatpush1.msra.mxu0 0.0
    %6014 = vmatprep.subr.mxu0 0.0
    %6015 = vmatpush1.msra.mxu0 0.0
    %6016 = vmatprep.subr.mxu0 0.0
    %6017 = vmatpush1.msra.mxu0 0.0
    %6018 = vmatprep.subr.mxu0 0.0
    %6019 = vmatpush1.msra.mxu0 0.0
    %6020 = vmatprep.subr.mxu0 0.0
    %6021 = vmatpush1.msra.mxu0 0.0
    %6022 = vmatprep.subr.mxu0 0.0
    %6023 = vmatpush1.msra.mxu0 0.0
    %6024 = vmatprep.subr.mxu0 0.0
    %6025 = vmatpush1.msra.mxu0 0.0
    %6026 = vmatprep.subr.mxu0 0.0
    %6027 = vmatpush1.msra.mxu0 0.0
    %6028 = vmatprep.subr.mxu0 0.0
    %6029 = vmatpush1.msra.mxu0 0.0
    %6030 = vmatprep.subr.mxu0 0.0
    %6031 = vmatpush1.msra.mxu0 0.0
    %6032 = vmatprep.subr.mxu0 0.0
    %6033 = vmatpush1.msra.mxu0 0.0
    %6034 = vmatprep.subr.mxu0 0.0
    %6035 = vmatpush1.msra.mxu0 %v5712
    %6036 = vmatprep.subr.mxu0 0.0
    %6037 = vmatpush1.msra.mxu0 %v5707
    %6038 = vmatprep.subr.mxu0 0.0
    %6039 = vmatpush1.msra.mxu0 %v5702
    %6040 = vmatprep.subr.mxu0 0.0
    %6041 = vmatpush1.msra.mxu0 %v5697
    %6042 = vmatprep.subr.mxu0 0.0
    %6043 = vmatpush2.msra.mxu0 0.0
    %6044 = vmatprep.subr.mxu0 0.0
    %6045 = vmatpush2.msra.mxu0 0.0
    %6046 = vmatprep.subr.mxu0 0.0
    %6047 = vmatpush2.msra.mxu0 0.0
    %6048 = vmatprep.subr.mxu0 0.0
    %6049 = vmatpush2.msra.mxu0 0.0
    %6050 = vmatprep.subr.mxu0 0.0
    %6051 = vmatpush2.msra.mxu0 0.0
    %6052 = vmatprep.subr.mxu0 0.0
    %6053 = vmatpush2.msra.mxu0 0.0
    %6054 = vmatprep.subr.mxu0 0.0
    %6055 = vmatpush2.msra.mxu0 0.0
    %6056 = vmatprep.subr.mxu0 0.0
    %6057 = vmatpush2.msra.mxu0 0.0
    %6058 = vmatprep.subr.mxu0 0.0
    %6059 = vmatpush2.msra.mxu0 0.0
    %6060 = vmatprep.subr.mxu0 0.0
    %6061 = vmatpush2.msra.mxu0 0.0
    %6062 = vmatprep.subr.mxu0 0.0
    %6063 = vmatpush2.msra.mxu0 0.0
    %6064 = vmatprep.subr.mxu0 0.0
    %6065 = vmatpush2.msra.mxu0 0.0
    %6066 = vmatprep.subr.mxu0 0.0
    %6067 = vmatpush2.msra.mxu0 0.0
    %6068 = vmatprep.subr.mxu0 0.0
    %6069 = vmatpush2.msra.mxu0 0.0
    %6070 = vmatprep.subr.mxu0 0.0
    %6071 = vmatpush2.msra.mxu0 0.0
    %6072 = vmatprep.subr.mxu0 0.0
    %6073 = vmatpush2.msra.mxu0 0.0
    %6074 = vmatprep.mubr.f32.mxu0 0.0
    %6075 = vmatmul.mubr.f32.gmra.mxu0 %v5866
    %v6076 = vpop.f32.mrf.mxu0
    %v6077 = vadd.f32 %v5859, %v6076
    %v6078 = vpop.f32.mrf.mxu0
    %6079 = vdwg.mxu0
    %v6085 = vcombine.low %v5935, %v5937
    %v6086 = vcombine.low %v6006, %v6008
    %v6088 = vunpack.c.l.s4 1966171168
    %v6089 = vunpack.c.0.s8 %v6088
    %v6090 = vlaneseq
    %v6091 = vshrl.u32 %v6090, 7
    %v6092 = vsub.s32 %v6089, %v6091
    %v6093 = vrot.slane %v6085, %v6092
    %v6095 = vunpack.c.l.s4 1966171168
    %v6096 = vunpack.c.0.s8 %v6095
    %v6097 = vlaneseq
    %v6098 = vshrl.u32 %v6097, 7
    %v6099 = vsub.s32 %v6096, %v6098
    %v6100 = vrot.slane %v6086, %v6099
    %v6102 = vunpack.c.l.s4 1966171168
    %v6103 = vunpack.c.0.s8 %v6102
    %v6104 = vlaneseq
    %v6105 = vshrl.u32 %v6104, 7
    %v6106 = vsub.s32 %v6103, %v6105
    %v6107 = vrot.slane %v6077, %v6106
    %v6108 = vcombine.low %v6093, %v6100
    %v6110 = vunpack.c.l.s4 1966171168
    %v6111 = vunpack.c.0.s8 %v6110
    %v6112 = vlaneseq
    %v6113 = vshrl.u32 %v6112, 7
    %v6114 = vsub.s32 %v6111, %v6113
    %v6115 = vrot.slane %v6108, %v6114
    %v6117 = vunpack.c.l.s4 1966171168
    %v6118 = vunpack.c.0.s8 %v6117
    %v6119 = vlaneseq
    %v6120 = vshrl.u32 %v6119, 7
    %v6121 = vsub.s32 %v6118, %v6120
    %v6122 = vrot.slane %v6107, %v6121
    %v6123 = vcombine.low %v6115, %v6122
    %v6125 = vlaneseq
    %vm6126 = vcmp.ge.s32.totalorder %v6125, 0
    %vm6127 = vcmp.lt.s32.totalorder %v6125, 640
    %vm6128 = vmand %vm6126, %vm6127
    %6129 = vst.msk [vmem:[#allocation34] ss:$2 sm:$0x1f] %vm6128, %v6123
    %v6130 = vsel %vm5714, %v5690, -inf
    %v6131 = vrot.slane %v6130, 4
    %v6132 = vmax.f32 %v6130, %v6131
    %v6133 = vrot.slane %v6132, 2
    %v6134 = vmax.f32 %v6132, %v6133
    %v6135 = vrot.slane %v6134, 1
    %v6136 = vmax.f32 %v6134, %v6135
    %v6137 = vsub.f32 %v5690, %v6136
    %v6138 = vmul.f32 %v6137, 1.442695
    %v6139 = vpow.pop %v6138
    %v6140 = vsel %vm5714, %v6139, 0.0
    %v6141 = vrot.slane %v6140, 4
    %v6142 = vadd.f32 %v6140, %v6141
    %v6143 = vrot.slane %v6142, 2
    %v6144 = vadd.f32 %v6142, %v6143
    %v6145 = vrot.slane %v6144, 1
    %v6146 = vadd.f32 %v6144, %v6145
    %v6147 = vrcp.pop %v6146
    %v6148 = vmul.f32 %v6139, %v6147
    %6149 = vxpose.xlu0.b32.start [1/16] %v6148, 128
    %6150 = vxpose.xlu0.b32.cont [2/16] 0.0, 128
    %6151 = vxpose.xlu0.b32.cont [3/16] 0.0, 128
    %6152 = vxpose.xlu0.b32.cont [4/16] 0.0, 128
    %6153 = vxpose.xlu0.b32.cont [5/16] 0.0, 128
    %6154 = vxpose.xlu0.b32.cont [6/16] 0.0, 128
    %6155 = vxpose.xlu0.b32.cont [7/16] 0.0, 128
    %6156 = vxpose.xlu0.b32.cont [8/16] 0.0, 128
    %6157 = vxpose.xlu0.b32.cont [9/16] 0.0, 128
    %6158 = vxpose.xlu0.b32.cont [10/16] 0.0, 128
    %6159 = vxpose.xlu0.b32.cont [11/16] 0.0, 128
    %6160 = vxpose.xlu0.b32.cont [12/16] 0.0, 128
    %6161 = vxpose.xlu0.b32.cont [13/16] 0.0, 128
    %6162 = vxpose.xlu0.b32.cont [14/16] 0.0, 128
    %6163 = vxpose.xlu0.b32.cont [15/16] 0.0, 128
    %6164 = vxpose.xlu0.b32.end [16/16] 0.0, 128
    %v6165 = vpop.trf.xlu0
    %v6166 = vpop.trf.xlu0
    %v6167 = vpop.trf.xlu0
    %v6168 = vpop.trf.xlu0
    %v6169 = vpop.trf.xlu0
    %v6170 = vpop.trf.xlu0
    %v6171 = vpop.trf.xlu0
    %v6172 = vpop.trf.xlu0
    %v6173 = vpop.trf.xlu0
    %v6174 = vpop.trf.xlu0
    %v6175 = vpop.trf.xlu0
    %v6176 = vpop.trf.xlu0
    %v6177 = vpop.trf.xlu0
    %v6178 = vpop.trf.xlu0
    %v6179 = vpop.trf.xlu0
    %v6180 = vpop.trf.xlu0
    %v6182 = vsel %vm891, %v6165, 0
    %6184 = vmatprep.subr.mxu0 0.0
    %6185 = vmatpush1.msra.mxu0 0.0
    %6186 = vmatprep.subr.mxu0 0.0
    %6187 = vmatpush1.msra.mxu0 0.0
    %6188 = vmatprep.subr.mxu0 0.0
    %6189 = vmatpush1.msra.mxu0 0.0
    %6190 = vmatprep.subr.mxu0 0.0
    %6191 = vmatpush1.msra.mxu0 0.0
    %6192 = vmatprep.subr.mxu0 0.0
    %6193 = vmatpush1.msra.mxu0 0.0
    %6194 = vmatprep.subr.mxu0 0.0
    %6195 = vmatpush1.msra.mxu0 0.0
    %6196 = vmatprep.subr.mxu0 0.0
    %6197 = vmatpush1.msra.mxu0 0.0
    %6198 = vmatprep.subr.mxu0 0.0
    %6199 = vmatpush1.msra.mxu0 0.0
    %6200 = vmatprep.subr.mxu0 0.0
    %6201 = vmatpush1.msra.mxu0 0.0
    %6202 = vmatprep.subr.mxu0 0.0
    %6203 = vmatpush1.msra.mxu0 0.0
    %6204 = vmatprep.subr.mxu0 0.0
    %6205 = vmatpush1.msra.mxu0 0.0
    %6206 = vmatprep.subr.mxu0 0.0
    %6207 = vmatpush1.msra.mxu0 0.0
    %6208 = vmatprep.subr.mxu0 0.0
    %6209 = vmatpush1.msra.mxu0 0.0
    %6210 = vmatprep.subr.mxu0 0.0
    %6211 = vmatpush1.msra.mxu0 0.0
    %6212 = vmatprep.subr.mxu0 0.0
    %6213 = vmatpush1.msra.mxu0 0.0
    %6214 = vmatprep.subr.mxu0 0.0
    %6215 = vmatpush1.msra.mxu0 %v5600
    %6216 = vmatprep.subr.mxu0 0.0
    %6217 = vmatpush2.msra.mxu0 0.0
    %6218 = vmatprep.subr.mxu0 0.0
    %6219 = vmatpush2.msra.mxu0 0.0
    %6220 = vmatprep.subr.mxu0 0.0
    %6221 = vmatpush2.msra.mxu0 0.0
    %6222 = vmatprep.subr.mxu0 0.0
    %6223 = vmatpush2.msra.mxu0 0.0
    %6224 = vmatprep.subr.mxu0 0.0
    %6225 = vmatpush2.msra.mxu0 0.0
    %6226 = vmatprep.subr.mxu0 0.0
    %6227 = vmatpush2.msra.mxu0 0.0
    %6228 = vmatprep.subr.mxu0 0.0
    %6229 = vmatpush2.msra.mxu0 0.0
    %6230 = vmatprep.subr.mxu0 0.0
    %6231 = vmatpush2.msra.mxu0 0.0
    %6232 = vmatprep.subr.mxu0 0.0
    %6233 = vmatpush2.msra.mxu0 0.0
    %6234 = vmatprep.subr.mxu0 0.0
    %6235 = vmatpush2.msra.mxu0 0.0
    %6236 = vmatprep.subr.mxu0 0.0
    %6237 = vmatpush2.msra.mxu0 0.0
    %6238 = vmatprep.subr.mxu0 0.0
    %6239 = vmatpush2.msra.mxu0 0.0
    %6240 = vmatprep.subr.mxu0 0.0
    %6241 = vmatpush2.msra.mxu0 0.0
    %6242 = vmatprep.subr.mxu0 0.0
    %6243 = vmatpush2.msra.mxu0 0.0
    %6244 = vmatprep.subr.mxu0 0.0
    %6245 = vmatpush2.msra.mxu0 0.0
    %6246 = vmatprep.subr.mxu0 0.0
    %6247 = vmatpush2.msra.mxu0 0.0
    %6248 = vmatprep.mubr.f32.mxu0 0.0
    %6249 = vmatmul.mubr.f32.gmra.mxu0 %v6182
    %v6250 = vpop.f32.mrf.mxu0
    %v6251 = vadd.f32 0.0, %v6250
    %v6252 = vpop.f32.mrf.mxu0
    %6253 = vdwg.mxu0
    %v6255 = vsel %vm398, %v6251, 0
    %6257 = vmatprep.subr.mxu0 0.0
    %6258 = vmatpush1.msra.mxu0 0.0
    %6259 = vmatprep.subr.mxu0 0.0
    %6260 = vmatpush1.msra.mxu0 0.0
    %6261 = vmatprep.subr.mxu0 0.0
    %6262 = vmatpush1.msra.mxu0 0.0
    %6263 = vmatprep.subr.mxu0 0.0
    %6264 = vmatpush1.msra.mxu0 0.0
    %6265 = vmatprep.subr.mxu0 0.0
    %6266 = vmatpush1.msra.mxu0 0.0
    %6267 = vmatprep.subr.mxu0 0.0
    %6268 = vmatpush1.msra.mxu0 0.0
    %6269 = vmatprep.subr.mxu0 0.0
    %6270 = vmatpush1.msra.mxu0 0.0
    %6271 = vmatprep.subr.mxu0 0.0
    %6272 = vmatpush1.msra.mxu0 0.0
    %6273 = vmatprep.subr.mxu0 0.0
    %6274 = vmatpush1.msra.mxu0 0.0
    %6275 = vmatprep.subr.mxu0 0.0
    %6276 = vmatpush1.msra.mxu0 0.0
    %6277 = vmatprep.subr.mxu0 0.0
    %6278 = vmatpush1.msra.mxu0 0.0
    %6279 = vmatprep.subr.mxu0 0.0
    %6280 = vmatpush1.msra.mxu0 0.0
    %6281 = vmatprep.subr.mxu0 %v5709
    %6282 = vmatpush1.msra.mxu0 %v5708
    %6283 = vmatprep.subr.mxu0 %v5704
    %6284 = vmatpush1.msra.mxu0 %v5703
    %6285 = vmatprep.subr.mxu0 %v5699
    %6286 = vmatpush1.msra.mxu0 %v5698
    %6287 = vmatprep.subr.mxu0 %v5694
    %6288 = vmatpush1.msra.mxu0 %v5693
    %6289 = vmatprep.subr.mxu0 0.0
    %6290 = vmatpush2.msra.mxu0 0.0
    %6291 = vmatprep.subr.mxu0 0.0
    %6292 = vmatpush2.msra.mxu0 0.0
    %6293 = vmatprep.subr.mxu0 0.0
    %6294 = vmatpush2.msra.mxu0 0.0
    %6295 = vmatprep.subr.mxu0 0.0
    %6296 = vmatpush2.msra.mxu0 0.0
    %6297 = vmatprep.subr.mxu0 0.0
    %6298 = vmatpush2.msra.mxu0 0.0
    %6299 = vmatprep.subr.mxu0 0.0
    %6300 = vmatpush2.msra.mxu0 0.0
    %6301 = vmatprep.subr.mxu0 0.0
    %6302 = vmatpush2.msra.mxu0 0.0
    %6303 = vmatprep.subr.mxu0 0.0
    %6304 = vmatpush2.msra.mxu0 0.0
    %6305 = vmatprep.subr.mxu0 0.0
    %6306 = vmatpush2.msra.mxu0 0.0
    %6307 = vmatprep.subr.mxu0 0.0
    %6308 = vmatpush2.msra.mxu0 0.0
    %6309 = vmatprep.subr.mxu0 0.0
    %6310 = vmatpush2.msra.mxu0 0.0
    %6311 = vmatprep.subr.mxu0 0.0
    %6312 = vmatpush2.msra.mxu0 0.0
    %6313 = vmatprep.subr.mxu0 0.0
    %6314 = vmatpush2.msra.mxu0 0.0
    %6315 = vmatprep.subr.mxu0 0.0
    %6316 = vmatpush2.msra.mxu0 0.0
    %6317 = vmatprep.subr.mxu0 0.0
    %6318 = vmatpush2.msra.mxu0 0.0
    %6319 = vmatprep.subr.mxu0 0.0
    %6320 = vmatpush2.msra.mxu0 0.0
    %6321 = vmatprep.mubr.f32.mxu0 0.0
    %6322 = vmatmul.mubr.f32.gmra.mxu0 %v6255
    %v6323 = vpop.f32.mrf.mxu0
    %v6324 = vadd.f32 %v5843, %v6323
    %v6325 = vpop.f32.mrf.mxu0
    %v6326 = vadd.f32 %v5847, %v6325
    %6327 = vdwg.mxu0
    %6328 = vmatprep.subr.mxu0 0.0
    %6329 = vmatpush1.msra.mxu0 0.0
    %6330 = vmatprep.subr.mxu0 0.0
    %6331 = vmatpush1.msra.mxu0 0.0
    %6332 = vmatprep.subr.mxu0 0.0
    %6333 = vmatpush1.msra.mxu0 0.0
    %6334 = vmatprep.subr.mxu0 0.0
    %6335 = vmatpush1.msra.mxu0 0.0
    %6336 = vmatprep.subr.mxu0 0.0
    %6337 = vmatpush1.msra.mxu0 0.0
    %6338 = vmatprep.subr.mxu0 0.0
    %6339 = vmatpush1.msra.mxu0 0.0
    %6340 = vmatprep.subr.mxu0 0.0
    %6341 = vmatpush1.msra.mxu0 0.0
    %6342 = vmatprep.subr.mxu0 0.0
    %6343 = vmatpush1.msra.mxu0 0.0
    %6344 = vmatprep.subr.mxu0 0.0
    %6345 = vmatpush1.msra.mxu0 0.0
    %6346 = vmatprep.subr.mxu0 0.0
    %6347 = vmatpush1.msra.mxu0 0.0
    %6348 = vmatprep.subr.mxu0 0.0
    %6349 = vmatpush1.msra.mxu0 0.0
    %6350 = vmatprep.subr.mxu0 0.0
    %6351 = vmatpush1.msra.mxu0 0.0
    %6352 = vmatprep.subr.mxu0 %v5711
    %6353 = vmatpush1.msra.mxu0 %v5710
    %6354 = vmatprep.subr.mxu0 %v5706
    %6355 = vmatpush1.msra.mxu0 %v5705
    %6356 = vmatprep.subr.mxu0 %v5701
    %6357 = vmatpush1.msra.mxu0 %v5700
    %6358 = vmatprep.subr.mxu0 %v5696
    %6359 = vmatpush1.msra.mxu0 %v5695
    %6360 = vmatprep.subr.mxu0 0.0
    %6361 = vmatpush2.msra.mxu0 0.0
    %6362 = vmatprep.subr.mxu0 0.0
    %6363 = vmatpush2.msra.mxu0 0.0
    %6364 = vmatprep.subr.mxu0 0.0
    %6365 = vmatpush2.msra.mxu0 0.0
    %6366 = vmatprep.subr.mxu0 0.0
    %6367 = vmatpush2.msra.mxu0 0.0
    %6368 = vmatprep.subr.mxu0 0.0
    %6369 = vmatpush2.msra.mxu0 0.0
    %6370 = vmatprep.subr.mxu0 0.0
    %6371 = vmatpush2.msra.mxu0 0.0
    %6372 = vmatprep.subr.mxu0 0.0
    %6373 = vmatpush2.msra.mxu0 0.0
    %6374 = vmatprep.subr.mxu0 0.0
    %6375 = vmatpush2.msra.mxu0 0.0
    %6376 = vmatprep.subr.mxu0 0.0
    %6377 = vmatpush2.msra.mxu0 0.0
    %6378 = vmatprep.subr.mxu0 0.0
    %6379 = vmatpush2.msra.mxu0 0.0
    %6380 = vmatprep.subr.mxu0 0.0
    %6381 = vmatpush2.msra.mxu0 0.0
    %6382 = vmatprep.subr.mxu0 0.0
    %6383 = vmatpush2.msra.mxu0 0.0
    %6384 = vmatprep.subr.mxu0 0.0
    %6385 = vmatpush2.msra.mxu0 0.0
    %6386 = vmatprep.subr.mxu0 0.0
    %6387 = vmatpush2.msra.mxu0 0.0
    %6388 = vmatprep.subr.mxu0 0.0
    %6389 = vmatpush2.msra.mxu0 0.0
    %6390 = vmatprep.subr.mxu0 0.0
    %6391 = vmatpush2.msra.mxu0 0.0
    %6392 = vmatprep.mubr.f32.mxu0 0.0
    %6393 = vmatmul.mubr.f32.gmra.mxu0 %v6255
    %v6394 = vpop.f32.mrf.mxu0
    %v6395 = vadd.f32 %v5851, %v6394
    %v6396 = vpop.f32.mrf.mxu0
    %v6397 = vadd.f32 %v5855, %v6396
    %6398 = vdwg.mxu0
    %6399 = vmatprep.subr.mxu0 0.0
    %6400 = vmatpush1.msra.mxu0 0.0
    %6401 = vmatprep.subr.mxu0 0.0
    %6402 = vmatpush1.msra.mxu0 0.0
    %6403 = vmatprep.subr.mxu0 0.0
    %6404 = vmatpush1.msra.mxu0 0.0
    %6405 = vmatprep.subr.mxu0 0.0
    %6406 = vmatpush1.msra.mxu0 0.0
    %6407 = vmatprep.subr.mxu0 0.0
    %6408 = vmatpush1.msra.mxu0 0.0
    %6409 = vmatprep.subr.mxu0 0.0
    %6410 = vmatpush1.msra.mxu0 0.0
    %6411 = vmatprep.subr.mxu0 0.0
    %6412 = vmatpush1.msra.mxu0 0.0
    %6413 = vmatprep.subr.mxu0 0.0
    %6414 = vmatpush1.msra.mxu0 0.0
    %6415 = vmatprep.subr.mxu0 0.0
    %6416 = vmatpush1.msra.mxu0 0.0
    %6417 = vmatprep.subr.mxu0 0.0
    %6418 = vmatpush1.msra.mxu0 0.0
    %6419 = vmatprep.subr.mxu0 0.0
    %6420 = vmatpush1.msra.mxu0 0.0
    %6421 = vmatprep.subr.mxu0 0.0
    %6422 = vmatpush1.msra.mxu0 0.0
    %6423 = vmatprep.subr.mxu0 0.0
    %6424 = vmatpush1.msra.mxu0 %v5712
    %6425 = vmatprep.subr.mxu0 0.0
    %6426 = vmatpush1.msra.mxu0 %v5707
    %6427 = vmatprep.subr.mxu0 0.0
    %6428 = vmatpush1.msra.mxu0 %v5702
    %6429 = vmatprep.subr.mxu0 0.0
    %6430 = vmatpush1.msra.mxu0 %v5697
    %6431 = vmatprep.subr.mxu0 0.0
    %6432 = vmatpush2.msra.mxu0 0.0
    %6433 = vmatprep.subr.mxu0 0.0
    %6434 = vmatpush2.msra.mxu0 0.0
    %6435 = vmatprep.subr.mxu0 0.0
    %6436 = vmatpush2.msra.mxu0 0.0
    %6437 = vmatprep.subr.mxu0 0.0
    %6438 = vmatpush2.msra.mxu0 0.0
    %6439 = vmatprep.subr.mxu0 0.0
    %6440 = vmatpush2.msra.mxu0 0.0
    %6441 = vmatprep.subr.mxu0 0.0
    %6442 = vmatpush2.msra.mxu0 0.0
    %6443 = vmatprep.subr.mxu0 0.0
    %6444 = vmatpush2.msra.mxu0 0.0
    %6445 = vmatprep.subr.mxu0 0.0
    %6446 = vmatpush2.msra.mxu0 0.0
    %6447 = vmatprep.subr.mxu0 0.0
    %6448 = vmatpush2.msra.mxu0 0.0
    %6449 = vmatprep.subr.mxu0 0.0
    %6450 = vmatpush2.msra.mxu0 0.0
    %6451 = vmatprep.subr.mxu0 0.0
    %6452 = vmatpush2.msra.mxu0 0.0
    %6453 = vmatprep.subr.mxu0 0.0
    %6454 = vmatpush2.msra.mxu0 0.0
    %6455 = vmatprep.subr.mxu0 0.0
    %6456 = vmatpush2.msra.mxu0 0.0
    %6457 = vmatprep.subr.mxu0 0.0
    %6458 = vmatpush2.msra.mxu0 0.0
    %6459 = vmatprep.subr.mxu0 0.0
    %6460 = vmatpush2.msra.mxu0 0.0
    %6461 = vmatprep.subr.mxu0 0.0
    %6462 = vmatpush2.msra.mxu0 0.0
    %6463 = vmatprep.mubr.f32.mxu0 0.0
    %6464 = vmatmul.mubr.f32.gmra.mxu0 %v6255
    %v6465 = vpop.f32.mrf.mxu0
    %v6466 = vadd.f32 %v5859, %v6465
    %v6467 = vpop.f32.mrf.mxu0
    %6468 = vdwg.mxu0
    %v6474 = vcombine.low %v6324, %v6326
    %v6475 = vcombine.low %v6395, %v6397
    %v6477 = vunpack.c.l.s4 1966171168
    %v6478 = vunpack.c.0.s8 %v6477
    %v6479 = vlaneseq
    %v6480 = vshrl.u32 %v6479, 7
    %v6481 = vsub.s32 %v6478, %v6480
    %v6482 = vrot.slane %v6474, %v6481
    %v6484 = vunpack.c.l.s4 1966171168
    %v6485 = vunpack.c.0.s8 %v6484
    %v6486 = vlaneseq
    %v6487 = vshrl.u32 %v6486, 7
    %v6488 = vsub.s32 %v6485, %v6487
    %v6489 = vrot.slane %v6475, %v6488
    %v6491 = vunpack.c.l.s4 1966171168
    %v6492 = vunpack.c.0.s8 %v6491
    %v6493 = vlaneseq
    %v6494 = vshrl.u32 %v6493, 7
    %v6495 = vsub.s32 %v6492, %v6494
    %v6496 = vrot.slane %v6466, %v6495
    %v6497 = vcombine.low %v6482, %v6489
    %v6499 = vunpack.c.l.s4 1966171168
    %v6500 = vunpack.c.0.s8 %v6499
    %v6501 = vlaneseq
    %v6502 = vshrl.u32 %v6501, 7
    %v6503 = vsub.s32 %v6500, %v6502
    %v6504 = vrot.slane %v6497, %v6503
    %v6506 = vunpack.c.l.s4 1966171168
    %v6507 = vunpack.c.0.s8 %v6506
    %v6508 = vlaneseq
    %v6509 = vshrl.u32 %v6508, 7
    %v6510 = vsub.s32 %v6507, %v6509
    %v6511 = vrot.slane %v6496, %v6510
    %v6512 = vcombine.low %v6504, %v6511
    %s6514 = scalar_lea.vmem [#allocation34], 1
    %6515 = vst.msk [vmem:[%s6514] ss:$2 sm:$0x1f] %vm6128, %v6512
    // Predicated region
    $region218: #{conformer_attn_pool_no_prenet.1} parent=1 // pred_check
      _
    $region219: #{conformer_attn_pool_no_prenet.1} parent=1 // pred_check_branch
      %6517 = sbr.rel (0) target = $region221
    $region220: #{conformer_attn_pool_no_prenet.1} parent=1 // pred_region
      %s6519 = ssub.s32 160, 160
      %6520 = vsyncadd [#allocation7], %s6519
      %s6522 = sshll.u32 [#allocation34], 4
      %s6523 = int_to_ptr.vmem [resolvable:$true] %s6522
      %6525 = dma.vmem_to_hbm [thread:$0]  %s6523, 160, %s73, [#allocation7]
    $region221: #{conformer_attn_pool_no_prenet.1} parent=1 // pred_fallthru
      _
    // Predicated region
    $region222: #{conformer_attn_pool_no_prenet.1} parent=1 // pred_check
      _
    $region223: #{conformer_attn_pool_no_prenet.1} parent=1 // pred_check_branch
      %6527 = sbr.rel (0) target = $region225
    $region224: #{conformer_attn_pool_no_prenet.1} parent=1 // pred_region
      %6528 = dma.done [#allocation7], 160
    $region225: #{conformer_attn_pool_no_prenet.1} parent=1 // pred_fallthru
      _
    %6529 = vsyncpa [#allocation6], 1
    %6530 = vsyncpa [#allocation9], 1
    %6531 = vsyncpa [#allocation12], 1
    %6532 = vsyncpa [#allocation15], 1
    %6533 = vsyncpa [#allocation18], 1
    %6534 = vsyncpa [#allocation21], 1
    %6535 = vsyncpa [#allocation24], 1
    %6536 = vsyncpa [#allocation27], 1
    %6537 = vsyncpa [#allocation30], 1
    %6538 = vsyncpa [#allocation33], 1
    %6539 = vsyncpa [#allocation7], 1

</llo_original>
